<compile_context>
chip_gen: v7x
topology: tpu7x:2x2x1
jax: 0.10.0
libtpu: 0.0.40
codegen_flags: <defaults>
</compile_context>

<pallas_src>
import math
import numpy as np
import jax
import jax.numpy as jnp
from jax.experimental import pallas as pl
from jax.experimental.pallas import tpu as pltpu

# ----------------------- static network geometry ----------------------------
H_IN, W_IN = 42, 38          # input spatial size dictated by N_HIDDEN_IN = 32*11*10
C_IN = 4
C1, C2 = 32, 32
H2, W2 = 11, 10              # conv2 output spatial size
HW2 = H2 * W2                # 110
K_PATCH = 6 * 6 * C_IN       # 144  (6x6x4 window feeding one 2x2 conv1-output group)
GROUP_COLS = 4 * C1          # 128  (dh, dw, conv1-out-channel)
N_HIDDEN_IN = C2 * HW2       # 3520
N_H1, N_H2 = 512, 128


# ------------------------------ fused kernel ---------------------------------
def _make_fused_kernel(n):
    def kernel(p_ref, w1_ref, s1_ref, b1_ref, w2_ref, s2_ref, b2_ref,
               wh1_ref, bh1_ref, wh2_ref, bh2_ref, wo_ref, bo_ref,
               o_ref, y2_ref, feat_ref):
        # conv1 (+ folded bn1, relu) on 2x2-output-group patches -> (HW2*n, 128)
        y1 = jnp.dot(p_ref[...], w1_ref[...], preferred_element_type=jnp.float32)
        y1 = jnp.maximum(y1 * s1_ref[...] + b1_ref[...], 0.0)
        # conv2 (+ folded bn2, relu): y1 columns are already im2col-ordered -> (HW2*n, 32)
        y2 = jnp.dot(y1.astype(jnp.bfloat16), w2_ref[...],
                     preferred_element_type=jnp.float32)
        y2 = jnp.maximum(y2 * s2_ref[...] + b2_ref[...], 0.0)
        y2_ref[...] = y2

        # flatten: rows are ordered (h2, w2, n); wh1 rows were permuted at init
        # to NHWC order, so feat[b, 32*r:32*r+32] = conv2_out[b, h2, w2, :].
        for r in range(HW2):
            feat_ref[:, 32 * r:32 * (r + 1)] = y2_ref[r * n:(r + 1) * n, :]

        feat = feat_ref[...].astype(jnp.bfloat16)
        # 3-layer MLP (bf16 operands, f32 accumulation)
        h = jnp.dot(feat, wh1_ref[...], preferred_element_type=jnp.float32) + bh1_ref[...]
        h = jnp.maximum(h, 0.0)
        h = jnp.dot(h.astype(jnp.bfloat16), wh2_ref[...],
                    preferred_element_type=jnp.float32) + bh2_ref[...]
        h = jnp.maximum(h, 0.0)
        o_ref[...] = jnp.dot(h.astype(jnp.bfloat16), wo_ref[...],
                             preferred_element_type=jnp.float32) + bo_ref[...]
    return kernel


def dqn_forward(x_nchw, params, outputs):
    n = x_nchw.shape[0]

    # ---- host-side glue: NCHW->NHWC, pad, 6x6 / stride-4 group patches ----
    x = jnp.transpose(x_nchw, (0, 2, 3, 1))                       # (n, 42, 38, 4)
    xp = jnp.pad(x, ((0, 0), (2, 2), (2, 2), (0, 0)))             # (n, 46, 42, 4)
    cols = []
    for i in range(6):
        for j in range(6):
            cols.append(xp[:, i:i + 4 * H2:4, j:j + 4 * W2:4, :])  # (n, 11, 10, 4)
    p = jnp.concatenate(cols, axis=-1)                             # (n, 11, 10, 144)
    # row order (h2, w2, n) so the in-kernel flatten copies contiguous rows
    p = jnp.transpose(p, (1, 2, 0, 3)).reshape(HW2 * n, K_PATCH).astype(jnp.bfloat16)

    return pl.pallas_call(
        _make_fused_kernel(n),
        out_shape=jax.ShapeDtypeStruct((n, outputs), jnp.float32),
        scratch_shapes=[pltpu.VMEM((HW2 * n, C2), jnp.float32),
                        pltpu.VMEM((n, N_HIDDEN_IN), jnp.float32)],
        compiler_params=pltpu.CompilerParams(vmem_limit_bytes=16 << 20),
    )(p, params["w1e"], params["scale1e"], params["shift1e"],
      params["w2m"], params["scale2"], params["shift2"],
      params["wh1"], params["bh1"], params["wh2"], params["bh2"],
      params["wo"], params["bo"])


# ------------------------------ parameter init -------------------------------
def init_params(key, outputs):
    ks = jax.random.split(key, 20)
    u = lambda k, shape, s: jax.random.uniform(k, shape, jnp.float32, -s, s)
    eps = 1e-5

    def fold_bn(conv_bias, gamma, beta, rmean, rvar):
        scale = gamma / jnp.sqrt(rvar + eps)
        shift = beta + (conv_bias - rmean) * scale
        return scale.reshape(1, -1), shift.reshape(1, -1)

    # ---------------- conv1 (PyTorch OIHW (32,4,4,4)) + bn1 ----------------
    f1 = 1.0 / math.sqrt(C_IN * 4 * 4)
    w1_oihw = u(ks[0], (C1, C_IN, 4, 4), f1)
    b1 = u(ks[1], (C1,), f1)
    g1 = 1.0 + 0.1 * jax.random.normal(ks[2], (C1,), jnp.float32)
    be1 = 0.1 * jax.random.normal(ks[3], (C1,), jnp.float32)
    rm1 = 0.1 * jax.random.normal(ks[4], (C1,), jnp.float32)
    rv1 = jax.random.uniform(ks[5], (C1,), jnp.float32, 0.5, 1.5)
    scale1, shift1 = fold_bn(b1, g1, be1, rm1, rv1)                # (1, 32)

    # expanded conv1 weight: rows = (di, dj, cin) of the 6x6x4 group window,
    # cols = (dh, dw, cout) -- exactly conv2's im2col patch ordering.
    i_r, j_r, ci_r = np.meshgrid(np.arange(6), np.arange(6), np.arange(C_IN),
                                 indexing="ij")
    i_r, j_r, ci_r = i_r.reshape(-1), j_r.reshape(-1), ci_r.reshape(-1)     # (144,)
    dh_c, dw_c, co_c = np.meshgrid(np.arange(2), np.arange(2), np.arange(C1),
                                   indexing="ij")
    dh_c, dw_c, co_c = dh_c.reshape(-1), dw_c.reshape(-1), co_c.reshape(-1)  # (128,)
    ki = i_r[:, None] - 2 * dh_c[None, :]
    kj = j_r[:, None] - 2 * dw_c[None, :]
    valid = (ki >= 0) & (ki < 4) & (kj >= 0) & (kj < 4)
    co_m = np.broadcast_to(co_c[None, :], (K_PATCH, GROUP_COLS))
    ci_m = np.broadcast_to(ci_r[:, None], (K_PATCH, GROUP_COLS))
    w1e = jnp.where(jnp.asarray(valid),
                    w1_oihw[co_m, ci_m, np.clip(ki, 0, 3), np.clip(kj, 0, 3)],
                    0.0).astype(jnp.bfloat16)                       # (144, 128)
    scale1e = jnp.tile(scale1, (1, 4))                              # (1, 128)
    shift1e = jnp.tile(shift1, (1, 4))

    # ---------------- conv2 (OIHW (32,32,2,2)) + bn2 ----------------
    f2 = 1.0 / math.sqrt(C1 * 2 * 2)
    w2_oihw = u(ks[6], (C2, C1, 2, 2), f2)
    b2 = u(ks[7], (C2,), f2)
    g2 = 1.0 + 0.1 * jax.random.normal(ks[8], (C2,), jnp.float32)
    be2 = 0.1 * jax.random.normal(ks[9], (C2,), jnp.float32)
    rm2 = 0.1 * jax.random.normal(ks[10], (C2,), jnp.float32)
    rv2 = jax.random.uniform(ks[11], (C2,), jnp.float32, 0.5, 1.5)
    scale2, shift2 = fold_bn(b2, g2, be2, rm2, rv2)                 # (1, 32)
    w2m = jnp.transpose(w2_oihw, (2, 3, 1, 0)).reshape(4 * C1, C2).astype(jnp.bfloat16)

    # ---------------- linear layers ((in, out) layout) ----------------
    fh1 = 1.0 / math.sqrt(N_HIDDEN_IN)
    wh1_nchw = u(ks[12], (N_HIDDEN_IN, N_H1), fh1)   # rows in PyTorch (c, h, w) order
    bh1 = u(ks[13], (1, N_H1), fh1)
    # permute rows so the kernel consumes the NHWC-flattened conv output directly
    hh, ww, cc = np.meshgrid(np.arange(H2), np.arange(W2), np.arange(C2),
                             indexing="ij")
    perm = (cc * HW2 + hh * W2 + ww).reshape(-1)      # NHWC index -> NCHW index
    wh1 = wh1_nchw[jnp.asarray(perm), :].astype(jnp.bfloat16)

    fh2 = 1.0 / math.sqrt(N_H1)
    wh2 = u(ks[14], (N_H1, N_H2), fh2).astype(jnp.bfloat16)
    bh2 = u(ks[15], (1, N_H2), fh2)
    fo = 1.0 / math.sqrt(N_H2)
    wo = u(ks[16], (N_H2, outputs), fo).astype(jnp.bfloat16)
    bo = u(ks[17], (1, outputs), fo)

    return dict(w1e=w1e, scale1e=scale1e, shift1e=shift1e,
                w2m=w2m, scale2=scale2, shift2=shift2,
                wh1=wh1, bh1=bh1, wh2=wh2, bh2=bh2, wo=wo, bo=bo)


# ---------------------------------- main --------------------------------------
if __name__ == "__main__":
    key = jax.random.PRNGKey(0)
    pkey, xkey = jax.random.split(key)
    outputs = 6

    params = init_params(pkey, outputs)
    # Input spatial size 42x38 is dictated by N_HIDDEN_IN = 32*11*10.
    x = jax.random.normal(xkey, (2, C_IN, H_IN, W_IN), jnp.float32)   # NCHW

    fwd = jax.jit(lambda xx, pp: dqn_forward(xx, pp, outputs))
    y = fwd(x, params)
    jax.block_until_ready(y)
    assert y.shape == (2, outputs) and y.dtype == jnp.float32
    assert bool(jnp.isfinite(y).all())
    print("KERNEL_OK")
</pallas_src>

<mosaic_0001>
module attributes {stable_mosaic.version = 11 : i64} {
  func.func @kernel(%arg0: memref<220x144xbf16, #tpu.memory_space<vmem>>, %arg1: memref<144x128xbf16, #tpu.memory_space<vmem>>, %arg2: memref<1x128xf32, #tpu.memory_space<vmem>>, %arg3: memref<1x128xf32, #tpu.memory_space<vmem>>, %arg4: memref<128x32xbf16, #tpu.memory_space<vmem>>, %arg5: memref<1x32xf32, #tpu.memory_space<vmem>>, %arg6: memref<1x32xf32, #tpu.memory_space<vmem>>, %arg7: memref<3520x512xbf16, #tpu.memory_space<vmem>>, %arg8: memref<1x512xf32, #tpu.memory_space<vmem>>, %arg9: memref<512x128xbf16, #tpu.memory_space<vmem>>, %arg10: memref<1x128xf32, #tpu.memory_space<vmem>>, %arg11: memref<128x6xbf16, #tpu.memory_space<vmem>>, %arg12: memref<1x6xf32, #tpu.memory_space<vmem>>, %arg13: memref<2x6xf32, #tpu.memory_space<vmem>>, %arg14: memref<220x32xf32, #tpu.memory_space<vmem>>, %arg15: memref<2x3520xf32, #tpu.memory_space<vmem>>) attributes {dimension_semantics = [], scalar_prefetch = 0 : i64, scratch_operands = 2 : i64, tpu.core_type = #tpu.core_type<tc>} {
    %c0 = arith.constant 0 : index
    %c0_0 = arith.constant 0 : index
    %0 = vector.load %arg0[%c0, %c0_0] : memref<220x144xbf16, #tpu.memory_space<vmem>>, vector<220x144xbf16>
    %c0_1 = arith.constant 0 : index
    %c0_2 = arith.constant 0 : index
    %1 = vector.load %arg1[%c0_1, %c0_2] : memref<144x128xbf16, #tpu.memory_space<vmem>>, vector<144x128xbf16>
    %cst = arith.constant dense<0.000000e+00> : vector<220x128xf32>
    %2 = tpu.matmul %0, %1, %cst {dimension_numbers = #tpu.dot_dimension_numbers<[1], [0], [0], [1], [0, 0, 1, 1], [], []>} : vector<220x144xbf16>, vector<144x128xbf16>, vector<220x128xf32> -> vector<220x128xf32>
    %c0_3 = arith.constant 0 : index
    %c0_4 = arith.constant 0 : index
    %3 = vector.load %arg2[%c0_3, %c0_4] : memref<1x128xf32, #tpu.memory_space<vmem>>, vector<1x128xf32>
    %4 = vector.broadcast %3 : vector<1x128xf32> to vector<220x128xf32>
    %5 = arith.mulf %2, %4 : vector<220x128xf32>
    %c0_5 = arith.constant 0 : index
    %c0_6 = arith.constant 0 : index
    %6 = vector.load %arg3[%c0_5, %c0_6] : memref<1x128xf32, #tpu.memory_space<vmem>>, vector<1x128xf32>
    %7 = vector.broadcast %6 : vector<1x128xf32> to vector<220x128xf32>
    %8 = arith.addf %5, %7 : vector<220x128xf32>
    %cst_7 = arith.constant 0.000000e+00 : f32
    %9 = vector.broadcast %cst_7 : f32 to vector<220x128xf32>
    %10 = arith.maximumf %8, %9 : vector<220x128xf32>
    %11 = arith.truncf %10 : vector<220x128xf32> to vector<220x128xbf16>
    %c0_8 = arith.constant 0 : index
    %c0_9 = arith.constant 0 : index
    %12 = vector.load %arg4[%c0_8, %c0_9] : memref<128x32xbf16, #tpu.memory_space<vmem>>, vector<128x32xbf16>
    %cst_10 = arith.constant dense<0.000000e+00> : vector<220x32xf32>
    %13 = tpu.matmul %11, %12, %cst_10 {dimension_numbers = #tpu.dot_dimension_numbers<[1], [0], [0], [1], [0, 0, 1, 1], [], []>} : vector<220x128xbf16>, vector<128x32xbf16>, vector<220x32xf32> -> vector<220x32xf32>
    %c0_11 = arith.constant 0 : index
    %c0_12 = arith.constant 0 : index
    %14 = vector.load %arg5[%c0_11, %c0_12] : memref<1x32xf32, #tpu.memory_space<vmem>>, vector<1x32xf32>
    %15 = vector.broadcast %14 : vector<1x32xf32> to vector<220x32xf32>
    %16 = arith.mulf %13, %15 : vector<220x32xf32>
    %c0_13 = arith.constant 0 : index
    %c0_14 = arith.constant 0 : index
    %17 = vector.load %arg6[%c0_13, %c0_14] : memref<1x32xf32, #tpu.memory_space<vmem>>, vector<1x32xf32>
    %18 = vector.broadcast %17 : vector<1x32xf32> to vector<220x32xf32>
    %19 = arith.addf %16, %18 : vector<220x32xf32>
    %cst_15 = arith.constant 0.000000e+00 : f32
    %20 = vector.broadcast %cst_15 : f32 to vector<220x32xf32>
    %21 = arith.maximumf %19, %20 : vector<220x32xf32>
    %c0_16 = arith.constant 0 : index
    %c0_17 = arith.constant 0 : index
    %22 = vector.load %arg14[%c0_16, %c0_17] : memref<220x32xf32, #tpu.memory_space<vmem>>, vector<220x32xf32>
    tpu.vector_store %arg14[%c0_16, %c0_17], %21 {strides = array<i32>} : memref<220x32xf32, #tpu.memory_space<vmem>>, vector<220x32xf32>,
    %c0_18 = arith.constant 0 : index
    %c0_19 = arith.constant 0 : index
    %23 = vector.load %arg14[%c0_18, %c0_19] : memref<220x32xf32, #tpu.memory_space<vmem>>, vector<2x32xf32>
    %c0_20 = arith.constant 0 : index
    %c0_21 = arith.constant 0 : index
    %24 = vector.load %arg15[%c0_20, %c0_21] : memref<2x3520xf32, #tpu.memory_space<vmem>>, vector<2x32xf32>
    tpu.vector_store %arg15[%c0_20, %c0_21], %23 {strides = array<i32>} : memref<2x3520xf32, #tpu.memory_space<vmem>>, vector<2x32xf32>,
    %c2 = arith.constant 2 : index
    %c0_22 = arith.constant 0 : index
    %25 = vector.load %arg14[%c2, %c0_22] : memref<220x32xf32, #tpu.memory_space<vmem>>, vector<2x32xf32>
    %c0_23 = arith.constant 0 : index
    %c32 = arith.constant 32 : index
    %26 = vector.load %arg15[%c0_23, %c32] : memref<2x3520xf32, #tpu.memory_space<vmem>>, vector<2x32xf32>
    tpu.vector_store %arg15[%c0_23, %c32], %25 {strides = array<i32>} : memref<2x3520xf32, #tpu.memory_space<vmem>>, vector<2x32xf32>,
    %c4 = arith.constant 4 : index
    %c0_24 = arith.constant 0 : index
    %27 = vector.load %arg14[%c4, %c0_24] : memref<220x32xf32, #tpu.memory_space<vmem>>, vector<2x32xf32>
    %c0_25 = arith.constant 0 : index
    %c64 = arith.constant 64 : index
    %28 = vector.load %arg15[%c0_25, %c64] : memref<2x3520xf32, #tpu.memory_space<vmem>>, vector<2x32xf32>
    tpu.vector_store %arg15[%c0_25, %c64], %27 {strides = array<i32>} : memref<2x3520xf32, #tpu.memory_space<vmem>>, vector<2x32xf32>,
    %c6 = arith.constant 6 : index
    %c0_26 = arith.constant 0 : index
    %29 = vector.load %arg14[%c6, %c0_26] : memref<220x32xf32, #tpu.memory_space<vmem>>, vector<2x32xf32>
    %c0_27 = arith.constant 0 : index
    %c96 = arith.constant 96 : index
    %30 = vector.load %arg15[%c0_27, %c96] : memref<2x3520xf32, #tpu.memory_space<vmem>>, vector<2x32xf32>
    tpu.vector_store %arg15[%c0_27, %c96], %29 {strides = array<i32>} : memref<2x3520xf32, #tpu.memory_space<vmem>>, vector<2x32xf32>,
    %c8 = arith.constant 8 : index
    %c0_28 = arith.constant 0 : index
    %31 = vector.load %arg14[%c8, %c0_28] : memref<220x32xf32, #tpu.memory_space<vmem>>, vector<2x32xf32>
    %c0_29 = arith.constant 0 : index
    %c128 = arith.constant 128 : index
    %32 = vector.load %arg15[%c0_29, %c128] : memref<2x3520xf32, #tpu.memory_space<vmem>>, vector<2x32xf32>
    tpu.vector_store %arg15[%c0_29, %c128], %31 {strides = array<i32>} : memref<2x3520xf32, #tpu.memory_space<vmem>>, vector<2x32xf32>,
    %c10 = arith.constant 10 : index
    %c0_30 = arith.constant 0 : index
    %33 = vector.load %arg14[%c10, %c0_30] : memref<220x32xf32, #tpu.memory_space<vmem>>, vector<2x32xf32>
    %c0_31 = arith.constant 0 : index
    %c160 = arith.constant 160 : index
    %34 = vector.load %arg15[%c0_31, %c160] : memref<2x3520xf32, #tpu.memory_space<vmem>>, vector<2x32xf32>
    tpu.vector_store %arg15[%c0_31, %c160], %33 {strides = array<i32>} : memref<2x3520xf32, #tpu.memory_space<vmem>>, vector<2x32xf32>,
    %c12 = arith.constant 12 : index
    %c0_32 = arith.constant 0 : index
    %35 = vector.load %arg14[%c12, %c0_32] : memref<220x32xf32, #tpu.memory_space<vmem>>, vector<2x32xf32>
    %c0_33 = arith.constant 0 : index
    %c192 = arith.constant 192 : index
    %36 = vector.load %arg15[%c0_33, %c192] : memref<2x3520xf32, #tpu.memory_space<vmem>>, vector<2x32xf32>
    tpu.vector_store %arg15[%c0_33, %c192], %35 {strides = array<i32>} : memref<2x3520xf32, #tpu.memory_space<vmem>>, vector<2x32xf32>,
    %c14 = arith.constant 14 : index
    %c0_34 = arith.constant 0 : index
    %37 = vector.load %arg14[%c14, %c0_34] : memref<220x32xf32, #tpu.memory_space<vmem>>, vector<2x32xf32>
    %c0_35 = arith.constant 0 : index
    %c224 = arith.constant 224 : index
    %38 = vector.load %arg15[%c0_35, %c224] : memref<2x3520xf32, #tpu.memory_space<vmem>>, vector<2x32xf32>
    tpu.vector_store %arg15[%c0_35, %c224], %37 {strides = array<i32>} : memref<2x3520xf32, #tpu.memory_space<vmem>>, vector<2x32xf32>,
    %c16 = arith.constant 16 : index
    %c0_36 = arith.constant 0 : index
    %39 = vector.load %arg14[%c16, %c0_36] : memref<220x32xf32, #tpu.memory_space<vmem>>, vector<2x32xf32>
    %c0_37 = arith.constant 0 : index
    %c256 = arith.constant 256 : index
    %40 = vector.load %arg15[%c0_37, %c256] : memref<2x3520xf32, #tpu.memory_space<vmem>>, vector<2x32xf32>
    tpu.vector_store %arg15[%c0_37, %c256], %39 {strides = array<i32>} : memref<2x3520xf32, #tpu.memory_space<vmem>>, vector<2x32xf32>,
    %c18 = arith.constant 18 : index
    %c0_38 = arith.constant 0 : index
    %41 = vector.load %arg14[%c18, %c0_38] : memref<220x32xf32, #tpu.memory_space<vmem>>, vector<2x32xf32>
    %c0_39 = arith.constant 0 : index
    %c288 = arith.constant 288 : index
    %42 = vector.load %arg15[%c0_39, %c288] : memref<2x3520xf32, #tpu.memory_space<vmem>>, vector<2x32xf32>
    tpu.vector_store %arg15[%c0_39, %c288], %41 {strides = array<i32>} : memref<2x3520xf32, #tpu.memory_space<vmem>>, vector<2x32xf32>,
    %c20 = arith.constant 20 : index
    %c0_40 = arith.constant 0 : index
    %43 = vector.load %arg14[%c20, %c0_40] : memref<220x32xf32, #tpu.memory_space<vmem>>, vector<2x32xf32>
    %c0_41 = arith.constant 0 : index
    %c320 = arith.constant 320 : index
    %44 = vector.load %arg15[%c0_41, %c320] : memref<2x3520xf32, #tpu.memory_space<vmem>>, vector<2x32xf32>
    tpu.vector_store %arg15[%c0_41, %c320], %43 {strides = array<i32>} : memref<2x3520xf32, #tpu.memory_space<vmem>>, vector<2x32xf32>,
    %c22 = arith.constant 22 : index
    %c0_42 = arith.constant 0 : index
    %45 = vector.load %arg14[%c22, %c0_42] : memref<220x32xf32, #tpu.memory_space<vmem>>, vector<2x32xf32>
    %c0_43 = arith.constant 0 : index
    %c352 = arith.constant 352 : index
    %46 = vector.load %arg15[%c0_43, %c352] : memref<2x3520xf32, #tpu.memory_space<vmem>>, vector<2x32xf32>
    tpu.vector_store %arg15[%c0_43, %c352], %45 {strides = array<i32>} : memref<2x3520xf32, #tpu.memory_space<vmem>>, vector<2x32xf32>,
    %c24 = arith.constant 24 : index
    %c0_44 = arith.constant 0 : index
    %47 = vector.load %arg14[%c24, %c0_44] : memref<220x32xf32, #tpu.memory_space<vmem>>, vector<2x32xf32>
    %c0_45 = arith.constant 0 : index
    %c384 = arith.constant 384 : index
    %48 = vector.load %arg15[%c0_45, %c384] : memref<2x3520xf32, #tpu.memory_space<vmem>>, vector<2x32xf32>
    tpu.vector_store %arg15[%c0_45, %c384], %47 {strides = array<i32>} : memref<2x3520xf32, #tpu.memory_space<vmem>>, vector<2x32xf32>,
    %c26 = arith.constant 26 : index
    %c0_46 = arith.constant 0 : index
    %49 = vector.load %arg14[%c26, %c0_46] : memref<220x32xf32, #tpu.memory_space<vmem>>, vector<2x32xf32>
    %c0_47 = arith.constant 0 : index
    %c416 = arith.constant 416 : index
    %50 = vector.load %arg15[%c0_47, %c416] : memref<2x3520xf32, #tpu.memory_space<vmem>>, vector<2x32xf32>
    tpu.vector_store %arg15[%c0_47, %c416], %49 {strides = array<i32>} : memref<2x3520xf32, #tpu.memory_space<vmem>>, vector<2x32xf32>,
    %c28 = arith.constant 28 : index
    %c0_48 = arith.constant 0 : index
    %51 = vector.load %arg14[%c28, %c0_48] : memref<220x32xf32, #tpu.memory_space<vmem>>, vector<2x32xf32>
    %c0_49 = arith.constant 0 : index
    %c448 = arith.constant 448 : index
    %52 = vector.load %arg15[%c0_49, %c448] : memref<2x3520xf32, #tpu.memory_space<vmem>>, vector<2x32xf32>
    tpu.vector_store %arg15[%c0_49, %c448], %51 {strides = array<i32>} : memref<2x3520xf32, #tpu.memory_space<vmem>>, vector<2x32xf32>,
    %c30 = arith.constant 30 : index
    %c0_50 = arith.constant 0 : index
    %53 = vector.load %arg14[%c30, %c0_50] : memref<220x32xf32, #tpu.memory_space<vmem>>, vector<2x32xf32>
    %c0_51 = arith.constant 0 : index
    %c480 = arith.constant 480 : index
    %54 = vector.load %arg15[%c0_51, %c480] : memref<2x3520xf32, #tpu.memory_space<vmem>>, vector<2x32xf32>
    tpu.vector_store %arg15[%c0_51, %c480], %53 {strides = array<i32>} : memref<2x3520xf32, #tpu.memory_space<vmem>>, vector<2x32xf32>,
    %c32_52 = arith.constant 32 : index
    %c0_53 = arith.constant 0 : index
    %55 = vector.load %arg14[%c32_52, %c0_53] : memref<220x32xf32, #tpu.memory_space<vmem>>, vector<2x32xf32>
    %c0_54 = arith.constant 0 : index
    %c512 = arith.constant 512 : index
    %56 = vector.load %arg15[%c0_54, %c512] : memref<2x3520xf32, #tpu.memory_space<vmem>>, vector<2x32xf32>
    tpu.vector_store %arg15[%c0_54, %c512], %55 {strides = array<i32>} : memref<2x3520xf32, #tpu.memory_space<vmem>>, vector<2x32xf32>,
    %c34 = arith.constant 34 : index
    %c0_55 = arith.constant 0 : index
    %57 = vector.load %arg14[%c34, %c0_55] : memref<220x32xf32, #tpu.memory_space<vmem>>, vector<2x32xf32>
    %c0_56 = arith.constant 0 : index
    %c544 = arith.constant 544 : index
    %58 = vector.load %arg15[%c0_56, %c544] : memref<2x3520xf32, #tpu.memory_space<vmem>>, vector<2x32xf32>
    tpu.vector_store %arg15[%c0_56, %c544], %57 {strides = array<i32>} : memref<2x3520xf32, #tpu.memory_space<vmem>>, vector<2x32xf32>,
    %c36 = arith.constant 36 : index
    %c0_57 = arith.constant 0 : index
    %59 = vector.load %arg14[%c36, %c0_57] : memref<220x32xf32, #tpu.memory_space<vmem>>, vector<2x32xf32>
    %c0_58 = arith.constant 0 : index
    %c576 = arith.constant 576 : index
    %60 = vector.load %arg15[%c0_58, %c576] : memref<2x3520xf32, #tpu.memory_space<vmem>>, vector<2x32xf32>
    tpu.vector_store %arg15[%c0_58, %c576], %59 {strides = array<i32>} : memref<2x3520xf32, #tpu.memory_space<vmem>>, vector<2x32xf32>,
    %c38 = arith.constant 38 : index
    %c0_59 = arith.constant 0 : index
    %61 = vector.load %arg14[%c38, %c0_59] : memref<220x32xf32, #tpu.memory_space<vmem>>, vector<2x32xf32>
    %c0_60 = arith.constant 0 : index
    %c608 = arith.constant 608 : index
    %62 = vector.load %arg15[%c0_60, %c608] : memref<2x3520xf32, #tpu.memory_space<vmem>>, vector<2x32xf32>
    tpu.vector_store %arg15[%c0_60, %c608], %61 {strides = array<i32>} : memref<2x3520xf32, #tpu.memory_space<vmem>>, vector<2x32xf32>,
    %c40 = arith.constant 40 : index
    %c0_61 = arith.constant 0 : index
    %63 = vector.load %arg14[%c40, %c0_61] : memref<220x32xf32, #tpu.memory_space<vmem>>, vector<2x32xf32>
    %c0_62 = arith.constant 0 : index
    %c640 = arith.constant 640 : index
    %64 = vector.load %arg15[%c0_62, %c640] : memref<2x3520xf32, #tpu.memory_space<vmem>>, vector<2x32xf32>
    tpu.vector_store %arg15[%c0_62, %c640], %63 {strides = array<i32>} : memref<2x3520xf32, #tpu.memory_space<vmem>>, vector<2x32xf32>,
    %c42 = arith.constant 42 : index
    %c0_63 = arith.constant 0 : index
    %65 = vector.load %arg14[%c42, %c0_63] : memref<220x32xf32, #tpu.memory_space<vmem>>, vector<2x32xf32>
    %c0_64 = arith.constant 0 : index
    %c672 = arith.constant 672 : index
    %66 = vector.load %arg15[%c0_64, %c672] : memref<2x3520xf32, #tpu.memory_space<vmem>>, vector<2x32xf32>
    tpu.vector_store %arg15[%c0_64, %c672], %65 {strides = array<i32>} : memref<2x3520xf32, #tpu.memory_space<vmem>>, vector<2x32xf32>,
    %c44 = arith.constant 44 : index
    %c0_65 = arith.constant 0 : index
    %67 = vector.load %arg14[%c44, %c0_65] : memref<220x32xf32, #tpu.memory_space<vmem>>, vector<2x32xf32>
    %c0_66 = arith.constant 0 : index
    %c704 = arith.constant 704 : index
    %68 = vector.load %arg15[%c0_66, %c704] : memref<2x3520xf32, #tpu.memory_space<vmem>>, vector<2x32xf32>
    tpu.vector_store %arg15[%c0_66, %c704], %67 {strides = array<i32>} : memref<2x3520xf32, #tpu.memory_space<vmem>>, vector<2x32xf32>,
    %c46 = arith.constant 46 : index
    %c0_67 = arith.constant 0 : index
    %69 = vector.load %arg14[%c46, %c0_67] : memref<220x32xf32, #tpu.memory_space<vmem>>, vector<2x32xf32>
    %c0_68 = arith.constant 0 : index
    %c736 = arith.constant 736 : index
    %70 = vector.load %arg15[%c0_68, %c736] : memref<2x3520xf32, #tpu.memory_space<vmem>>, vector<2x32xf32>
    tpu.vector_store %arg15[%c0_68, %c736], %69 {strides = array<i32>} : memref<2x3520xf32, #tpu.memory_space<vmem>>, vector<2x32xf32>,
    %c48 = arith.constant 48 : index
    %c0_69 = arith.constant 0 : index
    %71 = vector.load %arg14[%c48, %c0_69] : memref<220x32xf32, #tpu.memory_space<vmem>>, vector<2x32xf32>
    %c0_70 = arith.constant 0 : index
    %c768 = arith.constant 768 : index
    %72 = vector.load %arg15[%c0_70, %c768] : memref<2x3520xf32, #tpu.memory_space<vmem>>, vector<2x32xf32>
    tpu.vector_store %arg15[%c0_70, %c768], %71 {strides = array<i32>} : memref<2x3520xf32, #tpu.memory_space<vmem>>, vector<2x32xf32>,
    %c50 = arith.constant 50 : index
    %c0_71 = arith.constant 0 : index
    %73 = vector.load %arg14[%c50, %c0_71] : memref<220x32xf32, #tpu.memory_space<vmem>>, vector<2x32xf32>
    %c0_72 = arith.constant 0 : index
    %c800 = arith.constant 800 : index
    %74 = vector.load %arg15[%c0_72, %c800] : memref<2x3520xf32, #tpu.memory_space<vmem>>, vector<2x32xf32>
    tpu.vector_store %arg15[%c0_72, %c800], %73 {strides = array<i32>} : memref<2x3520xf32, #tpu.memory_space<vmem>>, vector<2x32xf32>,
    %c52 = arith.constant 52 : index
    %c0_73 = arith.constant 0 : index
    %75 = vector.load %arg14[%c52, %c0_73] : memref<220x32xf32, #tpu.memory_space<vmem>>, vector<2x32xf32>
    %c0_74 = arith.constant 0 : index
    %c832 = arith.constant 832 : index
    %76 = vector.load %arg15[%c0_74, %c832] : memref<2x3520xf32, #tpu.memory_space<vmem>>, vector<2x32xf32>
    tpu.vector_store %arg15[%c0_74, %c832], %75 {strides = array<i32>} : memref<2x3520xf32, #tpu.memory_space<vmem>>, vector<2x32xf32>,
    %c54 = arith.constant 54 : index
    %c0_75 = arith.constant 0 : index
    %77 = vector.load %arg14[%c54, %c0_75] : memref<220x32xf32, #tpu.memory_space<vmem>>, vector<2x32xf32>
    %c0_76 = arith.constant 0 : index
    %c864 = arith.constant 864 : index
    %78 = vector.load %arg15[%c0_76, %c864] : memref<2x3520xf32, #tpu.memory_space<vmem>>, vector<2x32xf32>
    tpu.vector_store %arg15[%c0_76, %c864], %77 {strides = array<i32>} : memref<2x3520xf32, #tpu.memory_space<vmem>>, vector<2x32xf32>,
    %c56 = arith.constant 56 : index
    %c0_77 = arith.constant 0 : index
    %79 = vector.load %arg14[%c56, %c0_77] : memref<220x32xf32, #tpu.memory_space<vmem>>, vector<2x32xf32>
    %c0_78 = arith.constant 0 : index
    %c896 = arith.constant 896 : index
    %80 = vector.load %arg15[%c0_78, %c896] : memref<2x3520xf32, #tpu.memory_space<vmem>>, vector<2x32xf32>
    tpu.vector_store %arg15[%c0_78, %c896], %79 {strides = array<i32>} : memref<2x3520xf32, #tpu.memory_space<vmem>>, vector<2x32xf32>,
    %c58 = arith.constant 58 : index
    %c0_79 = arith.constant 0 : index
    %81 = vector.load %arg14[%c58, %c0_79] : memref<220x32xf32, #tpu.memory_space<vmem>>, vector<2x32xf32>
    %c0_80 = arith.constant 0 : index
    %c928 = arith.constant 928 : index
    %82 = vector.load %arg15[%c0_80, %c928] : memref<2x3520xf32, #tpu.memory_space<vmem>>, vector<2x32xf32>
    tpu.vector_store %arg15[%c0_80, %c928], %81 {strides = array<i32>} : memref<2x3520xf32, #tpu.memory_space<vmem>>, vector<2x32xf32>,
    %c60 = arith.constant 60 : index
    %c0_81 = arith.constant 0 : index
    %83 = vector.load %arg14[%c60, %c0_81] : memref<220x32xf32, #tpu.memory_space<vmem>>, vector<2x32xf32>
    %c0_82 = arith.constant 0 : index
    %c960 = arith.constant 960 : index
    %84 = vector.load %arg15[%c0_82, %c960] : memref<2x3520xf32, #tpu.memory_space<vmem>>, vector<2x32xf32>
    tpu.vector_store %arg15[%c0_82, %c960], %83 {strides = array<i32>} : memref<2x3520xf32, #tpu.memory_space<vmem>>, vector<2x32xf32>,
    %c62 = arith.constant 62 : index
    %c0_83 = arith.constant 0 : index
    %85 = vector.load %arg14[%c62, %c0_83] : memref<220x32xf32, #tpu.memory_space<vmem>>, vector<2x32xf32>
    %c0_84 = arith.constant 0 : index
    %c992 = arith.constant 992 : index
    %86 = vector.load %arg15[%c0_84, %c992] : memref<2x3520xf32, #tpu.memory_space<vmem>>, vector<2x32xf32>
    tpu.vector_store %arg15[%c0_84, %c992], %85 {strides = array<i32>} : memref<2x3520xf32, #tpu.memory_space<vmem>>, vector<2x32xf32>,
    %c64_85 = arith.constant 64 : index
    %c0_86 = arith.constant 0 : index
    %87 = vector.load %arg14[%c64_85, %c0_86] : memref<220x32xf32, #tpu.memory_space<vmem>>, vector<2x32xf32>
    %c0_87 = arith.constant 0 : index
    %c1024 = arith.constant 1024 : index
    %88 = vector.load %arg15[%c0_87, %c1024] : memref<2x3520xf32, #tpu.memory_space<vmem>>, vector<2x32xf32>
    tpu.vector_store %arg15[%c0_87, %c1024], %87 {strides = array<i32>} : memref<2x3520xf32, #tpu.memory_space<vmem>>, vector<2x32xf32>,
    %c66 = arith.constant 66 : index
    %c0_88 = arith.constant 0 : index
    %89 = vector.load %arg14[%c66, %c0_88] : memref<220x32xf32, #tpu.memory_space<vmem>>, vector<2x32xf32>
    %c0_89 = arith.constant 0 : index
    %c1056 = arith.constant 1056 : index
    %90 = vector.load %arg15[%c0_89, %c1056] : memref<2x3520xf32, #tpu.memory_space<vmem>>, vector<2x32xf32>
    tpu.vector_store %arg15[%c0_89, %c1056], %89 {strides = array<i32>} : memref<2x3520xf32, #tpu.memory_space<vmem>>, vector<2x32xf32>,
    %c68 = arith.constant 68 : index
    %c0_90 = arith.constant 0 : index
    %91 = vector.load %arg14[%c68, %c0_90] : memref<220x32xf32, #tpu.memory_space<vmem>>, vector<2x32xf32>
    %c0_91 = arith.constant 0 : index
    %c1088 = arith.constant 1088 : index
    %92 = vector.load %arg15[%c0_91, %c1088] : memref<2x3520xf32, #tpu.memory_space<vmem>>, vector<2x32xf32>
    tpu.vector_store %arg15[%c0_91, %c1088], %91 {strides = array<i32>} : memref<2x3520xf32, #tpu.memory_space<vmem>>, vector<2x32xf32>,
    %c70 = arith.constant 70 : index
    %c0_92 = arith.constant 0 : index
    %93 = vector.load %arg14[%c70, %c0_92] : memref<220x32xf32, #tpu.memory_space<vmem>>, vector<2x32xf32>
    %c0_93 = arith.constant 0 : index
    %c1120 = arith.constant 1120 : index
    %94 = vector.load %arg15[%c0_93, %c1120] : memref<2x3520xf32, #tpu.memory_space<vmem>>, vector<2x32xf32>
    tpu.vector_store %arg15[%c0_93, %c1120], %93 {strides = array<i32>} : memref<2x3520xf32, #tpu.memory_space<vmem>>, vector<2x32xf32>,
    %c72 = arith.constant 72 : index
    %c0_94 = arith.constant 0 : index
    %95 = vector.load %arg14[%c72, %c0_94] : memref<220x32xf32, #tpu.memory_space<vmem>>, vector<2x32xf32>
    %c0_95 = arith.constant 0 : index
    %c1152 = arith.constant 1152 : index
    %96 = vector.load %arg15[%c0_95, %c1152] : memref<2x3520xf32, #tpu.memory_space<vmem>>, vector<2x32xf32>
    tpu.vector_store %arg15[%c0_95, %c1152], %95 {strides = array<i32>} : memref<2x3520xf32, #tpu.memory_space<vmem>>, vector<2x32xf32>,
    %c74 = arith.constant 74 : index
    %c0_96 = arith.constant 0 : index
    %97 = vector.load %arg14[%c74, %c0_96] : memref<220x32xf32, #tpu.memory_space<vmem>>, vector<2x32xf32>
    %c0_97 = arith.constant 0 : index
    %c1184 = arith.constant 1184 : index
    %98 = vector.load %arg15[%c0_97, %c1184] : memref<2x3520xf32, #tpu.memory_space<vmem>>, vector<2x32xf32>
    tpu.vector_store %arg15[%c0_97, %c1184], %97 {strides = array<i32>} : memref<2x3520xf32, #tpu.memory_space<vmem>>, vector<2x32xf32>,
    %c76 = arith.constant 76 : index
    %c0_98 = arith.constant 0 : index
    %99 = vector.load %arg14[%c76, %c0_98] : memref<220x32xf32, #tpu.memory_space<vmem>>, vector<2x32xf32>
    %c0_99 = arith.constant 0 : index
    %c1216 = arith.constant 1216 : index
    %100 = vector.load %arg15[%c0_99, %c1216] : memref<2x3520xf32, #tpu.memory_space<vmem>>, vector<2x32xf32>
    tpu.vector_store %arg15[%c0_99, %c1216], %99 {strides = array<i32>} : memref<2x3520xf32, #tpu.memory_space<vmem>>, vector<2x32xf32>,
    %c78 = arith.constant 78 : index
    %c0_100 = arith.constant 0 : index
    %101 = vector.load %arg14[%c78, %c0_100] : memref<220x32xf32, #tpu.memory_space<vmem>>, vector<2x32xf32>
    %c0_101 = arith.constant 0 : index
    %c1248 = arith.constant 1248 : index
    %102 = vector.load %arg15[%c0_101, %c1248] : memref<2x3520xf32, #tpu.memory_space<vmem>>, vector<2x32xf32>
    tpu.vector_store %arg15[%c0_101, %c1248], %101 {strides = array<i32>} : memref<2x3520xf32, #tpu.memory_space<vmem>>, vector<2x32xf32>,
    %c80 = arith.constant 80 : index
    %c0_102 = arith.constant 0 : index
    %103 = vector.load %arg14[%c80, %c0_102] : memref<220x32xf32, #tpu.memory_space<vmem>>, vector<2x32xf32>
    %c0_103 = arith.constant 0 : index
    %c1280 = arith.constant 1280 : index
    %104 = vector.load %arg15[%c0_103, %c1280] : memref<2x3520xf32, #tpu.memory_space<vmem>>, vector<2x32xf32>
    tpu.vector_store %arg15[%c0_103, %c1280], %103 {strides = array<i32>} : memref<2x3520xf32, #tpu.memory_space<vmem>>, vector<2x32xf32>,
    %c82 = arith.constant 82 : index
    %c0_104 = arith.constant 0 : index
    %105 = vector.load %arg14[%c82, %c0_104] : memref<220x32xf32, #tpu.memory_space<vmem>>, vector<2x32xf32>
    %c0_105 = arith.constant 0 : index
    %c1312 = arith.constant 1312 : index
    %106 = vector.load %arg15[%c0_105, %c1312] : memref<2x3520xf32, #tpu.memory_space<vmem>>, vector<2x32xf32>
    tpu.vector_store %arg15[%c0_105, %c1312], %105 {strides = array<i32>} : memref<2x3520xf32, #tpu.memory_space<vmem>>, vector<2x32xf32>,
    %c84 = arith.constant 84 : index
    %c0_106 = arith.constant 0 : index
    %107 = vector.load %arg14[%c84, %c0_106] : memref<220x32xf32, #tpu.memory_space<vmem>>, vector<2x32xf32>
    %c0_107 = arith.constant 0 : index
    %c1344 = arith.constant 1344 : index
    %108 = vector.load %arg15[%c0_107, %c1344] : memref<2x3520xf32, #tpu.memory_space<vmem>>, vector<2x32xf32>
    tpu.vector_store %arg15[%c0_107, %c1344], %107 {strides = array<i32>} : memref<2x3520xf32, #tpu.memory_space<vmem>>, vector<2x32xf32>,
    %c86 = arith.constant 86 : index
    %c0_108 = arith.constant 0 : index
    %109 = vector.load %arg14[%c86, %c0_108] : memref<220x32xf32, #tpu.memory_space<vmem>>, vector<2x32xf32>
    %c0_109 = arith.constant 0 : index
    %c1376 = arith.constant 1376 : index
    %110 = vector.load %arg15[%c0_109, %c1376] : memref<2x3520xf32, #tpu.memory_space<vmem>>, vector<2x32xf32>
    tpu.vector_store %arg15[%c0_109, %c1376], %109 {strides = array<i32>} : memref<2x3520xf32, #tpu.memory_space<vmem>>, vector<2x32xf32>,
    %c88 = arith.constant 88 : index
    %c0_110 = arith.constant 0 : index
    %111 = vector.load %arg14[%c88, %c0_110] : memref<220x32xf32, #tpu.memory_space<vmem>>, vector<2x32xf32>
    %c0_111 = arith.constant 0 : index
    %c1408 = arith.constant 1408 : index
    %112 = vector.load %arg15[%c0_111, %c1408] : memref<2x3520xf32, #tpu.memory_space<vmem>>, vector<2x32xf32>
    tpu.vector_store %arg15[%c0_111, %c1408], %111 {strides = array<i32>} : memref<2x3520xf32, #tpu.memory_space<vmem>>, vector<2x32xf32>,
    %c90 = arith.constant 90 : index
    %c0_112 = arith.constant 0 : index
    %113 = vector.load %arg14[%c90, %c0_112] : memref<220x32xf32, #tpu.memory_space<vmem>>, vector<2x32xf32>
    %c0_113 = arith.constant 0 : index
    %c1440 = arith.constant 1440 : index
    %114 = vector.load %arg15[%c0_113, %c1440] : memref<2x3520xf32, #tpu.memory_space<vmem>>, vector<2x32xf32>
    tpu.vector_store %arg15[%c0_113, %c1440], %113 {strides = array<i32>} : memref<2x3520xf32, #tpu.memory_space<vmem>>, vector<2x32xf32>,
    %c92 = arith.constant 92 : index
    %c0_114 = arith.constant 0 : index
    %115 = vector.load %arg14[%c92, %c0_114] : memref<220x32xf32, #tpu.memory_space<vmem>>, vector<2x32xf32>
    %c0_115 = arith.constant 0 : index
    %c1472 = arith.constant 1472 : index
    %116 = vector.load %arg15[%c0_115, %c1472] : memref<2x3520xf32, #tpu.memory_space<vmem>>, vector<2x32xf32>
    tpu.vector_store %arg15[%c0_115, %c1472], %115 {strides = array<i32>} : memref<2x3520xf32, #tpu.memory_space<vmem>>, vector<2x32xf32>,
    %c94 = arith.constant 94 : index
    %c0_116 = arith.constant 0 : index
    %117 = vector.load %arg14[%c94, %c0_116] : memref<220x32xf32, #tpu.memory_space<vmem>>, vector<2x32xf32>
    %c0_117 = arith.constant 0 : index
    %c1504 = arith.constant 1504 : index
    %118 = vector.load %arg15[%c0_117, %c1504] : memref<2x3520xf32, #tpu.memory_space<vmem>>, vector<2x32xf32>
    tpu.vector_store %arg15[%c0_117, %c1504], %117 {strides = array<i32>} : memref<2x3520xf32, #tpu.memory_space<vmem>>, vector<2x32xf32>,
    %c96_118 = arith.constant 96 : index
    %c0_119 = arith.constant 0 : index
    %119 = vector.load %arg14[%c96_118, %c0_119] : memref<220x32xf32, #tpu.memory_space<vmem>>, vector<2x32xf32>
    %c0_120 = arith.constant 0 : index
    %c1536 = arith.constant 1536 : index
    %120 = vector.load %arg15[%c0_120, %c1536] : memref<2x3520xf32, #tpu.memory_space<vmem>>, vector<2x32xf32>
    tpu.vector_store %arg15[%c0_120, %c1536], %119 {strides = array<i32>} : memref<2x3520xf32, #tpu.memory_space<vmem>>, vector<2x32xf32>,
    %c98 = arith.constant 98 : index
    %c0_121 = arith.constant 0 : index
    %121 = vector.load %arg14[%c98, %c0_121] : memref<220x32xf32, #tpu.memory_space<vmem>>, vector<2x32xf32>
    %c0_122 = arith.constant 0 : index
    %c1568 = arith.constant 1568 : index
    %122 = vector.load %arg15[%c0_122, %c1568] : memref<2x3520xf32, #tpu.memory_space<vmem>>, vector<2x32xf32>
    tpu.vector_store %arg15[%c0_122, %c1568], %121 {strides = array<i32>} : memref<2x3520xf32, #tpu.memory_space<vmem>>, vector<2x32xf32>,
    %c100 = arith.constant 100 : index
    %c0_123 = arith.constant 0 : index
    %123 = vector.load %arg14[%c100, %c0_123] : memref<220x32xf32, #tpu.memory_space<vmem>>, vector<2x32xf32>
    %c0_124 = arith.constant 0 : index
    %c1600 = arith.constant 1600 : index
    %124 = vector.load %arg15[%c0_124, %c1600] : memref<2x3520xf32, #tpu.memory_space<vmem>>, vector<2x32xf32>
    tpu.vector_store %arg15[%c0_124, %c1600], %123 {strides = array<i32>} : memref<2x3520xf32, #tpu.memory_space<vmem>>, vector<2x32xf32>,
    %c102 = arith.constant 102 : index
    %c0_125 = arith.constant 0 : index
    %125 = vector.load %arg14[%c102, %c0_125] : memref<220x32xf32, #tpu.memory_space<vmem>>, vector<2x32xf32>
    %c0_126 = arith.constant 0 : index
    %c1632 = arith.constant 1632 : index
    %126 = vector.load %arg15[%c0_126, %c1632] : memref<2x3520xf32, #tpu.memory_space<vmem>>, vector<2x32xf32>
    tpu.vector_store %arg15[%c0_126, %c1632], %125 {strides = array<i32>} : memref<2x3520xf32, #tpu.memory_space<vmem>>, vector<2x32xf32>,
    %c104 = arith.constant 104 : index
    %c0_127 = arith.constant 0 : index
    %127 = vector.load %arg14[%c104, %c0_127] : memref<220x32xf32, #tpu.memory_space<vmem>>, vector<2x32xf32>
    %c0_128 = arith.constant 0 : index
    %c1664 = arith.constant 1664 : index
    %128 = vector.load %arg15[%c0_128, %c1664] : memref<2x3520xf32, #tpu.memory_space<vmem>>, vector<2x32xf32>
    tpu.vector_store %arg15[%c0_128, %c1664], %127 {strides = array<i32>} : memref<2x3520xf32, #tpu.memory_space<vmem>>, vector<2x32xf32>,
    %c106 = arith.constant 106 : index
    %c0_129 = arith.constant 0 : index
    %129 = vector.load %arg14[%c106, %c0_129] : memref<220x32xf32, #tpu.memory_space<vmem>>, vector<2x32xf32>
    %c0_130 = arith.constant 0 : index
    %c1696 = arith.constant 1696 : index
    %130 = vector.load %arg15[%c0_130, %c1696] : memref<2x3520xf32, #tpu.memory_space<vmem>>, vector<2x32xf32>
    tpu.vector_store %arg15[%c0_130, %c1696], %129 {strides = array<i32>} : memref<2x3520xf32, #tpu.memory_space<vmem>>, vector<2x32xf32>,
    %c108 = arith.constant 108 : index
    %c0_131 = arith.constant 0 : index
    %131 = vector.load %arg14[%c108, %c0_131] : memref<220x32xf32, #tpu.memory_space<vmem>>, vector<2x32xf32>
    %c0_132 = arith.constant 0 : index
    %c1728 = arith.constant 1728 : index
    %132 = vector.load %arg15[%c0_132, %c1728] : memref<2x3520xf32, #tpu.memory_space<vmem>>, vector<2x32xf32>
    tpu.vector_store %arg15[%c0_132, %c1728], %131 {strides = array<i32>} : memref<2x3520xf32, #tpu.memory_space<vmem>>, vector<2x32xf32>,
    %c110 = arith.constant 110 : index
    %c0_133 = arith.constant 0 : index
    %133 = vector.load %arg14[%c110, %c0_133] : memref<220x32xf32, #tpu.memory_space<vmem>>, vector<2x32xf32>
    %c0_134 = arith.constant 0 : index
    %c1760 = arith.constant 1760 : index
    %134 = vector.load %arg15[%c0_134, %c1760] : memref<2x3520xf32, #tpu.memory_space<vmem>>, vector<2x32xf32>
    tpu.vector_store %arg15[%c0_134, %c1760], %133 {strides = array<i32>} : memref<2x3520xf32, #tpu.memory_space<vmem>>, vector<2x32xf32>,
    %c112 = arith.constant 112 : index
    %c0_135 = arith.constant 0 : index
    %135 = vector.load %arg14[%c112, %c0_135] : memref<220x32xf32, #tpu.memory_space<vmem>>, vector<2x32xf32>
    %c0_136 = arith.constant 0 : index
    %c1792 = arith.constant 1792 : index
    %136 = vector.load %arg15[%c0_136, %c1792] : memref<2x3520xf32, #tpu.memory_space<vmem>>, vector<2x32xf32>
    tpu.vector_store %arg15[%c0_136, %c1792], %135 {strides = array<i32>} : memref<2x3520xf32, #tpu.memory_space<vmem>>, vector<2x32xf32>,
    %c114 = arith.constant 114 : index
    %c0_137 = arith.constant 0 : index
    %137 = vector.load %arg14[%c114, %c0_137] : memref<220x32xf32, #tpu.memory_space<vmem>>, vector<2x32xf32>
    %c0_138 = arith.constant 0 : index
    %c1824 = arith.constant 1824 : index
    %138 = vector.load %arg15[%c0_138, %c1824] : memref<2x3520xf32, #tpu.memory_space<vmem>>, vector<2x32xf32>
    tpu.vector_store %arg15[%c0_138, %c1824], %137 {strides = array<i32>} : memref<2x3520xf32, #tpu.memory_space<vmem>>, vector<2x32xf32>,
    %c116 = arith.constant 116 : index
    %c0_139 = arith.constant 0 : index
    %139 = vector.load %arg14[%c116, %c0_139] : memref<220x32xf32, #tpu.memory_space<vmem>>, vector<2x32xf32>
    %c0_140 = arith.constant 0 : index
    %c1856 = arith.constant 1856 : index
    %140 = vector.load %arg15[%c0_140, %c1856] : memref<2x3520xf32, #tpu.memory_space<vmem>>, vector<2x32xf32>
    tpu.vector_store %arg15[%c0_140, %c1856], %139 {strides = array<i32>} : memref<2x3520xf32, #tpu.memory_space<vmem>>, vector<2x32xf32>,
    %c118 = arith.constant 118 : index
    %c0_141 = arith.constant 0 : index
    %141 = vector.load %arg14[%c118, %c0_141] : memref<220x32xf32, #tpu.memory_space<vmem>>, vector<2x32xf32>
    %c0_142 = arith.constant 0 : index
    %c1888 = arith.constant 1888 : index
    %142 = vector.load %arg15[%c0_142, %c1888] : memref<2x3520xf32, #tpu.memory_space<vmem>>, vector<2x32xf32>
    tpu.vector_store %arg15[%c0_142, %c1888], %141 {strides = array<i32>} : memref<2x3520xf32, #tpu.memory_space<vmem>>, vector<2x32xf32>,
    %c120 = arith.constant 120 : index
    %c0_143 = arith.constant 0 : index
    %143 = vector.load %arg14[%c120, %c0_143] : memref<220x32xf32, #tpu.memory_space<vmem>>, vector<2x32xf32>
    %c0_144 = arith.constant 0 : index
    %c1920 = arith.constant 1920 : index
    %144 = vector.load %arg15[%c0_144, %c1920] : memref<2x3520xf32, #tpu.memory_space<vmem>>, vector<2x32xf32>
    tpu.vector_store %arg15[%c0_144, %c1920], %143 {strides = array<i32>} : memref<2x3520xf32, #tpu.memory_space<vmem>>, vector<2x32xf32>,
    %c122 = arith.constant 122 : index
    %c0_145 = arith.constant 0 : index
    %145 = vector.load %arg14[%c122, %c0_145] : memref<220x32xf32, #tpu.memory_space<vmem>>, vector<2x32xf32>
    %c0_146 = arith.constant 0 : index
    %c1952 = arith.constant 1952 : index
    %146 = vector.load %arg15[%c0_146, %c1952] : memref<2x3520xf32, #tpu.memory_space<vmem>>, vector<2x32xf32>
    tpu.vector_store %arg15[%c0_146, %c1952], %145 {strides = array<i32>} : memref<2x3520xf32, #tpu.memory_space<vmem>>, vector<2x32xf32>,
    %c124 = arith.constant 124 : index
    %c0_147 = arith.constant 0 : index
    %147 = vector.load %arg14[%c124, %c0_147] : memref<220x32xf32, #tpu.memory_space<vmem>>, vector<2x32xf32>
    %c0_148 = arith.constant 0 : index
    %c1984 = arith.constant 1984 : index
    %148 = vector.load %arg15[%c0_148, %c1984] : memref<2x3520xf32, #tpu.memory_space<vmem>>, vector<2x32xf32>
    tpu.vector_store %arg15[%c0_148, %c1984], %147 {strides = array<i32>} : memref<2x3520xf32, #tpu.memory_space<vmem>>, vector<2x32xf32>,
    %c126 = arith.constant 126 : index
    %c0_149 = arith.constant 0 : index
    %149 = vector.load %arg14[%c126, %c0_149] : memref<220x32xf32, #tpu.memory_space<vmem>>, vector<2x32xf32>
    %c0_150 = arith.constant 0 : index
    %c2016 = arith.constant 2016 : index
    %150 = vector.load %arg15[%c0_150, %c2016] : memref<2x3520xf32, #tpu.memory_space<vmem>>, vector<2x32xf32>
    tpu.vector_store %arg15[%c0_150, %c2016], %149 {strides = array<i32>} : memref<2x3520xf32, #tpu.memory_space<vmem>>, vector<2x32xf32>,
    %c128_151 = arith.constant 128 : index
    %c0_152 = arith.constant 0 : index
    %151 = vector.load %arg14[%c128_151, %c0_152] : memref<220x32xf32, #tpu.memory_space<vmem>>, vector<2x32xf32>
    %c0_153 = arith.constant 0 : index
    %c2048 = arith.constant 2048 : index
    %152 = vector.load %arg15[%c0_153, %c2048] : memref<2x3520xf32, #tpu.memory_space<vmem>>, vector<2x32xf32>
    tpu.vector_store %arg15[%c0_153, %c2048], %151 {strides = array<i32>} : memref<2x3520xf32, #tpu.memory_space<vmem>>, vector<2x32xf32>,
    %c130 = arith.constant 130 : index
    %c0_154 = arith.constant 0 : index
    %153 = vector.load %arg14[%c130, %c0_154] : memref<220x32xf32, #tpu.memory_space<vmem>>, vector<2x32xf32>
    %c0_155 = arith.constant 0 : index
    %c2080 = arith.constant 2080 : index
    %154 = vector.load %arg15[%c0_155, %c2080] : memref<2x3520xf32, #tpu.memory_space<vmem>>, vector<2x32xf32>
    tpu.vector_store %arg15[%c0_155, %c2080], %153 {strides = array<i32>} : memref<2x3520xf32, #tpu.memory_space<vmem>>, vector<2x32xf32>,
    %c132 = arith.constant 132 : index
    %c0_156 = arith.constant 0 : index
    %155 = vector.load %arg14[%c132, %c0_156] : memref<220x32xf32, #tpu.memory_space<vmem>>, vector<2x32xf32>
    %c0_157 = arith.constant 0 : index
    %c2112 = arith.constant 2112 : index
    %156 = vector.load %arg15[%c0_157, %c2112] : memref<2x3520xf32, #tpu.memory_space<vmem>>, vector<2x32xf32>
    tpu.vector_store %arg15[%c0_157, %c2112], %155 {strides = array<i32>} : memref<2x3520xf32, #tpu.memory_space<vmem>>, vector<2x32xf32>,
    %c134 = arith.constant 134 : index
    %c0_158 = arith.constant 0 : index
    %157 = vector.load %arg14[%c134, %c0_158] : memref<220x32xf32, #tpu.memory_space<vmem>>, vector<2x32xf32>
    %c0_159 = arith.constant 0 : index
    %c2144 = arith.constant 2144 : index
    %158 = vector.load %arg15[%c0_159, %c2144] : memref<2x3520xf32, #tpu.memory_space<vmem>>, vector<2x32xf32>
    tpu.vector_store %arg15[%c0_159, %c2144], %157 {strides = array<i32>} : memref<2x3520xf32, #tpu.memory_space<vmem>>, vector<2x32xf32>,
    %c136 = arith.constant 136 : index
    %c0_160 = arith.constant 0 : index
    %159 = vector.load %arg14[%c136, %c0_160] : memref<220x32xf32, #tpu.memory_space<vmem>>, vector<2x32xf32>
    %c0_161 = arith.constant 0 : index
    %c2176 = arith.constant 2176 : index
    %160 = vector.load %arg15[%c0_161, %c2176] : memref<2x3520xf32, #tpu.memory_space<vmem>>, vector<2x32xf32>
    tpu.vector_store %arg15[%c0_161, %c2176], %159 {strides = array<i32>} : memref<2x3520xf32, #tpu.memory_space<vmem>>, vector<2x32xf32>,
    %c138 = arith.constant 138 : index
    %c0_162 = arith.constant 0 : index
    %161 = vector.load %arg14[%c138, %c0_162] : memref<220x32xf32, #tpu.memory_space<vmem>>, vector<2x32xf32>
    %c0_163 = arith.constant 0 : index
    %c2208 = arith.constant 2208 : index
    %162 = vector.load %arg15[%c0_163, %c2208] : memref<2x3520xf32, #tpu.memory_space<vmem>>, vector<2x32xf32>
    tpu.vector_store %arg15[%c0_163, %c2208], %161 {strides = array<i32>} : memref<2x3520xf32, #tpu.memory_space<vmem>>, vector<2x32xf32>,
    %c140 = arith.constant 140 : index
    %c0_164 = arith.constant 0 : index
    %163 = vector.load %arg14[%c140, %c0_164] : memref<220x32xf32, #tpu.memory_space<vmem>>, vector<2x32xf32>
    %c0_165 = arith.constant 0 : index
    %c2240 = arith.constant 2240 : index
    %164 = vector.load %arg15[%c0_165, %c2240] : memref<2x3520xf32, #tpu.memory_space<vmem>>, vector<2x32xf32>
    tpu.vector_store %arg15[%c0_165, %c2240], %163 {strides = array<i32>} : memref<2x3520xf32, #tpu.memory_space<vmem>>, vector<2x32xf32>,
    %c142 = arith.constant 142 : index
    %c0_166 = arith.constant 0 : index
    %165 = vector.load %arg14[%c142, %c0_166] : memref<220x32xf32, #tpu.memory_space<vmem>>, vector<2x32xf32>
    %c0_167 = arith.constant 0 : index
    %c2272 = arith.constant 2272 : index
    %166 = vector.load %arg15[%c0_167, %c2272] : memref<2x3520xf32, #tpu.memory_space<vmem>>, vector<2x32xf32>
    tpu.vector_store %arg15[%c0_167, %c2272], %165 {strides = array<i32>} : memref<2x3520xf32, #tpu.memory_space<vmem>>, vector<2x32xf32>,
    %c144 = arith.constant 144 : index
    %c0_168 = arith.constant 0 : index
    %167 = vector.load %arg14[%c144, %c0_168] : memref<220x32xf32, #tpu.memory_space<vmem>>, vector<2x32xf32>
    %c0_169 = arith.constant 0 : index
    %c2304 = arith.constant 2304 : index
    %168 = vector.load %arg15[%c0_169, %c2304] : memref<2x3520xf32, #tpu.memory_space<vmem>>, vector<2x32xf32>
    tpu.vector_store %arg15[%c0_169, %c2304], %167 {strides = array<i32>} : memref<2x3520xf32, #tpu.memory_space<vmem>>, vector<2x32xf32>,
    %c146 = arith.constant 146 : index
    %c0_170 = arith.constant 0 : index
    %169 = vector.load %arg14[%c146, %c0_170] : memref<220x32xf32, #tpu.memory_space<vmem>>, vector<2x32xf32>
    %c0_171 = arith.constant 0 : index
    %c2336 = arith.constant 2336 : index
    %170 = vector.load %arg15[%c0_171, %c2336] : memref<2x3520xf32, #tpu.memory_space<vmem>>, vector<2x32xf32>
    tpu.vector_store %arg15[%c0_171, %c2336], %169 {strides = array<i32>} : memref<2x3520xf32, #tpu.memory_space<vmem>>, vector<2x32xf32>,
    %c148 = arith.constant 148 : index
    %c0_172 = arith.constant 0 : index
    %171 = vector.load %arg14[%c148, %c0_172] : memref<220x32xf32, #tpu.memory_space<vmem>>, vector<2x32xf32>
    %c0_173 = arith.constant 0 : index
    %c2368 = arith.constant 2368 : index
    %172 = vector.load %arg15[%c0_173, %c2368] : memref<2x3520xf32, #tpu.memory_space<vmem>>, vector<2x32xf32>
    tpu.vector_store %arg15[%c0_173, %c2368], %171 {strides = array<i32>} : memref<2x3520xf32, #tpu.memory_space<vmem>>, vector<2x32xf32>,
    %c150 = arith.constant 150 : index
    %c0_174 = arith.constant 0 : index
    %173 = vector.load %arg14[%c150, %c0_174] : memref<220x32xf32, #tpu.memory_space<vmem>>, vector<2x32xf32>
    %c0_175 = arith.constant 0 : index
    %c2400 = arith.constant 2400 : index
    %174 = vector.load %arg15[%c0_175, %c2400] : memref<2x3520xf32, #tpu.memory_space<vmem>>, vector<2x32xf32>
    tpu.vector_store %arg15[%c0_175, %c2400], %173 {strides = array<i32>} : memref<2x3520xf32, #tpu.memory_space<vmem>>, vector<2x32xf32>,
    %c152 = arith.constant 152 : index
    %c0_176 = arith.constant 0 : index
    %175 = vector.load %arg14[%c152, %c0_176] : memref<220x32xf32, #tpu.memory_space<vmem>>, vector<2x32xf32>
    %c0_177 = arith.constant 0 : index
    %c2432 = arith.constant 2432 : index
    %176 = vector.load %arg15[%c0_177, %c2432] : memref<2x3520xf32, #tpu.memory_space<vmem>>, vector<2x32xf32>
    tpu.vector_store %arg15[%c0_177, %c2432], %175 {strides = array<i32>} : memref<2x3520xf32, #tpu.memory_space<vmem>>, vector<2x32xf32>,
    %c154 = arith.constant 154 : index
    %c0_178 = arith.constant 0 : index
    %177 = vector.load %arg14[%c154, %c0_178] : memref<220x32xf32, #tpu.memory_space<vmem>>, vector<2x32xf32>
    %c0_179 = arith.constant 0 : index
    %c2464 = arith.constant 2464 : index
    %178 = vector.load %arg15[%c0_179, %c2464] : memref<2x3520xf32, #tpu.memory_space<vmem>>, vector<2x32xf32>
    tpu.vector_store %arg15[%c0_179, %c2464], %177 {strides = array<i32>} : memref<2x3520xf32, #tpu.memory_space<vmem>>, vector<2x32xf32>,
    %c156 = arith.constant 156 : index
    %c0_180 = arith.constant 0 : index
    %179 = vector.load %arg14[%c156, %c0_180] : memref<220x32xf32, #tpu.memory_space<vmem>>, vector<2x32xf32>
    %c0_181 = arith.constant 0 : index
    %c2496 = arith.constant 2496 : index
    %180 = vector.load %arg15[%c0_181, %c2496] : memref<2x3520xf32, #tpu.memory_space<vmem>>, vector<2x32xf32>
    tpu.vector_store %arg15[%c0_181, %c2496], %179 {strides = array<i32>} : memref<2x3520xf32, #tpu.memory_space<vmem>>, vector<2x32xf32>,
    %c158 = arith.constant 158 : index
    %c0_182 = arith.constant 0 : index
    %181 = vector.load %arg14[%c158, %c0_182] : memref<220x32xf32, #tpu.memory_space<vmem>>, vector<2x32xf32>
    %c0_183 = arith.constant 0 : index
    %c2528 = arith.constant 2528 : index
    %182 = vector.load %arg15[%c0_183, %c2528] : memref<2x3520xf32, #tpu.memory_space<vmem>>, vector<2x32xf32>
    tpu.vector_store %arg15[%c0_183, %c2528], %181 {strides = array<i32>} : memref<2x3520xf32, #tpu.memory_space<vmem>>, vector<2x32xf32>,
    %c160_184 = arith.constant 160 : index
    %c0_185 = arith.constant 0 : index
    %183 = vector.load %arg14[%c160_184, %c0_185] : memref<220x32xf32, #tpu.memory_space<vmem>>, vector<2x32xf32>
    %c0_186 = arith.constant 0 : index
    %c2560 = arith.constant 2560 : index
    %184 = vector.load %arg15[%c0_186, %c2560] : memref<2x3520xf32, #tpu.memory_space<vmem>>, vector<2x32xf32>
    tpu.vector_store %arg15[%c0_186, %c2560], %183 {strides = array<i32>} : memref<2x3520xf32, #tpu.memory_space<vmem>>, vector<2x32xf32>,
    %c162 = arith.constant 162 : index
    %c0_187 = arith.constant 0 : index
    %185 = vector.load %arg14[%c162, %c0_187] : memref<220x32xf32, #tpu.memory_space<vmem>>, vector<2x32xf32>
    %c0_188 = arith.constant 0 : index
    %c2592 = arith.constant 2592 : index
    %186 = vector.load %arg15[%c0_188, %c2592] : memref<2x3520xf32, #tpu.memory_space<vmem>>, vector<2x32xf32>
    tpu.vector_store %arg15[%c0_188, %c2592], %185 {strides = array<i32>} : memref<2x3520xf32, #tpu.memory_space<vmem>>, vector<2x32xf32>,
    %c164 = arith.constant 164 : index
    %c0_189 = arith.constant 0 : index
    %187 = vector.load %arg14[%c164, %c0_189] : memref<220x32xf32, #tpu.memory_space<vmem>>, vector<2x32xf32>
    %c0_190 = arith.constant 0 : index
    %c2624 = arith.constant 2624 : index
    %188 = vector.load %arg15[%c0_190, %c2624] : memref<2x3520xf32, #tpu.memory_space<vmem>>, vector<2x32xf32>
    tpu.vector_store %arg15[%c0_190, %c2624], %187 {strides = array<i32>} : memref<2x3520xf32, #tpu.memory_space<vmem>>, vector<2x32xf32>,
    %c166 = arith.constant 166 : index
    %c0_191 = arith.constant 0 : index
    %189 = vector.load %arg14[%c166, %c0_191] : memref<220x32xf32, #tpu.memory_space<vmem>>, vector<2x32xf32>
    %c0_192 = arith.constant 0 : index
    %c2656 = arith.constant 2656 : index
    %190 = vector.load %arg15[%c0_192, %c2656] : memref<2x3520xf32, #tpu.memory_space<vmem>>, vector<2x32xf32>
    tpu.vector_store %arg15[%c0_192, %c2656], %189 {strides = array<i32>} : memref<2x3520xf32, #tpu.memory_space<vmem>>, vector<2x32xf32>,
    %c168 = arith.constant 168 : index
    %c0_193 = arith.constant 0 : index
    %191 = vector.load %arg14[%c168, %c0_193] : memref<220x32xf32, #tpu.memory_space<vmem>>, vector<2x32xf32>
    %c0_194 = arith.constant 0 : index
    %c2688 = arith.constant 2688 : index
    %192 = vector.load %arg15[%c0_194, %c2688] : memref<2x3520xf32, #tpu.memory_space<vmem>>, vector<2x32xf32>
    tpu.vector_store %arg15[%c0_194, %c2688], %191 {strides = array<i32>} : memref<2x3520xf32, #tpu.memory_space<vmem>>, vector<2x32xf32>,
    %c170 = arith.constant 170 : index
    %c0_195 = arith.constant 0 : index
    %193 = vector.load %arg14[%c170, %c0_195] : memref<220x32xf32, #tpu.memory_space<vmem>>, vector<2x32xf32>
    %c0_196 = arith.constant 0 : index
    %c2720 = arith.constant 2720 : index
    %194 = vector.load %arg15[%c0_196, %c2720] : memref<2x3520xf32, #tpu.memory_space<vmem>>, vector<2x32xf32>
    tpu.vector_store %arg15[%c0_196, %c2720], %193 {strides = array<i32>} : memref<2x3520xf32, #tpu.memory_space<vmem>>, vector<2x32xf32>,
    %c172 = arith.constant 172 : index
    %c0_197 = arith.constant 0 : index
    %195 = vector.load %arg14[%c172, %c0_197] : memref<220x32xf32, #tpu.memory_space<vmem>>, vector<2x32xf32>
    %c0_198 = arith.constant 0 : index
    %c2752 = arith.constant 2752 : index
    %196 = vector.load %arg15[%c0_198, %c2752] : memref<2x3520xf32, #tpu.memory_space<vmem>>, vector<2x32xf32>
    tpu.vector_store %arg15[%c0_198, %c2752], %195 {strides = array<i32>} : memref<2x3520xf32, #tpu.memory_space<vmem>>, vector<2x32xf32>,
    %c174 = arith.constant 174 : index
    %c0_199 = arith.constant 0 : index
    %197 = vector.load %arg14[%c174, %c0_199] : memref<220x32xf32, #tpu.memory_space<vmem>>, vector<2x32xf32>
    %c0_200 = arith.constant 0 : index
    %c2784 = arith.constant 2784 : index
    %198 = vector.load %arg15[%c0_200, %c2784] : memref<2x3520xf32, #tpu.memory_space<vmem>>, vector<2x32xf32>
    tpu.vector_store %arg15[%c0_200, %c2784], %197 {strides = array<i32>} : memref<2x3520xf32, #tpu.memory_space<vmem>>, vector<2x32xf32>,
    %c176 = arith.constant 176 : index
    %c0_201 = arith.constant 0 : index
    %199 = vector.load %arg14[%c176, %c0_201] : memref<220x32xf32, #tpu.memory_space<vmem>>, vector<2x32xf32>
    %c0_202 = arith.constant 0 : index
    %c2816 = arith.constant 2816 : index
    %200 = vector.load %arg15[%c0_202, %c2816] : memref<2x3520xf32, #tpu.memory_space<vmem>>, vector<2x32xf32>
    tpu.vector_store %arg15[%c0_202, %c2816], %199 {strides = array<i32>} : memref<2x3520xf32, #tpu.memory_space<vmem>>, vector<2x32xf32>,
    %c178 = arith.constant 178 : index
    %c0_203 = arith.constant 0 : index
    %201 = vector.load %arg14[%c178, %c0_203] : memref<220x32xf32, #tpu.memory_space<vmem>>, vector<2x32xf32>
    %c0_204 = arith.constant 0 : index
    %c2848 = arith.constant 2848 : index
    %202 = vector.load %arg15[%c0_204, %c2848] : memref<2x3520xf32, #tpu.memory_space<vmem>>, vector<2x32xf32>
    tpu.vector_store %arg15[%c0_204, %c2848], %201 {strides = array<i32>} : memref<2x3520xf32, #tpu.memory_space<vmem>>, vector<2x32xf32>,
    %c180 = arith.constant 180 : index
    %c0_205 = arith.constant 0 : index
    %203 = vector.load %arg14[%c180, %c0_205] : memref<220x32xf32, #tpu.memory_space<vmem>>, vector<2x32xf32>
    %c0_206 = arith.constant 0 : index
    %c2880 = arith.constant 2880 : index
    %204 = vector.load %arg15[%c0_206, %c2880] : memref<2x3520xf32, #tpu.memory_space<vmem>>, vector<2x32xf32>
    tpu.vector_store %arg15[%c0_206, %c2880], %203 {strides = array<i32>} : memref<2x3520xf32, #tpu.memory_space<vmem>>, vector<2x32xf32>,
    %c182 = arith.constant 182 : index
    %c0_207 = arith.constant 0 : index
    %205 = vector.load %arg14[%c182, %c0_207] : memref<220x32xf32, #tpu.memory_space<vmem>>, vector<2x32xf32>
    %c0_208 = arith.constant 0 : index
    %c2912 = arith.constant 2912 : index
    %206 = vector.load %arg15[%c0_208, %c2912] : memref<2x3520xf32, #tpu.memory_space<vmem>>, vector<2x32xf32>
    tpu.vector_store %arg15[%c0_208, %c2912], %205 {strides = array<i32>} : memref<2x3520xf32, #tpu.memory_space<vmem>>, vector<2x32xf32>,
    %c184 = arith.constant 184 : index
    %c0_209 = arith.constant 0 : index
    %207 = vector.load %arg14[%c184, %c0_209] : memref<220x32xf32, #tpu.memory_space<vmem>>, vector<2x32xf32>
    %c0_210 = arith.constant 0 : index
    %c2944 = arith.constant 2944 : index
    %208 = vector.load %arg15[%c0_210, %c2944] : memref<2x3520xf32, #tpu.memory_space<vmem>>, vector<2x32xf32>
    tpu.vector_store %arg15[%c0_210, %c2944], %207 {strides = array<i32>} : memref<2x3520xf32, #tpu.memory_space<vmem>>, vector<2x32xf32>,
    %c186 = arith.constant 186 : index
    %c0_211 = arith.constant 0 : index
    %209 = vector.load %arg14[%c186, %c0_211] : memref<220x32xf32, #tpu.memory_space<vmem>>, vector<2x32xf32>
    %c0_212 = arith.constant 0 : index
    %c2976 = arith.constant 2976 : index
    %210 = vector.load %arg15[%c0_212, %c2976] : memref<2x3520xf32, #tpu.memory_space<vmem>>, vector<2x32xf32>
    tpu.vector_store %arg15[%c0_212, %c2976], %209 {strides = array<i32>} : memref<2x3520xf32, #tpu.memory_space<vmem>>, vector<2x32xf32>,
    %c188 = arith.constant 188 : index
    %c0_213 = arith.constant 0 : index
    %211 = vector.load %arg14[%c188, %c0_213] : memref<220x32xf32, #tpu.memory_space<vmem>>, vector<2x32xf32>
    %c0_214 = arith.constant 0 : index
    %c3008 = arith.constant 3008 : index
    %212 = vector.load %arg15[%c0_214, %c3008] : memref<2x3520xf32, #tpu.memory_space<vmem>>, vector<2x32xf32>
    tpu.vector_store %arg15[%c0_214, %c3008], %211 {strides = array<i32>} : memref<2x3520xf32, #tpu.memory_space<vmem>>, vector<2x32xf32>,
    %c190 = arith.constant 190 : index
    %c0_215 = arith.constant 0 : index
    %213 = vector.load %arg14[%c190, %c0_215] : memref<220x32xf32, #tpu.memory_space<vmem>>, vector<2x32xf32>
    %c0_216 = arith.constant 0 : index
    %c3040 = arith.constant 3040 : index
    %214 = vector.load %arg15[%c0_216, %c3040] : memref<2x3520xf32, #tpu.memory_space<vmem>>, vector<2x32xf32>
    tpu.vector_store %arg15[%c0_216, %c3040], %213 {strides = array<i32>} : memref<2x3520xf32, #tpu.memory_space<vmem>>, vector<2x32xf32>,
    %c192_217 = arith.constant 192 : index
    %c0_218 = arith.constant 0 : index
    %215 = vector.load %arg14[%c192_217, %c0_218] : memref<220x32xf32, #tpu.memory_space<vmem>>, vector<2x32xf32>
    %c0_219 = arith.constant 0 : index
    %c3072 = arith.constant 3072 : index
    %216 = vector.load %arg15[%c0_219, %c3072] : memref<2x3520xf32, #tpu.memory_space<vmem>>, vector<2x32xf32>
    tpu.vector_store %arg15[%c0_219, %c3072], %215 {strides = array<i32>} : memref<2x3520xf32, #tpu.memory_space<vmem>>, vector<2x32xf32>,
    %c194 = arith.constant 194 : index
    %c0_220 = arith.constant 0 : index
    %217 = vector.load %arg14[%c194, %c0_220] : memref<220x32xf32, #tpu.memory_space<vmem>>, vector<2x32xf32>
    %c0_221 = arith.constant 0 : index
    %c3104 = arith.constant 3104 : index
    %218 = vector.load %arg15[%c0_221, %c3104] : memref<2x3520xf32, #tpu.memory_space<vmem>>, vector<2x32xf32>
    tpu.vector_store %arg15[%c0_221, %c3104], %217 {strides = array<i32>} : memref<2x3520xf32, #tpu.memory_space<vmem>>, vector<2x32xf32>,
    %c196 = arith.constant 196 : index
    %c0_222 = arith.constant 0 : index
    %219 = vector.load %arg14[%c196, %c0_222] : memref<220x32xf32, #tpu.memory_space<vmem>>, vector<2x32xf32>
    %c0_223 = arith.constant 0 : index
    %c3136 = arith.constant 3136 : index
    %220 = vector.load %arg15[%c0_223, %c3136] : memref<2x3520xf32, #tpu.memory_space<vmem>>, vector<2x32xf32>
    tpu.vector_store %arg15[%c0_223, %c3136], %219 {strides = array<i32>} : memref<2x3520xf32, #tpu.memory_space<vmem>>, vector<2x32xf32>,
    %c198 = arith.constant 198 : index
    %c0_224 = arith.constant 0 : index
    %221 = vector.load %arg14[%c198, %c0_224] : memref<220x32xf32, #tpu.memory_space<vmem>>, vector<2x32xf32>
    %c0_225 = arith.constant 0 : index
    %c3168 = arith.constant 3168 : index
    %222 = vector.load %arg15[%c0_225, %c3168] : memref<2x3520xf32, #tpu.memory_space<vmem>>, vector<2x32xf32>
    tpu.vector_store %arg15[%c0_225, %c3168], %221 {strides = array<i32>} : memref<2x3520xf32, #tpu.memory_space<vmem>>, vector<2x32xf32>,
    %c200 = arith.constant 200 : index
    %c0_226 = arith.constant 0 : index
    %223 = vector.load %arg14[%c200, %c0_226] : memref<220x32xf32, #tpu.memory_space<vmem>>, vector<2x32xf32>
    %c0_227 = arith.constant 0 : index
    %c3200 = arith.constant 3200 : index
    %224 = vector.load %arg15[%c0_227, %c3200] : memref<2x3520xf32, #tpu.memory_space<vmem>>, vector<2x32xf32>
    tpu.vector_store %arg15[%c0_227, %c3200], %223 {strides = array<i32>} : memref<2x3520xf32, #tpu.memory_space<vmem>>, vector<2x32xf32>,
    %c202 = arith.constant 202 : index
    %c0_228 = arith.constant 0 : index
    %225 = vector.load %arg14[%c202, %c0_228] : memref<220x32xf32, #tpu.memory_space<vmem>>, vector<2x32xf32>
    %c0_229 = arith.constant 0 : index
    %c3232 = arith.constant 3232 : index
    %226 = vector.load %arg15[%c0_229, %c3232] : memref<2x3520xf32, #tpu.memory_space<vmem>>, vector<2x32xf32>
    tpu.vector_store %arg15[%c0_229, %c3232], %225 {strides = array<i32>} : memref<2x3520xf32, #tpu.memory_space<vmem>>, vector<2x32xf32>,
    %c204 = arith.constant 204 : index
    %c0_230 = arith.constant 0 : index
    %227 = vector.load %arg14[%c204, %c0_230] : memref<220x32xf32, #tpu.memory_space<vmem>>, vector<2x32xf32>
    %c0_231 = arith.constant 0 : index
    %c3264 = arith.constant 3264 : index
    %228 = vector.load %arg15[%c0_231, %c3264] : memref<2x3520xf32, #tpu.memory_space<vmem>>, vector<2x32xf32>
    tpu.vector_store %arg15[%c0_231, %c3264], %227 {strides = array<i32>} : memref<2x3520xf32, #tpu.memory_space<vmem>>, vector<2x32xf32>,
    %c206 = arith.constant 206 : index
    %c0_232 = arith.constant 0 : index
    %229 = vector.load %arg14[%c206, %c0_232] : memref<220x32xf32, #tpu.memory_space<vmem>>, vector<2x32xf32>
    %c0_233 = arith.constant 0 : index
    %c3296 = arith.constant 3296 : index
    %230 = vector.load %arg15[%c0_233, %c3296] : memref<2x3520xf32, #tpu.memory_space<vmem>>, vector<2x32xf32>
    tpu.vector_store %arg15[%c0_233, %c3296], %229 {strides = array<i32>} : memref<2x3520xf32, #tpu.memory_space<vmem>>, vector<2x32xf32>,
    %c208 = arith.constant 208 : index
    %c0_234 = arith.constant 0 : index
    %231 = vector.load %arg14[%c208, %c0_234] : memref<220x32xf32, #tpu.memory_space<vmem>>, vector<2x32xf32>
    %c0_235 = arith.constant 0 : index
    %c3328 = arith.constant 3328 : index
    %232 = vector.load %arg15[%c0_235, %c3328] : memref<2x3520xf32, #tpu.memory_space<vmem>>, vector<2x32xf32>
    tpu.vector_store %arg15[%c0_235, %c3328], %231 {strides = array<i32>} : memref<2x3520xf32, #tpu.memory_space<vmem>>, vector<2x32xf32>,
    %c210 = arith.constant 210 : index
    %c0_236 = arith.constant 0 : index
    %233 = vector.load %arg14[%c210, %c0_236] : memref<220x32xf32, #tpu.memory_space<vmem>>, vector<2x32xf32>
    %c0_237 = arith.constant 0 : index
    %c3360 = arith.constant 3360 : index
    %234 = vector.load %arg15[%c0_237, %c3360] : memref<2x3520xf32, #tpu.memory_space<vmem>>, vector<2x32xf32>
    tpu.vector_store %arg15[%c0_237, %c3360], %233 {strides = array<i32>} : memref<2x3520xf32, #tpu.memory_space<vmem>>, vector<2x32xf32>,
    %c212 = arith.constant 212 : index
    %c0_238 = arith.constant 0 : index
    %235 = vector.load %arg14[%c212, %c0_238] : memref<220x32xf32, #tpu.memory_space<vmem>>, vector<2x32xf32>
    %c0_239 = arith.constant 0 : index
    %c3392 = arith.constant 3392 : index
    %236 = vector.load %arg15[%c0_239, %c3392] : memref<2x3520xf32, #tpu.memory_space<vmem>>, vector<2x32xf32>
    tpu.vector_store %arg15[%c0_239, %c3392], %235 {strides = array<i32>} : memref<2x3520xf32, #tpu.memory_space<vmem>>, vector<2x32xf32>,
    %c214 = arith.constant 214 : index
    %c0_240 = arith.constant 0 : index
    %237 = vector.load %arg14[%c214, %c0_240] : memref<220x32xf32, #tpu.memory_space<vmem>>, vector<2x32xf32>
    %c0_241 = arith.constant 0 : index
    %c3424 = arith.constant 3424 : index
    %238 = vector.load %arg15[%c0_241, %c3424] : memref<2x3520xf32, #tpu.memory_space<vmem>>, vector<2x32xf32>
    tpu.vector_store %arg15[%c0_241, %c3424], %237 {strides = array<i32>} : memref<2x3520xf32, #tpu.memory_space<vmem>>, vector<2x32xf32>,
    %c216 = arith.constant 216 : index
    %c0_242 = arith.constant 0 : index
    %239 = vector.load %arg14[%c216, %c0_242] : memref<220x32xf32, #tpu.memory_space<vmem>>, vector<2x32xf32>
    %c0_243 = arith.constant 0 : index
    %c3456 = arith.constant 3456 : index
    %240 = vector.load %arg15[%c0_243, %c3456] : memref<2x3520xf32, #tpu.memory_space<vmem>>, vector<2x32xf32>
    tpu.vector_store %arg15[%c0_243, %c3456], %239 {strides = array<i32>} : memref<2x3520xf32, #tpu.memory_space<vmem>>, vector<2x32xf32>,
    %c218 = arith.constant 218 : index
    %c0_244 = arith.constant 0 : index
    %241 = vector.load %arg14[%c218, %c0_244] : memref<220x32xf32, #tpu.memory_space<vmem>>, vector<2x32xf32>
    %c0_245 = arith.constant 0 : index
    %c3488 = arith.constant 3488 : index
    %242 = vector.load %arg15[%c0_245, %c3488] : memref<2x3520xf32, #tpu.memory_space<vmem>>, vector<2x32xf32>
    tpu.vector_store %arg15[%c0_245, %c3488], %241 {strides = array<i32>} : memref<2x3520xf32, #tpu.memory_space<vmem>>, vector<2x32xf32>,
    %c0_246 = arith.constant 0 : index
    %c0_247 = arith.constant 0 : index
    %243 = vector.load %arg15[%c0_246, %c0_247] : memref<2x3520xf32, #tpu.memory_space<vmem>>, vector<2x3520xf32>
    %244 = arith.truncf %243 : vector<2x3520xf32> to vector<2x3520xbf16>
    %c0_248 = arith.constant 0 : index
    %c0_249 = arith.constant 0 : index
    %245 = vector.load %arg7[%c0_248, %c0_249] : memref<3520x512xbf16, #tpu.memory_space<vmem>>, vector<3520x512xbf16>
    %cst_250 = arith.constant dense<0.000000e+00> : vector<2x512xf32>
    %246 = tpu.matmul %244, %245, %cst_250 {dimension_numbers = #tpu.dot_dimension_numbers<[1], [0], [0], [1], [0, 0, 1, 1], [], []>} : vector<2x3520xbf16>, vector<3520x512xbf16>, vector<2x512xf32> -> vector<2x512xf32>
    %c0_251 = arith.constant 0 : index
    %c0_252 = arith.constant 0 : index
    %247 = vector.load %arg8[%c0_251, %c0_252] : memref<1x512xf32, #tpu.memory_space<vmem>>, vector<1x512xf32>
    %248 = vector.broadcast %247 : vector<1x512xf32> to vector<2x512xf32>
    %249 = arith.addf %246, %248 : vector<2x512xf32>
    %cst_253 = arith.constant 0.000000e+00 : f32
    %250 = vector.broadcast %cst_253 : f32 to vector<2x512xf32>
    %251 = arith.maximumf %249, %250 : vector<2x512xf32>
    %252 = arith.truncf %251 : vector<2x512xf32> to vector<2x512xbf16>
    %c0_254 = arith.constant 0 : index
    %c0_255 = arith.constant 0 : index
    %253 = vector.load %arg9[%c0_254, %c0_255] : memref<512x128xbf16, #tpu.memory_space<vmem>>, vector<512x128xbf16>
    %cst_256 = arith.constant dense<0.000000e+00> : vector<2x128xf32>
    %254 = tpu.matmul %252, %253, %cst_256 {dimension_numbers = #tpu.dot_dimension_numbers<[1], [0], [0], [1], [0, 0, 1, 1], [], []>} : vector<2x512xbf16>, vector<512x128xbf16>, vector<2x128xf32> -> vector<2x128xf32>
    %c0_257 = arith.constant 0 : index
    %c0_258 = arith.constant 0 : index
    %255 = vector.load %arg10[%c0_257, %c0_258] : memref<1x128xf32, #tpu.memory_space<vmem>>, vector<1x128xf32>
    %256 = vector.broadcast %255 : vector<1x128xf32> to vector<2x128xf32>
    %257 = arith.addf %254, %256 : vector<2x128xf32>
    %cst_259 = arith.constant 0.000000e+00 : f32
    %258 = vector.broadcast %cst_259 : f32 to vector<2x128xf32>
    %259 = arith.maximumf %257, %258 : vector<2x128xf32>
    %260 = arith.truncf %259 : vector<2x128xf32> to vector<2x128xbf16>
    %c0_260 = arith.constant 0 : index
    %c0_261 = arith.constant 0 : index
    %261 = vector.load %arg11[%c0_260, %c0_261] : memref<128x6xbf16, #tpu.memory_space<vmem>>, vector<128x6xbf16>
    %cst_262 = arith.constant dense<0.000000e+00> : vector<2x6xf32>
    %262 = tpu.matmul %260, %261, %cst_262 {dimension_numbers = #tpu.dot_dimension_numbers<[1], [0], [0], [1], [0, 0, 1, 1], [], []>} : vector<2x128xbf16>, vector<128x6xbf16>, vector<2x6xf32> -> vector<2x6xf32>
    %c0_263 = arith.constant 0 : index
    %c0_264 = arith.constant 0 : index
    %263 = vector.load %arg12[%c0_263, %c0_264] : memref<1x6xf32, #tpu.memory_space<vmem>>, vector<1x6xf32>
    %264 = vector.broadcast %263 : vector<1x6xf32> to vector<2x6xf32>
    %265 = arith.addf %262, %264 : vector<2x6xf32>
    %c0_265 = arith.constant 0 : index
    %c0_266 = arith.constant 0 : index
    %266 = vector.load %arg13[%c0_265, %c0_266] : memref<2x6xf32, #tpu.memory_space<vmem>>, vector<2x6xf32>
    tpu.vector_store %arg13[%c0_265, %c0_266], %265 {strides = array<i32>} : memref<2x6xf32, #tpu.memory_space<vmem>>, vector<2x6xf32>,
    return
  }
}

</mosaic_0001>

<llo_original>
// kernel: _lambda_.1
$region0: #{_lambda_.1}
  #allocation0 [shape = 'u32[]', space=smem, size = 0x4, offset = 0x4, fixed_abs, tag = 'smem constant byte address 0x4 - core index']
  #allocation1 [shape = 'u32[144,128]{1,0:T(1,128)}', space=vmem, size = 0x12000, scoped, tag = 'internal scratch']
  #allocation2 [shape = 'f32[220,32]{1,0:T(8,128)}', space=vmem, size = 0x1c000, scoped, tag = 'scratch operand']
  #allocation3 [shape = 'f32[2,3520]{1,0:T(2,128)}', space=vmem, size = 0x7000, scoped, tag = 'scratch operand']
  %s0 = inlined_call_operand.vmem [shape: bf16[220,144], index: 0, kind: input, shape index: {}]
  %s1 = inlined_call_operand.vmem [shape: bf16[144,128], index: 1, kind: input, shape index: {}]
  %s2 = inlined_call_operand.vmem [shape: f32[1,128], index: 2, kind: input, shape index: {}]
  %s3 = inlined_call_operand.vmem [shape: f32[1,128], index: 3, kind: input, shape index: {}]
  %s4 = inlined_call_operand.vmem [shape: bf16[128,32], index: 4, kind: input, shape index: {}]
  %s5 = inlined_call_operand.vmem [shape: f32[1,32], index: 5, kind: input, shape index: {}]
  %s6 = inlined_call_operand.vmem [shape: f32[1,32], index: 6, kind: input, shape index: {}]
  %s7 = inlined_call_operand.vmem [shape: bf16[3520,512], index: 7, kind: input, shape index: {}]
  %s8 = inlined_call_operand.vmem [shape: f32[1,512], index: 8, kind: input, shape index: {}]
  %s9 = inlined_call_operand.vmem [shape: bf16[512,128], index: 9, kind: input, shape index: {}]
  %s10 = inlined_call_operand.vmem [shape: f32[1,128], index: 10, kind: input, shape index: {}]
  %s11 = inlined_call_operand.vmem [shape: bf16[128,6], index: 11, kind: input, shape index: {}]
  %s12 = inlined_call_operand.vmem [shape: f32[1,6], index: 12, kind: input, shape index: {}]
  %s13 = inlined_call_operand.hbm [shape: f32[2,6], index: 13, kind: output, shape index: {}]
  %s14 = sld [smem:[#allocation0]]
  $region62: #{_lambda_.1} parent=0
    _
  %s16 = ssub.s32 1, %s14
  %s17 = scalar_select 0, %s16, %s14
  $region1: #{_lambda_.1} parent=0
    #allocation4 [shape = 'u8[1024]{0}', space=vmem, size = 0x400, scoped, tag = 'output window, operand 0, single buffered']
    #allocation5 [shape = 's32[1]{0}', space=sflag, size = 0x4, scoped, tag = 'scoped memory for _lambda_.1']
    %18 = vsyncpa [#allocation5], 0
    // Predicated region
    $region2: #{_lambda_.1} parent=1 // pred_check
      _
    $region3: #{_lambda_.1} parent=1 // pred_check_branch
      %20 = sbr.rel (0) target = $region5
    $region4: #{_lambda_.1} parent=1 // pred_region
      _
    $region5: #{_lambda_.1} parent=1 // pred_fallthru
      _
    // Predicated region
    $region6: #{_lambda_.1} parent=1 // pred_check
      _
    $region7: #{_lambda_.1} parent=1 // pred_check_branch
      %22 = sbr.rel (0) target = $region9
    $region8: #{_lambda_.1} parent=1 // pred_region
      _
    $region9: #{_lambda_.1} parent=1 // pred_fallthru
      _
    // Predicated region
    $region10: #{_lambda_.1} parent=1 // pred_check
      _
    $region11: #{_lambda_.1} parent=1 // pred_check_branch
      %24 = sbr.rel (0) target = $region13
    $region12: #{_lambda_.1} parent=1 // pred_region
      _
    $region13: #{_lambda_.1} parent=1 // pred_fallthru
      _
    // Predicated region
    $region14: #{_lambda_.1} parent=1 // pred_check
      _
    $region15: #{_lambda_.1} parent=1 // pred_check_branch
      %26 = sbr.rel (0) target = $region17
    $region16: #{_lambda_.1} parent=1 // pred_region
      _
    $region17: #{_lambda_.1} parent=1 // pred_fallthru
      _
    // Predicated region
    $region18: #{_lambda_.1} parent=1 // pred_check
      _
    $region19: #{_lambda_.1} parent=1 // pred_check_branch
      %28 = sbr.rel (0) target = $region21
    $region20: #{_lambda_.1} parent=1 // pred_region
      _
    $region21: #{_lambda_.1} parent=1 // pred_fallthru
      _
    // Predicated region
    $region22: #{_lambda_.1} parent=1 // pred_check
      _
    $region23: #{_lambda_.1} parent=1 // pred_check_branch
      %30 = sbr.rel (0) target = $region25
    $region24: #{_lambda_.1} parent=1 // pred_region
      _
    $region25: #{_lambda_.1} parent=1 // pred_fallthru
      _
    // Predicated region
    $region26: #{_lambda_.1} parent=1 // pred_check
      _
    $region27: #{_lambda_.1} parent=1 // pred_check_branch
      %32 = sbr.rel (0) target = $region29
    $region28: #{_lambda_.1} parent=1 // pred_region
      _
    $region29: #{_lambda_.1} parent=1 // pred_fallthru
      _
    // Predicated region
    $region30: #{_lambda_.1} parent=1 // pred_check
      _
    $region31: #{_lambda_.1} parent=1 // pred_check_branch
      %34 = sbr.rel (0) target = $region33
    $region32: #{_lambda_.1} parent=1 // pred_region
      _
    $region33: #{_lambda_.1} parent=1 // pred_fallthru
      _
    // Predicated region
    $region34: #{_lambda_.1} parent=1 // pred_check
      _
    $region35: #{_lambda_.1} parent=1 // pred_check_branch
      %36 = sbr.rel (0) target = $region37
    $region36: #{_lambda_.1} parent=1 // pred_region
      _
    $region37: #{_lambda_.1} parent=1 // pred_fallthru
      _
    // Predicated region
    $region38: #{_lambda_.1} parent=1 // pred_check
      _
    $region39: #{_lambda_.1} parent=1 // pred_check_branch
      %38 = sbr.rel (0) target = $region41
    $region40: #{_lambda_.1} parent=1 // pred_region
      _
    $region41: #{_lambda_.1} parent=1 // pred_fallthru
      _
    // Predicated region
    $region42: #{_lambda_.1} parent=1 // pred_check
      _
    $region43: #{_lambda_.1} parent=1 // pred_check_branch
      %40 = sbr.rel (0) target = $region45
    $region44: #{_lambda_.1} parent=1 // pred_region
      _
    $region45: #{_lambda_.1} parent=1 // pred_fallthru
      _
    // Predicated region
    $region46: #{_lambda_.1} parent=1 // pred_check
      _
    $region47: #{_lambda_.1} parent=1 // pred_check_branch
      %42 = sbr.rel (0) target = $region49
    $region48: #{_lambda_.1} parent=1 // pred_region
      _
    $region49: #{_lambda_.1} parent=1 // pred_fallthru
      _
    // Predicated region
    $region50: #{_lambda_.1} parent=1 // pred_check
      _
    $region51: #{_lambda_.1} parent=1 // pred_check_branch
      %44 = sbr.rel (0) target = $region53
    $region52: #{_lambda_.1} parent=1 // pred_region
      _
    $region53: #{_lambda_.1} parent=1 // pred_fallthru
      _
    %v46 = vld [vmem:[%s0] sm:$0xff]
    %v47 = vld [vmem:[%s0 + $0x8] sm:$0xff]
    %v48 = vld [vmem:[%s0 + $0x10] sm:$0xff]
    %v49 = vld [vmem:[%s0 + $0x18] sm:$0xff]
    %v50 = vld [vmem:[%s0 + $0x20] sm:$0xff]
    %v51 = vld [vmem:[%s0 + $0x28] sm:$0xff]
    %v52 = vld [vmem:[%s0 + $0x30] sm:$0xff]
    %v53 = vld [vmem:[%s0 + $0x38] sm:$0xff]
    %v54 = vld [vmem:[%s0 + $0x40] sm:$0xff]
    %v55 = vld [vmem:[%s0 + $0x48] sm:$0xff]
    %v56 = vld [vmem:[%s0 + $0x50] sm:$0xff]
    %v57 = vld [vmem:[%s0 + $0x58] sm:$0xff]
    %v58 = vld [vmem:[%s0 + $0x60] sm:$0xff]
    %v59 = vld [vmem:[%s0 + $0x68] sm:$0xff]
    %v60 = vld [vmem:[%s0 + $0x70] sm:$0xff]
    %v61 = vld [vmem:[%s0 + $0x78] sm:$0xff]
    %v62 = vld [vmem:[%s0 + $0x80] sm:$0xff]
    %v63 = vld [vmem:[%s0 + $0x88] sm:$0xff]
    %v64 = vld [vmem:[%s0 + $0x90] sm:$0xff]
    %v65 = vld [vmem:[%s0 + $0x98] sm:$0xff]
    %v66 = vld [vmem:[%s0 + $0xa0] sm:$0xff]
    %v67 = vld [vmem:[%s0 + $0xa8] sm:$0xff]
    %v68 = vld [vmem:[%s0 + $0xb0] sm:$0xff]
    %v69 = vld [vmem:[%s0 + $0xb8] sm:$0xff]
    %v70 = vld [vmem:[%s0 + $0xc0] sm:$0xff]
    %v71 = vld [vmem:[%s0 + $0xc8] sm:$0xff]
    %v72 = vld [vmem:[%s0 + $0xd0] sm:$0xff]
    %v73 = vld [vmem:[%s0 + $0xd8] sm:$0x33]
    %v74 = vld [vmem:[%s1] sm:$0xf]
    %v75 = vld [vmem:[%s1 + $0x4] sm:$0xf]
    %v76 = vld [vmem:[%s1 + $0x8] sm:$0xf]
    %v77 = vld [vmem:[%s1 + $0xc] sm:$0xf]
    %v78 = vld [vmem:[%s1 + $0x10] sm:$0xf]
    %v79 = vld [vmem:[%s1 + $0x14] sm:$0xf]
    %v80 = vld [vmem:[%s1 + $0x18] sm:$0xf]
    %v81 = vld [vmem:[%s1 + $0x1c] sm:$0xf]
    %v82 = vld [vmem:[%s1 + $0x20] sm:$0xf]
    %v83 = vld [vmem:[%s1 + $0x24] sm:$0xf]
    %v84 = vld [vmem:[%s1 + $0x28] sm:$0xf]
    %v85 = vld [vmem:[%s1 + $0x2c] sm:$0xf]
    %v86 = vld [vmem:[%s1 + $0x30] sm:$0xf]
    %v87 = vld [vmem:[%s1 + $0x34] sm:$0xf]
    %v88 = vld [vmem:[%s1 + $0x38] sm:$0xf]
    %v89 = vld [vmem:[%s1 + $0x3c] sm:$0xf]
    %v90 = vld [vmem:[%s1 + $0x40] sm:$0xf]
    %v91 = vld [vmem:[%s1 + $0x44] sm:$0xf]
    %v120 = vunpack.c.l.b16 %v46
    %v121 = vunpack.c.h.b16 %v46
    %v122 = vunpack.c.l.b16 %v47
    %v123 = vunpack.c.h.b16 %v47
    %v124 = vunpack.c.l.b16 %v48
    %v125 = vunpack.c.h.b16 %v48
    %v126 = vunpack.c.l.b16 %v49
    %v127 = vunpack.c.h.b16 %v49
    %v128 = vunpack.c.l.b16 %v50
    %v129 = vunpack.c.h.b16 %v50
    %v130 = vunpack.c.l.b16 %v51
    %v131 = vunpack.c.h.b16 %v51
    %v132 = vunpack.c.l.b16 %v52
    %v133 = vunpack.c.h.b16 %v52
    %v134 = vunpack.c.l.b16 %v53
    %v135 = vunpack.c.h.b16 %v53
    %v136 = vunpack.c.l.b16 %v54
    %v137 = vunpack.c.h.b16 %v54
    %v138 = vunpack.c.l.b16 %v55
    %v139 = vunpack.c.h.b16 %v55
    %v140 = vunpack.c.l.b16 %v56
    %v141 = vunpack.c.h.b16 %v56
    %v142 = vunpack.c.l.b16 %v57
    %v143 = vunpack.c.h.b16 %v57
    %v144 = vunpack.c.l.b16 %v58
    %v145 = vunpack.c.h.b16 %v58
    %v146 = vunpack.c.l.b16 %v59
    %v147 = vunpack.c.h.b16 %v59
    %v148 = vunpack.c.l.b16 %v60
    %v149 = vunpack.c.h.b16 %v60
    %v150 = vunpack.c.l.b16 %v61
    %v151 = vunpack.c.h.b16 %v61
    %v152 = vunpack.c.l.b16 %v62
    %v153 = vunpack.c.h.b16 %v62
    %v154 = vunpack.c.l.b16 %v63
    %v155 = vunpack.c.h.b16 %v63
    %v156 = vunpack.c.l.b16 %v64
    %v157 = vunpack.c.h.b16 %v64
    %v158 = vunpack.c.l.b16 %v65
    %v159 = vunpack.c.h.b16 %v65
    %v160 = vunpack.c.l.b16 %v66
    %v161 = vunpack.c.h.b16 %v66
    %v162 = vunpack.c.l.b16 %v67
    %v163 = vunpack.c.h.b16 %v67
    %v164 = vunpack.c.l.b16 %v68
    %v165 = vunpack.c.h.b16 %v68
    %v166 = vunpack.c.l.b16 %v69
    %v167 = vunpack.c.h.b16 %v69
    %v168 = vunpack.c.l.b16 %v70
    %v169 = vunpack.c.h.b16 %v70
    %v170 = vunpack.c.l.b16 %v71
    %v171 = vunpack.c.h.b16 %v71
    %v172 = vunpack.c.l.b16 %v72
    %v173 = vunpack.c.h.b16 %v72
    %v174 = vunpack.c.l.b16 %v73
    %v175 = vunpack.c.h.b16 %v73
    %v176 = vpack.c.b16 %v122, %v120
    %v177 = vpack.c.b16 %v123, %v121
    %v178 = vpack.c.b16 %v126, %v124
    %v179 = vpack.c.b16 %v127, %v125
    %v180 = vpack.c.b16 %v130, %v128
    %v181 = vpack.c.b16 %v131, %v129
    %v182 = vpack.c.b16 %v134, %v132
    %v183 = vpack.c.b16 %v135, %v133
    %v184 = vpack.c.b16 %v138, %v136
    %v185 = vpack.c.b16 %v139, %v137
    %v186 = vpack.c.b16 %v142, %v140
    %v187 = vpack.c.b16 %v143, %v141
    %v188 = vpack.c.b16 %v146, %v144
    %v189 = vpack.c.b16 %v147, %v145
    %v190 = vpack.c.b16 %v150, %v148
    %v191 = vpack.c.b16 %v151, %v149
    %v192 = vpack.c.b16 %v154, %v152
    %v193 = vpack.c.b16 %v155, %v153
    %v194 = vpack.c.b16 %v158, %v156
    %v195 = vpack.c.b16 %v159, %v157
    %v196 = vpack.c.b16 %v162, %v160
    %v197 = vpack.c.b16 %v163, %v161
    %v198 = vpack.c.b16 %v166, %v164
    %v199 = vpack.c.b16 %v167, %v165
    %v200 = vpack.c.b16 %v170, %v168
    %v201 = vpack.c.b16 %v171, %v169
    %v202 = vpack.c.b16 %v174, %v172
    %v203 = vpack.c.b16 %v175, %v173
    %v236 = vunpack.c.l.b16 %v74
    %v237 = vunpack.c.l.b16 %v75
    %v238 = vunpack.c.l.b16 %v76
    %v239 = vunpack.c.l.b16 %v77
    %v240 = vunpack.c.l.b16 %v78
    %v241 = vunpack.c.l.b16 %v79
    %v242 = vunpack.c.l.b16 %v80
    %v243 = vunpack.c.l.b16 %v81
    %v244 = vunpack.c.l.b16 %v82
    %v245 = vunpack.c.l.b16 %v83
    %v246 = vunpack.c.l.b16 %v84
    %v247 = vunpack.c.l.b16 %v85
    %v248 = vunpack.c.l.b16 %v86
    %v249 = vunpack.c.l.b16 %v87
    %v250 = vunpack.c.l.b16 %v88
    %v251 = vunpack.c.l.b16 %v89
    %v252 = vunpack.c.l.b16 %v90
    %v253 = vunpack.c.l.b16 %v91
    %v254 = vpack.c.b16 %v237, %v236
    %v255 = vpack.c.b16 %v239, %v238
    %v256 = vpack.c.b16 %v241, %v240
    %v257 = vpack.c.b16 %v243, %v242
    %v258 = vpack.c.b16 %v245, %v244
    %v259 = vpack.c.b16 %v247, %v246
    %v260 = vpack.c.b16 %v249, %v248
    %v261 = vpack.c.b16 %v251, %v250
    %v262 = vpack.c.b16 %v253, %v252
    %vm272 = vcmask 130048
    %v274 = vsel %vm272, %v177, 0
    %v277 = vsel %vm272, %v179, 0
    %v280 = vsel %vm272, %v181, 0
    %v283 = vsel %vm272, %v183, 0
    %v286 = vsel %vm272, %v185, 0
    %v289 = vsel %vm272, %v187, 0
    %v292 = vsel %vm272, %v189, 0
    %v295 = vsel %vm272, %v191, 0
    %v298 = vsel %vm272, %v193, 0
    %v301 = vsel %vm272, %v195, 0
    %v304 = vsel %vm272, %v197, 0
    %v307 = vsel %vm272, %v199, 0
    %v310 = vsel %vm272, %v201, 0
    %v313 = vsel %vm272, %v203, 0
    %315 = vmatprep.subr.bf16.mxu0 0
    %316 = vmatpush1.bf16.msra.mxu0 %v254
    %317 = vmatprep.subr.bf16.mxu0 0
    %318 = vmatpush1.bf16.msra.mxu0 %v255
    %319 = vmatprep.subr.bf16.mxu0 0
    %320 = vmatpush1.bf16.msra.mxu0 %v256
    %321 = vmatprep.subr.bf16.mxu0 0
    %322 = vmatpush1.bf16.msra.mxu0 %v257
    %323 = vmatprep.subr.bf16.mxu0 0
    %324 = vmatpush1.bf16.msra.mxu0 %v258
    %325 = vmatprep.subr.bf16.mxu0 0
    %326 = vmatpush1.bf16.msra.mxu0 %v259
    %327 = vmatprep.subr.bf16.mxu0 0
    %328 = vmatpush1.bf16.msra.mxu0 %v260
    %329 = vmatprep.subr.bf16.mxu0 0
    %330 = vmatpush1.bf16.msra.mxu0 %v261
    %331 = vmatprep.subr.bf16.mxu0 0
    %332 = vmatpush1.bf16.msra.mxu0 %v262
    %333 = vmatprep.subr.bf16.mxu0 0
    %334 = vmatpush1.bf16.msra.mxu0 0
    %335 = vmatprep.subr.bf16.mxu0 0
    %336 = vmatpush1.bf16.msra.mxu0 0
    %337 = vmatprep.subr.bf16.mxu0 0
    %338 = vmatpush1.bf16.msra.mxu0 0
    %339 = vmatprep.subr.bf16.mxu0 0
    %340 = vmatpush1.bf16.msra.mxu0 0
    %341 = vmatprep.subr.bf16.mxu0 0
    %342 = vmatpush1.bf16.msra.mxu0 0
    %343 = vmatprep.subr.bf16.mxu0 0
    %344 = vmatpush1.bf16.msra.mxu0 0
    %345 = vmatprep.subr.bf16.mxu0 0
    %346 = vmatpush1.bf16.msra.mxu0 0
    %347 = vmatprep.mubr.bf16.mxu0 %v274
    %348 = vmatmul.mubr.bf16.gmra.mrb[0].mxu0 %v176
    %v349 = vpop.f32.mrb[0].mxu0
    %v350 = vadd.f32 0.0, %v349
    %v351 = vpop.f32.mrb[0].mxu0
    %v352 = vpop.f32.mrb[0].mxu0
    %v353 = vadd.f32 0.0, %v352
    %v354 = vpop.f32.mrb[0].mxu0
    %355 = vmatprep.mubr.bf16.mxu0 %v277
    %356 = vmatmul.mubr.bf16.gmra.mrb[0].mxu0 %v178
    %v357 = vpop.f32.mrb[0].mxu0
    %v358 = vadd.f32 0.0, %v357
    %v359 = vpop.f32.mrb[0].mxu0
    %v360 = vpop.f32.mrb[0].mxu0
    %v361 = vadd.f32 0.0, %v360
    %v362 = vpop.f32.mrb[0].mxu0
    %363 = vmatprep.mubr.bf16.mxu0 %v280
    %364 = vmatmul.mubr.bf16.gmra.mrb[0].mxu0 %v180
    %v365 = vpop.f32.mrb[0].mxu0
    %v366 = vadd.f32 0.0, %v365
    %v367 = vpop.f32.mrb[0].mxu0
    %v368 = vpop.f32.mrb[0].mxu0
    %v369 = vadd.f32 0.0, %v368
    %v370 = vpop.f32.mrb[0].mxu0
    %371 = vmatprep.mubr.bf16.mxu0 %v283
    %372 = vmatmul.mubr.bf16.gmra.mrb[0].mxu0 %v182
    %v373 = vpop.f32.mrb[0].mxu0
    %v374 = vadd.f32 0.0, %v373
    %v375 = vpop.f32.mrb[0].mxu0
    %v376 = vpop.f32.mrb[0].mxu0
    %v377 = vadd.f32 0.0, %v376
    %v378 = vpop.f32.mrb[0].mxu0
    %379 = vmatprep.mubr.bf16.mxu0 %v286
    %380 = vmatmul.mubr.bf16.gmra.mrb[0].mxu0 %v184
    %v381 = vpop.f32.mrb[0].mxu0
    %v382 = vadd.f32 0.0, %v381
    %v383 = vpop.f32.mrb[0].mxu0
    %v384 = vpop.f32.mrb[0].mxu0
    %v385 = vadd.f32 0.0, %v384
    %v386 = vpop.f32.mrb[0].mxu0
    %387 = vmatprep.mubr.bf16.mxu0 %v289
    %388 = vmatmul.mubr.bf16.gmra.mrb[0].mxu0 %v186
    %v389 = vpop.f32.mrb[0].mxu0
    %v390 = vadd.f32 0.0, %v389
    %v391 = vpop.f32.mrb[0].mxu0
    %v392 = vpop.f32.mrb[0].mxu0
    %v393 = vadd.f32 0.0, %v392
    %v394 = vpop.f32.mrb[0].mxu0
    %395 = vmatprep.mubr.bf16.mxu0 %v292
    %396 = vmatmul.mubr.bf16.gmra.mrb[0].mxu0 %v188
    %v397 = vpop.f32.mrb[0].mxu0
    %v398 = vadd.f32 0.0, %v397
    %v399 = vpop.f32.mrb[0].mxu0
    %v400 = vpop.f32.mrb[0].mxu0
    %v401 = vadd.f32 0.0, %v400
    %v402 = vpop.f32.mrb[0].mxu0
    %403 = vmatprep.mubr.bf16.mxu0 %v295
    %404 = vmatmul.mubr.bf16.gmra.mrb[0].mxu0 %v190
    %v405 = vpop.f32.mrb[0].mxu0
    %v406 = vadd.f32 0.0, %v405
    %v407 = vpop.f32.mrb[0].mxu0
    %v408 = vpop.f32.mrb[0].mxu0
    %v409 = vadd.f32 0.0, %v408
    %v410 = vpop.f32.mrb[0].mxu0
    %411 = vmatprep.mubr.bf16.mxu0 %v298
    %412 = vmatmul.mubr.bf16.gmra.mrb[0].mxu0 %v192
    %v413 = vpop.f32.mrb[0].mxu0
    %v414 = vadd.f32 0.0, %v413
    %v415 = vpop.f32.mrb[0].mxu0
    %v416 = vpop.f32.mrb[0].mxu0
    %v417 = vadd.f32 0.0, %v416
    %v418 = vpop.f32.mrb[0].mxu0
    %419 = vmatprep.mubr.bf16.mxu0 %v301
    %420 = vmatmul.mubr.bf16.gmra.mrb[0].mxu0 %v194
    %v421 = vpop.f32.mrb[0].mxu0
    %v422 = vadd.f32 0.0, %v421
    %v423 = vpop.f32.mrb[0].mxu0
    %v424 = vpop.f32.mrb[0].mxu0
    %v425 = vadd.f32 0.0, %v424
    %v426 = vpop.f32.mrb[0].mxu0
    %427 = vmatprep.mubr.bf16.mxu0 %v304
    %428 = vmatmul.mubr.bf16.gmra.mrb[0].mxu0 %v196
    %v429 = vpop.f32.mrb[0].mxu0
    %v430 = vadd.f32 0.0, %v429
    %v431 = vpop.f32.mrb[0].mxu0
    %v432 = vpop.f32.mrb[0].mxu0
    %v433 = vadd.f32 0.0, %v432
    %v434 = vpop.f32.mrb[0].mxu0
    %435 = vmatprep.mubr.bf16.mxu0 %v307
    %436 = vmatmul.mubr.bf16.gmra.mrb[0].mxu0 %v198
    %v437 = vpop.f32.mrb[0].mxu0
    %v438 = vadd.f32 0.0, %v437
    %v439 = vpop.f32.mrb[0].mxu0
    %v440 = vpop.f32.mrb[0].mxu0
    %v441 = vadd.f32 0.0, %v440
    %v442 = vpop.f32.mrb[0].mxu0
    %443 = vmatprep.mubr.bf16.mxu0 %v310
    %444 = vmatmul.mubr.bf16.gmra.mrb[0].mxu0 %v200
    %v445 = vpop.f32.mrb[0].mxu0
    %v446 = vadd.f32 0.0, %v445
    %v447 = vpop.f32.mrb[0].mxu0
    %v448 = vpop.f32.mrb[0].mxu0
    %v449 = vadd.f32 0.0, %v448
    %v450 = vpop.f32.mrb[0].mxu0
    %451 = vmatprep.mubr.bf16.mxu0 %v313
    %452 = vmatmul.mubr.bf16.gmra.mrb[0].mxu0 %v202
    %v453 = vpop.f32.mrb[0].mxu0
    %v454 = vadd.f32 0.0, %v453
    %v455 = vpop.f32.mrb[0].mxu0
    %v456 = vpop.f32.mrb[0].mxu0
    %v457 = vadd.f32 0.0, %v456
    %v458 = vpop.f32.mrb[0].mxu0
    %459 = vdwg.mxu0
    %v460 = vld [vmem:[%s2] sm:$0x1]
    %v462 = vlaneseq
    %v463 = vshrl.u32 %v462, 7
    %v464 = vsub.s32 0, %v463
    %v465 = vrot.slane %v460, %v464
    %v467 = vmul.f32 %v350, %v465
    %v468 = vmul.f32 %v353, %v465
    %v469 = vmul.f32 %v358, %v465
    %v470 = vmul.f32 %v361, %v465
    %v471 = vmul.f32 %v366, %v465
    %v472 = vmul.f32 %v369, %v465
    %v473 = vmul.f32 %v374, %v465
    %v474 = vmul.f32 %v377, %v465
    %v475 = vmul.f32 %v382, %v465
    %v476 = vmul.f32 %v385, %v465
    %v477 = vmul.f32 %v390, %v465
    %v478 = vmul.f32 %v393, %v465
    %v479 = vmul.f32 %v398, %v465
    %v480 = vmul.f32 %v401, %v465
    %v481 = vmul.f32 %v406, %v465
    %v482 = vmul.f32 %v409, %v465
    %v483 = vmul.f32 %v414, %v465
    %v484 = vmul.f32 %v417, %v465
    %v485 = vmul.f32 %v422, %v465
    %v486 = vmul.f32 %v425, %v465
    %v487 = vmul.f32 %v430, %v465
    %v488 = vmul.f32 %v433, %v465
    %v489 = vmul.f32 %v438, %v465
    %v490 = vmul.f32 %v441, %v465
    %v491 = vmul.f32 %v446, %v465
    %v492 = vmul.f32 %v449, %v465
    %v493 = vmul.f32 %v454, %v465
    %v494 = vmul.f32 %v457, %v465
    %v495 = vld [vmem:[%s3] sm:$0x1]
    %v497 = vlaneseq
    %v498 = vshrl.u32 %v497, 7
    %v499 = vsub.s32 0, %v498
    %v500 = vrot.slane %v495, %v499
    %v502 = vadd.f32 %v467, %v500
    %v503 = vadd.f32 %v468, %v500
    %v504 = vadd.f32 %v469, %v500
    %v505 = vadd.f32 %v470, %v500
    %v506 = vadd.f32 %v471, %v500
    %v507 = vadd.f32 %v472, %v500
    %v508 = vadd.f32 %v473, %v500
    %v509 = vadd.f32 %v474, %v500
    %v510 = vadd.f32 %v475, %v500
    %v511 = vadd.f32 %v476, %v500
    %v512 = vadd.f32 %v477, %v500
    %v513 = vadd.f32 %v478, %v500
    %v514 = vadd.f32 %v479, %v500
    %v515 = vadd.f32 %v480, %v500
    %v516 = vadd.f32 %v481, %v500
    %v517 = vadd.f32 %v482, %v500
    %v518 = vadd.f32 %v483, %v500
    %v519 = vadd.f32 %v484, %v500
    %v520 = vadd.f32 %v485, %v500
    %v521 = vadd.f32 %v486, %v500
    %v522 = vadd.f32 %v487, %v500
    %v523 = vadd.f32 %v488, %v500
    %v524 = vadd.f32 %v489, %v500
    %v525 = vadd.f32 %v490, %v500
    %v526 = vadd.f32 %v491, %v500
    %v527 = vadd.f32 %v492, %v500
    %v528 = vadd.f32 %v493, %v500
    %v529 = vadd.f32 %v494, %v500
    %v530 = vmax.f32 %v502, 0.0
    %v531 = vmax.f32 %v503, 0.0
    %v532 = vmax.f32 %v504, 0.0
    %v533 = vmax.f32 %v505, 0.0
    %v534 = vmax.f32 %v506, 0.0
    %v535 = vmax.f32 %v507, 0.0
    %v536 = vmax.f32 %v508, 0.0
    %v537 = vmax.f32 %v509, 0.0
    %v538 = vmax.f32 %v510, 0.0
    %v539 = vmax.f32 %v511, 0.0
    %v540 = vmax.f32 %v512, 0.0
    %v541 = vmax.f32 %v513, 0.0
    %v542 = vmax.f32 %v514, 0.0
    %v543 = vmax.f32 %v515, 0.0
    %v544 = vmax.f32 %v516, 0.0
    %v545 = vmax.f32 %v517, 0.0
    %v546 = vmax.f32 %v518, 0.0
    %v547 = vmax.f32 %v519, 0.0
    %v548 = vmax.f32 %v520, 0.0
    %v549 = vmax.f32 %v521, 0.0
    %v550 = vmax.f32 %v522, 0.0
    %v551 = vmax.f32 %v523, 0.0
    %v552 = vmax.f32 %v524, 0.0
    %v553 = vmax.f32 %v525, 0.0
    %v554 = vmax.f32 %v526, 0.0
    %v555 = vmax.f32 %v527, 0.0
    %v556 = vmax.f32 %v528, 0.0
    %v557 = vmax.f32 %v529, 0.0
    %v558 = vpack.c.bf16 %v531, %v530
    %v559 = vpack.c.bf16 %v533, %v532
    %v560 = vpack.c.bf16 %v535, %v534
    %v561 = vpack.c.bf16 %v537, %v536
    %v562 = vpack.c.bf16 %v539, %v538
    %v563 = vpack.c.bf16 %v541, %v540
    %v564 = vpack.c.bf16 %v543, %v542
    %v565 = vpack.c.bf16 %v545, %v544
    %v566 = vpack.c.bf16 %v547, %v546
    %v567 = vpack.c.bf16 %v549, %v548
    %v568 = vpack.c.bf16 %v551, %v550
    %v569 = vpack.c.bf16 %v553, %v552
    %v570 = vpack.c.bf16 %v555, %v554
    %v571 = vpack.c.bf16 %v557, %v556
    %v572 = vld [vmem:[%s4] sm:$0xf]
    %v573 = vld [vmem:[%s4 + $0x4] sm:$0xf]
    %v574 = vld [vmem:[%s4 + $0x8] sm:$0xf]
    %v575 = vld [vmem:[%s4 + $0xc] sm:$0xf]
    %v576 = vld [vmem:[%s4 + $0x10] sm:$0xf]
    %v577 = vld [vmem:[%s4 + $0x14] sm:$0xf]
    %v578 = vld [vmem:[%s4 + $0x18] sm:$0xf]
    %v579 = vld [vmem:[%s4 + $0x1c] sm:$0xf]
    %v580 = vld [vmem:[%s4 + $0x20] sm:$0xf]
    %v581 = vld [vmem:[%s4 + $0x24] sm:$0xf]
    %v582 = vld [vmem:[%s4 + $0x28] sm:$0xf]
    %v583 = vld [vmem:[%s4 + $0x2c] sm:$0xf]
    %v584 = vld [vmem:[%s4 + $0x30] sm:$0xf]
    %v585 = vld [vmem:[%s4 + $0x34] sm:$0xf]
    %v586 = vld [vmem:[%s4 + $0x38] sm:$0xf]
    %v587 = vld [vmem:[%s4 + $0x3c] sm:$0xf]
    %v604 = vunpack.c.l.b16 %v572
    %v605 = vunpack.c.l.b16 %v573
    %v606 = vunpack.c.l.b16 %v574
    %v607 = vunpack.c.l.b16 %v575
    %v608 = vunpack.c.l.b16 %v576
    %v609 = vunpack.c.l.b16 %v577
    %v610 = vunpack.c.l.b16 %v578
    %v611 = vunpack.c.l.b16 %v579
    %v612 = vunpack.c.l.b16 %v580
    %v613 = vunpack.c.l.b16 %v581
    %v614 = vunpack.c.l.b16 %v582
    %v615 = vunpack.c.l.b16 %v583
    %v616 = vunpack.c.l.b16 %v584
    %v617 = vunpack.c.l.b16 %v585
    %v618 = vunpack.c.l.b16 %v586
    %v619 = vunpack.c.l.b16 %v587
    %v620 = vpack.c.b16 %v605, %v604
    %v621 = vpack.c.b16 %v607, %v606
    %v622 = vpack.c.b16 %v609, %v608
    %v623 = vpack.c.b16 %v611, %v610
    %v624 = vpack.c.b16 %v613, %v612
    %v625 = vpack.c.b16 %v615, %v614
    %v626 = vpack.c.b16 %v617, %v616
    %v627 = vpack.c.b16 %v619, %v618
    %636 = vmatprep.subr.bf16.mxu0 0
    %637 = vmatpush1.bf16.msra.mxu0 %v620
    %638 = vmatprep.subr.bf16.mxu0 0
    %639 = vmatpush1.bf16.msra.mxu0 %v621
    %640 = vmatprep.subr.bf16.mxu0 0
    %641 = vmatpush1.bf16.msra.mxu0 %v622
    %642 = vmatprep.subr.bf16.mxu0 0
    %643 = vmatpush1.bf16.msra.mxu0 %v623
    %644 = vmatprep.subr.bf16.mxu0 0
    %645 = vmatpush1.bf16.msra.mxu0 %v624
    %646 = vmatprep.subr.bf16.mxu0 0
    %647 = vmatpush1.bf16.msra.mxu0 %v625
    %648 = vmatprep.subr.bf16.mxu0 0
    %649 = vmatpush1.bf16.msra.mxu0 %v626
    %650 = vmatprep.subr.bf16.mxu0 0
    %651 = vmatpush1.bf16.msra.mxu0 %v627
    %652 = vmatprep.subr.bf16.mxu0 0
    %653 = vmatpush1.bf16.msra.mxu0 0
    %654 = vmatprep.subr.bf16.mxu0 0
    %655 = vmatpush1.bf16.msra.mxu0 0
    %656 = vmatprep.subr.bf16.mxu0 0
    %657 = vmatpush1.bf16.msra.mxu0 0
    %658 = vmatprep.subr.bf16.mxu0 0
    %659 = vmatpush1.bf16.msra.mxu0 0
    %660 = vmatprep.subr.bf16.mxu0 0
    %661 = vmatpush1.bf16.msra.mxu0 0
    %662 = vmatprep.subr.bf16.mxu0 0
    %663 = vmatpush1.bf16.msra.mxu0 0
    %664 = vmatprep.subr.bf16.mxu0 0
    %665 = vmatpush1.bf16.msra.mxu0 0
    %666 = vmatprep.subr.bf16.mxu0 0
    %667 = vmatpush1.bf16.msra.mxu0 0
    %668 = vmatprep.mubr.bf16.mxu0 0
    %669 = vmatmul.mubr.bf16.gmra.mrb[0].mxu0 %v558
    %v670 = vpop.f32.mrb[0].mxu0
    %v671 = vadd.f32 0.0, %v670
    %v672 = vpop.f32.mrb[0].mxu0
    %v673 = vpop.f32.mrb[0].mxu0
    %v674 = vadd.f32 0.0, %v673
    %v675 = vpop.f32.mrb[0].mxu0
    %676 = vmatprep.mubr.bf16.mxu0 0
    %677 = vmatmul.mubr.bf16.gmra.mrb[0].mxu0 %v559
    %v678 = vpop.f32.mrb[0].mxu0
    %v679 = vadd.f32 0.0, %v678
    %v680 = vpop.f32.mrb[0].mxu0
    %v681 = vpop.f32.mrb[0].mxu0
    %v682 = vadd.f32 0.0, %v681
    %v683 = vpop.f32.mrb[0].mxu0
    %684 = vmatprep.mubr.bf16.mxu0 0
    %685 = vmatmul.mubr.bf16.gmra.mrb[0].mxu0 %v560
    %v686 = vpop.f32.mrb[0].mxu0
    %v687 = vadd.f32 0.0, %v686
    %v688 = vpop.f32.mrb[0].mxu0
    %v689 = vpop.f32.mrb[0].mxu0
    %v690 = vadd.f32 0.0, %v689
    %v691 = vpop.f32.mrb[0].mxu0
    %692 = vmatprep.mubr.bf16.mxu0 0
    %693 = vmatmul.mubr.bf16.gmra.mrb[0].mxu0 %v561
    %v694 = vpop.f32.mrb[0].mxu0
    %v695 = vadd.f32 0.0, %v694
    %v696 = vpop.f32.mrb[0].mxu0
    %v697 = vpop.f32.mrb[0].mxu0
    %v698 = vadd.f32 0.0, %v697
    %v699 = vpop.f32.mrb[0].mxu0
    %700 = vmatprep.mubr.bf16.mxu0 0
    %701 = vmatmul.mubr.bf16.gmra.mrb[0].mxu0 %v562
    %v702 = vpop.f32.mrb[0].mxu0
    %v703 = vadd.f32 0.0, %v702
    %v704 = vpop.f32.mrb[0].mxu0
    %v705 = vpop.f32.mrb[0].mxu0
    %v706 = vadd.f32 0.0, %v705
    %v707 = vpop.f32.mrb[0].mxu0
    %708 = vmatprep.mubr.bf16.mxu0 0
    %709 = vmatmul.mubr.bf16.gmra.mrb[0].mxu0 %v563
    %v710 = vpop.f32.mrb[0].mxu0
    %v711 = vadd.f32 0.0, %v710
    %v712 = vpop.f32.mrb[0].mxu0
    %v713 = vpop.f32.mrb[0].mxu0
    %v714 = vadd.f32 0.0, %v713
    %v715 = vpop.f32.mrb[0].mxu0
    %716 = vmatprep.mubr.bf16.mxu0 0
    %717 = vmatmul.mubr.bf16.gmra.mrb[0].mxu0 %v564
    %v718 = vpop.f32.mrb[0].mxu0
    %v719 = vadd.f32 0.0, %v718
    %v720 = vpop.f32.mrb[0].mxu0
    %v721 = vpop.f32.mrb[0].mxu0
    %v722 = vadd.f32 0.0, %v721
    %v723 = vpop.f32.mrb[0].mxu0
    %724 = vmatprep.mubr.bf16.mxu0 0
    %725 = vmatmul.mubr.bf16.gmra.mrb[0].mxu0 %v565
    %v726 = vpop.f32.mrb[0].mxu0
    %v727 = vadd.f32 0.0, %v726
    %v728 = vpop.f32.mrb[0].mxu0
    %v729 = vpop.f32.mrb[0].mxu0
    %v730 = vadd.f32 0.0, %v729
    %v731 = vpop.f32.mrb[0].mxu0
    %732 = vmatprep.mubr.bf16.mxu0 0
    %733 = vmatmul.mubr.bf16.gmra.mrb[0].mxu0 %v566
    %v734 = vpop.f32.mrb[0].mxu0
    %v735 = vadd.f32 0.0, %v734
    %v736 = vpop.f32.mrb[0].mxu0
    %v737 = vpop.f32.mrb[0].mxu0
    %v738 = vadd.f32 0.0, %v737
    %v739 = vpop.f32.mrb[0].mxu0
    %740 = vmatprep.mubr.bf16.mxu0 0
    %741 = vmatmul.mubr.bf16.gmra.mrb[0].mxu0 %v567
    %v742 = vpop.f32.mrb[0].mxu0
    %v743 = vadd.f32 0.0, %v742
    %v744 = vpop.f32.mrb[0].mxu0
    %v745 = vpop.f32.mrb[0].mxu0
    %v746 = vadd.f32 0.0, %v745
    %v747 = vpop.f32.mrb[0].mxu0
    %748 = vmatprep.mubr.bf16.mxu0 0
    %749 = vmatmul.mubr.bf16.gmra.mrb[0].mxu0 %v568
    %v750 = vpop.f32.mrb[0].mxu0
    %v751 = vadd.f32 0.0, %v750
    %v752 = vpop.f32.mrb[0].mxu0
    %v753 = vpop.f32.mrb[0].mxu0
    %v754 = vadd.f32 0.0, %v753
    %v755 = vpop.f32.mrb[0].mxu0
    %756 = vmatprep.mubr.bf16.mxu0 0
    %757 = vmatmul.mubr.bf16.gmra.mrb[0].mxu0 %v569
    %v758 = vpop.f32.mrb[0].mxu0
    %v759 = vadd.f32 0.0, %v758
    %v760 = vpop.f32.mrb[0].mxu0
    %v761 = vpop.f32.mrb[0].mxu0
    %v762 = vadd.f32 0.0, %v761
    %v763 = vpop.f32.mrb[0].mxu0
    %764 = vmatprep.mubr.bf16.mxu0 0
    %765 = vmatmul.mubr.bf16.gmra.mrb[0].mxu0 %v570
    %v766 = vpop.f32.mrb[0].mxu0
    %v767 = vadd.f32 0.0, %v766
    %v768 = vpop.f32.mrb[0].mxu0
    %v769 = vpop.f32.mrb[0].mxu0
    %v770 = vadd.f32 0.0, %v769
    %v771 = vpop.f32.mrb[0].mxu0
    %772 = vmatprep.mubr.bf16.mxu0 0
    %773 = vmatmul.mubr.bf16.gmra.mrb[0].mxu0 %v571
    %v774 = vpop.f32.mrb[0].mxu0
    %v775 = vadd.f32 0.0, %v774
    %v776 = vpop.f32.mrb[0].mxu0
    %v777 = vpop.f32.mrb[0].mxu0
    %v778 = vadd.f32 0.0, %v777
    %v779 = vpop.f32.mrb[0].mxu0
    %780 = vdwg.mxu0
    %v781 = vld [vmem:[%s5] sm:$0x1]
    %v783 = vlaneseq
    %v784 = vshrl.u32 %v783, 7
    %v785 = vsub.s32 0, %v784
    %v786 = vrot.slane %v781, %v785
    %v788 = vmul.f32 %v671, %v786
    %v789 = vmul.f32 %v674, %v786
    %v790 = vmul.f32 %v679, %v786
    %v791 = vmul.f32 %v682, %v786
    %v792 = vmul.f32 %v687, %v786
    %v793 = vmul.f32 %v690, %v786
    %v794 = vmul.f32 %v695, %v786
    %v795 = vmul.f32 %v698, %v786
    %v796 = vmul.f32 %v703, %v786
    %v797 = vmul.f32 %v706, %v786
    %v798 = vmul.f32 %v711, %v786
    %v799 = vmul.f32 %v714, %v786
    %v800 = vmul.f32 %v719, %v786
    %v801 = vmul.f32 %v722, %v786
    %v802 = vmul.f32 %v727, %v786
    %v803 = vmul.f32 %v730, %v786
    %v804 = vmul.f32 %v735, %v786
    %v805 = vmul.f32 %v738, %v786
    %v806 = vmul.f32 %v743, %v786
    %v807 = vmul.f32 %v746, %v786
    %v808 = vmul.f32 %v751, %v786
    %v809 = vmul.f32 %v754, %v786
    %v810 = vmul.f32 %v759, %v786
    %v811 = vmul.f32 %v762, %v786
    %v812 = vmul.f32 %v767, %v786
    %v813 = vmul.f32 %v770, %v786
    %v814 = vmul.f32 %v775, %v786
    %v815 = vmul.f32 %v778, %v786
    %v816 = vld [vmem:[%s6] sm:$0x1]
    %v818 = vlaneseq
    %v819 = vshrl.u32 %v818, 7
    %v820 = vsub.s32 0, %v819
    %v821 = vrot.slane %v816, %v820
    %v823 = vadd.f32 %v788, %v821
    %v824 = vadd.f32 %v789, %v821
    %v825 = vadd.f32 %v790, %v821
    %v826 = vadd.f32 %v791, %v821
    %v827 = vadd.f32 %v792, %v821
    %v828 = vadd.f32 %v793, %v821
    %v829 = vadd.f32 %v794, %v821
    %v830 = vadd.f32 %v795, %v821
    %v831 = vadd.f32 %v796, %v821
    %v832 = vadd.f32 %v797, %v821
    %v833 = vadd.f32 %v798, %v821
    %v834 = vadd.f32 %v799, %v821
    %v835 = vadd.f32 %v800, %v821
    %v836 = vadd.f32 %v801, %v821
    %v837 = vadd.f32 %v802, %v821
    %v838 = vadd.f32 %v803, %v821
    %v839 = vadd.f32 %v804, %v821
    %v840 = vadd.f32 %v805, %v821
    %v841 = vadd.f32 %v806, %v821
    %v842 = vadd.f32 %v807, %v821
    %v843 = vadd.f32 %v808, %v821
    %v844 = vadd.f32 %v809, %v821
    %v845 = vadd.f32 %v810, %v821
    %v846 = vadd.f32 %v811, %v821
    %v847 = vadd.f32 %v812, %v821
    %v848 = vadd.f32 %v813, %v821
    %v849 = vadd.f32 %v814, %v821
    %v850 = vadd.f32 %v815, %v821
    %v851 = vmax.f32 %v823, 0.0
    %v852 = vmax.f32 %v824, 0.0
    %v853 = vmax.f32 %v825, 0.0
    %v854 = vmax.f32 %v826, 0.0
    %v855 = vmax.f32 %v827, 0.0
    %v856 = vmax.f32 %v828, 0.0
    %v857 = vmax.f32 %v829, 0.0
    %v858 = vmax.f32 %v830, 0.0
    %v859 = vmax.f32 %v831, 0.0
    %v860 = vmax.f32 %v832, 0.0
    %v861 = vmax.f32 %v833, 0.0
    %v862 = vmax.f32 %v834, 0.0
    %v863 = vmax.f32 %v835, 0.0
    %v864 = vmax.f32 %v836, 0.0
    %v865 = vmax.f32 %v837, 0.0
    %v866 = vmax.f32 %v838, 0.0
    %v867 = vmax.f32 %v839, 0.0
    %v868 = vmax.f32 %v840, 0.0
    %v869 = vmax.f32 %v841, 0.0
    %v870 = vmax.f32 %v842, 0.0
    %v871 = vmax.f32 %v843, 0.0
    %v872 = vmax.f32 %v844, 0.0
    %v873 = vmax.f32 %v845, 0.0
    %v874 = vmax.f32 %v846, 0.0
    %v875 = vmax.f32 %v847, 0.0
    %v876 = vmax.f32 %v848, 0.0
    %v877 = vmax.f32 %v849, 0.0
    %v878 = vmax.f32 %v850, 0.0
    %vm879 = vcmask 261120
    %880 = vst.msk [vmem:[#allocation2] sm:$0xff] %vm879, %v851
    %881 = vst.msk [vmem:[#allocation2 + $0x8] sm:$0xff] %vm879, %v852
    %882 = vst.msk [vmem:[#allocation2 + $0x10] sm:$0xff] %vm879, %v853
    %883 = vst.msk [vmem:[#allocation2 + $0x18] sm:$0xff] %vm879, %v854
    %884 = vst.msk [vmem:[#allocation2 + $0x20] sm:$0xff] %vm879, %v855
    %885 = vst.msk [vmem:[#allocation2 + $0x28] sm:$0xff] %vm879, %v856
    %886 = vst.msk [vmem:[#allocation2 + $0x30] sm:$0xff] %vm879, %v857
    %887 = vst.msk [vmem:[#allocation2 + $0x38] sm:$0xff] %vm879, %v858
    %888 = vst.msk [vmem:[#allocation2 + $0x40] sm:$0xff] %vm879, %v859
    %889 = vst.msk [vmem:[#allocation2 + $0x48] sm:$0xff] %vm879, %v860
    %890 = vst.msk [vmem:[#allocation2 + $0x50] sm:$0xff] %vm879, %v861
    %891 = vst.msk [vmem:[#allocation2 + $0x58] sm:$0xff] %vm879, %v862
    %892 = vst.msk [vmem:[#allocation2 + $0x60] sm:$0xff] %vm879, %v863
    %893 = vst.msk [vmem:[#allocation2 + $0x68] sm:$0xff] %vm879, %v864
    %894 = vst.msk [vmem:[#allocation2 + $0x70] sm:$0xff] %vm879, %v865
    %895 = vst.msk [vmem:[#allocation2 + $0x78] sm:$0xff] %vm879, %v866
    %896 = vst.msk [vmem:[#allocation2 + $0x80] sm:$0xff] %vm879, %v867
    %897 = vst.msk [vmem:[#allocation2 + $0x88] sm:$0xff] %vm879, %v868
    %898 = vst.msk [vmem:[#allocation2 + $0x90] sm:$0xff] %vm879, %v869
    %899 = vst.msk [vmem:[#allocation2 + $0x98] sm:$0xff] %vm879, %v870
    %900 = vst.msk [vmem:[#allocation2 + $0xa0] sm:$0xff] %vm879, %v871
    %901 = vst.msk [vmem:[#allocation2 + $0xa8] sm:$0xff] %vm879, %v872
    %902 = vst.msk [vmem:[#allocation2 + $0xb0] sm:$0xff] %vm879, %v873
    %903 = vst.msk [vmem:[#allocation2 + $0xb8] sm:$0xff] %vm879, %v874
    %904 = vst.msk [vmem:[#allocation2 + $0xc0] sm:$0xff] %vm879, %v875
    %905 = vst.msk [vmem:[#allocation2 + $0xc8] sm:$0xff] %vm879, %v876
    %906 = vst.msk [vmem:[#allocation2 + $0xd0] sm:$0xff] %vm879, %v877
    %vm907 = vcmask 257024
    %908 = vst.msk [vmem:[#allocation2 + $0xd8] sm:$0xf] %vm907, %v878
    %v909 = vld [vmem:[#allocation2] sm:$0x3]
    %vm910 = vcmask 254976
    %911 = vst.msk [vmem:[#allocation3] sm:$0x3] %vm910, %v909
    %v912 = vld [vmem:[#allocation2 + $0x2] sm:$0x3]
    %v915 = vunpack.c.l.s4 1983009808
    %v916 = vunpack.c.0.s8 %v915
    %v917 = vlaneseq
    %v918 = vshrl.u32 %v917, 7
    %v919 = vsub.s32 %v916, %v918
    %v920 = vrot.slane %v912, %v919
    %921 = vrot.lane.b32.xlu0 %v920, 32
    %v922 = vpop.permute.xlu0 %921
    %vm924 = vcmask 517376
    %925 = vst.msk [vmem:[#allocation3] sm:$0x3] %vm924, %v922
    %v926 = vld [vmem:[#allocation2 + $0x4] sm:$0x3]
    %v929 = vunpack.c.l.s4 1983009808
    %v930 = vunpack.c.0.s8 %v929
    %v931 = vlaneseq
    %v932 = vshrl.u32 %v931, 7
    %v933 = vsub.s32 %v930, %v932
    %v934 = vrot.slane %v926, %v933
    %935 = vrot.lane.b32.xlu0 %v934, 64
    %v936 = vpop.permute.xlu0 %935
    %vm938 = vcmask 779776
    %939 = vst.msk [vmem:[#allocation3] sm:$0x3] %vm938, %v936
    %v940 = vld [vmem:[#allocation2 + $0x6] sm:$0x3]
    %v943 = vunpack.c.l.s4 1983009808
    %v944 = vunpack.c.0.s8 %v943
    %v945 = vlaneseq
    %v946 = vshrl.u32 %v945, 7
    %v947 = vsub.s32 %v944, %v946
    %v948 = vrot.slane %v940, %v947
    %949 = vrot.lane.b32.xlu0 %v948, 96
    %v950 = vpop.permute.xlu0 %949
    %vm952 = vcmask 1042176
    %953 = vst.msk [vmem:[#allocation3] sm:$0x3] %vm952, %v950
    %v954 = vld [vmem:[#allocation2 + $0x8] sm:$0x3]
    %955 = vst.msk [vmem:[#allocation3 + $0x2] sm:$0x3] %vm910, %v954
    %v956 = vld [vmem:[#allocation2 + $0xa] sm:$0x3]
    %v959 = vunpack.c.l.s4 1983009808
    %v960 = vunpack.c.0.s8 %v959
    %v961 = vlaneseq
    %v962 = vshrl.u32 %v961, 7
    %v963 = vsub.s32 %v960, %v962
    %v964 = vrot.slane %v956, %v963
    %965 = vrot.lane.b32.xlu0 %v964, 32
    %v966 = vpop.permute.xlu0 %965
    %968 = vst.msk [vmem:[#allocation3 + $0x2] sm:$0x3] %vm924, %v966
    %v969 = vld [vmem:[#allocation2 + $0xc] sm:$0x3]
    %v972 = vunpack.c.l.s4 1983009808
    %v973 = vunpack.c.0.s8 %v972
    %v974 = vlaneseq
    %v975 = vshrl.u32 %v974, 7
    %v976 = vsub.s32 %v973, %v975
    %v977 = vrot.slane %v969, %v976
    %978 = vrot.lane.b32.xlu0 %v977, 64
    %v979 = vpop.permute.xlu0 %978
    %981 = vst.msk [vmem:[#allocation3 + $0x2] sm:$0x3] %vm938, %v979
    %v982 = vld [vmem:[#allocation2 + $0xe] sm:$0x3]
    %v985 = vunpack.c.l.s4 1983009808
    %v986 = vunpack.c.0.s8 %v985
    %v987 = vlaneseq
    %v988 = vshrl.u32 %v987, 7
    %v989 = vsub.s32 %v986, %v988
    %v990 = vrot.slane %v982, %v989
    %991 = vrot.lane.b32.xlu0 %v990, 96
    %v992 = vpop.permute.xlu0 %991
    %994 = vst.msk [vmem:[#allocation3 + $0x2] sm:$0x3] %vm952, %v992
    %v995 = vld [vmem:[#allocation2 + $0x10] sm:$0x3]
    %996 = vst.msk [vmem:[#allocation3 + $0x4] sm:$0x3] %vm910, %v995
    %v997 = vld [vmem:[#allocation2 + $0x12] sm:$0x3]
    %v1000 = vunpack.c.l.s4 1983009808
    %v1001 = vunpack.c.0.s8 %v1000
    %v1002 = vlaneseq
    %v1003 = vshrl.u32 %v1002, 7
    %v1004 = vsub.s32 %v1001, %v1003
    %v1005 = vrot.slane %v997, %v1004
    %1006 = vrot.lane.b32.xlu0 %v1005, 32
    %v1007 = vpop.permute.xlu0 %1006
    %1009 = vst.msk [vmem:[#allocation3 + $0x4] sm:$0x3] %vm924, %v1007
    %v1010 = vld [vmem:[#allocation2 + $0x14] sm:$0x3]
    %v1013 = vunpack.c.l.s4 1983009808
    %v1014 = vunpack.c.0.s8 %v1013
    %v1015 = vlaneseq
    %v1016 = vshrl.u32 %v1015, 7
    %v1017 = vsub.s32 %v1014, %v1016
    %v1018 = vrot.slane %v1010, %v1017
    %1019 = vrot.lane.b32.xlu0 %v1018, 64
    %v1020 = vpop.permute.xlu0 %1019
    %1022 = vst.msk [vmem:[#allocation3 + $0x4] sm:$0x3] %vm938, %v1020
    %v1023 = vld [vmem:[#allocation2 + $0x16] sm:$0x3]
    %v1026 = vunpack.c.l.s4 1983009808
    %v1027 = vunpack.c.0.s8 %v1026
    %v1028 = vlaneseq
    %v1029 = vshrl.u32 %v1028, 7
    %v1030 = vsub.s32 %v1027, %v1029
    %v1031 = vrot.slane %v1023, %v1030
    %1032 = vrot.lane.b32.xlu0 %v1031, 96
    %v1033 = vpop.permute.xlu0 %1032
    %1035 = vst.msk [vmem:[#allocation3 + $0x4] sm:$0x3] %vm952, %v1033
    %v1036 = vld [vmem:[#allocation2 + $0x18] sm:$0x3]
    %1037 = vst.msk [vmem:[#allocation3 + $0x6] sm:$0x3] %vm910, %v1036
    %v1038 = vld [vmem:[#allocation2 + $0x1a] sm:$0x3]
    %v1041 = vunpack.c.l.s4 1983009808
    %v1042 = vunpack.c.0.s8 %v1041
    %v1043 = vlaneseq
    %v1044 = vshrl.u32 %v1043, 7
    %v1045 = vsub.s32 %v1042, %v1044
    %v1046 = vrot.slane %v1038, %v1045
    %1047 = vrot.lane.b32.xlu0 %v1046, 32
    %v1048 = vpop.permute.xlu0 %1047
    %1050 = vst.msk [vmem:[#allocation3 + $0x6] sm:$0x3] %vm924, %v1048
    %v1051 = vld [vmem:[#allocation2 + $0x1c] sm:$0x3]
    %v1054 = vunpack.c.l.s4 1983009808
    %v1055 = vunpack.c.0.s8 %v1054
    %v1056 = vlaneseq
    %v1057 = vshrl.u32 %v1056, 7
    %v1058 = vsub.s32 %v1055, %v1057
    %v1059 = vrot.slane %v1051, %v1058
    %1060 = vrot.lane.b32.xlu0 %v1059, 64
    %v1061 = vpop.permute.xlu0 %1060
    %1063 = vst.msk [vmem:[#allocation3 + $0x6] sm:$0x3] %vm938, %v1061
    %v1064 = vld [vmem:[#allocation2 + $0x1e] sm:$0x3]
    %v1067 = vunpack.c.l.s4 1983009808
    %v1068 = vunpack.c.0.s8 %v1067
    %v1069 = vlaneseq
    %v1070 = vshrl.u32 %v1069, 7
    %v1071 = vsub.s32 %v1068, %v1070
    %v1072 = vrot.slane %v1064, %v1071
    %1073 = vrot.lane.b32.xlu0 %v1072, 96
    %v1074 = vpop.permute.xlu0 %1073
    %1076 = vst.msk [vmem:[#allocation3 + $0x6] sm:$0x3] %vm952, %v1074
    %v1077 = vld [vmem:[#allocation2 + $0x20] sm:$0x3]
    %1078 = vst.msk [vmem:[#allocation3 + $0x8] sm:$0x3] %vm910, %v1077
    %v1079 = vld [vmem:[#allocation2 + $0x22] sm:$0x3]
    %v1082 = vunpack.c.l.s4 1983009808
    %v1083 = vunpack.c.0.s8 %v1082
    %v1084 = vlaneseq
    %v1085 = vshrl.u32 %v1084, 7
    %v1086 = vsub.s32 %v1083, %v1085
    %v1087 = vrot.slane %v1079, %v1086
    %1088 = vrot.lane.b32.xlu0 %v1087, 32
    %v1089 = vpop.permute.xlu0 %1088
    %1091 = vst.msk [vmem:[#allocation3 + $0x8] sm:$0x3] %vm924, %v1089
    %v1092 = vld [vmem:[#allocation2 + $0x24] sm:$0x3]
    %v1095 = vunpack.c.l.s4 1983009808
    %v1096 = vunpack.c.0.s8 %v1095
    %v1097 = vlaneseq
    %v1098 = vshrl.u32 %v1097, 7
    %v1099 = vsub.s32 %v1096, %v1098
    %v1100 = vrot.slane %v1092, %v1099
    %1101 = vrot.lane.b32.xlu0 %v1100, 64
    %v1102 = vpop.permute.xlu0 %1101
    %1104 = vst.msk [vmem:[#allocation3 + $0x8] sm:$0x3] %vm938, %v1102
    %v1105 = vld [vmem:[#allocation2 + $0x26] sm:$0x3]
    %v1108 = vunpack.c.l.s4 1983009808
    %v1109 = vunpack.c.0.s8 %v1108
    %v1110 = vlaneseq
    %v1111 = vshrl.u32 %v1110, 7
    %v1112 = vsub.s32 %v1109, %v1111
    %v1113 = vrot.slane %v1105, %v1112
    %1114 = vrot.lane.b32.xlu0 %v1113, 96
    %v1115 = vpop.permute.xlu0 %1114
    %1117 = vst.msk [vmem:[#allocation3 + $0x8] sm:$0x3] %vm952, %v1115
    %v1118 = vld [vmem:[#allocation2 + $0x28] sm:$0x3]
    %1119 = vst.msk [vmem:[#allocation3 + $0xa] sm:$0x3] %vm910, %v1118
    %v1120 = vld [vmem:[#allocation2 + $0x2a] sm:$0x3]
    %v1123 = vunpack.c.l.s4 1983009808
    %v1124 = vunpack.c.0.s8 %v1123
    %v1125 = vlaneseq
    %v1126 = vshrl.u32 %v1125, 7
    %v1127 = vsub.s32 %v1124, %v1126
    %v1128 = vrot.slane %v1120, %v1127
    %1129 = vrot.lane.b32.xlu0 %v1128, 32
    %v1130 = vpop.permute.xlu0 %1129
    %1132 = vst.msk [vmem:[#allocation3 + $0xa] sm:$0x3] %vm924, %v1130
    %v1133 = vld [vmem:[#allocation2 + $0x2c] sm:$0x3]
    %v1136 = vunpack.c.l.s4 1983009808
    %v1137 = vunpack.c.0.s8 %v1136
    %v1138 = vlaneseq
    %v1139 = vshrl.u32 %v1138, 7
    %v1140 = vsub.s32 %v1137, %v1139
    %v1141 = vrot.slane %v1133, %v1140
    %1142 = vrot.lane.b32.xlu0 %v1141, 64
    %v1143 = vpop.permute.xlu0 %1142
    %1145 = vst.msk [vmem:[#allocation3 + $0xa] sm:$0x3] %vm938, %v1143
    %v1146 = vld [vmem:[#allocation2 + $0x2e] sm:$0x3]
    %v1149 = vunpack.c.l.s4 1983009808
    %v1150 = vunpack.c.0.s8 %v1149
    %v1151 = vlaneseq
    %v1152 = vshrl.u32 %v1151, 7
    %v1153 = vsub.s32 %v1150, %v1152
    %v1154 = vrot.slane %v1146, %v1153
    %1155 = vrot.lane.b32.xlu0 %v1154, 96
    %v1156 = vpop.permute.xlu0 %1155
    %1158 = vst.msk [vmem:[#allocation3 + $0xa] sm:$0x3] %vm952, %v1156
    %v1159 = vld [vmem:[#allocation2 + $0x30] sm:$0x3]
    %1160 = vst.msk [vmem:[#allocation3 + $0xc] sm:$0x3] %vm910, %v1159
    %v1161 = vld [vmem:[#allocation2 + $0x32] sm:$0x3]
    %v1164 = vunpack.c.l.s4 1983009808
    %v1165 = vunpack.c.0.s8 %v1164
    %v1166 = vlaneseq
    %v1167 = vshrl.u32 %v1166, 7
    %v1168 = vsub.s32 %v1165, %v1167
    %v1169 = vrot.slane %v1161, %v1168
    %1170 = vrot.lane.b32.xlu0 %v1169, 32
    %v1171 = vpop.permute.xlu0 %1170
    %1173 = vst.msk [vmem:[#allocation3 + $0xc] sm:$0x3] %vm924, %v1171
    %v1174 = vld [vmem:[#allocation2 + $0x34] sm:$0x3]
    %v1177 = vunpack.c.l.s4 1983009808
    %v1178 = vunpack.c.0.s8 %v1177
    %v1179 = vlaneseq
    %v1180 = vshrl.u32 %v1179, 7
    %v1181 = vsub.s32 %v1178, %v1180
    %v1182 = vrot.slane %v1174, %v1181
    %1183 = vrot.lane.b32.xlu0 %v1182, 64
    %v1184 = vpop.permute.xlu0 %1183
    %1186 = vst.msk [vmem:[#allocation3 + $0xc] sm:$0x3] %vm938, %v1184
    %v1187 = vld [vmem:[#allocation2 + $0x36] sm:$0x3]
    %v1190 = vunpack.c.l.s4 1983009808
    %v1191 = vunpack.c.0.s8 %v1190
    %v1192 = vlaneseq
    %v1193 = vshrl.u32 %v1192, 7
    %v1194 = vsub.s32 %v1191, %v1193
    %v1195 = vrot.slane %v1187, %v1194
    %1196 = vrot.lane.b32.xlu0 %v1195, 96
    %v1197 = vpop.permute.xlu0 %1196
    %1199 = vst.msk [vmem:[#allocation3 + $0xc] sm:$0x3] %vm952, %v1197
    %v1200 = vld [vmem:[#allocation2 + $0x38] sm:$0x3]
    %1201 = vst.msk [vmem:[#allocation3 + $0xe] sm:$0x3] %vm910, %v1200
    %v1202 = vld [vmem:[#allocation2 + $0x3a] sm:$0x3]
    %v1205 = vunpack.c.l.s4 1983009808
    %v1206 = vunpack.c.0.s8 %v1205
    %v1207 = vlaneseq
    %v1208 = vshrl.u32 %v1207, 7
    %v1209 = vsub.s32 %v1206, %v1208
    %v1210 = vrot.slane %v1202, %v1209
    %1211 = vrot.lane.b32.xlu0 %v1210, 32
    %v1212 = vpop.permute.xlu0 %1211
    %1214 = vst.msk [vmem:[#allocation3 + $0xe] sm:$0x3] %vm924, %v1212
    %v1215 = vld [vmem:[#allocation2 + $0x3c] sm:$0x3]
    %v1218 = vunpack.c.l.s4 1983009808
    %v1219 = vunpack.c.0.s8 %v1218
    %v1220 = vlaneseq
    %v1221 = vshrl.u32 %v1220, 7
    %v1222 = vsub.s32 %v1219, %v1221
    %v1223 = vrot.slane %v1215, %v1222
    %1224 = vrot.lane.b32.xlu0 %v1223, 64
    %v1225 = vpop.permute.xlu0 %1224
    %1227 = vst.msk [vmem:[#allocation3 + $0xe] sm:$0x3] %vm938, %v1225
    %v1228 = vld [vmem:[#allocation2 + $0x3e] sm:$0x3]
    %v1231 = vunpack.c.l.s4 1983009808
    %v1232 = vunpack.c.0.s8 %v1231
    %v1233 = vlaneseq
    %v1234 = vshrl.u32 %v1233, 7
    %v1235 = vsub.s32 %v1232, %v1234
    %v1236 = vrot.slane %v1228, %v1235
    %1237 = vrot.lane.b32.xlu0 %v1236, 96
    %v1238 = vpop.permute.xlu0 %1237
    %1240 = vst.msk [vmem:[#allocation3 + $0xe] sm:$0x3] %vm952, %v1238
    %v1241 = vld [vmem:[#allocation2 + $0x40] sm:$0x3]
    %1242 = vst.msk [vmem:[#allocation3 + $0x10] sm:$0x3] %vm910, %v1241
    %v1243 = vld [vmem:[#allocation2 + $0x42] sm:$0x3]
    %v1246 = vunpack.c.l.s4 1983009808
    %v1247 = vunpack.c.0.s8 %v1246
    %v1248 = vlaneseq
    %v1249 = vshrl.u32 %v1248, 7
    %v1250 = vsub.s32 %v1247, %v1249
    %v1251 = vrot.slane %v1243, %v1250
    %1252 = vrot.lane.b32.xlu0 %v1251, 32
    %v1253 = vpop.permute.xlu0 %1252
    %1255 = vst.msk [vmem:[#allocation3 + $0x10] sm:$0x3] %vm924, %v1253
    %v1256 = vld [vmem:[#allocation2 + $0x44] sm:$0x3]
    %v1259 = vunpack.c.l.s4 1983009808
    %v1260 = vunpack.c.0.s8 %v1259
    %v1261 = vlaneseq
    %v1262 = vshrl.u32 %v1261, 7
    %v1263 = vsub.s32 %v1260, %v1262
    %v1264 = vrot.slane %v1256, %v1263
    %1265 = vrot.lane.b32.xlu0 %v1264, 64
    %v1266 = vpop.permute.xlu0 %1265
    %1268 = vst.msk [vmem:[#allocation3 + $0x10] sm:$0x3] %vm938, %v1266
    %v1269 = vld [vmem:[#allocation2 + $0x46] sm:$0x3]
    %v1272 = vunpack.c.l.s4 1983009808
    %v1273 = vunpack.c.0.s8 %v1272
    %v1274 = vlaneseq
    %v1275 = vshrl.u32 %v1274, 7
    %v1276 = vsub.s32 %v1273, %v1275
    %v1277 = vrot.slane %v1269, %v1276
    %1278 = vrot.lane.b32.xlu0 %v1277, 96
    %v1279 = vpop.permute.xlu0 %1278
    %1281 = vst.msk [vmem:[#allocation3 + $0x10] sm:$0x3] %vm952, %v1279
    %v1282 = vld [vmem:[#allocation2 + $0x48] sm:$0x3]
    %1283 = vst.msk [vmem:[#allocation3 + $0x12] sm:$0x3] %vm910, %v1282
    %v1284 = vld [vmem:[#allocation2 + $0x4a] sm:$0x3]
    %v1287 = vunpack.c.l.s4 1983009808
    %v1288 = vunpack.c.0.s8 %v1287
    %v1289 = vlaneseq
    %v1290 = vshrl.u32 %v1289, 7
    %v1291 = vsub.s32 %v1288, %v1290
    %v1292 = vrot.slane %v1284, %v1291
    %1293 = vrot.lane.b32.xlu0 %v1292, 32
    %v1294 = vpop.permute.xlu0 %1293
    %1296 = vst.msk [vmem:[#allocation3 + $0x12] sm:$0x3] %vm924, %v1294
    %v1297 = vld [vmem:[#allocation2 + $0x4c] sm:$0x3]
    %v1300 = vunpack.c.l.s4 1983009808
    %v1301 = vunpack.c.0.s8 %v1300
    %v1302 = vlaneseq
    %v1303 = vshrl.u32 %v1302, 7
    %v1304 = vsub.s32 %v1301, %v1303
    %v1305 = vrot.slane %v1297, %v1304
    %1306 = vrot.lane.b32.xlu0 %v1305, 64
    %v1307 = vpop.permute.xlu0 %1306
    %1309 = vst.msk [vmem:[#allocation3 + $0x12] sm:$0x3] %vm938, %v1307
    %v1310 = vld [vmem:[#allocation2 + $0x4e] sm:$0x3]
    %v1313 = vunpack.c.l.s4 1983009808
    %v1314 = vunpack.c.0.s8 %v1313
    %v1315 = vlaneseq
    %v1316 = vshrl.u32 %v1315, 7
    %v1317 = vsub.s32 %v1314, %v1316
    %v1318 = vrot.slane %v1310, %v1317
    %1319 = vrot.lane.b32.xlu0 %v1318, 96
    %v1320 = vpop.permute.xlu0 %1319
    %1322 = vst.msk [vmem:[#allocation3 + $0x12] sm:$0x3] %vm952, %v1320
    %v1323 = vld [vmem:[#allocation2 + $0x50] sm:$0x3]
    %1324 = vst.msk [vmem:[#allocation3 + $0x14] sm:$0x3] %vm910, %v1323
    %v1325 = vld [vmem:[#allocation2 + $0x52] sm:$0x3]
    %v1328 = vunpack.c.l.s4 1983009808
    %v1329 = vunpack.c.0.s8 %v1328
    %v1330 = vlaneseq
    %v1331 = vshrl.u32 %v1330, 7
    %v1332 = vsub.s32 %v1329, %v1331
    %v1333 = vrot.slane %v1325, %v1332
    %1334 = vrot.lane.b32.xlu0 %v1333, 32
    %v1335 = vpop.permute.xlu0 %1334
    %1337 = vst.msk [vmem:[#allocation3 + $0x14] sm:$0x3] %vm924, %v1335
    %v1338 = vld [vmem:[#allocation2 + $0x54] sm:$0x3]
    %v1341 = vunpack.c.l.s4 1983009808
    %v1342 = vunpack.c.0.s8 %v1341
    %v1343 = vlaneseq
    %v1344 = vshrl.u32 %v1343, 7
    %v1345 = vsub.s32 %v1342, %v1344
    %v1346 = vrot.slane %v1338, %v1345
    %1347 = vrot.lane.b32.xlu0 %v1346, 64
    %v1348 = vpop.permute.xlu0 %1347
    %1350 = vst.msk [vmem:[#allocation3 + $0x14] sm:$0x3] %vm938, %v1348
    %v1351 = vld [vmem:[#allocation2 + $0x56] sm:$0x3]
    %v1354 = vunpack.c.l.s4 1983009808
    %v1355 = vunpack.c.0.s8 %v1354
    %v1356 = vlaneseq
    %v1357 = vshrl.u32 %v1356, 7
    %v1358 = vsub.s32 %v1355, %v1357
    %v1359 = vrot.slane %v1351, %v1358
    %1360 = vrot.lane.b32.xlu0 %v1359, 96
    %v1361 = vpop.permute.xlu0 %1360
    %1363 = vst.msk [vmem:[#allocation3 + $0x14] sm:$0x3] %vm952, %v1361
    %v1364 = vld [vmem:[#allocation2 + $0x58] sm:$0x3]
    %1365 = vst.msk [vmem:[#allocation3 + $0x16] sm:$0x3] %vm910, %v1364
    %v1366 = vld [vmem:[#allocation2 + $0x5a] sm:$0x3]
    %v1369 = vunpack.c.l.s4 1983009808
    %v1370 = vunpack.c.0.s8 %v1369
    %v1371 = vlaneseq
    %v1372 = vshrl.u32 %v1371, 7
    %v1373 = vsub.s32 %v1370, %v1372
    %v1374 = vrot.slane %v1366, %v1373
    %1375 = vrot.lane.b32.xlu0 %v1374, 32
    %v1376 = vpop.permute.xlu0 %1375
    %1378 = vst.msk [vmem:[#allocation3 + $0x16] sm:$0x3] %vm924, %v1376
    %v1379 = vld [vmem:[#allocation2 + $0x5c] sm:$0x3]
    %v1382 = vunpack.c.l.s4 1983009808
    %v1383 = vunpack.c.0.s8 %v1382
    %v1384 = vlaneseq
    %v1385 = vshrl.u32 %v1384, 7
    %v1386 = vsub.s32 %v1383, %v1385
    %v1387 = vrot.slane %v1379, %v1386
    %1388 = vrot.lane.b32.xlu0 %v1387, 64
    %v1389 = vpop.permute.xlu0 %1388
    %1391 = vst.msk [vmem:[#allocation3 + $0x16] sm:$0x3] %vm938, %v1389
    %v1392 = vld [vmem:[#allocation2 + $0x5e] sm:$0x3]
    %v1395 = vunpack.c.l.s4 1983009808
    %v1396 = vunpack.c.0.s8 %v1395
    %v1397 = vlaneseq
    %v1398 = vshrl.u32 %v1397, 7
    %v1399 = vsub.s32 %v1396, %v1398
    %v1400 = vrot.slane %v1392, %v1399
    %1401 = vrot.lane.b32.xlu0 %v1400, 96
    %v1402 = vpop.permute.xlu0 %1401
    %1404 = vst.msk [vmem:[#allocation3 + $0x16] sm:$0x3] %vm952, %v1402
    %v1405 = vld [vmem:[#allocation2 + $0x60] sm:$0x3]
    %1406 = vst.msk [vmem:[#allocation3 + $0x18] sm:$0x3] %vm910, %v1405
    %v1407 = vld [vmem:[#allocation2 + $0x62] sm:$0x3]
    %v1410 = vunpack.c.l.s4 1983009808
    %v1411 = vunpack.c.0.s8 %v1410
    %v1412 = vlaneseq
    %v1413 = vshrl.u32 %v1412, 7
    %v1414 = vsub.s32 %v1411, %v1413
    %v1415 = vrot.slane %v1407, %v1414
    %1416 = vrot.lane.b32.xlu0 %v1415, 32
    %v1417 = vpop.permute.xlu0 %1416
    %1419 = vst.msk [vmem:[#allocation3 + $0x18] sm:$0x3] %vm924, %v1417
    %v1420 = vld [vmem:[#allocation2 + $0x64] sm:$0x3]
    %v1423 = vunpack.c.l.s4 1983009808
    %v1424 = vunpack.c.0.s8 %v1423
    %v1425 = vlaneseq
    %v1426 = vshrl.u32 %v1425, 7
    %v1427 = vsub.s32 %v1424, %v1426
    %v1428 = vrot.slane %v1420, %v1427
    %1429 = vrot.lane.b32.xlu0 %v1428, 64
    %v1430 = vpop.permute.xlu0 %1429
    %1432 = vst.msk [vmem:[#allocation3 + $0x18] sm:$0x3] %vm938, %v1430
    %v1433 = vld [vmem:[#allocation2 + $0x66] sm:$0x3]
    %v1436 = vunpack.c.l.s4 1983009808
    %v1437 = vunpack.c.0.s8 %v1436
    %v1438 = vlaneseq
    %v1439 = vshrl.u32 %v1438, 7
    %v1440 = vsub.s32 %v1437, %v1439
    %v1441 = vrot.slane %v1433, %v1440
    %1442 = vrot.lane.b32.xlu0 %v1441, 96
    %v1443 = vpop.permute.xlu0 %1442
    %1445 = vst.msk [vmem:[#allocation3 + $0x18] sm:$0x3] %vm952, %v1443
    %v1446 = vld [vmem:[#allocation2 + $0x68] sm:$0x3]
    %1447 = vst.msk [vmem:[#allocation3 + $0x1a] sm:$0x3] %vm910, %v1446
    %v1448 = vld [vmem:[#allocation2 + $0x6a] sm:$0x3]
    %v1451 = vunpack.c.l.s4 1983009808
    %v1452 = vunpack.c.0.s8 %v1451
    %v1453 = vlaneseq
    %v1454 = vshrl.u32 %v1453, 7
    %v1455 = vsub.s32 %v1452, %v1454
    %v1456 = vrot.slane %v1448, %v1455
    %1457 = vrot.lane.b32.xlu0 %v1456, 32
    %v1458 = vpop.permute.xlu0 %1457
    %1460 = vst.msk [vmem:[#allocation3 + $0x1a] sm:$0x3] %vm924, %v1458
    %v1461 = vld [vmem:[#allocation2 + $0x6c] sm:$0x3]
    %v1464 = vunpack.c.l.s4 1983009808
    %v1465 = vunpack.c.0.s8 %v1464
    %v1466 = vlaneseq
    %v1467 = vshrl.u32 %v1466, 7
    %v1468 = vsub.s32 %v1465, %v1467
    %v1469 = vrot.slane %v1461, %v1468
    %1470 = vrot.lane.b32.xlu0 %v1469, 64
    %v1471 = vpop.permute.xlu0 %1470
    %1473 = vst.msk [vmem:[#allocation3 + $0x1a] sm:$0x3] %vm938, %v1471
    %v1474 = vld [vmem:[#allocation2 + $0x6e] sm:$0x3]
    %v1477 = vunpack.c.l.s4 1983009808
    %v1478 = vunpack.c.0.s8 %v1477
    %v1479 = vlaneseq
    %v1480 = vshrl.u32 %v1479, 7
    %v1481 = vsub.s32 %v1478, %v1480
    %v1482 = vrot.slane %v1474, %v1481
    %1483 = vrot.lane.b32.xlu0 %v1482, 96
    %v1484 = vpop.permute.xlu0 %1483
    %1486 = vst.msk [vmem:[#allocation3 + $0x1a] sm:$0x3] %vm952, %v1484
    %v1487 = vld [vmem:[#allocation2 + $0x70] sm:$0x3]
    %1488 = vst.msk [vmem:[#allocation3 + $0x1c] sm:$0x3] %vm910, %v1487
    %v1489 = vld [vmem:[#allocation2 + $0x72] sm:$0x3]
    %v1492 = vunpack.c.l.s4 1983009808
    %v1493 = vunpack.c.0.s8 %v1492
    %v1494 = vlaneseq
    %v1495 = vshrl.u32 %v1494, 7
    %v1496 = vsub.s32 %v1493, %v1495
    %v1497 = vrot.slane %v1489, %v1496
    %1498 = vrot.lane.b32.xlu0 %v1497, 32
    %v1499 = vpop.permute.xlu0 %1498
    %1501 = vst.msk [vmem:[#allocation3 + $0x1c] sm:$0x3] %vm924, %v1499
    %v1502 = vld [vmem:[#allocation2 + $0x74] sm:$0x3]
    %v1505 = vunpack.c.l.s4 1983009808
    %v1506 = vunpack.c.0.s8 %v1505
    %v1507 = vlaneseq
    %v1508 = vshrl.u32 %v1507, 7
    %v1509 = vsub.s32 %v1506, %v1508
    %v1510 = vrot.slane %v1502, %v1509
    %1511 = vrot.lane.b32.xlu0 %v1510, 64
    %v1512 = vpop.permute.xlu0 %1511
    %1514 = vst.msk [vmem:[#allocation3 + $0x1c] sm:$0x3] %vm938, %v1512
    %v1515 = vld [vmem:[#allocation2 + $0x76] sm:$0x3]
    %v1518 = vunpack.c.l.s4 1983009808
    %v1519 = vunpack.c.0.s8 %v1518
    %v1520 = vlaneseq
    %v1521 = vshrl.u32 %v1520, 7
    %v1522 = vsub.s32 %v1519, %v1521
    %v1523 = vrot.slane %v1515, %v1522
    %1524 = vrot.lane.b32.xlu0 %v1523, 96
    %v1525 = vpop.permute.xlu0 %1524
    %1527 = vst.msk [vmem:[#allocation3 + $0x1c] sm:$0x3] %vm952, %v1525
    %v1528 = vld [vmem:[#allocation2 + $0x78] sm:$0x3]
    %1529 = vst.msk [vmem:[#allocation3 + $0x1e] sm:$0x3] %vm910, %v1528
    %v1530 = vld [vmem:[#allocation2 + $0x7a] sm:$0x3]
    %v1533 = vunpack.c.l.s4 1983009808
    %v1534 = vunpack.c.0.s8 %v1533
    %v1535 = vlaneseq
    %v1536 = vshrl.u32 %v1535, 7
    %v1537 = vsub.s32 %v1534, %v1536
    %v1538 = vrot.slane %v1530, %v1537
    %1539 = vrot.lane.b32.xlu0 %v1538, 32
    %v1540 = vpop.permute.xlu0 %1539
    %1542 = vst.msk [vmem:[#allocation3 + $0x1e] sm:$0x3] %vm924, %v1540
    %v1543 = vld [vmem:[#allocation2 + $0x7c] sm:$0x3]
    %v1546 = vunpack.c.l.s4 1983009808
    %v1547 = vunpack.c.0.s8 %v1546
    %v1548 = vlaneseq
    %v1549 = vshrl.u32 %v1548, 7
    %v1550 = vsub.s32 %v1547, %v1549
    %v1551 = vrot.slane %v1543, %v1550
    %1552 = vrot.lane.b32.xlu0 %v1551, 64
    %v1553 = vpop.permute.xlu0 %1552
    %1555 = vst.msk [vmem:[#allocation3 + $0x1e] sm:$0x3] %vm938, %v1553
    %v1556 = vld [vmem:[#allocation2 + $0x7e] sm:$0x3]
    %v1559 = vunpack.c.l.s4 1983009808
    %v1560 = vunpack.c.0.s8 %v1559
    %v1561 = vlaneseq
    %v1562 = vshrl.u32 %v1561, 7
    %v1563 = vsub.s32 %v1560, %v1562
    %v1564 = vrot.slane %v1556, %v1563
    %1565 = vrot.lane.b32.xlu0 %v1564, 96
    %v1566 = vpop.permute.xlu0 %1565
    %1568 = vst.msk [vmem:[#allocation3 + $0x1e] sm:$0x3] %vm952, %v1566
    %v1569 = vld [vmem:[#allocation2 + $0x80] sm:$0x3]
    %1570 = vst.msk [vmem:[#allocation3 + $0x20] sm:$0x3] %vm910, %v1569
    %v1571 = vld [vmem:[#allocation2 + $0x82] sm:$0x3]
    %v1574 = vunpack.c.l.s4 1983009808
    %v1575 = vunpack.c.0.s8 %v1574
    %v1576 = vlaneseq
    %v1577 = vshrl.u32 %v1576, 7
    %v1578 = vsub.s32 %v1575, %v1577
    %v1579 = vrot.slane %v1571, %v1578
    %1580 = vrot.lane.b32.xlu0 %v1579, 32
    %v1581 = vpop.permute.xlu0 %1580
    %1583 = vst.msk [vmem:[#allocation3 + $0x20] sm:$0x3] %vm924, %v1581
    %v1584 = vld [vmem:[#allocation2 + $0x84] sm:$0x3]
    %v1587 = vunpack.c.l.s4 1983009808
    %v1588 = vunpack.c.0.s8 %v1587
    %v1589 = vlaneseq
    %v1590 = vshrl.u32 %v1589, 7
    %v1591 = vsub.s32 %v1588, %v1590
    %v1592 = vrot.slane %v1584, %v1591
    %1593 = vrot.lane.b32.xlu0 %v1592, 64
    %v1594 = vpop.permute.xlu0 %1593
    %1596 = vst.msk [vmem:[#allocation3 + $0x20] sm:$0x3] %vm938, %v1594
    %v1597 = vld [vmem:[#allocation2 + $0x86] sm:$0x3]
    %v1600 = vunpack.c.l.s4 1983009808
    %v1601 = vunpack.c.0.s8 %v1600
    %v1602 = vlaneseq
    %v1603 = vshrl.u32 %v1602, 7
    %v1604 = vsub.s32 %v1601, %v1603
    %v1605 = vrot.slane %v1597, %v1604
    %1606 = vrot.lane.b32.xlu0 %v1605, 96
    %v1607 = vpop.permute.xlu0 %1606
    %1609 = vst.msk [vmem:[#allocation3 + $0x20] sm:$0x3] %vm952, %v1607
    %v1610 = vld [vmem:[#allocation2 + $0x88] sm:$0x3]
    %1611 = vst.msk [vmem:[#allocation3 + $0x22] sm:$0x3] %vm910, %v1610
    %v1612 = vld [vmem:[#allocation2 + $0x8a] sm:$0x3]
    %v1615 = vunpack.c.l.s4 1983009808
    %v1616 = vunpack.c.0.s8 %v1615
    %v1617 = vlaneseq
    %v1618 = vshrl.u32 %v1617, 7
    %v1619 = vsub.s32 %v1616, %v1618
    %v1620 = vrot.slane %v1612, %v1619
    %1621 = vrot.lane.b32.xlu0 %v1620, 32
    %v1622 = vpop.permute.xlu0 %1621
    %1624 = vst.msk [vmem:[#allocation3 + $0x22] sm:$0x3] %vm924, %v1622
    %v1625 = vld [vmem:[#allocation2 + $0x8c] sm:$0x3]
    %v1628 = vunpack.c.l.s4 1983009808
    %v1629 = vunpack.c.0.s8 %v1628
    %v1630 = vlaneseq
    %v1631 = vshrl.u32 %v1630, 7
    %v1632 = vsub.s32 %v1629, %v1631
    %v1633 = vrot.slane %v1625, %v1632
    %1634 = vrot.lane.b32.xlu0 %v1633, 64
    %v1635 = vpop.permute.xlu0 %1634
    %1637 = vst.msk [vmem:[#allocation3 + $0x22] sm:$0x3] %vm938, %v1635
    %v1638 = vld [vmem:[#allocation2 + $0x8e] sm:$0x3]
    %v1641 = vunpack.c.l.s4 1983009808
    %v1642 = vunpack.c.0.s8 %v1641
    %v1643 = vlaneseq
    %v1644 = vshrl.u32 %v1643, 7
    %v1645 = vsub.s32 %v1642, %v1644
    %v1646 = vrot.slane %v1638, %v1645
    %1647 = vrot.lane.b32.xlu0 %v1646, 96
    %v1648 = vpop.permute.xlu0 %1647
    %1650 = vst.msk [vmem:[#allocation3 + $0x22] sm:$0x3] %vm952, %v1648
    %v1651 = vld [vmem:[#allocation2 + $0x90] sm:$0x3]
    %1652 = vst.msk [vmem:[#allocation3 + $0x24] sm:$0x3] %vm910, %v1651
    %v1653 = vld [vmem:[#allocation2 + $0x92] sm:$0x3]
    %v1656 = vunpack.c.l.s4 1983009808
    %v1657 = vunpack.c.0.s8 %v1656
    %v1658 = vlaneseq
    %v1659 = vshrl.u32 %v1658, 7
    %v1660 = vsub.s32 %v1657, %v1659
    %v1661 = vrot.slane %v1653, %v1660
    %1662 = vrot.lane.b32.xlu0 %v1661, 32
    %v1663 = vpop.permute.xlu0 %1662
    %1665 = vst.msk [vmem:[#allocation3 + $0x24] sm:$0x3] %vm924, %v1663
    %v1666 = vld [vmem:[#allocation2 + $0x94] sm:$0x3]
    %v1669 = vunpack.c.l.s4 1983009808
    %v1670 = vunpack.c.0.s8 %v1669
    %v1671 = vlaneseq
    %v1672 = vshrl.u32 %v1671, 7
    %v1673 = vsub.s32 %v1670, %v1672
    %v1674 = vrot.slane %v1666, %v1673
    %1675 = vrot.lane.b32.xlu0 %v1674, 64
    %v1676 = vpop.permute.xlu0 %1675
    %1678 = vst.msk [vmem:[#allocation3 + $0x24] sm:$0x3] %vm938, %v1676
    %v1679 = vld [vmem:[#allocation2 + $0x96] sm:$0x3]
    %v1682 = vunpack.c.l.s4 1983009808
    %v1683 = vunpack.c.0.s8 %v1682
    %v1684 = vlaneseq
    %v1685 = vshrl.u32 %v1684, 7
    %v1686 = vsub.s32 %v1683, %v1685
    %v1687 = vrot.slane %v1679, %v1686
    %1688 = vrot.lane.b32.xlu0 %v1687, 96
    %v1689 = vpop.permute.xlu0 %1688
    %1691 = vst.msk [vmem:[#allocation3 + $0x24] sm:$0x3] %vm952, %v1689
    %v1692 = vld [vmem:[#allocation2 + $0x98] sm:$0x3]
    %1693 = vst.msk [vmem:[#allocation3 + $0x26] sm:$0x3] %vm910, %v1692
    %v1694 = vld [vmem:[#allocation2 + $0x9a] sm:$0x3]
    %v1697 = vunpack.c.l.s4 1983009808
    %v1698 = vunpack.c.0.s8 %v1697
    %v1699 = vlaneseq
    %v1700 = vshrl.u32 %v1699, 7
    %v1701 = vsub.s32 %v1698, %v1700
    %v1702 = vrot.slane %v1694, %v1701
    %1703 = vrot.lane.b32.xlu0 %v1702, 32
    %v1704 = vpop.permute.xlu0 %1703
    %1706 = vst.msk [vmem:[#allocation3 + $0x26] sm:$0x3] %vm924, %v1704
    %v1707 = vld [vmem:[#allocation2 + $0x9c] sm:$0x3]
    %v1710 = vunpack.c.l.s4 1983009808
    %v1711 = vunpack.c.0.s8 %v1710
    %v1712 = vlaneseq
    %v1713 = vshrl.u32 %v1712, 7
    %v1714 = vsub.s32 %v1711, %v1713
    %v1715 = vrot.slane %v1707, %v1714
    %1716 = vrot.lane.b32.xlu0 %v1715, 64
    %v1717 = vpop.permute.xlu0 %1716
    %1719 = vst.msk [vmem:[#allocation3 + $0x26] sm:$0x3] %vm938, %v1717
    %v1720 = vld [vmem:[#allocation2 + $0x9e] sm:$0x3]
    %v1723 = vunpack.c.l.s4 1983009808
    %v1724 = vunpack.c.0.s8 %v1723
    %v1725 = vlaneseq
    %v1726 = vshrl.u32 %v1725, 7
    %v1727 = vsub.s32 %v1724, %v1726
    %v1728 = vrot.slane %v1720, %v1727
    %1729 = vrot.lane.b32.xlu0 %v1728, 96
    %v1730 = vpop.permute.xlu0 %1729
    %1732 = vst.msk [vmem:[#allocation3 + $0x26] sm:$0x3] %vm952, %v1730
    %v1733 = vld [vmem:[#allocation2 + $0xa0] sm:$0x3]
    %1734 = vst.msk [vmem:[#allocation3 + $0x28] sm:$0x3] %vm910, %v1733
    %v1735 = vld [vmem:[#allocation2 + $0xa2] sm:$0x3]
    %v1738 = vunpack.c.l.s4 1983009808
    %v1739 = vunpack.c.0.s8 %v1738
    %v1740 = vlaneseq
    %v1741 = vshrl.u32 %v1740, 7
    %v1742 = vsub.s32 %v1739, %v1741
    %v1743 = vrot.slane %v1735, %v1742
    %1744 = vrot.lane.b32.xlu0 %v1743, 32
    %v1745 = vpop.permute.xlu0 %1744
    %1747 = vst.msk [vmem:[#allocation3 + $0x28] sm:$0x3] %vm924, %v1745
    %v1748 = vld [vmem:[#allocation2 + $0xa4] sm:$0x3]
    %v1751 = vunpack.c.l.s4 1983009808
    %v1752 = vunpack.c.0.s8 %v1751
    %v1753 = vlaneseq
    %v1754 = vshrl.u32 %v1753, 7
    %v1755 = vsub.s32 %v1752, %v1754
    %v1756 = vrot.slane %v1748, %v1755
    %1757 = vrot.lane.b32.xlu0 %v1756, 64
    %v1758 = vpop.permute.xlu0 %1757
    %1760 = vst.msk [vmem:[#allocation3 + $0x28] sm:$0x3] %vm938, %v1758
    %v1761 = vld [vmem:[#allocation2 + $0xa6] sm:$0x3]
    %v1764 = vunpack.c.l.s4 1983009808
    %v1765 = vunpack.c.0.s8 %v1764
    %v1766 = vlaneseq
    %v1767 = vshrl.u32 %v1766, 7
    %v1768 = vsub.s32 %v1765, %v1767
    %v1769 = vrot.slane %v1761, %v1768
    %1770 = vrot.lane.b32.xlu0 %v1769, 96
    %v1771 = vpop.permute.xlu0 %1770
    %1773 = vst.msk [vmem:[#allocation3 + $0x28] sm:$0x3] %vm952, %v1771
    %v1774 = vld [vmem:[#allocation2 + $0xa8] sm:$0x3]
    %1775 = vst.msk [vmem:[#allocation3 + $0x2a] sm:$0x3] %vm910, %v1774
    %v1776 = vld [vmem:[#allocation2 + $0xaa] sm:$0x3]
    %v1779 = vunpack.c.l.s4 1983009808
    %v1780 = vunpack.c.0.s8 %v1779
    %v1781 = vlaneseq
    %v1782 = vshrl.u32 %v1781, 7
    %v1783 = vsub.s32 %v1780, %v1782
    %v1784 = vrot.slane %v1776, %v1783
    %1785 = vrot.lane.b32.xlu0 %v1784, 32
    %v1786 = vpop.permute.xlu0 %1785
    %1788 = vst.msk [vmem:[#allocation3 + $0x2a] sm:$0x3] %vm924, %v1786
    %v1789 = vld [vmem:[#allocation2 + $0xac] sm:$0x3]
    %v1792 = vunpack.c.l.s4 1983009808
    %v1793 = vunpack.c.0.s8 %v1792
    %v1794 = vlaneseq
    %v1795 = vshrl.u32 %v1794, 7
    %v1796 = vsub.s32 %v1793, %v1795
    %v1797 = vrot.slane %v1789, %v1796
    %1798 = vrot.lane.b32.xlu0 %v1797, 64
    %v1799 = vpop.permute.xlu0 %1798
    %1801 = vst.msk [vmem:[#allocation3 + $0x2a] sm:$0x3] %vm938, %v1799
    %v1802 = vld [vmem:[#allocation2 + $0xae] sm:$0x3]
    %v1805 = vunpack.c.l.s4 1983009808
    %v1806 = vunpack.c.0.s8 %v1805
    %v1807 = vlaneseq
    %v1808 = vshrl.u32 %v1807, 7
    %v1809 = vsub.s32 %v1806, %v1808
    %v1810 = vrot.slane %v1802, %v1809
    %1811 = vrot.lane.b32.xlu0 %v1810, 96
    %v1812 = vpop.permute.xlu0 %1811
    %1814 = vst.msk [vmem:[#allocation3 + $0x2a] sm:$0x3] %vm952, %v1812
    %v1815 = vld [vmem:[#allocation2 + $0xb0] sm:$0x3]
    %1816 = vst.msk [vmem:[#allocation3 + $0x2c] sm:$0x3] %vm910, %v1815
    %v1817 = vld [vmem:[#allocation2 + $0xb2] sm:$0x3]
    %v1820 = vunpack.c.l.s4 1983009808
    %v1821 = vunpack.c.0.s8 %v1820
    %v1822 = vlaneseq
    %v1823 = vshrl.u32 %v1822, 7
    %v1824 = vsub.s32 %v1821, %v1823
    %v1825 = vrot.slane %v1817, %v1824
    %1826 = vrot.lane.b32.xlu0 %v1825, 32
    %v1827 = vpop.permute.xlu0 %1826
    %1829 = vst.msk [vmem:[#allocation3 + $0x2c] sm:$0x3] %vm924, %v1827
    %v1830 = vld [vmem:[#allocation2 + $0xb4] sm:$0x3]
    %v1833 = vunpack.c.l.s4 1983009808
    %v1834 = vunpack.c.0.s8 %v1833
    %v1835 = vlaneseq
    %v1836 = vshrl.u32 %v1835, 7
    %v1837 = vsub.s32 %v1834, %v1836
    %v1838 = vrot.slane %v1830, %v1837
    %1839 = vrot.lane.b32.xlu0 %v1838, 64
    %v1840 = vpop.permute.xlu0 %1839
    %1842 = vst.msk [vmem:[#allocation3 + $0x2c] sm:$0x3] %vm938, %v1840
    %v1843 = vld [vmem:[#allocation2 + $0xb6] sm:$0x3]
    %v1846 = vunpack.c.l.s4 1983009808
    %v1847 = vunpack.c.0.s8 %v1846
    %v1848 = vlaneseq
    %v1849 = vshrl.u32 %v1848, 7
    %v1850 = vsub.s32 %v1847, %v1849
    %v1851 = vrot.slane %v1843, %v1850
    %1852 = vrot.lane.b32.xlu0 %v1851, 96
    %v1853 = vpop.permute.xlu0 %1852
    %1855 = vst.msk [vmem:[#allocation3 + $0x2c] sm:$0x3] %vm952, %v1853
    %v1856 = vld [vmem:[#allocation2 + $0xb8] sm:$0x3]
    %1857 = vst.msk [vmem:[#allocation3 + $0x2e] sm:$0x3] %vm910, %v1856
    %v1858 = vld [vmem:[#allocation2 + $0xba] sm:$0x3]
    %v1861 = vunpack.c.l.s4 1983009808
    %v1862 = vunpack.c.0.s8 %v1861
    %v1863 = vlaneseq
    %v1864 = vshrl.u32 %v1863, 7
    %v1865 = vsub.s32 %v1862, %v1864
    %v1866 = vrot.slane %v1858, %v1865
    %1867 = vrot.lane.b32.xlu0 %v1866, 32
    %v1868 = vpop.permute.xlu0 %1867
    %1870 = vst.msk [vmem:[#allocation3 + $0x2e] sm:$0x3] %vm924, %v1868
    %v1871 = vld [vmem:[#allocation2 + $0xbc] sm:$0x3]
    %v1874 = vunpack.c.l.s4 1983009808
    %v1875 = vunpack.c.0.s8 %v1874
    %v1876 = vlaneseq
    %v1877 = vshrl.u32 %v1876, 7
    %v1878 = vsub.s32 %v1875, %v1877
    %v1879 = vrot.slane %v1871, %v1878
    %1880 = vrot.lane.b32.xlu0 %v1879, 64
    %v1881 = vpop.permute.xlu0 %1880
    %1883 = vst.msk [vmem:[#allocation3 + $0x2e] sm:$0x3] %vm938, %v1881
    %v1884 = vld [vmem:[#allocation2 + $0xbe] sm:$0x3]
    %v1887 = vunpack.c.l.s4 1983009808
    %v1888 = vunpack.c.0.s8 %v1887
    %v1889 = vlaneseq
    %v1890 = vshrl.u32 %v1889, 7
    %v1891 = vsub.s32 %v1888, %v1890
    %v1892 = vrot.slane %v1884, %v1891
    %1893 = vrot.lane.b32.xlu0 %v1892, 96
    %v1894 = vpop.permute.xlu0 %1893
    %1896 = vst.msk [vmem:[#allocation3 + $0x2e] sm:$0x3] %vm952, %v1894
    %v1897 = vld [vmem:[#allocation2 + $0xc0] sm:$0x3]
    %1898 = vst.msk [vmem:[#allocation3 + $0x30] sm:$0x3] %vm910, %v1897
    %v1899 = vld [vmem:[#allocation2 + $0xc2] sm:$0x3]
    %v1902 = vunpack.c.l.s4 1983009808
    %v1903 = vunpack.c.0.s8 %v1902
    %v1904 = vlaneseq
    %v1905 = vshrl.u32 %v1904, 7
    %v1906 = vsub.s32 %v1903, %v1905
    %v1907 = vrot.slane %v1899, %v1906
    %1908 = vrot.lane.b32.xlu0 %v1907, 32
    %v1909 = vpop.permute.xlu0 %1908
    %1911 = vst.msk [vmem:[#allocation3 + $0x30] sm:$0x3] %vm924, %v1909
    %v1912 = vld [vmem:[#allocation2 + $0xc4] sm:$0x3]
    %v1915 = vunpack.c.l.s4 1983009808
    %v1916 = vunpack.c.0.s8 %v1915
    %v1917 = vlaneseq
    %v1918 = vshrl.u32 %v1917, 7
    %v1919 = vsub.s32 %v1916, %v1918
    %v1920 = vrot.slane %v1912, %v1919
    %1921 = vrot.lane.b32.xlu0 %v1920, 64
    %v1922 = vpop.permute.xlu0 %1921
    %1924 = vst.msk [vmem:[#allocation3 + $0x30] sm:$0x3] %vm938, %v1922
    %v1925 = vld [vmem:[#allocation2 + $0xc6] sm:$0x3]
    %v1928 = vunpack.c.l.s4 1983009808
    %v1929 = vunpack.c.0.s8 %v1928
    %v1930 = vlaneseq
    %v1931 = vshrl.u32 %v1930, 7
    %v1932 = vsub.s32 %v1929, %v1931
    %v1933 = vrot.slane %v1925, %v1932
    %1934 = vrot.lane.b32.xlu0 %v1933, 96
    %v1935 = vpop.permute.xlu0 %1934
    %1937 = vst.msk [vmem:[#allocation3 + $0x30] sm:$0x3] %vm952, %v1935
    %v1938 = vld [vmem:[#allocation2 + $0xc8] sm:$0x3]
    %1939 = vst.msk [vmem:[#allocation3 + $0x32] sm:$0x3] %vm910, %v1938
    %v1940 = vld [vmem:[#allocation2 + $0xca] sm:$0x3]
    %v1943 = vunpack.c.l.s4 1983009808
    %v1944 = vunpack.c.0.s8 %v1943
    %v1945 = vlaneseq
    %v1946 = vshrl.u32 %v1945, 7
    %v1947 = vsub.s32 %v1944, %v1946
    %v1948 = vrot.slane %v1940, %v1947
    %1949 = vrot.lane.b32.xlu0 %v1948, 32
    %v1950 = vpop.permute.xlu0 %1949
    %1952 = vst.msk [vmem:[#allocation3 + $0x32] sm:$0x3] %vm924, %v1950
    %v1953 = vld [vmem:[#allocation2 + $0xcc] sm:$0x3]
    %v1956 = vunpack.c.l.s4 1983009808
    %v1957 = vunpack.c.0.s8 %v1956
    %v1958 = vlaneseq
    %v1959 = vshrl.u32 %v1958, 7
    %v1960 = vsub.s32 %v1957, %v1959
    %v1961 = vrot.slane %v1953, %v1960
    %1962 = vrot.lane.b32.xlu0 %v1961, 64
    %v1963 = vpop.permute.xlu0 %1962
    %1965 = vst.msk [vmem:[#allocation3 + $0x32] sm:$0x3] %vm938, %v1963
    %v1966 = vld [vmem:[#allocation2 + $0xce] sm:$0x3]
    %v1969 = vunpack.c.l.s4 1983009808
    %v1970 = vunpack.c.0.s8 %v1969
    %v1971 = vlaneseq
    %v1972 = vshrl.u32 %v1971, 7
    %v1973 = vsub.s32 %v1970, %v1972
    %v1974 = vrot.slane %v1966, %v1973
    %1975 = vrot.lane.b32.xlu0 %v1974, 96
    %v1976 = vpop.permute.xlu0 %1975
    %1978 = vst.msk [vmem:[#allocation3 + $0x32] sm:$0x3] %vm952, %v1976
    %v1979 = vld [vmem:[#allocation2 + $0xd0] sm:$0x3]
    %1980 = vst.msk [vmem:[#allocation3 + $0x34] sm:$0x3] %vm910, %v1979
    %v1981 = vld [vmem:[#allocation2 + $0xd2] sm:$0x3]
    %v1984 = vunpack.c.l.s4 1983009808
    %v1985 = vunpack.c.0.s8 %v1984
    %v1986 = vlaneseq
    %v1987 = vshrl.u32 %v1986, 7
    %v1988 = vsub.s32 %v1985, %v1987
    %v1989 = vrot.slane %v1981, %v1988
    %1990 = vrot.lane.b32.xlu0 %v1989, 32
    %v1991 = vpop.permute.xlu0 %1990
    %1993 = vst.msk [vmem:[#allocation3 + $0x34] sm:$0x3] %vm924, %v1991
    %v1994 = vld [vmem:[#allocation2 + $0xd4] sm:$0x3]
    %v1997 = vunpack.c.l.s4 1983009808
    %v1998 = vunpack.c.0.s8 %v1997
    %v1999 = vlaneseq
    %v2000 = vshrl.u32 %v1999, 7
    %v2001 = vsub.s32 %v1998, %v2000
    %v2002 = vrot.slane %v1994, %v2001
    %2003 = vrot.lane.b32.xlu0 %v2002, 64
    %v2004 = vpop.permute.xlu0 %2003
    %2006 = vst.msk [vmem:[#allocation3 + $0x34] sm:$0x3] %vm938, %v2004
    %v2007 = vld [vmem:[#allocation2 + $0xd6] sm:$0x3]
    %v2010 = vunpack.c.l.s4 1983009808
    %v2011 = vunpack.c.0.s8 %v2010
    %v2012 = vlaneseq
    %v2013 = vshrl.u32 %v2012, 7
    %v2014 = vsub.s32 %v2011, %v2013
    %v2015 = vrot.slane %v2007, %v2014
    %2016 = vrot.lane.b32.xlu0 %v2015, 96
    %v2017 = vpop.permute.xlu0 %2016
    %2019 = vst.msk [vmem:[#allocation3 + $0x34] sm:$0x3] %vm952, %v2017
    %v2020 = vld [vmem:[#allocation2 + $0xd8] sm:$0x3]
    %2021 = vst.msk [vmem:[#allocation3 + $0x36] sm:$0x3] %vm910, %v2020
    %v2022 = vld [vmem:[#allocation2 + $0xda] sm:$0x3]
    %v2025 = vunpack.c.l.s4 1983009808
    %v2026 = vunpack.c.0.s8 %v2025
    %v2027 = vlaneseq
    %v2028 = vshrl.u32 %v2027, 7
    %v2029 = vsub.s32 %v2026, %v2028
    %v2030 = vrot.slane %v2022, %v2029
    %2031 = vrot.lane.b32.xlu0 %v2030, 32
    %v2032 = vpop.permute.xlu0 %2031
    %2034 = vst.msk [vmem:[#allocation3 + $0x36] sm:$0x3] %vm924, %v2032
    %v2035 = vld [vmem:[#allocation3] sm:$0xff]
    %v2036 = vld [vmem:[#allocation3 + $0x8] sm:$0xff]
    %v2037 = vld [vmem:[#allocation3 + $0x10] sm:$0xff]
    %v2038 = vld [vmem:[#allocation3 + $0x18] sm:$0xff]
    %v2039 = vld [vmem:[#allocation3 + $0x20] sm:$0xff]
    %v2040 = vld [vmem:[#allocation3 + $0x28] sm:$0xff]
    %v2041 = vld [vmem:[#allocation3 + $0x30] sm:$0xff]
    %v2049 = vcombine.high %v2035, %v2035
    %v2051 = vunpack.c.l.s4 1983009808
    %v2052 = vunpack.c.0.s8 %v2051
    %v2053 = vlaneseq
    %v2054 = vshrl.u32 %v2053, 7
    %v2055 = vsub.s32 %v2052, %v2054
    %v2056 = vrot.slane %v2035, %v2055
    %v2058 = vunpack.c.l.s4 1983009808
    %v2059 = vunpack.c.0.s8 %v2058
    %v2060 = vlaneseq
    %v2061 = vshrl.u32 %v2060, 7
    %v2062 = vsub.s32 %v2059, %v2061
    %v2063 = vrot.slane %v2049, %v2062
    %v2064 = vcombine.high %v2056, %v2056
    %v2065 = vcombine.high %v2063, %v2063
    %v2066 = vcombine.high %v2036, %v2036
    %v2068 = vunpack.c.l.s4 1983009808
    %v2069 = vunpack.c.0.s8 %v2068
    %v2070 = vlaneseq
    %v2071 = vshrl.u32 %v2070, 7
    %v2072 = vsub.s32 %v2069, %v2071
    %v2073 = vrot.slane %v2036, %v2072
    %v2075 = vunpack.c.l.s4 1983009808
    %v2076 = vunpack.c.0.s8 %v2075
    %v2077 = vlaneseq
    %v2078 = vshrl.u32 %v2077, 7
    %v2079 = vsub.s32 %v2076, %v2078
    %v2080 = vrot.slane %v2066, %v2079
    %v2081 = vcombine.high %v2073, %v2073
    %v2082 = vcombine.high %v2080, %v2080
    %v2083 = vcombine.high %v2037, %v2037
    %v2085 = vunpack.c.l.s4 1983009808
    %v2086 = vunpack.c.0.s8 %v2085
    %v2087 = vlaneseq
    %v2088 = vshrl.u32 %v2087, 7
    %v2089 = vsub.s32 %v2086, %v2088
    %v2090 = vrot.slane %v2037, %v2089
    %v2092 = vunpack.c.l.s4 1983009808
    %v2093 = vunpack.c.0.s8 %v2092
    %v2094 = vlaneseq
    %v2095 = vshrl.u32 %v2094, 7
    %v2096 = vsub.s32 %v2093, %v2095
    %v2097 = vrot.slane %v2083, %v2096
    %v2098 = vcombine.high %v2090, %v2090
    %v2099 = vcombine.high %v2097, %v2097
    %v2100 = vcombine.high %v2038, %v2038
    %v2102 = vunpack.c.l.s4 1983009808
    %v2103 = vunpack.c.0.s8 %v2102
    %v2104 = vlaneseq
    %v2105 = vshrl.u32 %v2104, 7
    %v2106 = vsub.s32 %v2103, %v2105
    %v2107 = vrot.slane %v2038, %v2106
    %v2109 = vunpack.c.l.s4 1983009808
    %v2110 = vunpack.c.0.s8 %v2109
    %v2111 = vlaneseq
    %v2112 = vshrl.u32 %v2111, 7
    %v2113 = vsub.s32 %v2110, %v2112
    %v2114 = vrot.slane %v2100, %v2113
    %v2115 = vcombine.high %v2107, %v2107
    %v2116 = vcombine.high %v2114, %v2114
    %v2117 = vcombine.high %v2039, %v2039
    %v2119 = vunpack.c.l.s4 1983009808
    %v2120 = vunpack.c.0.s8 %v2119
    %v2121 = vlaneseq
    %v2122 = vshrl.u32 %v2121, 7
    %v2123 = vsub.s32 %v2120, %v2122
    %v2124 = vrot.slane %v2039, %v2123
    %v2126 = vunpack.c.l.s4 1983009808
    %v2127 = vunpack.c.0.s8 %v2126
    %v2128 = vlaneseq
    %v2129 = vshrl.u32 %v2128, 7
    %v2130 = vsub.s32 %v2127, %v2129
    %v2131 = vrot.slane %v2117, %v2130
    %v2132 = vcombine.high %v2124, %v2124
    %v2133 = vcombine.high %v2131, %v2131
    %v2134 = vcombine.high %v2040, %v2040
    %v2136 = vunpack.c.l.s4 1983009808
    %v2137 = vunpack.c.0.s8 %v2136
    %v2138 = vlaneseq
    %v2139 = vshrl.u32 %v2138, 7
    %v2140 = vsub.s32 %v2137, %v2139
    %v2141 = vrot.slane %v2040, %v2140
    %v2143 = vunpack.c.l.s4 1983009808
    %v2144 = vunpack.c.0.s8 %v2143
    %v2145 = vlaneseq
    %v2146 = vshrl.u32 %v2145, 7
    %v2147 = vsub.s32 %v2144, %v2146
    %v2148 = vrot.slane %v2134, %v2147
    %v2149 = vcombine.high %v2141, %v2141
    %v2150 = vcombine.high %v2148, %v2148
    %v2151 = vcombine.high %v2041, %v2041
    %v2153 = vunpack.c.l.s4 1983009808
    %v2154 = vunpack.c.0.s8 %v2153
    %v2155 = vlaneseq
    %v2156 = vshrl.u32 %v2155, 7
    %v2157 = vsub.s32 %v2154, %v2156
    %v2158 = vrot.slane %v2041, %v2157
    %v2160 = vunpack.c.l.s4 1983009808
    %v2161 = vunpack.c.0.s8 %v2160
    %v2162 = vlaneseq
    %v2163 = vshrl.u32 %v2162, 7
    %v2164 = vsub.s32 %v2161, %v2163
    %v2165 = vrot.slane %v2151, %v2164
    %v2166 = vcombine.high %v2158, %v2158
    %v2167 = vcombine.high %v2165, %v2165
    %v2196 = vpack.c.bf16 %v2056, %v2056
    %v2197 = vpack.c.bf16 %v2064, %v2064
    %v2198 = vpack.c.bf16 %v2063, %v2063
    %v2199 = vpack.c.bf16 %v2065, %v2065
    %v2200 = vpack.c.bf16 %v2073, %v2073
    %v2201 = vpack.c.bf16 %v2081, %v2081
    %v2202 = vpack.c.bf16 %v2080, %v2080
    %v2203 = vpack.c.bf16 %v2082, %v2082
    %v2204 = vpack.c.bf16 %v2090, %v2090
    %v2205 = vpack.c.bf16 %v2098, %v2098
    %v2206 = vpack.c.bf16 %v2097, %v2097
    %v2207 = vpack.c.bf16 %v2099, %v2099
    %v2208 = vpack.c.bf16 %v2107, %v2107
    %v2209 = vpack.c.bf16 %v2115, %v2115
    %v2210 = vpack.c.bf16 %v2114, %v2114
    %v2211 = vpack.c.bf16 %v2116, %v2116
    %v2212 = vpack.c.bf16 %v2124, %v2124
    %v2213 = vpack.c.bf16 %v2132, %v2132
    %v2214 = vpack.c.bf16 %v2131, %v2131
    %v2215 = vpack.c.bf16 %v2133, %v2133
    %v2216 = vpack.c.bf16 %v2141, %v2141
    %v2217 = vpack.c.bf16 %v2149, %v2149
    %v2218 = vpack.c.bf16 %v2148, %v2148
    %v2219 = vpack.c.bf16 %v2150, %v2150
    %v2220 = vpack.c.bf16 %v2158, %v2158
    %v2221 = vpack.c.bf16 %v2166, %v2166
    %v2222 = vpack.c.bf16 %v2165, %v2165
    %v2223 = vpack.c.bf16 %v2167, %v2167
    %v2224 = vld [vmem:[%s7] sm:$0xff]
    %v2225 = vld [vmem:[%s7 + $0x8] sm:$0xff]
    %v2226 = vld [vmem:[%s7 + $0x10] sm:$0xff]
    %v2227 = vld [vmem:[%s7 + $0x18] sm:$0xff]
    %v2228 = vld [vmem:[%s7 + $0x20] sm:$0xff]
    %v2229 = vld [vmem:[%s7 + $0x28] sm:$0xff]
    %v2230 = vld [vmem:[%s7 + $0x30] sm:$0xff]
    %v2231 = vld [vmem:[%s7 + $0x38] sm:$0xff]
    %v2232 = vld [vmem:[%s7 + $0x40] sm:$0xff]
    %v2233 = vld [vmem:[%s7 + $0x48] sm:$0xff]
    %v2234 = vld [vmem:[%s7 + $0x50] sm:$0xff]
    %v2235 = vld [vmem:[%s7 + $0x58] sm:$0xff]
    %v2236 = vld [vmem:[%s7 + $0x60] sm:$0xff]
    %v2237 = vld [vmem:[%s7 + $0x68] sm:$0xff]
    %v2238 = vld [vmem:[%s7 + $0x70] sm:$0xff]
    %v2239 = vld [vmem:[%s7 + $0x78] sm:$0xff]
    %v2240 = vld [vmem:[%s7 + $0x80] sm:$0xff]
    %v2241 = vld [vmem:[%s7 + $0x88] sm:$0xff]
    %v2242 = vld [vmem:[%s7 + $0x90] sm:$0xff]
    %v2243 = vld [vmem:[%s7 + $0x98] sm:$0xff]
    %v2244 = vld [vmem:[%s7 + $0xa0] sm:$0xff]
    %v2245 = vld [vmem:[%s7 + $0xa8] sm:$0xff]
    %v2246 = vld [vmem:[%s7 + $0xb0] sm:$0xff]
    %v2247 = vld [vmem:[%s7 + $0xb8] sm:$0xff]
    %v2248 = vld [vmem:[%s7 + $0xc0] sm:$0xff]
    %v2249 = vld [vmem:[%s7 + $0xc8] sm:$0xff]
    %v2250 = vld [vmem:[%s7 + $0xd0] sm:$0xff]
    %v2251 = vld [vmem:[%s7 + $0xd8] sm:$0xff]
    %v2252 = vld [vmem:[%s7 + $0xe0] sm:$0xff]
    %v2253 = vld [vmem:[%s7 + $0xe8] sm:$0xff]
    %v2254 = vld [vmem:[%s7 + $0xf0] sm:$0xff]
    %v2255 = vld [vmem:[%s7 + $0xf8] sm:$0xff]
    %v2256 = vld [vmem:[%s7 + $0x100] sm:$0xff]
    %v2257 = vld [vmem:[%s7 + $0x108] sm:$0xff]
    %v2258 = vld [vmem:[%s7 + $0x110] sm:$0xff]
    %v2259 = vld [vmem:[%s7 + $0x118] sm:$0xff]
    %v2260 = vld [vmem:[%s7 + $0x120] sm:$0xff]
    %v2261 = vld [vmem:[%s7 + $0x128] sm:$0xff]
    %v2262 = vld [vmem:[%s7 + $0x130] sm:$0xff]
    %v2263 = vld [vmem:[%s7 + $0x138] sm:$0xff]
    %v2264 = vld [vmem:[%s7 + $0x140] sm:$0xff]
    %v2265 = vld [vmem:[%s7 + $0x148] sm:$0xff]
    %v2266 = vld [vmem:[%s7 + $0x150] sm:$0xff]
    %v2267 = vld [vmem:[%s7 + $0x158] sm:$0xff]
    %v2268 = vld [vmem:[%s7 + $0x160] sm:$0xff]
    %v2269 = vld [vmem:[%s7 + $0x168] sm:$0xff]
    %v2270 = vld [vmem:[%s7 + $0x170] sm:$0xff]
    %v2271 = vld [vmem:[%s7 + $0x178] sm:$0xff]
    %v2272 = vld [vmem:[%s7 + $0x180] sm:$0xff]
    %v2273 = vld [vmem:[%s7 + $0x188] sm:$0xff]
    %v2274 = vld [vmem:[%s7 + $0x190] sm:$0xff]
    %v2275 = vld [vmem:[%s7 + $0x198] sm:$0xff]
    %v2276 = vld [vmem:[%s7 + $0x1a0] sm:$0xff]
    %v2277 = vld [vmem:[%s7 + $0x1a8] sm:$0xff]
    %v2278 = vld [vmem:[%s7 + $0x1b0] sm:$0xff]
    %v2279 = vld [vmem:[%s7 + $0x1b8] sm:$0xff]
    %v2280 = vld [vmem:[%s7 + $0x1c0] sm:$0xff]
    %v2281 = vld [vmem:[%s7 + $0x1c8] sm:$0xff]
    %v2282 = vld [vmem:[%s7 + $0x1d0] sm:$0xff]
    %v2283 = vld [vmem:[%s7 + $0x1d8] sm:$0xff]
    %v2284 = vld [vmem:[%s7 + $0x1e0] sm:$0xff]
    %v2285 = vld [vmem:[%s7 + $0x1e8] sm:$0xff]
    %v2286 = vld [vmem:[%s7 + $0x1f0] sm:$0xff]
    %v2287 = vld [vmem:[%s7 + $0x1f8] sm:$0xff]
    %v2288 = vld [vmem:[%s7 + $0x200] sm:$0xff]
    %v2289 = vld [vmem:[%s7 + $0x208] sm:$0xff]
    %v2290 = vld [vmem:[%s7 + $0x210] sm:$0xff]
    %v2291 = vld [vmem:[%s7 + $0x218] sm:$0xff]
    %v2292 = vld [vmem:[%s7 + $0x220] sm:$0xff]
    %v2293 = vld [vmem:[%s7 + $0x228] sm:$0xff]
    %v2294 = vld [vmem:[%s7 + $0x230] sm:$0xff]
    %v2295 = vld [vmem:[%s7 + $0x238] sm:$0xff]
    %v2296 = vld [vmem:[%s7 + $0x240] sm:$0xff]
    %v2297 = vld [vmem:[%s7 + $0x248] sm:$0xff]
    %v2298 = vld [vmem:[%s7 + $0x250] sm:$0xff]
    %v2299 = vld [vmem:[%s7 + $0x258] sm:$0xff]
    %v2300 = vld [vmem:[%s7 + $0x260] sm:$0xff]
    %v2301 = vld [vmem:[%s7 + $0x268] sm:$0xff]
    %v2302 = vld [vmem:[%s7 + $0x270] sm:$0xff]
    %v2303 = vld [vmem:[%s7 + $0x278] sm:$0xff]
    %v2304 = vld [vmem:[%s7 + $0x280] sm:$0xff]
    %v2305 = vld [vmem:[%s7 + $0x288] sm:$0xff]
    %v2306 = vld [vmem:[%s7 + $0x290] sm:$0xff]
    %v2307 = vld [vmem:[%s7 + $0x298] sm:$0xff]
    %v2308 = vld [vmem:[%s7 + $0x2a0] sm:$0xff]
    %v2309 = vld [vmem:[%s7 + $0x2a8] sm:$0xff]
    %v2310 = vld [vmem:[%s7 + $0x2b0] sm:$0xff]
    %v2311 = vld [vmem:[%s7 + $0x2b8] sm:$0xff]
    %v2312 = vld [vmem:[%s7 + $0x2c0] sm:$0xff]
    %v2313 = vld [vmem:[%s7 + $0x2c8] sm:$0xff]
    %v2314 = vld [vmem:[%s7 + $0x2d0] sm:$0xff]
    %v2315 = vld [vmem:[%s7 + $0x2d8] sm:$0xff]
    %v2316 = vld [vmem:[%s7 + $0x2e0] sm:$0xff]
    %v2317 = vld [vmem:[%s7 + $0x2e8] sm:$0xff]
    %v2318 = vld [vmem:[%s7 + $0x2f0] sm:$0xff]
    %v2319 = vld [vmem:[%s7 + $0x2f8] sm:$0xff]
    %v2320 = vld [vmem:[%s7 + $0x300] sm:$0xff]
    %v2321 = vld [vmem:[%s7 + $0x308] sm:$0xff]
    %v2322 = vld [vmem:[%s7 + $0x310] sm:$0xff]
    %v2323 = vld [vmem:[%s7 + $0x318] sm:$0xff]
    %v2324 = vld [vmem:[%s7 + $0x320] sm:$0xff]
    %v2325 = vld [vmem:[%s7 + $0x328] sm:$0xff]
    %v2326 = vld [vmem:[%s7 + $0x330] sm:$0xff]
    %v2327 = vld [vmem:[%s7 + $0x338] sm:$0xff]
    %v2328 = vld [vmem:[%s7 + $0x340] sm:$0xff]
    %v2329 = vld [vmem:[%s7 + $0x348] sm:$0xff]
    %v2330 = vld [vmem:[%s7 + $0x350] sm:$0xff]
    %v2331 = vld [vmem:[%s7 + $0x358] sm:$0xff]
    %v2332 = vld [vmem:[%s7 + $0x360] sm:$0xff]
    %v2333 = vld [vmem:[%s7 + $0x368] sm:$0xff]
    %v2334 = vld [vmem:[%s7 + $0x370] sm:$0xff]
    %v2335 = vld [vmem:[%s7 + $0x378] sm:$0xff]
    %v2336 = vld [vmem:[%s7 + $0x380] sm:$0xff]
    %v2337 = vld [vmem:[%s7 + $0x388] sm:$0xff]
    %v2338 = vld [vmem:[%s7 + $0x390] sm:$0xff]
    %v2339 = vld [vmem:[%s7 + $0x398] sm:$0xff]
    %v2340 = vld [vmem:[%s7 + $0x3a0] sm:$0xff]
    %v2341 = vld [vmem:[%s7 + $0x3a8] sm:$0xff]
    %v2342 = vld [vmem:[%s7 + $0x3b0] sm:$0xff]
    %v2343 = vld [vmem:[%s7 + $0x3b8] sm:$0xff]
    %v2344 = vld [vmem:[%s7 + $0x3c0] sm:$0xff]
    %v2345 = vld [vmem:[%s7 + $0x3c8] sm:$0xff]
    %v2346 = vld [vmem:[%s7 + $0x3d0] sm:$0xff]
    %v2347 = vld [vmem:[%s7 + $0x3d8] sm:$0xff]
    %v2348 = vld [vmem:[%s7 + $0x3e0] sm:$0xff]
    %v2349 = vld [vmem:[%s7 + $0x3e8] sm:$0xff]
    %v2350 = vld [vmem:[%s7 + $0x3f0] sm:$0xff]
    %v2351 = vld [vmem:[%s7 + $0x3f8] sm:$0xff]
    %v2352 = vld [vmem:[%s7 + $0x400] sm:$0xff]
    %v2353 = vld [vmem:[%s7 + $0x408] sm:$0xff]
    %v2354 = vld [vmem:[%s7 + $0x410] sm:$0xff]
    %v2355 = vld [vmem:[%s7 + $0x418] sm:$0xff]
    %v2356 = vld [vmem:[%s7 + $0x420] sm:$0xff]
    %v2357 = vld [vmem:[%s7 + $0x428] sm:$0xff]
    %v2358 = vld [vmem:[%s7 + $0x430] sm:$0xff]
    %v2359 = vld [vmem:[%s7 + $0x438] sm:$0xff]
    %v2360 = vld [vmem:[%s7 + $0x440] sm:$0xff]
    %v2361 = vld [vmem:[%s7 + $0x448] sm:$0xff]
    %v2362 = vld [vmem:[%s7 + $0x450] sm:$0xff]
    %v2363 = vld [vmem:[%s7 + $0x458] sm:$0xff]
    %v2364 = vld [vmem:[%s7 + $0x460] sm:$0xff]
    %v2365 = vld [vmem:[%s7 + $0x468] sm:$0xff]
    %v2366 = vld [vmem:[%s7 + $0x470] sm:$0xff]
    %v2367 = vld [vmem:[%s7 + $0x478] sm:$0xff]
    %v2368 = vld [vmem:[%s7 + $0x480] sm:$0xff]
    %v2369 = vld [vmem:[%s7 + $0x488] sm:$0xff]
    %v2370 = vld [vmem:[%s7 + $0x490] sm:$0xff]
    %v2371 = vld [vmem:[%s7 + $0x498] sm:$0xff]
    %v2372 = vld [vmem:[%s7 + $0x4a0] sm:$0xff]
    %v2373 = vld [vmem:[%s7 + $0x4a8] sm:$0xff]
    %v2374 = vld [vmem:[%s7 + $0x4b0] sm:$0xff]
    %v2375 = vld [vmem:[%s7 + $0x4b8] sm:$0xff]
    %v2376 = vld [vmem:[%s7 + $0x4c0] sm:$0xff]
    %v2377 = vld [vmem:[%s7 + $0x4c8] sm:$0xff]
    %v2378 = vld [vmem:[%s7 + $0x4d0] sm:$0xff]
    %v2379 = vld [vmem:[%s7 + $0x4d8] sm:$0xff]
    %v2380 = vld [vmem:[%s7 + $0x4e0] sm:$0xff]
    %v2381 = vld [vmem:[%s7 + $0x4e8] sm:$0xff]
    %v2382 = vld [vmem:[%s7 + $0x4f0] sm:$0xff]
    %v2383 = vld [vmem:[%s7 + $0x4f8] sm:$0xff]
    %v2384 = vld [vmem:[%s7 + $0x500] sm:$0xff]
    %v2385 = vld [vmem:[%s7 + $0x508] sm:$0xff]
    %v2386 = vld [vmem:[%s7 + $0x510] sm:$0xff]
    %v2387 = vld [vmem:[%s7 + $0x518] sm:$0xff]
    %v2388 = vld [vmem:[%s7 + $0x520] sm:$0xff]
    %v2389 = vld [vmem:[%s7 + $0x528] sm:$0xff]
    %v2390 = vld [vmem:[%s7 + $0x530] sm:$0xff]
    %v2391 = vld [vmem:[%s7 + $0x538] sm:$0xff]
    %v2392 = vld [vmem:[%s7 + $0x540] sm:$0xff]
    %v2393 = vld [vmem:[%s7 + $0x548] sm:$0xff]
    %v2394 = vld [vmem:[%s7 + $0x550] sm:$0xff]
    %v2395 = vld [vmem:[%s7 + $0x558] sm:$0xff]
    %v2396 = vld [vmem:[%s7 + $0x560] sm:$0xff]
    %v2397 = vld [vmem:[%s7 + $0x568] sm:$0xff]
    %v2398 = vld [vmem:[%s7 + $0x570] sm:$0xff]
    %v2399 = vld [vmem:[%s7 + $0x578] sm:$0xff]
    %v2400 = vld [vmem:[%s7 + $0x580] sm:$0xff]
    %v2401 = vld [vmem:[%s7 + $0x588] sm:$0xff]
    %v2402 = vld [vmem:[%s7 + $0x590] sm:$0xff]
    %v2403 = vld [vmem:[%s7 + $0x598] sm:$0xff]
    %v2404 = vld [vmem:[%s7 + $0x5a0] sm:$0xff]
    %v2405 = vld [vmem:[%s7 + $0x5a8] sm:$0xff]
    %v2406 = vld [vmem:[%s7 + $0x5b0] sm:$0xff]
    %v2407 = vld [vmem:[%s7 + $0x5b8] sm:$0xff]
    %v2408 = vld [vmem:[%s7 + $0x5c0] sm:$0xff]
    %v2409 = vld [vmem:[%s7 + $0x5c8] sm:$0xff]
    %v2410 = vld [vmem:[%s7 + $0x5d0] sm:$0xff]
    %v2411 = vld [vmem:[%s7 + $0x5d8] sm:$0xff]
    %v2412 = vld [vmem:[%s7 + $0x5e0] sm:$0xff]
    %v2413 = vld [vmem:[%s7 + $0x5e8] sm:$0xff]
    %v2414 = vld [vmem:[%s7 + $0x5f0] sm:$0xff]
    %v2415 = vld [vmem:[%s7 + $0x5f8] sm:$0xff]
    %v2416 = vld [vmem:[%s7 + $0x600] sm:$0xff]
    %v2417 = vld [vmem:[%s7 + $0x608] sm:$0xff]
    %v2418 = vld [vmem:[%s7 + $0x610] sm:$0xff]
    %v2419 = vld [vmem:[%s7 + $0x618] sm:$0xff]
    %v2420 = vld [vmem:[%s7 + $0x620] sm:$0xff]
    %v2421 = vld [vmem:[%s7 + $0x628] sm:$0xff]
    %v2422 = vld [vmem:[%s7 + $0x630] sm:$0xff]
    %v2423 = vld [vmem:[%s7 + $0x638] sm:$0xff]
    %v2424 = vld [vmem:[%s7 + $0x640] sm:$0xff]
    %v2425 = vld [vmem:[%s7 + $0x648] sm:$0xff]
    %v2426 = vld [vmem:[%s7 + $0x650] sm:$0xff]
    %v2427 = vld [vmem:[%s7 + $0x658] sm:$0xff]
    %v2428 = vld [vmem:[%s7 + $0x660] sm:$0xff]
    %v2429 = vld [vmem:[%s7 + $0x668] sm:$0xff]
    %v2430 = vld [vmem:[%s7 + $0x670] sm:$0xff]
    %v2431 = vld [vmem:[%s7 + $0x678] sm:$0xff]
    %v2432 = vld [vmem:[%s7 + $0x680] sm:$0xff]
    %v2433 = vld [vmem:[%s7 + $0x688] sm:$0xff]
    %v2434 = vld [vmem:[%s7 + $0x690] sm:$0xff]
    %v2435 = vld [vmem:[%s7 + $0x698] sm:$0xff]
    %v2436 = vld [vmem:[%s7 + $0x6a0] sm:$0xff]
    %v2437 = vld [vmem:[%s7 + $0x6a8] sm:$0xff]
    %v2438 = vld [vmem:[%s7 + $0x6b0] sm:$0xff]
    %v2439 = vld [vmem:[%s7 + $0x6b8] sm:$0xff]
    %v2440 = vld [vmem:[%s7 + $0x6c0] sm:$0xff]
    %v2441 = vld [vmem:[%s7 + $0x6c8] sm:$0xff]
    %v2442 = vld [vmem:[%s7 + $0x6d0] sm:$0xff]
    %v2443 = vld [vmem:[%s7 + $0x6d8] sm:$0xff]
    %v2444 = vld [vmem:[%s7 + $0x6e0] sm:$0xff]
    %v2445 = vld [vmem:[%s7 + $0x6e8] sm:$0xff]
    %v2446 = vld [vmem:[%s7 + $0x6f0] sm:$0xff]
    %v2447 = vld [vmem:[%s7 + $0x6f8] sm:$0xff]
    %v2448 = vld [vmem:[%s7 + $0x700] sm:$0xff]
    %v2449 = vld [vmem:[%s7 + $0x708] sm:$0xff]
    %v2450 = vld [vmem:[%s7 + $0x710] sm:$0xff]
    %v2451 = vld [vmem:[%s7 + $0x718] sm:$0xff]
    %v2452 = vld [vmem:[%s7 + $0x720] sm:$0xff]
    %v2453 = vld [vmem:[%s7 + $0x728] sm:$0xff]
    %v2454 = vld [vmem:[%s7 + $0x730] sm:$0xff]
    %v2455 = vld [vmem:[%s7 + $0x738] sm:$0xff]
    %v2456 = vld [vmem:[%s7 + $0x740] sm:$0xff]
    %v2457 = vld [vmem:[%s7 + $0x748] sm:$0xff]
    %v2458 = vld [vmem:[%s7 + $0x750] sm:$0xff]
    %v2459 = vld [vmem:[%s7 + $0x758] sm:$0xff]
    %v2460 = vld [vmem:[%s7 + $0x760] sm:$0xff]
    %v2461 = vld [vmem:[%s7 + $0x768] sm:$0xff]
    %v2462 = vld [vmem:[%s7 + $0x770] sm:$0xff]
    %v2463 = vld [vmem:[%s7 + $0x778] sm:$0xff]
    %v2464 = vld [vmem:[%s7 + $0x780] sm:$0xff]
    %v2465 = vld [vmem:[%s7 + $0x788] sm:$0xff]
    %v2466 = vld [vmem:[%s7 + $0x790] sm:$0xff]
    %v2467 = vld [vmem:[%s7 + $0x798] sm:$0xff]
    %v2468 = vld [vmem:[%s7 + $0x7a0] sm:$0xff]
    %v2469 = vld [vmem:[%s7 + $0x7a8] sm:$0xff]
    %v2470 = vld [vmem:[%s7 + $0x7b0] sm:$0xff]
    %v2471 = vld [vmem:[%s7 + $0x7b8] sm:$0xff]
    %v2472 = vld [vmem:[%s7 + $0x7c0] sm:$0xff]
    %v2473 = vld [vmem:[%s7 + $0x7c8] sm:$0xff]
    %v2474 = vld [vmem:[%s7 + $0x7d0] sm:$0xff]
    %v2475 = vld [vmem:[%s7 + $0x7d8] sm:$0xff]
    %v2476 = vld [vmem:[%s7 + $0x7e0] sm:$0xff]
    %v2477 = vld [vmem:[%s7 + $0x7e8] sm:$0xff]
    %v2478 = vld [vmem:[%s7 + $0x7f0] sm:$0xff]
    %v2479 = vld [vmem:[%s7 + $0x7f8] sm:$0xff]
    %v2480 = vld [vmem:[%s7 + $0x800] sm:$0xff]
    %v2481 = vld [vmem:[%s7 + $0x808] sm:$0xff]
    %v2482 = vld [vmem:[%s7 + $0x810] sm:$0xff]
    %v2483 = vld [vmem:[%s7 + $0x818] sm:$0xff]
    %v2484 = vld [vmem:[%s7 + $0x820] sm:$0xff]
    %v2485 = vld [vmem:[%s7 + $0x828] sm:$0xff]
    %v2486 = vld [vmem:[%s7 + $0x830] sm:$0xff]
    %v2487 = vld [vmem:[%s7 + $0x838] sm:$0xff]
    %v2488 = vld [vmem:[%s7 + $0x840] sm:$0xff]
    %v2489 = vld [vmem:[%s7 + $0x848] sm:$0xff]
    %v2490 = vld [vmem:[%s7 + $0x850] sm:$0xff]
    %v2491 = vld [vmem:[%s7 + $0x858] sm:$0xff]
    %v2492 = vld [vmem:[%s7 + $0x860] sm:$0xff]
    %v2493 = vld [vmem:[%s7 + $0x868] sm:$0xff]
    %v2494 = vld [vmem:[%s7 + $0x870] sm:$0xff]
    %v2495 = vld [vmem:[%s7 + $0x878] sm:$0xff]
    %v2496 = vld [vmem:[%s7 + $0x880] sm:$0xff]
    %v2497 = vld [vmem:[%s7 + $0x888] sm:$0xff]
    %v2498 = vld [vmem:[%s7 + $0x890] sm:$0xff]
    %v2499 = vld [vmem:[%s7 + $0x898] sm:$0xff]
    %v2500 = vld [vmem:[%s7 + $0x8a0] sm:$0xff]
    %v2501 = vld [vmem:[%s7 + $0x8a8] sm:$0xff]
    %v2502 = vld [vmem:[%s7 + $0x8b0] sm:$0xff]
    %v2503 = vld [vmem:[%s7 + $0x8b8] sm:$0xff]
    %v2504 = vld [vmem:[%s7 + $0x8c0] sm:$0xff]
    %v2505 = vld [vmem:[%s7 + $0x8c8] sm:$0xff]
    %v2506 = vld [vmem:[%s7 + $0x8d0] sm:$0xff]
    %v2507 = vld [vmem:[%s7 + $0x8d8] sm:$0xff]
    %v2508 = vld [vmem:[%s7 + $0x8e0] sm:$0xff]
    %v2509 = vld [vmem:[%s7 + $0x8e8] sm:$0xff]
    %v2510 = vld [vmem:[%s7 + $0x8f0] sm:$0xff]
    %v2511 = vld [vmem:[%s7 + $0x8f8] sm:$0xff]
    %v2512 = vld [vmem:[%s7 + $0x900] sm:$0xff]
    %v2513 = vld [vmem:[%s7 + $0x908] sm:$0xff]
    %v2514 = vld [vmem:[%s7 + $0x910] sm:$0xff]
    %v2515 = vld [vmem:[%s7 + $0x918] sm:$0xff]
    %v2516 = vld [vmem:[%s7 + $0x920] sm:$0xff]
    %v2517 = vld [vmem:[%s7 + $0x928] sm:$0xff]
    %v2518 = vld [vmem:[%s7 + $0x930] sm:$0xff]
    %v2519 = vld [vmem:[%s7 + $0x938] sm:$0xff]
    %v2520 = vld [vmem:[%s7 + $0x940] sm:$0xff]
    %v2521 = vld [vmem:[%s7 + $0x948] sm:$0xff]
    %v2522 = vld [vmem:[%s7 + $0x950] sm:$0xff]
    %v2523 = vld [vmem:[%s7 + $0x958] sm:$0xff]
    %v2524 = vld [vmem:[%s7 + $0x960] sm:$0xff]
    %v2525 = vld [vmem:[%s7 + $0x968] sm:$0xff]
    %v2526 = vld [vmem:[%s7 + $0x970] sm:$0xff]
    %v2527 = vld [vmem:[%s7 + $0x978] sm:$0xff]
    %v2528 = vld [vmem:[%s7 + $0x980] sm:$0xff]
    %v2529 = vld [vmem:[%s7 + $0x988] sm:$0xff]
    %v2530 = vld [vmem:[%s7 + $0x990] sm:$0xff]
    %v2531 = vld [vmem:[%s7 + $0x998] sm:$0xff]
    %v2532 = vld [vmem:[%s7 + $0x9a0] sm:$0xff]
    %v2533 = vld [vmem:[%s7 + $0x9a8] sm:$0xff]
    %v2534 = vld [vmem:[%s7 + $0x9b0] sm:$0xff]
    %v2535 = vld [vmem:[%s7 + $0x9b8] sm:$0xff]
    %v2536 = vld [vmem:[%s7 + $0x9c0] sm:$0xff]
    %v2537 = vld [vmem:[%s7 + $0x9c8] sm:$0xff]
    %v2538 = vld [vmem:[%s7 + $0x9d0] sm:$0xff]
    %v2539 = vld [vmem:[%s7 + $0x9d8] sm:$0xff]
    %v2540 = vld [vmem:[%s7 + $0x9e0] sm:$0xff]
    %v2541 = vld [vmem:[%s7 + $0x9e8] sm:$0xff]
    %v2542 = vld [vmem:[%s7 + $0x9f0] sm:$0xff]
    %v2543 = vld [vmem:[%s7 + $0x9f8] sm:$0xff]
    %v2544 = vld [vmem:[%s7 + $0xa00] sm:$0xff]
    %v2545 = vld [vmem:[%s7 + $0xa08] sm:$0xff]
    %v2546 = vld [vmem:[%s7 + $0xa10] sm:$0xff]
    %v2547 = vld [vmem:[%s7 + $0xa18] sm:$0xff]
    %v2548 = vld [vmem:[%s7 + $0xa20] sm:$0xff]
    %v2549 = vld [vmem:[%s7 + $0xa28] sm:$0xff]
    %v2550 = vld [vmem:[%s7 + $0xa30] sm:$0xff]
    %v2551 = vld [vmem:[%s7 + $0xa38] sm:$0xff]
    %v2552 = vld [vmem:[%s7 + $0xa40] sm:$0xff]
    %v2553 = vld [vmem:[%s7 + $0xa48] sm:$0xff]
    %v2554 = vld [vmem:[%s7 + $0xa50] sm:$0xff]
    %v2555 = vld [vmem:[%s7 + $0xa58] sm:$0xff]
    %v2556 = vld [vmem:[%s7 + $0xa60] sm:$0xff]
    %v2557 = vld [vmem:[%s7 + $0xa68] sm:$0xff]
    %v2558 = vld [vmem:[%s7 + $0xa70] sm:$0xff]
    %v2559 = vld [vmem:[%s7 + $0xa78] sm:$0xff]
    %v2560 = vld [vmem:[%s7 + $0xa80] sm:$0xff]
    %v2561 = vld [vmem:[%s7 + $0xa88] sm:$0xff]
    %v2562 = vld [vmem:[%s7 + $0xa90] sm:$0xff]
    %v2563 = vld [vmem:[%s7 + $0xa98] sm:$0xff]
    %v2564 = vld [vmem:[%s7 + $0xaa0] sm:$0xff]
    %v2565 = vld [vmem:[%s7 + $0xaa8] sm:$0xff]
    %v2566 = vld [vmem:[%s7 + $0xab0] sm:$0xff]
    %v2567 = vld [vmem:[%s7 + $0xab8] sm:$0xff]
    %v2568 = vld [vmem:[%s7 + $0xac0] sm:$0xff]
    %v2569 = vld [vmem:[%s7 + $0xac8] sm:$0xff]
    %v2570 = vld [vmem:[%s7 + $0xad0] sm:$0xff]
    %v2571 = vld [vmem:[%s7 + $0xad8] sm:$0xff]
    %v2572 = vld [vmem:[%s7 + $0xae0] sm:$0xff]
    %v2573 = vld [vmem:[%s7 + $0xae8] sm:$0xff]
    %v2574 = vld [vmem:[%s7 + $0xaf0] sm:$0xff]
    %v2575 = vld [vmem:[%s7 + $0xaf8] sm:$0xff]
    %v2576 = vld [vmem:[%s7 + $0xb00] sm:$0xff]
    %v2577 = vld [vmem:[%s7 + $0xb08] sm:$0xff]
    %v2578 = vld [vmem:[%s7 + $0xb10] sm:$0xff]
    %v2579 = vld [vmem:[%s7 + $0xb18] sm:$0xff]
    %v2580 = vld [vmem:[%s7 + $0xb20] sm:$0xff]
    %v2581 = vld [vmem:[%s7 + $0xb28] sm:$0xff]
    %v2582 = vld [vmem:[%s7 + $0xb30] sm:$0xff]
    %v2583 = vld [vmem:[%s7 + $0xb38] sm:$0xff]
    %v2584 = vld [vmem:[%s7 + $0xb40] sm:$0xff]
    %v2585 = vld [vmem:[%s7 + $0xb48] sm:$0xff]
    %v2586 = vld [vmem:[%s7 + $0xb50] sm:$0xff]
    %v2587 = vld [vmem:[%s7 + $0xb58] sm:$0xff]
    %v2588 = vld [vmem:[%s7 + $0xb60] sm:$0xff]
    %v2589 = vld [vmem:[%s7 + $0xb68] sm:$0xff]
    %v2590 = vld [vmem:[%s7 + $0xb70] sm:$0xff]
    %v2591 = vld [vmem:[%s7 + $0xb78] sm:$0xff]
    %v2592 = vld [vmem:[%s7 + $0xb80] sm:$0xff]
    %v2593 = vld [vmem:[%s7 + $0xb88] sm:$0xff]
    %v2594 = vld [vmem:[%s7 + $0xb90] sm:$0xff]
    %v2595 = vld [vmem:[%s7 + $0xb98] sm:$0xff]
    %v2596 = vld [vmem:[%s7 + $0xba0] sm:$0xff]
    %v2597 = vld [vmem:[%s7 + $0xba8] sm:$0xff]
    %v2598 = vld [vmem:[%s7 + $0xbb0] sm:$0xff]
    %v2599 = vld [vmem:[%s7 + $0xbb8] sm:$0xff]
    %v2600 = vld [vmem:[%s7 + $0xbc0] sm:$0xff]
    %v2601 = vld [vmem:[%s7 + $0xbc8] sm:$0xff]
    %v2602 = vld [vmem:[%s7 + $0xbd0] sm:$0xff]
    %v2603 = vld [vmem:[%s7 + $0xbd8] sm:$0xff]
    %v2604 = vld [vmem:[%s7 + $0xbe0] sm:$0xff]
    %v2605 = vld [vmem:[%s7 + $0xbe8] sm:$0xff]
    %v2606 = vld [vmem:[%s7 + $0xbf0] sm:$0xff]
    %v2607 = vld [vmem:[%s7 + $0xbf8] sm:$0xff]
    %v2608 = vld [vmem:[%s7 + $0xc00] sm:$0xff]
    %v2609 = vld [vmem:[%s7 + $0xc08] sm:$0xff]
    %v2610 = vld [vmem:[%s7 + $0xc10] sm:$0xff]
    %v2611 = vld [vmem:[%s7 + $0xc18] sm:$0xff]
    %v2612 = vld [vmem:[%s7 + $0xc20] sm:$0xff]
    %v2613 = vld [vmem:[%s7 + $0xc28] sm:$0xff]
    %v2614 = vld [vmem:[%s7 + $0xc30] sm:$0xff]
    %v2615 = vld [vmem:[%s7 + $0xc38] sm:$0xff]
    %v2616 = vld [vmem:[%s7 + $0xc40] sm:$0xff]
    %v2617 = vld [vmem:[%s7 + $0xc48] sm:$0xff]
    %v2618 = vld [vmem:[%s7 + $0xc50] sm:$0xff]
    %v2619 = vld [vmem:[%s7 + $0xc58] sm:$0xff]
    %v2620 = vld [vmem:[%s7 + $0xc60] sm:$0xff]
    %v2621 = vld [vmem:[%s7 + $0xc68] sm:$0xff]
    %v2622 = vld [vmem:[%s7 + $0xc70] sm:$0xff]
    %v2623 = vld [vmem:[%s7 + $0xc78] sm:$0xff]
    %v2624 = vld [vmem:[%s7 + $0xc80] sm:$0xff]
    %v2625 = vld [vmem:[%s7 + $0xc88] sm:$0xff]
    %v2626 = vld [vmem:[%s7 + $0xc90] sm:$0xff]
    %v2627 = vld [vmem:[%s7 + $0xc98] sm:$0xff]
    %v2628 = vld [vmem:[%s7 + $0xca0] sm:$0xff]
    %v2629 = vld [vmem:[%s7 + $0xca8] sm:$0xff]
    %v2630 = vld [vmem:[%s7 + $0xcb0] sm:$0xff]
    %v2631 = vld [vmem:[%s7 + $0xcb8] sm:$0xff]
    %v2632 = vld [vmem:[%s7 + $0xcc0] sm:$0xff]
    %v2633 = vld [vmem:[%s7 + $0xcc8] sm:$0xff]
    %v2634 = vld [vmem:[%s7 + $0xcd0] sm:$0xff]
    %v2635 = vld [vmem:[%s7 + $0xcd8] sm:$0xff]
    %v2636 = vld [vmem:[%s7 + $0xce0] sm:$0xff]
    %v2637 = vld [vmem:[%s7 + $0xce8] sm:$0xff]
    %v2638 = vld [vmem:[%s7 + $0xcf0] sm:$0xff]
    %v2639 = vld [vmem:[%s7 + $0xcf8] sm:$0xff]
    %v2640 = vld [vmem:[%s7 + $0xd00] sm:$0xff]
    %v2641 = vld [vmem:[%s7 + $0xd08] sm:$0xff]
    %v2642 = vld [vmem:[%s7 + $0xd10] sm:$0xff]
    %v2643 = vld [vmem:[%s7 + $0xd18] sm:$0xff]
    %v2644 = vld [vmem:[%s7 + $0xd20] sm:$0xff]
    %v2645 = vld [vmem:[%s7 + $0xd28] sm:$0xff]
    %v2646 = vld [vmem:[%s7 + $0xd30] sm:$0xff]
    %v2647 = vld [vmem:[%s7 + $0xd38] sm:$0xff]
    %v2648 = vld [vmem:[%s7 + $0xd40] sm:$0xff]
    %v2649 = vld [vmem:[%s7 + $0xd48] sm:$0xff]
    %v2650 = vld [vmem:[%s7 + $0xd50] sm:$0xff]
    %v2651 = vld [vmem:[%s7 + $0xd58] sm:$0xff]
    %v2652 = vld [vmem:[%s7 + $0xd60] sm:$0xff]
    %v2653 = vld [vmem:[%s7 + $0xd68] sm:$0xff]
    %v2654 = vld [vmem:[%s7 + $0xd70] sm:$0xff]
    %v2655 = vld [vmem:[%s7 + $0xd78] sm:$0xff]
    %v2656 = vld [vmem:[%s7 + $0xd80] sm:$0xff]
    %v2657 = vld [vmem:[%s7 + $0xd88] sm:$0xff]
    %v2658 = vld [vmem:[%s7 + $0xd90] sm:$0xff]
    %v2659 = vld [vmem:[%s7 + $0xd98] sm:$0xff]
    %v2660 = vld [vmem:[%s7 + $0xda0] sm:$0xff]
    %v2661 = vld [vmem:[%s7 + $0xda8] sm:$0xff]
    %v2662 = vld [vmem:[%s7 + $0xdb0] sm:$0xff]
    %v2663 = vld [vmem:[%s7 + $0xdb8] sm:$0xff]
    %v2664 = vld [vmem:[%s7 + $0xdc0] sm:$0xff]
    %v2665 = vld [vmem:[%s7 + $0xdc8] sm:$0xff]
    %v2666 = vld [vmem:[%s7 + $0xdd0] sm:$0xff]
    %v2667 = vld [vmem:[%s7 + $0xdd8] sm:$0xff]
    %v2668 = vld [vmem:[%s7 + $0xde0] sm:$0xff]
    %v2669 = vld [vmem:[%s7 + $0xde8] sm:$0xff]
    %v2670 = vld [vmem:[%s7 + $0xdf0] sm:$0xff]
    %v2671 = vld [vmem:[%s7 + $0xdf8] sm:$0xff]
    %v2672 = vld [vmem:[%s7 + $0xe00] sm:$0xff]
    %v2673 = vld [vmem:[%s7 + $0xe08] sm:$0xff]
    %v2674 = vld [vmem:[%s7 + $0xe10] sm:$0xff]
    %v2675 = vld [vmem:[%s7 + $0xe18] sm:$0xff]
    %v2676 = vld [vmem:[%s7 + $0xe20] sm:$0xff]
    %v2677 = vld [vmem:[%s7 + $0xe28] sm:$0xff]
    %v2678 = vld [vmem:[%s7 + $0xe30] sm:$0xff]
    %v2679 = vld [vmem:[%s7 + $0xe38] sm:$0xff]
    %v2680 = vld [vmem:[%s7 + $0xe40] sm:$0xff]
    %v2681 = vld [vmem:[%s7 + $0xe48] sm:$0xff]
    %v2682 = vld [vmem:[%s7 + $0xe50] sm:$0xff]
    %v2683 = vld [vmem:[%s7 + $0xe58] sm:$0xff]
    %v2684 = vld [vmem:[%s7 + $0xe60] sm:$0xff]
    %v2685 = vld [vmem:[%s7 + $0xe68] sm:$0xff]
    %v2686 = vld [vmem:[%s7 + $0xe70] sm:$0xff]
    %v2687 = vld [vmem:[%s7 + $0xe78] sm:$0xff]
    %v2688 = vld [vmem:[%s7 + $0xe80] sm:$0xff]
    %v2689 = vld [vmem:[%s7 + $0xe88] sm:$0xff]
    %v2690 = vld [vmem:[%s7 + $0xe90] sm:$0xff]
    %v2691 = vld [vmem:[%s7 + $0xe98] sm:$0xff]
    %v2692 = vld [vmem:[%s7 + $0xea0] sm:$0xff]
    %v2693 = vld [vmem:[%s7 + $0xea8] sm:$0xff]
    %v2694 = vld [vmem:[%s7 + $0xeb0] sm:$0xff]
    %v2695 = vld [vmem:[%s7 + $0xeb8] sm:$0xff]
    %v2696 = vld [vmem:[%s7 + $0xec0] sm:$0xff]
    %v2697 = vld [vmem:[%s7 + $0xec8] sm:$0xff]
    %v2698 = vld [vmem:[%s7 + $0xed0] sm:$0xff]
    %v2699 = vld [vmem:[%s7 + $0xed8] sm:$0xff]
    %v2700 = vld [vmem:[%s7 + $0xee0] sm:$0xff]
    %v2701 = vld [vmem:[%s7 + $0xee8] sm:$0xff]
    %v2702 = vld [vmem:[%s7 + $0xef0] sm:$0xff]
    %v2703 = vld [vmem:[%s7 + $0xef8] sm:$0xff]
    %v2704 = vld [vmem:[%s7 + $0xf00] sm:$0xff]
    %v2705 = vld [vmem:[%s7 + $0xf08] sm:$0xff]
    %v2706 = vld [vmem:[%s7 + $0xf10] sm:$0xff]
    %v2707 = vld [vmem:[%s7 + $0xf18] sm:$0xff]
    %v2708 = vld [vmem:[%s7 + $0xf20] sm:$0xff]
    %v2709 = vld [vmem:[%s7 + $0xf28] sm:$0xff]
    %v2710 = vld [vmem:[%s7 + $0xf30] sm:$0xff]
    %v2711 = vld [vmem:[%s7 + $0xf38] sm:$0xff]
    %v2712 = vld [vmem:[%s7 + $0xf40] sm:$0xff]
    %v2713 = vld [vmem:[%s7 + $0xf48] sm:$0xff]
    %v2714 = vld [vmem:[%s7 + $0xf50] sm:$0xff]
    %v2715 = vld [vmem:[%s7 + $0xf58] sm:$0xff]
    %v2716 = vld [vmem:[%s7 + $0xf60] sm:$0xff]
    %v2717 = vld [vmem:[%s7 + $0xf68] sm:$0xff]
    %v2718 = vld [vmem:[%s7 + $0xf70] sm:$0xff]
    %v2719 = vld [vmem:[%s7 + $0xf78] sm:$0xff]
    %v2720 = vld [vmem:[%s7 + $0xf80] sm:$0xff]
    %v2721 = vld [vmem:[%s7 + $0xf88] sm:$0xff]
    %v2722 = vld [vmem:[%s7 + $0xf90] sm:$0xff]
    %v2723 = vld [vmem:[%s7 + $0xf98] sm:$0xff]
    %v2724 = vld [vmem:[%s7 + $0xfa0] sm:$0xff]
    %v2725 = vld [vmem:[%s7 + $0xfa8] sm:$0xff]
    %v2726 = vld [vmem:[%s7 + $0xfb0] sm:$0xff]
    %v2727 = vld [vmem:[%s7 + $0xfb8] sm:$0xff]
    %v2728 = vld [vmem:[%s7 + $0xfc0] sm:$0xff]
    %v2729 = vld [vmem:[%s7 + $0xfc8] sm:$0xff]
    %v2730 = vld [vmem:[%s7 + $0xfd0] sm:$0xff]
    %v2731 = vld [vmem:[%s7 + $0xfd8] sm:$0xff]
    %v2732 = vld [vmem:[%s7 + $0xfe0] sm:$0xff]
    %v2733 = vld [vmem:[%s7 + $0xfe8] sm:$0xff]
    %v2734 = vld [vmem:[%s7 + $0xff0] sm:$0xff]
    %v2735 = vld [vmem:[%s7 + $0xff8] sm:$0xff]
    %v2736 = vld [vmem:[%s7 + $0x1000] sm:$0xff]
    %v2737 = vld [vmem:[%s7 + $0x1008] sm:$0xff]
    %v2738 = vld [vmem:[%s7 + $0x1010] sm:$0xff]
    %v2739 = vld [vmem:[%s7 + $0x1018] sm:$0xff]
    %v2740 = vld [vmem:[%s7 + $0x1020] sm:$0xff]
    %v2741 = vld [vmem:[%s7 + $0x1028] sm:$0xff]
    %v2742 = vld [vmem:[%s7 + $0x1030] sm:$0xff]
    %v2743 = vld [vmem:[%s7 + $0x1038] sm:$0xff]
    %v2744 = vld [vmem:[%s7 + $0x1040] sm:$0xff]
    %v2745 = vld [vmem:[%s7 + $0x1048] sm:$0xff]
    %v2746 = vld [vmem:[%s7 + $0x1050] sm:$0xff]
    %v2747 = vld [vmem:[%s7 + $0x1058] sm:$0xff]
    %v2748 = vld [vmem:[%s7 + $0x1060] sm:$0xff]
    %v2749 = vld [vmem:[%s7 + $0x1068] sm:$0xff]
    %v2750 = vld [vmem:[%s7 + $0x1070] sm:$0xff]
    %v2751 = vld [vmem:[%s7 + $0x1078] sm:$0xff]
    %v2752 = vld [vmem:[%s7 + $0x1080] sm:$0xff]
    %v2753 = vld [vmem:[%s7 + $0x1088] sm:$0xff]
    %v2754 = vld [vmem:[%s7 + $0x1090] sm:$0xff]
    %v2755 = vld [vmem:[%s7 + $0x1098] sm:$0xff]
    %v2756 = vld [vmem:[%s7 + $0x10a0] sm:$0xff]
    %v2757 = vld [vmem:[%s7 + $0x10a8] sm:$0xff]
    %v2758 = vld [vmem:[%s7 + $0x10b0] sm:$0xff]
    %v2759 = vld [vmem:[%s7 + $0x10b8] sm:$0xff]
    %v2760 = vld [vmem:[%s7 + $0x10c0] sm:$0xff]
    %v2761 = vld [vmem:[%s7 + $0x10c8] sm:$0xff]
    %v2762 = vld [vmem:[%s7 + $0x10d0] sm:$0xff]
    %v2763 = vld [vmem:[%s7 + $0x10d8] sm:$0xff]
    %v2764 = vld [vmem:[%s7 + $0x10e0] sm:$0xff]
    %v2765 = vld [vmem:[%s7 + $0x10e8] sm:$0xff]
    %v2766 = vld [vmem:[%s7 + $0x10f0] sm:$0xff]
    %v2767 = vld [vmem:[%s7 + $0x10f8] sm:$0xff]
    %v2768 = vld [vmem:[%s7 + $0x1100] sm:$0xff]
    %v2769 = vld [vmem:[%s7 + $0x1108] sm:$0xff]
    %v2770 = vld [vmem:[%s7 + $0x1110] sm:$0xff]
    %v2771 = vld [vmem:[%s7 + $0x1118] sm:$0xff]
    %v2772 = vld [vmem:[%s7 + $0x1120] sm:$0xff]
    %v2773 = vld [vmem:[%s7 + $0x1128] sm:$0xff]
    %v2774 = vld [vmem:[%s7 + $0x1130] sm:$0xff]
    %v2775 = vld [vmem:[%s7 + $0x1138] sm:$0xff]
    %v2776 = vld [vmem:[%s7 + $0x1140] sm:$0xff]
    %v2777 = vld [vmem:[%s7 + $0x1148] sm:$0xff]
    %v2778 = vld [vmem:[%s7 + $0x1150] sm:$0xff]
    %v2779 = vld [vmem:[%s7 + $0x1158] sm:$0xff]
    %v2780 = vld [vmem:[%s7 + $0x1160] sm:$0xff]
    %v2781 = vld [vmem:[%s7 + $0x1168] sm:$0xff]
    %v2782 = vld [vmem:[%s7 + $0x1170] sm:$0xff]
    %v2783 = vld [vmem:[%s7 + $0x1178] sm:$0xff]
    %v2784 = vld [vmem:[%s7 + $0x1180] sm:$0xff]
    %v2785 = vld [vmem:[%s7 + $0x1188] sm:$0xff]
    %v2786 = vld [vmem:[%s7 + $0x1190] sm:$0xff]
    %v2787 = vld [vmem:[%s7 + $0x1198] sm:$0xff]
    %v2788 = vld [vmem:[%s7 + $0x11a0] sm:$0xff]
    %v2789 = vld [vmem:[%s7 + $0x11a8] sm:$0xff]
    %v2790 = vld [vmem:[%s7 + $0x11b0] sm:$0xff]
    %v2791 = vld [vmem:[%s7 + $0x11b8] sm:$0xff]
    %v2792 = vld [vmem:[%s7 + $0x11c0] sm:$0xff]
    %v2793 = vld [vmem:[%s7 + $0x11c8] sm:$0xff]
    %v2794 = vld [vmem:[%s7 + $0x11d0] sm:$0xff]
    %v2795 = vld [vmem:[%s7 + $0x11d8] sm:$0xff]
    %v2796 = vld [vmem:[%s7 + $0x11e0] sm:$0xff]
    %v2797 = vld [vmem:[%s7 + $0x11e8] sm:$0xff]
    %v2798 = vld [vmem:[%s7 + $0x11f0] sm:$0xff]
    %v2799 = vld [vmem:[%s7 + $0x11f8] sm:$0xff]
    %v2800 = vld [vmem:[%s7 + $0x1200] sm:$0xff]
    %v2801 = vld [vmem:[%s7 + $0x1208] sm:$0xff]
    %v2802 = vld [vmem:[%s7 + $0x1210] sm:$0xff]
    %v2803 = vld [vmem:[%s7 + $0x1218] sm:$0xff]
    %v2804 = vld [vmem:[%s7 + $0x1220] sm:$0xff]
    %v2805 = vld [vmem:[%s7 + $0x1228] sm:$0xff]
    %v2806 = vld [vmem:[%s7 + $0x1230] sm:$0xff]
    %v2807 = vld [vmem:[%s7 + $0x1238] sm:$0xff]
    %v2808 = vld [vmem:[%s7 + $0x1240] sm:$0xff]
    %v2809 = vld [vmem:[%s7 + $0x1248] sm:$0xff]
    %v2810 = vld [vmem:[%s7 + $0x1250] sm:$0xff]
    %v2811 = vld [vmem:[%s7 + $0x1258] sm:$0xff]
    %v2812 = vld [vmem:[%s7 + $0x1260] sm:$0xff]
    %v2813 = vld [vmem:[%s7 + $0x1268] sm:$0xff]
    %v2814 = vld [vmem:[%s7 + $0x1270] sm:$0xff]
    %v2815 = vld [vmem:[%s7 + $0x1278] sm:$0xff]
    %v2816 = vld [vmem:[%s7 + $0x1280] sm:$0xff]
    %v2817 = vld [vmem:[%s7 + $0x1288] sm:$0xff]
    %v2818 = vld [vmem:[%s7 + $0x1290] sm:$0xff]
    %v2819 = vld [vmem:[%s7 + $0x1298] sm:$0xff]
    %v2820 = vld [vmem:[%s7 + $0x12a0] sm:$0xff]
    %v2821 = vld [vmem:[%s7 + $0x12a8] sm:$0xff]
    %v2822 = vld [vmem:[%s7 + $0x12b0] sm:$0xff]
    %v2823 = vld [vmem:[%s7 + $0x12b8] sm:$0xff]
    %v2824 = vld [vmem:[%s7 + $0x12c0] sm:$0xff]
    %v2825 = vld [vmem:[%s7 + $0x12c8] sm:$0xff]
    %v2826 = vld [vmem:[%s7 + $0x12d0] sm:$0xff]
    %v2827 = vld [vmem:[%s7 + $0x12d8] sm:$0xff]
    %v2828 = vld [vmem:[%s7 + $0x12e0] sm:$0xff]
    %v2829 = vld [vmem:[%s7 + $0x12e8] sm:$0xff]
    %v2830 = vld [vmem:[%s7 + $0x12f0] sm:$0xff]
    %v2831 = vld [vmem:[%s7 + $0x12f8] sm:$0xff]
    %v2832 = vld [vmem:[%s7 + $0x1300] sm:$0xff]
    %v2833 = vld [vmem:[%s7 + $0x1308] sm:$0xff]
    %v2834 = vld [vmem:[%s7 + $0x1310] sm:$0xff]
    %v2835 = vld [vmem:[%s7 + $0x1318] sm:$0xff]
    %v2836 = vld [vmem:[%s7 + $0x1320] sm:$0xff]
    %v2837 = vld [vmem:[%s7 + $0x1328] sm:$0xff]
    %v2838 = vld [vmem:[%s7 + $0x1330] sm:$0xff]
    %v2839 = vld [vmem:[%s7 + $0x1338] sm:$0xff]
    %v2840 = vld [vmem:[%s7 + $0x1340] sm:$0xff]
    %v2841 = vld [vmem:[%s7 + $0x1348] sm:$0xff]
    %v2842 = vld [vmem:[%s7 + $0x1350] sm:$0xff]
    %v2843 = vld [vmem:[%s7 + $0x1358] sm:$0xff]
    %v2844 = vld [vmem:[%s7 + $0x1360] sm:$0xff]
    %v2845 = vld [vmem:[%s7 + $0x1368] sm:$0xff]
    %v2846 = vld [vmem:[%s7 + $0x1370] sm:$0xff]
    %v2847 = vld [vmem:[%s7 + $0x1378] sm:$0xff]
    %v2848 = vld [vmem:[%s7 + $0x1380] sm:$0xff]
    %v2849 = vld [vmem:[%s7 + $0x1388] sm:$0xff]
    %v2850 = vld [vmem:[%s7 + $0x1390] sm:$0xff]
    %v2851 = vld [vmem:[%s7 + $0x1398] sm:$0xff]
    %v2852 = vld [vmem:[%s7 + $0x13a0] sm:$0xff]
    %v2853 = vld [vmem:[%s7 + $0x13a8] sm:$0xff]
    %v2854 = vld [vmem:[%s7 + $0x13b0] sm:$0xff]
    %v2855 = vld [vmem:[%s7 + $0x13b8] sm:$0xff]
    %v2856 = vld [vmem:[%s7 + $0x13c0] sm:$0xff]
    %v2857 = vld [vmem:[%s7 + $0x13c8] sm:$0xff]
    %v2858 = vld [vmem:[%s7 + $0x13d0] sm:$0xff]
    %v2859 = vld [vmem:[%s7 + $0x13d8] sm:$0xff]
    %v2860 = vld [vmem:[%s7 + $0x13e0] sm:$0xff]
    %v2861 = vld [vmem:[%s7 + $0x13e8] sm:$0xff]
    %v2862 = vld [vmem:[%s7 + $0x13f0] sm:$0xff]
    %v2863 = vld [vmem:[%s7 + $0x13f8] sm:$0xff]
    %v2864 = vld [vmem:[%s7 + $0x1400] sm:$0xff]
    %v2865 = vld [vmem:[%s7 + $0x1408] sm:$0xff]
    %v2866 = vld [vmem:[%s7 + $0x1410] sm:$0xff]
    %v2867 = vld [vmem:[%s7 + $0x1418] sm:$0xff]
    %v2868 = vld [vmem:[%s7 + $0x1420] sm:$0xff]
    %v2869 = vld [vmem:[%s7 + $0x1428] sm:$0xff]
    %v2870 = vld [vmem:[%s7 + $0x1430] sm:$0xff]
    %v2871 = vld [vmem:[%s7 + $0x1438] sm:$0xff]
    %v2872 = vld [vmem:[%s7 + $0x1440] sm:$0xff]
    %v2873 = vld [vmem:[%s7 + $0x1448] sm:$0xff]
    %v2874 = vld [vmem:[%s7 + $0x1450] sm:$0xff]
    %v2875 = vld [vmem:[%s7 + $0x1458] sm:$0xff]
    %v2876 = vld [vmem:[%s7 + $0x1460] sm:$0xff]
    %v2877 = vld [vmem:[%s7 + $0x1468] sm:$0xff]
    %v2878 = vld [vmem:[%s7 + $0x1470] sm:$0xff]
    %v2879 = vld [vmem:[%s7 + $0x1478] sm:$0xff]
    %v2880 = vld [vmem:[%s7 + $0x1480] sm:$0xff]
    %v2881 = vld [vmem:[%s7 + $0x1488] sm:$0xff]
    %v2882 = vld [vmem:[%s7 + $0x1490] sm:$0xff]
    %v2883 = vld [vmem:[%s7 + $0x1498] sm:$0xff]
    %v2884 = vld [vmem:[%s7 + $0x14a0] sm:$0xff]
    %v2885 = vld [vmem:[%s7 + $0x14a8] sm:$0xff]
    %v2886 = vld [vmem:[%s7 + $0x14b0] sm:$0xff]
    %v2887 = vld [vmem:[%s7 + $0x14b8] sm:$0xff]
    %v2888 = vld [vmem:[%s7 + $0x14c0] sm:$0xff]
    %v2889 = vld [vmem:[%s7 + $0x14c8] sm:$0xff]
    %v2890 = vld [vmem:[%s7 + $0x14d0] sm:$0xff]
    %v2891 = vld [vmem:[%s7 + $0x14d8] sm:$0xff]
    %v2892 = vld [vmem:[%s7 + $0x14e0] sm:$0xff]
    %v2893 = vld [vmem:[%s7 + $0x14e8] sm:$0xff]
    %v2894 = vld [vmem:[%s7 + $0x14f0] sm:$0xff]
    %v2895 = vld [vmem:[%s7 + $0x14f8] sm:$0xff]
    %v2896 = vld [vmem:[%s7 + $0x1500] sm:$0xff]
    %v2897 = vld [vmem:[%s7 + $0x1508] sm:$0xff]
    %v2898 = vld [vmem:[%s7 + $0x1510] sm:$0xff]
    %v2899 = vld [vmem:[%s7 + $0x1518] sm:$0xff]
    %v2900 = vld [vmem:[%s7 + $0x1520] sm:$0xff]
    %v2901 = vld [vmem:[%s7 + $0x1528] sm:$0xff]
    %v2902 = vld [vmem:[%s7 + $0x1530] sm:$0xff]
    %v2903 = vld [vmem:[%s7 + $0x1538] sm:$0xff]
    %v2904 = vld [vmem:[%s7 + $0x1540] sm:$0xff]
    %v2905 = vld [vmem:[%s7 + $0x1548] sm:$0xff]
    %v2906 = vld [vmem:[%s7 + $0x1550] sm:$0xff]
    %v2907 = vld [vmem:[%s7 + $0x1558] sm:$0xff]
    %v2908 = vld [vmem:[%s7 + $0x1560] sm:$0xff]
    %v2909 = vld [vmem:[%s7 + $0x1568] sm:$0xff]
    %v2910 = vld [vmem:[%s7 + $0x1570] sm:$0xff]
    %v2911 = vld [vmem:[%s7 + $0x1578] sm:$0xff]
    %v2912 = vld [vmem:[%s7 + $0x1580] sm:$0xff]
    %v2913 = vld [vmem:[%s7 + $0x1588] sm:$0xff]
    %v2914 = vld [vmem:[%s7 + $0x1590] sm:$0xff]
    %v2915 = vld [vmem:[%s7 + $0x1598] sm:$0xff]
    %v2916 = vld [vmem:[%s7 + $0x15a0] sm:$0xff]
    %v2917 = vld [vmem:[%s7 + $0x15a8] sm:$0xff]
    %v2918 = vld [vmem:[%s7 + $0x15b0] sm:$0xff]
    %v2919 = vld [vmem:[%s7 + $0x15b8] sm:$0xff]
    %v2920 = vld [vmem:[%s7 + $0x15c0] sm:$0xff]
    %v2921 = vld [vmem:[%s7 + $0x15c8] sm:$0xff]
    %v2922 = vld [vmem:[%s7 + $0x15d0] sm:$0xff]
    %v2923 = vld [vmem:[%s7 + $0x15d8] sm:$0xff]
    %v2924 = vld [vmem:[%s7 + $0x15e0] sm:$0xff]
    %v2925 = vld [vmem:[%s7 + $0x15e8] sm:$0xff]
    %v2926 = vld [vmem:[%s7 + $0x15f0] sm:$0xff]
    %v2927 = vld [vmem:[%s7 + $0x15f8] sm:$0xff]
    %v2928 = vld [vmem:[%s7 + $0x1600] sm:$0xff]
    %v2929 = vld [vmem:[%s7 + $0x1608] sm:$0xff]
    %v2930 = vld [vmem:[%s7 + $0x1610] sm:$0xff]
    %v2931 = vld [vmem:[%s7 + $0x1618] sm:$0xff]
    %v2932 = vld [vmem:[%s7 + $0x1620] sm:$0xff]
    %v2933 = vld [vmem:[%s7 + $0x1628] sm:$0xff]
    %v2934 = vld [vmem:[%s7 + $0x1630] sm:$0xff]
    %v2935 = vld [vmem:[%s7 + $0x1638] sm:$0xff]
    %v2936 = vld [vmem:[%s7 + $0x1640] sm:$0xff]
    %v2937 = vld [vmem:[%s7 + $0x1648] sm:$0xff]
    %v2938 = vld [vmem:[%s7 + $0x1650] sm:$0xff]
    %v2939 = vld [vmem:[%s7 + $0x1658] sm:$0xff]
    %v2940 = vld [vmem:[%s7 + $0x1660] sm:$0xff]
    %v2941 = vld [vmem:[%s7 + $0x1668] sm:$0xff]
    %v2942 = vld [vmem:[%s7 + $0x1670] sm:$0xff]
    %v2943 = vld [vmem:[%s7 + $0x1678] sm:$0xff]
    %v2944 = vld [vmem:[%s7 + $0x1680] sm:$0xff]
    %v2945 = vld [vmem:[%s7 + $0x1688] sm:$0xff]
    %v2946 = vld [vmem:[%s7 + $0x1690] sm:$0xff]
    %v2947 = vld [vmem:[%s7 + $0x1698] sm:$0xff]
    %v2948 = vld [vmem:[%s7 + $0x16a0] sm:$0xff]
    %v2949 = vld [vmem:[%s7 + $0x16a8] sm:$0xff]
    %v2950 = vld [vmem:[%s7 + $0x16b0] sm:$0xff]
    %v2951 = vld [vmem:[%s7 + $0x16b8] sm:$0xff]
    %v2952 = vld [vmem:[%s7 + $0x16c0] sm:$0xff]
    %v2953 = vld [vmem:[%s7 + $0x16c8] sm:$0xff]
    %v2954 = vld [vmem:[%s7 + $0x16d0] sm:$0xff]
    %v2955 = vld [vmem:[%s7 + $0x16d8] sm:$0xff]
    %v2956 = vld [vmem:[%s7 + $0x16e0] sm:$0xff]
    %v2957 = vld [vmem:[%s7 + $0x16e8] sm:$0xff]
    %v2958 = vld [vmem:[%s7 + $0x16f0] sm:$0xff]
    %v2959 = vld [vmem:[%s7 + $0x16f8] sm:$0xff]
    %v2960 = vld [vmem:[%s7 + $0x1700] sm:$0xff]
    %v2961 = vld [vmem:[%s7 + $0x1708] sm:$0xff]
    %v2962 = vld [vmem:[%s7 + $0x1710] sm:$0xff]
    %v2963 = vld [vmem:[%s7 + $0x1718] sm:$0xff]
    %v2964 = vld [vmem:[%s7 + $0x1720] sm:$0xff]
    %v2965 = vld [vmem:[%s7 + $0x1728] sm:$0xff]
    %v2966 = vld [vmem:[%s7 + $0x1730] sm:$0xff]
    %v2967 = vld [vmem:[%s7 + $0x1738] sm:$0xff]
    %v2968 = vld [vmem:[%s7 + $0x1740] sm:$0xff]
    %v2969 = vld [vmem:[%s7 + $0x1748] sm:$0xff]
    %v2970 = vld [vmem:[%s7 + $0x1750] sm:$0xff]
    %v2971 = vld [vmem:[%s7 + $0x1758] sm:$0xff]
    %v2972 = vld [vmem:[%s7 + $0x1760] sm:$0xff]
    %v2973 = vld [vmem:[%s7 + $0x1768] sm:$0xff]
    %v2974 = vld [vmem:[%s7 + $0x1770] sm:$0xff]
    %v2975 = vld [vmem:[%s7 + $0x1778] sm:$0xff]
    %v2976 = vld [vmem:[%s7 + $0x1780] sm:$0xff]
    %v2977 = vld [vmem:[%s7 + $0x1788] sm:$0xff]
    %v2978 = vld [vmem:[%s7 + $0x1790] sm:$0xff]
    %v2979 = vld [vmem:[%s7 + $0x1798] sm:$0xff]
    %v2980 = vld [vmem:[%s7 + $0x17a0] sm:$0xff]
    %v2981 = vld [vmem:[%s7 + $0x17a8] sm:$0xff]
    %v2982 = vld [vmem:[%s7 + $0x17b0] sm:$0xff]
    %v2983 = vld [vmem:[%s7 + $0x17b8] sm:$0xff]
    %v2984 = vld [vmem:[%s7 + $0x17c0] sm:$0xff]
    %v2985 = vld [vmem:[%s7 + $0x17c8] sm:$0xff]
    %v2986 = vld [vmem:[%s7 + $0x17d0] sm:$0xff]
    %v2987 = vld [vmem:[%s7 + $0x17d8] sm:$0xff]
    %v2988 = vld [vmem:[%s7 + $0x17e0] sm:$0xff]
    %v2989 = vld [vmem:[%s7 + $0x17e8] sm:$0xff]
    %v2990 = vld [vmem:[%s7 + $0x17f0] sm:$0xff]
    %v2991 = vld [vmem:[%s7 + $0x17f8] sm:$0xff]
    %v2992 = vld [vmem:[%s7 + $0x1800] sm:$0xff]
    %v2993 = vld [vmem:[%s7 + $0x1808] sm:$0xff]
    %v2994 = vld [vmem:[%s7 + $0x1810] sm:$0xff]
    %v2995 = vld [vmem:[%s7 + $0x1818] sm:$0xff]
    %v2996 = vld [vmem:[%s7 + $0x1820] sm:$0xff]
    %v2997 = vld [vmem:[%s7 + $0x1828] sm:$0xff]
    %v2998 = vld [vmem:[%s7 + $0x1830] sm:$0xff]
    %v2999 = vld [vmem:[%s7 + $0x1838] sm:$0xff]
    %v3000 = vld [vmem:[%s7 + $0x1840] sm:$0xff]
    %v3001 = vld [vmem:[%s7 + $0x1848] sm:$0xff]
    %v3002 = vld [vmem:[%s7 + $0x1850] sm:$0xff]
    %v3003 = vld [vmem:[%s7 + $0x1858] sm:$0xff]
    %v3004 = vld [vmem:[%s7 + $0x1860] sm:$0xff]
    %v3005 = vld [vmem:[%s7 + $0x1868] sm:$0xff]
    %v3006 = vld [vmem:[%s7 + $0x1870] sm:$0xff]
    %v3007 = vld [vmem:[%s7 + $0x1878] sm:$0xff]
    %v3008 = vld [vmem:[%s7 + $0x1880] sm:$0xff]
    %v3009 = vld [vmem:[%s7 + $0x1888] sm:$0xff]
    %v3010 = vld [vmem:[%s7 + $0x1890] sm:$0xff]
    %v3011 = vld [vmem:[%s7 + $0x1898] sm:$0xff]
    %v3012 = vld [vmem:[%s7 + $0x18a0] sm:$0xff]
    %v3013 = vld [vmem:[%s7 + $0x18a8] sm:$0xff]
    %v3014 = vld [vmem:[%s7 + $0x18b0] sm:$0xff]
    %v3015 = vld [vmem:[%s7 + $0x18b8] sm:$0xff]
    %v3016 = vld [vmem:[%s7 + $0x18c0] sm:$0xff]
    %v3017 = vld [vmem:[%s7 + $0x18c8] sm:$0xff]
    %v3018 = vld [vmem:[%s7 + $0x18d0] sm:$0xff]
    %v3019 = vld [vmem:[%s7 + $0x18d8] sm:$0xff]
    %v3020 = vld [vmem:[%s7 + $0x18e0] sm:$0xff]
    %v3021 = vld [vmem:[%s7 + $0x18e8] sm:$0xff]
    %v3022 = vld [vmem:[%s7 + $0x18f0] sm:$0xff]
    %v3023 = vld [vmem:[%s7 + $0x18f8] sm:$0xff]
    %v3024 = vld [vmem:[%s7 + $0x1900] sm:$0xff]
    %v3025 = vld [vmem:[%s7 + $0x1908] sm:$0xff]
    %v3026 = vld [vmem:[%s7 + $0x1910] sm:$0xff]
    %v3027 = vld [vmem:[%s7 + $0x1918] sm:$0xff]
    %v3028 = vld [vmem:[%s7 + $0x1920] sm:$0xff]
    %v3029 = vld [vmem:[%s7 + $0x1928] sm:$0xff]
    %v3030 = vld [vmem:[%s7 + $0x1930] sm:$0xff]
    %v3031 = vld [vmem:[%s7 + $0x1938] sm:$0xff]
    %v3032 = vld [vmem:[%s7 + $0x1940] sm:$0xff]
    %v3033 = vld [vmem:[%s7 + $0x1948] sm:$0xff]
    %v3034 = vld [vmem:[%s7 + $0x1950] sm:$0xff]
    %v3035 = vld [vmem:[%s7 + $0x1958] sm:$0xff]
    %v3036 = vld [vmem:[%s7 + $0x1960] sm:$0xff]
    %v3037 = vld [vmem:[%s7 + $0x1968] sm:$0xff]
    %v3038 = vld [vmem:[%s7 + $0x1970] sm:$0xff]
    %v3039 = vld [vmem:[%s7 + $0x1978] sm:$0xff]
    %v3040 = vld [vmem:[%s7 + $0x1980] sm:$0xff]
    %v3041 = vld [vmem:[%s7 + $0x1988] sm:$0xff]
    %v3042 = vld [vmem:[%s7 + $0x1990] sm:$0xff]
    %v3043 = vld [vmem:[%s7 + $0x1998] sm:$0xff]
    %v3044 = vld [vmem:[%s7 + $0x19a0] sm:$0xff]
    %v3045 = vld [vmem:[%s7 + $0x19a8] sm:$0xff]
    %v3046 = vld [vmem:[%s7 + $0x19b0] sm:$0xff]
    %v3047 = vld [vmem:[%s7 + $0x19b8] sm:$0xff]
    %v3048 = vld [vmem:[%s7 + $0x19c0] sm:$0xff]
    %v3049 = vld [vmem:[%s7 + $0x19c8] sm:$0xff]
    %v3050 = vld [vmem:[%s7 + $0x19d0] sm:$0xff]
    %v3051 = vld [vmem:[%s7 + $0x19d8] sm:$0xff]
    %v3052 = vld [vmem:[%s7 + $0x19e0] sm:$0xff]
    %v3053 = vld [vmem:[%s7 + $0x19e8] sm:$0xff]
    %v3054 = vld [vmem:[%s7 + $0x19f0] sm:$0xff]
    %v3055 = vld [vmem:[%s7 + $0x19f8] sm:$0xff]
    %v3056 = vld [vmem:[%s7 + $0x1a00] sm:$0xff]
    %v3057 = vld [vmem:[%s7 + $0x1a08] sm:$0xff]
    %v3058 = vld [vmem:[%s7 + $0x1a10] sm:$0xff]
    %v3059 = vld [vmem:[%s7 + $0x1a18] sm:$0xff]
    %v3060 = vld [vmem:[%s7 + $0x1a20] sm:$0xff]
    %v3061 = vld [vmem:[%s7 + $0x1a28] sm:$0xff]
    %v3062 = vld [vmem:[%s7 + $0x1a30] sm:$0xff]
    %v3063 = vld [vmem:[%s7 + $0x1a38] sm:$0xff]
    %v3064 = vld [vmem:[%s7 + $0x1a40] sm:$0xff]
    %v3065 = vld [vmem:[%s7 + $0x1a48] sm:$0xff]
    %v3066 = vld [vmem:[%s7 + $0x1a50] sm:$0xff]
    %v3067 = vld [vmem:[%s7 + $0x1a58] sm:$0xff]
    %v3068 = vld [vmem:[%s7 + $0x1a60] sm:$0xff]
    %v3069 = vld [vmem:[%s7 + $0x1a68] sm:$0xff]
    %v3070 = vld [vmem:[%s7 + $0x1a70] sm:$0xff]
    %v3071 = vld [vmem:[%s7 + $0x1a78] sm:$0xff]
    %v3072 = vld [vmem:[%s7 + $0x1a80] sm:$0xff]
    %v3073 = vld [vmem:[%s7 + $0x1a88] sm:$0xff]
    %v3074 = vld [vmem:[%s7 + $0x1a90] sm:$0xff]
    %v3075 = vld [vmem:[%s7 + $0x1a98] sm:$0xff]
    %v3076 = vld [vmem:[%s7 + $0x1aa0] sm:$0xff]
    %v3077 = vld [vmem:[%s7 + $0x1aa8] sm:$0xff]
    %v3078 = vld [vmem:[%s7 + $0x1ab0] sm:$0xff]
    %v3079 = vld [vmem:[%s7 + $0x1ab8] sm:$0xff]
    %v3080 = vld [vmem:[%s7 + $0x1ac0] sm:$0xff]
    %v3081 = vld [vmem:[%s7 + $0x1ac8] sm:$0xff]
    %v3082 = vld [vmem:[%s7 + $0x1ad0] sm:$0xff]
    %v3083 = vld [vmem:[%s7 + $0x1ad8] sm:$0xff]
    %v3084 = vld [vmem:[%s7 + $0x1ae0] sm:$0xff]
    %v3085 = vld [vmem:[%s7 + $0x1ae8] sm:$0xff]
    %v3086 = vld [vmem:[%s7 + $0x1af0] sm:$0xff]
    %v3087 = vld [vmem:[%s7 + $0x1af8] sm:$0xff]
    %v3088 = vld [vmem:[%s7 + $0x1b00] sm:$0xff]
    %v3089 = vld [vmem:[%s7 + $0x1b08] sm:$0xff]
    %v3090 = vld [vmem:[%s7 + $0x1b10] sm:$0xff]
    %v3091 = vld [vmem:[%s7 + $0x1b18] sm:$0xff]
    %v3092 = vld [vmem:[%s7 + $0x1b20] sm:$0xff]
    %v3093 = vld [vmem:[%s7 + $0x1b28] sm:$0xff]
    %v3094 = vld [vmem:[%s7 + $0x1b30] sm:$0xff]
    %v3095 = vld [vmem:[%s7 + $0x1b38] sm:$0xff]
    %v3096 = vld [vmem:[%s7 + $0x1b40] sm:$0xff]
    %v3097 = vld [vmem:[%s7 + $0x1b48] sm:$0xff]
    %v3098 = vld [vmem:[%s7 + $0x1b50] sm:$0xff]
    %v3099 = vld [vmem:[%s7 + $0x1b58] sm:$0xff]
    %v3100 = vld [vmem:[%s7 + $0x1b60] sm:$0xff]
    %v3101 = vld [vmem:[%s7 + $0x1b68] sm:$0xff]
    %v3102 = vld [vmem:[%s7 + $0x1b70] sm:$0xff]
    %v3103 = vld [vmem:[%s7 + $0x1b78] sm:$0xff]
    %v3104 = vld [vmem:[%s8] sm:$0xf]
    %v3106 = vlaneseq
    %v3107 = vshrl.u32 %v3106, 7
    %v3108 = vsub.s32 0, %v3107
    %v3109 = vrot.slane %v3104, %v3108
    %v3110 = vlaneseq
    %v3111 = vshrl.u32 %v3110, 7
    %v3112 = vsub.s32 1, %v3111
    %v3113 = vrot.slane %v3104, %v3112
    %v3114 = vlaneseq
    %v3115 = vshrl.u32 %v3114, 7
    %v3116 = vsub.s32 2, %v3115
    %v3117 = vrot.slane %v3104, %v3116
    %v3118 = vlaneseq
    %v3119 = vshrl.u32 %v3118, 7
    %v3120 = vsub.s32 3, %v3119
    %v3121 = vrot.slane %v3104, %v3120
    %v4006 = vunpack.c.l.b16 %v2224
    %v4007 = vunpack.c.h.b16 %v2224
    %v4008 = vunpack.c.l.b16 %v2225
    %v4009 = vunpack.c.h.b16 %v2225
    %v4010 = vunpack.c.l.b16 %v2226
    %v4011 = vunpack.c.h.b16 %v2226
    %v4012 = vunpack.c.l.b16 %v2227
    %v4013 = vunpack.c.h.b16 %v2227
    %v4014 = vunpack.c.l.b16 %v2228
    %v4015 = vunpack.c.h.b16 %v2228
    %v4016 = vunpack.c.l.b16 %v2229
    %v4017 = vunpack.c.h.b16 %v2229
    %v4018 = vunpack.c.l.b16 %v2230
    %v4019 = vunpack.c.h.b16 %v2230
    %v4020 = vunpack.c.l.b16 %v2231
    %v4021 = vunpack.c.h.b16 %v2231
    %v4022 = vunpack.c.l.b16 %v2232
    %v4023 = vunpack.c.h.b16 %v2232
    %v4024 = vunpack.c.l.b16 %v2233
    %v4025 = vunpack.c.h.b16 %v2233
    %v4026 = vunpack.c.l.b16 %v2234
    %v4027 = vunpack.c.h.b16 %v2234
    %v4028 = vunpack.c.l.b16 %v2235
    %v4029 = vunpack.c.h.b16 %v2235
    %v4030 = vunpack.c.l.b16 %v2236
    %v4031 = vunpack.c.h.b16 %v2236
    %v4032 = vunpack.c.l.b16 %v2237
    %v4033 = vunpack.c.h.b16 %v2237
    %v4034 = vunpack.c.l.b16 %v2238
    %v4035 = vunpack.c.h.b16 %v2238
    %v4036 = vunpack.c.l.b16 %v2239
    %v4037 = vunpack.c.h.b16 %v2239
    %v4038 = vunpack.c.l.b16 %v2240
    %v4039 = vunpack.c.h.b16 %v2240
    %v4040 = vunpack.c.l.b16 %v2241
    %v4041 = vunpack.c.h.b16 %v2241
    %v4042 = vunpack.c.l.b16 %v2242
    %v4043 = vunpack.c.h.b16 %v2242
    %v4044 = vunpack.c.l.b16 %v2243
    %v4045 = vunpack.c.h.b16 %v2243
    %v4046 = vunpack.c.l.b16 %v2244
    %v4047 = vunpack.c.h.b16 %v2244
    %v4048 = vunpack.c.l.b16 %v2245
    %v4049 = vunpack.c.h.b16 %v2245
    %v4050 = vunpack.c.l.b16 %v2246
    %v4051 = vunpack.c.h.b16 %v2246
    %v4052 = vunpack.c.l.b16 %v2247
    %v4053 = vunpack.c.h.b16 %v2247
    %v4054 = vunpack.c.l.b16 %v2248
    %v4055 = vunpack.c.h.b16 %v2248
    %v4056 = vunpack.c.l.b16 %v2249
    %v4057 = vunpack.c.h.b16 %v2249
    %v4058 = vunpack.c.l.b16 %v2250
    %v4059 = vunpack.c.h.b16 %v2250
    %v4060 = vunpack.c.l.b16 %v2251
    %v4061 = vunpack.c.h.b16 %v2251
    %v4062 = vunpack.c.l.b16 %v2252
    %v4063 = vunpack.c.h.b16 %v2252
    %v4064 = vunpack.c.l.b16 %v2253
    %v4065 = vunpack.c.h.b16 %v2253
    %v4066 = vunpack.c.l.b16 %v2254
    %v4067 = vunpack.c.h.b16 %v2254
    %v4068 = vunpack.c.l.b16 %v2255
    %v4069 = vunpack.c.h.b16 %v2255
    %v4070 = vunpack.c.l.b16 %v2256
    %v4071 = vunpack.c.h.b16 %v2256
    %v4072 = vunpack.c.l.b16 %v2257
    %v4073 = vunpack.c.h.b16 %v2257
    %v4074 = vunpack.c.l.b16 %v2258
    %v4075 = vunpack.c.h.b16 %v2258
    %v4076 = vunpack.c.l.b16 %v2259
    %v4077 = vunpack.c.h.b16 %v2259
    %v4078 = vunpack.c.l.b16 %v2260
    %v4079 = vunpack.c.h.b16 %v2260
    %v4080 = vunpack.c.l.b16 %v2261
    %v4081 = vunpack.c.h.b16 %v2261
    %v4082 = vunpack.c.l.b16 %v2262
    %v4083 = vunpack.c.h.b16 %v2262
    %v4084 = vunpack.c.l.b16 %v2263
    %v4085 = vunpack.c.h.b16 %v2263
    %v4086 = vunpack.c.l.b16 %v2264
    %v4087 = vunpack.c.h.b16 %v2264
    %v4088 = vunpack.c.l.b16 %v2265
    %v4089 = vunpack.c.h.b16 %v2265
    %v4090 = vunpack.c.l.b16 %v2266
    %v4091 = vunpack.c.h.b16 %v2266
    %v4092 = vunpack.c.l.b16 %v2267
    %v4093 = vunpack.c.h.b16 %v2267
    %v4094 = vunpack.c.l.b16 %v2268
    %v4095 = vunpack.c.h.b16 %v2268
    %v4096 = vunpack.c.l.b16 %v2269
    %v4097 = vunpack.c.h.b16 %v2269
    %v4098 = vunpack.c.l.b16 %v2270
    %v4099 = vunpack.c.h.b16 %v2270
    %v4100 = vunpack.c.l.b16 %v2271
    %v4101 = vunpack.c.h.b16 %v2271
    %v4102 = vunpack.c.l.b16 %v2272
    %v4103 = vunpack.c.h.b16 %v2272
    %v4104 = vunpack.c.l.b16 %v2273
    %v4105 = vunpack.c.h.b16 %v2273
    %v4106 = vunpack.c.l.b16 %v2274
    %v4107 = vunpack.c.h.b16 %v2274
    %v4108 = vunpack.c.l.b16 %v2275
    %v4109 = vunpack.c.h.b16 %v2275
    %v4110 = vunpack.c.l.b16 %v2276
    %v4111 = vunpack.c.h.b16 %v2276
    %v4112 = vunpack.c.l.b16 %v2277
    %v4113 = vunpack.c.h.b16 %v2277
    %v4114 = vunpack.c.l.b16 %v2278
    %v4115 = vunpack.c.h.b16 %v2278
    %v4116 = vunpack.c.l.b16 %v2279
    %v4117 = vunpack.c.h.b16 %v2279
    %v4118 = vunpack.c.l.b16 %v2280
    %v4119 = vunpack.c.h.b16 %v2280
    %v4120 = vunpack.c.l.b16 %v2281
    %v4121 = vunpack.c.h.b16 %v2281
    %v4122 = vunpack.c.l.b16 %v2282
    %v4123 = vunpack.c.h.b16 %v2282
    %v4124 = vunpack.c.l.b16 %v2283
    %v4125 = vunpack.c.h.b16 %v2283
    %v4126 = vunpack.c.l.b16 %v2284
    %v4127 = vunpack.c.h.b16 %v2284
    %v4128 = vunpack.c.l.b16 %v2285
    %v4129 = vunpack.c.h.b16 %v2285
    %v4130 = vunpack.c.l.b16 %v2286
    %v4131 = vunpack.c.h.b16 %v2286
    %v4132 = vunpack.c.l.b16 %v2287
    %v4133 = vunpack.c.h.b16 %v2287
    %v4134 = vunpack.c.l.b16 %v2288
    %v4135 = vunpack.c.h.b16 %v2288
    %v4136 = vunpack.c.l.b16 %v2289
    %v4137 = vunpack.c.h.b16 %v2289
    %v4138 = vunpack.c.l.b16 %v2290
    %v4139 = vunpack.c.h.b16 %v2290
    %v4140 = vunpack.c.l.b16 %v2291
    %v4141 = vunpack.c.h.b16 %v2291
    %v4142 = vunpack.c.l.b16 %v2292
    %v4143 = vunpack.c.h.b16 %v2292
    %v4144 = vunpack.c.l.b16 %v2293
    %v4145 = vunpack.c.h.b16 %v2293
    %v4146 = vunpack.c.l.b16 %v2294
    %v4147 = vunpack.c.h.b16 %v2294
    %v4148 = vunpack.c.l.b16 %v2295
    %v4149 = vunpack.c.h.b16 %v2295
    %v4150 = vunpack.c.l.b16 %v2296
    %v4151 = vunpack.c.h.b16 %v2296
    %v4152 = vunpack.c.l.b16 %v2297
    %v4153 = vunpack.c.h.b16 %v2297
    %v4154 = vunpack.c.l.b16 %v2298
    %v4155 = vunpack.c.h.b16 %v2298
    %v4156 = vunpack.c.l.b16 %v2299
    %v4157 = vunpack.c.h.b16 %v2299
    %v4158 = vunpack.c.l.b16 %v2300
    %v4159 = vunpack.c.h.b16 %v2300
    %v4160 = vunpack.c.l.b16 %v2301
    %v4161 = vunpack.c.h.b16 %v2301
    %v4162 = vunpack.c.l.b16 %v2302
    %v4163 = vunpack.c.h.b16 %v2302
    %v4164 = vunpack.c.l.b16 %v2303
    %v4165 = vunpack.c.h.b16 %v2303
    %v4166 = vunpack.c.l.b16 %v2304
    %v4167 = vunpack.c.h.b16 %v2304
    %v4168 = vunpack.c.l.b16 %v2305
    %v4169 = vunpack.c.h.b16 %v2305
    %v4170 = vunpack.c.l.b16 %v2306
    %v4171 = vunpack.c.h.b16 %v2306
    %v4172 = vunpack.c.l.b16 %v2307
    %v4173 = vunpack.c.h.b16 %v2307
    %v4174 = vunpack.c.l.b16 %v2308
    %v4175 = vunpack.c.h.b16 %v2308
    %v4176 = vunpack.c.l.b16 %v2309
    %v4177 = vunpack.c.h.b16 %v2309
    %v4178 = vunpack.c.l.b16 %v2310
    %v4179 = vunpack.c.h.b16 %v2310
    %v4180 = vunpack.c.l.b16 %v2311
    %v4181 = vunpack.c.h.b16 %v2311
    %v4182 = vunpack.c.l.b16 %v2312
    %v4183 = vunpack.c.h.b16 %v2312
    %v4184 = vunpack.c.l.b16 %v2313
    %v4185 = vunpack.c.h.b16 %v2313
    %v4186 = vunpack.c.l.b16 %v2314
    %v4187 = vunpack.c.h.b16 %v2314
    %v4188 = vunpack.c.l.b16 %v2315
    %v4189 = vunpack.c.h.b16 %v2315
    %v4190 = vunpack.c.l.b16 %v2316
    %v4191 = vunpack.c.h.b16 %v2316
    %v4192 = vunpack.c.l.b16 %v2317
    %v4193 = vunpack.c.h.b16 %v2317
    %v4194 = vunpack.c.l.b16 %v2318
    %v4195 = vunpack.c.h.b16 %v2318
    %v4196 = vunpack.c.l.b16 %v2319
    %v4197 = vunpack.c.h.b16 %v2319
    %v4198 = vunpack.c.l.b16 %v2320
    %v4199 = vunpack.c.h.b16 %v2320
    %v4200 = vunpack.c.l.b16 %v2321
    %v4201 = vunpack.c.h.b16 %v2321
    %v4202 = vunpack.c.l.b16 %v2322
    %v4203 = vunpack.c.h.b16 %v2322
    %v4204 = vunpack.c.l.b16 %v2323
    %v4205 = vunpack.c.h.b16 %v2323
    %v4206 = vunpack.c.l.b16 %v2324
    %v4207 = vunpack.c.h.b16 %v2324
    %v4208 = vunpack.c.l.b16 %v2325
    %v4209 = vunpack.c.h.b16 %v2325
    %v4210 = vunpack.c.l.b16 %v2326
    %v4211 = vunpack.c.h.b16 %v2326
    %v4212 = vunpack.c.l.b16 %v2327
    %v4213 = vunpack.c.h.b16 %v2327
    %v4214 = vunpack.c.l.b16 %v2328
    %v4215 = vunpack.c.h.b16 %v2328
    %v4216 = vunpack.c.l.b16 %v2329
    %v4217 = vunpack.c.h.b16 %v2329
    %v4218 = vunpack.c.l.b16 %v2330
    %v4219 = vunpack.c.h.b16 %v2330
    %v4220 = vunpack.c.l.b16 %v2331
    %v4221 = vunpack.c.h.b16 %v2331
    %v4222 = vunpack.c.l.b16 %v2332
    %v4223 = vunpack.c.h.b16 %v2332
    %v4224 = vunpack.c.l.b16 %v2333
    %v4225 = vunpack.c.h.b16 %v2333
    %v4226 = vunpack.c.l.b16 %v2334
    %v4227 = vunpack.c.h.b16 %v2334
    %v4228 = vunpack.c.l.b16 %v2335
    %v4229 = vunpack.c.h.b16 %v2335
    %v4230 = vunpack.c.l.b16 %v2336
    %v4231 = vunpack.c.h.b16 %v2336
    %v4232 = vunpack.c.l.b16 %v2337
    %v4233 = vunpack.c.h.b16 %v2337
    %v4234 = vunpack.c.l.b16 %v2338
    %v4235 = vunpack.c.h.b16 %v2338
    %v4236 = vunpack.c.l.b16 %v2339
    %v4237 = vunpack.c.h.b16 %v2339
    %v4238 = vunpack.c.l.b16 %v2340
    %v4239 = vunpack.c.h.b16 %v2340
    %v4240 = vunpack.c.l.b16 %v2341
    %v4241 = vunpack.c.h.b16 %v2341
    %v4242 = vunpack.c.l.b16 %v2342
    %v4243 = vunpack.c.h.b16 %v2342
    %v4244 = vunpack.c.l.b16 %v2343
    %v4245 = vunpack.c.h.b16 %v2343
    %v4246 = vunpack.c.l.b16 %v2344
    %v4247 = vunpack.c.h.b16 %v2344
    %v4248 = vunpack.c.l.b16 %v2345
    %v4249 = vunpack.c.h.b16 %v2345
    %v4250 = vunpack.c.l.b16 %v2346
    %v4251 = vunpack.c.h.b16 %v2346
    %v4252 = vunpack.c.l.b16 %v2347
    %v4253 = vunpack.c.h.b16 %v2347
    %v4254 = vunpack.c.l.b16 %v2348
    %v4255 = vunpack.c.h.b16 %v2348
    %v4256 = vunpack.c.l.b16 %v2349
    %v4257 = vunpack.c.h.b16 %v2349
    %v4258 = vunpack.c.l.b16 %v2350
    %v4259 = vunpack.c.h.b16 %v2350
    %v4260 = vunpack.c.l.b16 %v2351
    %v4261 = vunpack.c.h.b16 %v2351
    %v4262 = vunpack.c.l.b16 %v2352
    %v4263 = vunpack.c.h.b16 %v2352
    %v4264 = vunpack.c.l.b16 %v2353
    %v4265 = vunpack.c.h.b16 %v2353
    %v4266 = vunpack.c.l.b16 %v2354
    %v4267 = vunpack.c.h.b16 %v2354
    %v4268 = vunpack.c.l.b16 %v2355
    %v4269 = vunpack.c.h.b16 %v2355
    %v4270 = vunpack.c.l.b16 %v2356
    %v4271 = vunpack.c.h.b16 %v2356
    %v4272 = vunpack.c.l.b16 %v2357
    %v4273 = vunpack.c.h.b16 %v2357
    %v4274 = vunpack.c.l.b16 %v2358
    %v4275 = vunpack.c.h.b16 %v2358
    %v4276 = vunpack.c.l.b16 %v2359
    %v4277 = vunpack.c.h.b16 %v2359
    %v4278 = vunpack.c.l.b16 %v2360
    %v4279 = vunpack.c.h.b16 %v2360
    %v4280 = vunpack.c.l.b16 %v2361
    %v4281 = vunpack.c.h.b16 %v2361
    %v4282 = vunpack.c.l.b16 %v2362
    %v4283 = vunpack.c.h.b16 %v2362
    %v4284 = vunpack.c.l.b16 %v2363
    %v4285 = vunpack.c.h.b16 %v2363
    %v4286 = vunpack.c.l.b16 %v2364
    %v4287 = vunpack.c.h.b16 %v2364
    %v4288 = vunpack.c.l.b16 %v2365
    %v4289 = vunpack.c.h.b16 %v2365
    %v4290 = vunpack.c.l.b16 %v2366
    %v4291 = vunpack.c.h.b16 %v2366
    %v4292 = vunpack.c.l.b16 %v2367
    %v4293 = vunpack.c.h.b16 %v2367
    %v4294 = vunpack.c.l.b16 %v2368
    %v4295 = vunpack.c.h.b16 %v2368
    %v4296 = vunpack.c.l.b16 %v2369
    %v4297 = vunpack.c.h.b16 %v2369
    %v4298 = vunpack.c.l.b16 %v2370
    %v4299 = vunpack.c.h.b16 %v2370
    %v4300 = vunpack.c.l.b16 %v2371
    %v4301 = vunpack.c.h.b16 %v2371
    %v4302 = vunpack.c.l.b16 %v2372
    %v4303 = vunpack.c.h.b16 %v2372
    %v4304 = vunpack.c.l.b16 %v2373
    %v4305 = vunpack.c.h.b16 %v2373
    %v4306 = vunpack.c.l.b16 %v2374
    %v4307 = vunpack.c.h.b16 %v2374
    %v4308 = vunpack.c.l.b16 %v2375
    %v4309 = vunpack.c.h.b16 %v2375
    %v4310 = vunpack.c.l.b16 %v2376
    %v4311 = vunpack.c.h.b16 %v2376
    %v4312 = vunpack.c.l.b16 %v2377
    %v4313 = vunpack.c.h.b16 %v2377
    %v4314 = vunpack.c.l.b16 %v2378
    %v4315 = vunpack.c.h.b16 %v2378
    %v4316 = vunpack.c.l.b16 %v2379
    %v4317 = vunpack.c.h.b16 %v2379
    %v4318 = vunpack.c.l.b16 %v2380
    %v4319 = vunpack.c.h.b16 %v2380
    %v4320 = vunpack.c.l.b16 %v2381
    %v4321 = vunpack.c.h.b16 %v2381
    %v4322 = vunpack.c.l.b16 %v2382
    %v4323 = vunpack.c.h.b16 %v2382
    %v4324 = vunpack.c.l.b16 %v2383
    %v4325 = vunpack.c.h.b16 %v2383
    %v4326 = vunpack.c.l.b16 %v2384
    %v4327 = vunpack.c.h.b16 %v2384
    %v4328 = vunpack.c.l.b16 %v2385
    %v4329 = vunpack.c.h.b16 %v2385
    %v4330 = vunpack.c.l.b16 %v2386
    %v4331 = vunpack.c.h.b16 %v2386
    %v4332 = vunpack.c.l.b16 %v2387
    %v4333 = vunpack.c.h.b16 %v2387
    %v4334 = vunpack.c.l.b16 %v2388
    %v4335 = vunpack.c.h.b16 %v2388
    %v4336 = vunpack.c.l.b16 %v2389
    %v4337 = vunpack.c.h.b16 %v2389
    %v4338 = vunpack.c.l.b16 %v2390
    %v4339 = vunpack.c.h.b16 %v2390
    %v4340 = vunpack.c.l.b16 %v2391
    %v4341 = vunpack.c.h.b16 %v2391
    %v4342 = vunpack.c.l.b16 %v2392
    %v4343 = vunpack.c.h.b16 %v2392
    %v4344 = vunpack.c.l.b16 %v2393
    %v4345 = vunpack.c.h.b16 %v2393
    %v4346 = vunpack.c.l.b16 %v2394
    %v4347 = vunpack.c.h.b16 %v2394
    %v4348 = vunpack.c.l.b16 %v2395
    %v4349 = vunpack.c.h.b16 %v2395
    %v4350 = vunpack.c.l.b16 %v2396
    %v4351 = vunpack.c.h.b16 %v2396
    %v4352 = vunpack.c.l.b16 %v2397
    %v4353 = vunpack.c.h.b16 %v2397
    %v4354 = vunpack.c.l.b16 %v2398
    %v4355 = vunpack.c.h.b16 %v2398
    %v4356 = vunpack.c.l.b16 %v2399
    %v4357 = vunpack.c.h.b16 %v2399
    %v4358 = vunpack.c.l.b16 %v2400
    %v4359 = vunpack.c.h.b16 %v2400
    %v4360 = vunpack.c.l.b16 %v2401
    %v4361 = vunpack.c.h.b16 %v2401
    %v4362 = vunpack.c.l.b16 %v2402
    %v4363 = vunpack.c.h.b16 %v2402
    %v4364 = vunpack.c.l.b16 %v2403
    %v4365 = vunpack.c.h.b16 %v2403
    %v4366 = vunpack.c.l.b16 %v2404
    %v4367 = vunpack.c.h.b16 %v2404
    %v4368 = vunpack.c.l.b16 %v2405
    %v4369 = vunpack.c.h.b16 %v2405
    %v4370 = vunpack.c.l.b16 %v2406
    %v4371 = vunpack.c.h.b16 %v2406
    %v4372 = vunpack.c.l.b16 %v2407
    %v4373 = vunpack.c.h.b16 %v2407
    %v4374 = vunpack.c.l.b16 %v2408
    %v4375 = vunpack.c.h.b16 %v2408
    %v4376 = vunpack.c.l.b16 %v2409
    %v4377 = vunpack.c.h.b16 %v2409
    %v4378 = vunpack.c.l.b16 %v2410
    %v4379 = vunpack.c.h.b16 %v2410
    %v4380 = vunpack.c.l.b16 %v2411
    %v4381 = vunpack.c.h.b16 %v2411
    %v4382 = vunpack.c.l.b16 %v2412
    %v4383 = vunpack.c.h.b16 %v2412
    %v4384 = vunpack.c.l.b16 %v2413
    %v4385 = vunpack.c.h.b16 %v2413
    %v4386 = vunpack.c.l.b16 %v2414
    %v4387 = vunpack.c.h.b16 %v2414
    %v4388 = vunpack.c.l.b16 %v2415
    %v4389 = vunpack.c.h.b16 %v2415
    %v4390 = vunpack.c.l.b16 %v2416
    %v4391 = vunpack.c.h.b16 %v2416
    %v4392 = vunpack.c.l.b16 %v2417
    %v4393 = vunpack.c.h.b16 %v2417
    %v4394 = vunpack.c.l.b16 %v2418
    %v4395 = vunpack.c.h.b16 %v2418
    %v4396 = vunpack.c.l.b16 %v2419
    %v4397 = vunpack.c.h.b16 %v2419
    %v4398 = vunpack.c.l.b16 %v2420
    %v4399 = vunpack.c.h.b16 %v2420
    %v4400 = vunpack.c.l.b16 %v2421
    %v4401 = vunpack.c.h.b16 %v2421
    %v4402 = vunpack.c.l.b16 %v2422
    %v4403 = vunpack.c.h.b16 %v2422
    %v4404 = vunpack.c.l.b16 %v2423
    %v4405 = vunpack.c.h.b16 %v2423
    %v4406 = vunpack.c.l.b16 %v2424
    %v4407 = vunpack.c.h.b16 %v2424
    %v4408 = vunpack.c.l.b16 %v2425
    %v4409 = vunpack.c.h.b16 %v2425
    %v4410 = vunpack.c.l.b16 %v2426
    %v4411 = vunpack.c.h.b16 %v2426
    %v4412 = vunpack.c.l.b16 %v2427
    %v4413 = vunpack.c.h.b16 %v2427
    %v4414 = vunpack.c.l.b16 %v2428
    %v4415 = vunpack.c.h.b16 %v2428
    %v4416 = vunpack.c.l.b16 %v2429
    %v4417 = vunpack.c.h.b16 %v2429
    %v4418 = vunpack.c.l.b16 %v2430
    %v4419 = vunpack.c.h.b16 %v2430
    %v4420 = vunpack.c.l.b16 %v2431
    %v4421 = vunpack.c.h.b16 %v2431
    %v4422 = vunpack.c.l.b16 %v2432
    %v4423 = vunpack.c.h.b16 %v2432
    %v4424 = vunpack.c.l.b16 %v2433
    %v4425 = vunpack.c.h.b16 %v2433
    %v4426 = vunpack.c.l.b16 %v2434
    %v4427 = vunpack.c.h.b16 %v2434
    %v4428 = vunpack.c.l.b16 %v2435
    %v4429 = vunpack.c.h.b16 %v2435
    %v4430 = vunpack.c.l.b16 %v2436
    %v4431 = vunpack.c.h.b16 %v2436
    %v4432 = vunpack.c.l.b16 %v2437
    %v4433 = vunpack.c.h.b16 %v2437
    %v4434 = vunpack.c.l.b16 %v2438
    %v4435 = vunpack.c.h.b16 %v2438
    %v4436 = vunpack.c.l.b16 %v2439
    %v4437 = vunpack.c.h.b16 %v2439
    %v4438 = vunpack.c.l.b16 %v2440
    %v4439 = vunpack.c.h.b16 %v2440
    %v4440 = vunpack.c.l.b16 %v2441
    %v4441 = vunpack.c.h.b16 %v2441
    %v4442 = vunpack.c.l.b16 %v2442
    %v4443 = vunpack.c.h.b16 %v2442
    %v4444 = vunpack.c.l.b16 %v2443
    %v4445 = vunpack.c.h.b16 %v2443
    %v4446 = vunpack.c.l.b16 %v2444
    %v4447 = vunpack.c.h.b16 %v2444
    %v4448 = vunpack.c.l.b16 %v2445
    %v4449 = vunpack.c.h.b16 %v2445
    %v4450 = vunpack.c.l.b16 %v2446
    %v4451 = vunpack.c.h.b16 %v2446
    %v4452 = vunpack.c.l.b16 %v2447
    %v4453 = vunpack.c.h.b16 %v2447
    %v4454 = vunpack.c.l.b16 %v2448
    %v4455 = vunpack.c.h.b16 %v2448
    %v4456 = vunpack.c.l.b16 %v2449
    %v4457 = vunpack.c.h.b16 %v2449
    %v4458 = vunpack.c.l.b16 %v2450
    %v4459 = vunpack.c.h.b16 %v2450
    %v4460 = vunpack.c.l.b16 %v2451
    %v4461 = vunpack.c.h.b16 %v2451
    %v4462 = vunpack.c.l.b16 %v2452
    %v4463 = vunpack.c.h.b16 %v2452
    %v4464 = vunpack.c.l.b16 %v2453
    %v4465 = vunpack.c.h.b16 %v2453
    %v4466 = vunpack.c.l.b16 %v2454
    %v4467 = vunpack.c.h.b16 %v2454
    %v4468 = vunpack.c.l.b16 %v2455
    %v4469 = vunpack.c.h.b16 %v2455
    %v4470 = vunpack.c.l.b16 %v2456
    %v4471 = vunpack.c.h.b16 %v2456
    %v4472 = vunpack.c.l.b16 %v2457
    %v4473 = vunpack.c.h.b16 %v2457
    %v4474 = vunpack.c.l.b16 %v2458
    %v4475 = vunpack.c.h.b16 %v2458
    %v4476 = vunpack.c.l.b16 %v2459
    %v4477 = vunpack.c.h.b16 %v2459
    %v4478 = vunpack.c.l.b16 %v2460
    %v4479 = vunpack.c.h.b16 %v2460
    %v4480 = vunpack.c.l.b16 %v2461
    %v4481 = vunpack.c.h.b16 %v2461
    %v4482 = vunpack.c.l.b16 %v2462
    %v4483 = vunpack.c.h.b16 %v2462
    %v4484 = vunpack.c.l.b16 %v2463
    %v4485 = vunpack.c.h.b16 %v2463
    %v4486 = vunpack.c.l.b16 %v2464
    %v4487 = vunpack.c.h.b16 %v2464
    %v4488 = vunpack.c.l.b16 %v2465
    %v4489 = vunpack.c.h.b16 %v2465
    %v4490 = vunpack.c.l.b16 %v2466
    %v4491 = vunpack.c.h.b16 %v2466
    %v4492 = vunpack.c.l.b16 %v2467
    %v4493 = vunpack.c.h.b16 %v2467
    %v4494 = vunpack.c.l.b16 %v2468
    %v4495 = vunpack.c.h.b16 %v2468
    %v4496 = vunpack.c.l.b16 %v2469
    %v4497 = vunpack.c.h.b16 %v2469
    %v4498 = vunpack.c.l.b16 %v2470
    %v4499 = vunpack.c.h.b16 %v2470
    %v4500 = vunpack.c.l.b16 %v2471
    %v4501 = vunpack.c.h.b16 %v2471
    %v4502 = vunpack.c.l.b16 %v2472
    %v4503 = vunpack.c.h.b16 %v2472
    %v4504 = vunpack.c.l.b16 %v2473
    %v4505 = vunpack.c.h.b16 %v2473
    %v4506 = vunpack.c.l.b16 %v2474
    %v4507 = vunpack.c.h.b16 %v2474
    %v4508 = vunpack.c.l.b16 %v2475
    %v4509 = vunpack.c.h.b16 %v2475
    %v4510 = vunpack.c.l.b16 %v2476
    %v4511 = vunpack.c.h.b16 %v2476
    %v4512 = vunpack.c.l.b16 %v2477
    %v4513 = vunpack.c.h.b16 %v2477
    %v4514 = vunpack.c.l.b16 %v2478
    %v4515 = vunpack.c.h.b16 %v2478
    %v4516 = vunpack.c.l.b16 %v2479
    %v4517 = vunpack.c.h.b16 %v2479
    %v4518 = vunpack.c.l.b16 %v2480
    %v4519 = vunpack.c.h.b16 %v2480
    %v4520 = vunpack.c.l.b16 %v2481
    %v4521 = vunpack.c.h.b16 %v2481
    %v4522 = vunpack.c.l.b16 %v2482
    %v4523 = vunpack.c.h.b16 %v2482
    %v4524 = vunpack.c.l.b16 %v2483
    %v4525 = vunpack.c.h.b16 %v2483
    %v4526 = vunpack.c.l.b16 %v2484
    %v4527 = vunpack.c.h.b16 %v2484
    %v4528 = vunpack.c.l.b16 %v2485
    %v4529 = vunpack.c.h.b16 %v2485
    %v4530 = vunpack.c.l.b16 %v2486
    %v4531 = vunpack.c.h.b16 %v2486
    %v4532 = vunpack.c.l.b16 %v2487
    %v4533 = vunpack.c.h.b16 %v2487
    %v4534 = vunpack.c.l.b16 %v2488
    %v4535 = vunpack.c.h.b16 %v2488
    %v4536 = vunpack.c.l.b16 %v2489
    %v4537 = vunpack.c.h.b16 %v2489
    %v4538 = vunpack.c.l.b16 %v2490
    %v4539 = vunpack.c.h.b16 %v2490
    %v4540 = vunpack.c.l.b16 %v2491
    %v4541 = vunpack.c.h.b16 %v2491
    %v4542 = vunpack.c.l.b16 %v2492
    %v4543 = vunpack.c.h.b16 %v2492
    %v4544 = vunpack.c.l.b16 %v2493
    %v4545 = vunpack.c.h.b16 %v2493
    %v4546 = vunpack.c.l.b16 %v2494
    %v4547 = vunpack.c.h.b16 %v2494
    %v4548 = vunpack.c.l.b16 %v2495
    %v4549 = vunpack.c.h.b16 %v2495
    %v4550 = vunpack.c.l.b16 %v2496
    %v4551 = vunpack.c.h.b16 %v2496
    %v4552 = vunpack.c.l.b16 %v2497
    %v4553 = vunpack.c.h.b16 %v2497
    %v4554 = vunpack.c.l.b16 %v2498
    %v4555 = vunpack.c.h.b16 %v2498
    %v4556 = vunpack.c.l.b16 %v2499
    %v4557 = vunpack.c.h.b16 %v2499
    %v4558 = vunpack.c.l.b16 %v2500
    %v4559 = vunpack.c.h.b16 %v2500
    %v4560 = vunpack.c.l.b16 %v2501
    %v4561 = vunpack.c.h.b16 %v2501
    %v4562 = vunpack.c.l.b16 %v2502
    %v4563 = vunpack.c.h.b16 %v2502
    %v4564 = vunpack.c.l.b16 %v2503
    %v4565 = vunpack.c.h.b16 %v2503
    %v4566 = vunpack.c.l.b16 %v2504
    %v4567 = vunpack.c.h.b16 %v2504
    %v4568 = vunpack.c.l.b16 %v2505
    %v4569 = vunpack.c.h.b16 %v2505
    %v4570 = vunpack.c.l.b16 %v2506
    %v4571 = vunpack.c.h.b16 %v2506
    %v4572 = vunpack.c.l.b16 %v2507
    %v4573 = vunpack.c.h.b16 %v2507
    %v4574 = vunpack.c.l.b16 %v2508
    %v4575 = vunpack.c.h.b16 %v2508
    %v4576 = vunpack.c.l.b16 %v2509
    %v4577 = vunpack.c.h.b16 %v2509
    %v4578 = vunpack.c.l.b16 %v2510
    %v4579 = vunpack.c.h.b16 %v2510
    %v4580 = vunpack.c.l.b16 %v2511
    %v4581 = vunpack.c.h.b16 %v2511
    %v4582 = vunpack.c.l.b16 %v2512
    %v4583 = vunpack.c.h.b16 %v2512
    %v4584 = vunpack.c.l.b16 %v2513
    %v4585 = vunpack.c.h.b16 %v2513
    %v4586 = vunpack.c.l.b16 %v2514
    %v4587 = vunpack.c.h.b16 %v2514
    %v4588 = vunpack.c.l.b16 %v2515
    %v4589 = vunpack.c.h.b16 %v2515
    %v4590 = vunpack.c.l.b16 %v2516
    %v4591 = vunpack.c.h.b16 %v2516
    %v4592 = vunpack.c.l.b16 %v2517
    %v4593 = vunpack.c.h.b16 %v2517
    %v4594 = vunpack.c.l.b16 %v2518
    %v4595 = vunpack.c.h.b16 %v2518
    %v4596 = vunpack.c.l.b16 %v2519
    %v4597 = vunpack.c.h.b16 %v2519
    %v4598 = vunpack.c.l.b16 %v2520
    %v4599 = vunpack.c.h.b16 %v2520
    %v4600 = vunpack.c.l.b16 %v2521
    %v4601 = vunpack.c.h.b16 %v2521
    %v4602 = vunpack.c.l.b16 %v2522
    %v4603 = vunpack.c.h.b16 %v2522
    %v4604 = vunpack.c.l.b16 %v2523
    %v4605 = vunpack.c.h.b16 %v2523
    %v4606 = vunpack.c.l.b16 %v2524
    %v4607 = vunpack.c.h.b16 %v2524
    %v4608 = vunpack.c.l.b16 %v2525
    %v4609 = vunpack.c.h.b16 %v2525
    %v4610 = vunpack.c.l.b16 %v2526
    %v4611 = vunpack.c.h.b16 %v2526
    %v4612 = vunpack.c.l.b16 %v2527
    %v4613 = vunpack.c.h.b16 %v2527
    %v4614 = vunpack.c.l.b16 %v2528
    %v4615 = vunpack.c.h.b16 %v2528
    %v4616 = vunpack.c.l.b16 %v2529
    %v4617 = vunpack.c.h.b16 %v2529
    %v4618 = vunpack.c.l.b16 %v2530
    %v4619 = vunpack.c.h.b16 %v2530
    %v4620 = vunpack.c.l.b16 %v2531
    %v4621 = vunpack.c.h.b16 %v2531
    %v4622 = vunpack.c.l.b16 %v2532
    %v4623 = vunpack.c.h.b16 %v2532
    %v4624 = vunpack.c.l.b16 %v2533
    %v4625 = vunpack.c.h.b16 %v2533
    %v4626 = vunpack.c.l.b16 %v2534
    %v4627 = vunpack.c.h.b16 %v2534
    %v4628 = vunpack.c.l.b16 %v2535
    %v4629 = vunpack.c.h.b16 %v2535
    %v4630 = vunpack.c.l.b16 %v2536
    %v4631 = vunpack.c.h.b16 %v2536
    %v4632 = vunpack.c.l.b16 %v2537
    %v4633 = vunpack.c.h.b16 %v2537
    %v4634 = vunpack.c.l.b16 %v2538
    %v4635 = vunpack.c.h.b16 %v2538
    %v4636 = vunpack.c.l.b16 %v2539
    %v4637 = vunpack.c.h.b16 %v2539
    %v4638 = vunpack.c.l.b16 %v2540
    %v4639 = vunpack.c.h.b16 %v2540
    %v4640 = vunpack.c.l.b16 %v2541
    %v4641 = vunpack.c.h.b16 %v2541
    %v4642 = vunpack.c.l.b16 %v2542
    %v4643 = vunpack.c.h.b16 %v2542
    %v4644 = vunpack.c.l.b16 %v2543
    %v4645 = vunpack.c.h.b16 %v2543
    %v4646 = vunpack.c.l.b16 %v2544
    %v4647 = vunpack.c.h.b16 %v2544
    %v4648 = vunpack.c.l.b16 %v2545
    %v4649 = vunpack.c.h.b16 %v2545
    %v4650 = vunpack.c.l.b16 %v2546
    %v4651 = vunpack.c.h.b16 %v2546
    %v4652 = vunpack.c.l.b16 %v2547
    %v4653 = vunpack.c.h.b16 %v2547
    %v4654 = vunpack.c.l.b16 %v2548
    %v4655 = vunpack.c.h.b16 %v2548
    %v4656 = vunpack.c.l.b16 %v2549
    %v4657 = vunpack.c.h.b16 %v2549
    %v4658 = vunpack.c.l.b16 %v2550
    %v4659 = vunpack.c.h.b16 %v2550
    %v4660 = vunpack.c.l.b16 %v2551
    %v4661 = vunpack.c.h.b16 %v2551
    %v4662 = vunpack.c.l.b16 %v2552
    %v4663 = vunpack.c.h.b16 %v2552
    %v4664 = vunpack.c.l.b16 %v2553
    %v4665 = vunpack.c.h.b16 %v2553
    %v4666 = vunpack.c.l.b16 %v2554
    %v4667 = vunpack.c.h.b16 %v2554
    %v4668 = vunpack.c.l.b16 %v2555
    %v4669 = vunpack.c.h.b16 %v2555
    %v4670 = vunpack.c.l.b16 %v2556
    %v4671 = vunpack.c.h.b16 %v2556
    %v4672 = vunpack.c.l.b16 %v2557
    %v4673 = vunpack.c.h.b16 %v2557
    %v4674 = vunpack.c.l.b16 %v2558
    %v4675 = vunpack.c.h.b16 %v2558
    %v4676 = vunpack.c.l.b16 %v2559
    %v4677 = vunpack.c.h.b16 %v2559
    %v4678 = vunpack.c.l.b16 %v2560
    %v4679 = vunpack.c.h.b16 %v2560
    %v4680 = vunpack.c.l.b16 %v2561
    %v4681 = vunpack.c.h.b16 %v2561
    %v4682 = vunpack.c.l.b16 %v2562
    %v4683 = vunpack.c.h.b16 %v2562
    %v4684 = vunpack.c.l.b16 %v2563
    %v4685 = vunpack.c.h.b16 %v2563
    %v4686 = vunpack.c.l.b16 %v2564
    %v4687 = vunpack.c.h.b16 %v2564
    %v4688 = vunpack.c.l.b16 %v2565
    %v4689 = vunpack.c.h.b16 %v2565
    %v4690 = vunpack.c.l.b16 %v2566
    %v4691 = vunpack.c.h.b16 %v2566
    %v4692 = vunpack.c.l.b16 %v2567
    %v4693 = vunpack.c.h.b16 %v2567
    %v4694 = vunpack.c.l.b16 %v2568
    %v4695 = vunpack.c.h.b16 %v2568
    %v4696 = vunpack.c.l.b16 %v2569
    %v4697 = vunpack.c.h.b16 %v2569
    %v4698 = vunpack.c.l.b16 %v2570
    %v4699 = vunpack.c.h.b16 %v2570
    %v4700 = vunpack.c.l.b16 %v2571
    %v4701 = vunpack.c.h.b16 %v2571
    %v4702 = vunpack.c.l.b16 %v2572
    %v4703 = vunpack.c.h.b16 %v2572
    %v4704 = vunpack.c.l.b16 %v2573
    %v4705 = vunpack.c.h.b16 %v2573
    %v4706 = vunpack.c.l.b16 %v2574
    %v4707 = vunpack.c.h.b16 %v2574
    %v4708 = vunpack.c.l.b16 %v2575
    %v4709 = vunpack.c.h.b16 %v2575
    %v4710 = vunpack.c.l.b16 %v2576
    %v4711 = vunpack.c.h.b16 %v2576
    %v4712 = vunpack.c.l.b16 %v2577
    %v4713 = vunpack.c.h.b16 %v2577
    %v4714 = vunpack.c.l.b16 %v2578
    %v4715 = vunpack.c.h.b16 %v2578
    %v4716 = vunpack.c.l.b16 %v2579
    %v4717 = vunpack.c.h.b16 %v2579
    %v4718 = vunpack.c.l.b16 %v2580
    %v4719 = vunpack.c.h.b16 %v2580
    %v4720 = vunpack.c.l.b16 %v2581
    %v4721 = vunpack.c.h.b16 %v2581
    %v4722 = vunpack.c.l.b16 %v2582
    %v4723 = vunpack.c.h.b16 %v2582
    %v4724 = vunpack.c.l.b16 %v2583
    %v4725 = vunpack.c.h.b16 %v2583
    %v4726 = vunpack.c.l.b16 %v2584
    %v4727 = vunpack.c.h.b16 %v2584
    %v4728 = vunpack.c.l.b16 %v2585
    %v4729 = vunpack.c.h.b16 %v2585
    %v4730 = vunpack.c.l.b16 %v2586
    %v4731 = vunpack.c.h.b16 %v2586
    %v4732 = vunpack.c.l.b16 %v2587
    %v4733 = vunpack.c.h.b16 %v2587
    %v4734 = vunpack.c.l.b16 %v2588
    %v4735 = vunpack.c.h.b16 %v2588
    %v4736 = vunpack.c.l.b16 %v2589
    %v4737 = vunpack.c.h.b16 %v2589
    %v4738 = vunpack.c.l.b16 %v2590
    %v4739 = vunpack.c.h.b16 %v2590
    %v4740 = vunpack.c.l.b16 %v2591
    %v4741 = vunpack.c.h.b16 %v2591
    %v4742 = vunpack.c.l.b16 %v2592
    %v4743 = vunpack.c.h.b16 %v2592
    %v4744 = vunpack.c.l.b16 %v2593
    %v4745 = vunpack.c.h.b16 %v2593
    %v4746 = vunpack.c.l.b16 %v2594
    %v4747 = vunpack.c.h.b16 %v2594
    %v4748 = vunpack.c.l.b16 %v2595
    %v4749 = vunpack.c.h.b16 %v2595
    %v4750 = vunpack.c.l.b16 %v2596
    %v4751 = vunpack.c.h.b16 %v2596
    %v4752 = vunpack.c.l.b16 %v2597
    %v4753 = vunpack.c.h.b16 %v2597
    %v4754 = vunpack.c.l.b16 %v2598
    %v4755 = vunpack.c.h.b16 %v2598
    %v4756 = vunpack.c.l.b16 %v2599
    %v4757 = vunpack.c.h.b16 %v2599
    %v4758 = vunpack.c.l.b16 %v2600
    %v4759 = vunpack.c.h.b16 %v2600
    %v4760 = vunpack.c.l.b16 %v2601
    %v4761 = vunpack.c.h.b16 %v2601
    %v4762 = vunpack.c.l.b16 %v2602
    %v4763 = vunpack.c.h.b16 %v2602
    %v4764 = vunpack.c.l.b16 %v2603
    %v4765 = vunpack.c.h.b16 %v2603
    %v4766 = vunpack.c.l.b16 %v2604
    %v4767 = vunpack.c.h.b16 %v2604
    %v4768 = vunpack.c.l.b16 %v2605
    %v4769 = vunpack.c.h.b16 %v2605
    %v4770 = vunpack.c.l.b16 %v2606
    %v4771 = vunpack.c.h.b16 %v2606
    %v4772 = vunpack.c.l.b16 %v2607
    %v4773 = vunpack.c.h.b16 %v2607
    %v4774 = vunpack.c.l.b16 %v2608
    %v4775 = vunpack.c.h.b16 %v2608
    %v4776 = vunpack.c.l.b16 %v2609
    %v4777 = vunpack.c.h.b16 %v2609
    %v4778 = vunpack.c.l.b16 %v2610
    %v4779 = vunpack.c.h.b16 %v2610
    %v4780 = vunpack.c.l.b16 %v2611
    %v4781 = vunpack.c.h.b16 %v2611
    %v4782 = vunpack.c.l.b16 %v2612
    %v4783 = vunpack.c.h.b16 %v2612
    %v4784 = vunpack.c.l.b16 %v2613
    %v4785 = vunpack.c.h.b16 %v2613
    %v4786 = vunpack.c.l.b16 %v2614
    %v4787 = vunpack.c.h.b16 %v2614
    %v4788 = vunpack.c.l.b16 %v2615
    %v4789 = vunpack.c.h.b16 %v2615
    %v4790 = vunpack.c.l.b16 %v2616
    %v4791 = vunpack.c.h.b16 %v2616
    %v4792 = vunpack.c.l.b16 %v2617
    %v4793 = vunpack.c.h.b16 %v2617
    %v4794 = vunpack.c.l.b16 %v2618
    %v4795 = vunpack.c.h.b16 %v2618
    %v4796 = vunpack.c.l.b16 %v2619
    %v4797 = vunpack.c.h.b16 %v2619
    %v4798 = vunpack.c.l.b16 %v2620
    %v4799 = vunpack.c.h.b16 %v2620
    %v4800 = vunpack.c.l.b16 %v2621
    %v4801 = vunpack.c.h.b16 %v2621
    %v4802 = vunpack.c.l.b16 %v2622
    %v4803 = vunpack.c.h.b16 %v2622
    %v4804 = vunpack.c.l.b16 %v2623
    %v4805 = vunpack.c.h.b16 %v2623
    %v4806 = vunpack.c.l.b16 %v2624
    %v4807 = vunpack.c.h.b16 %v2624
    %v4808 = vunpack.c.l.b16 %v2625
    %v4809 = vunpack.c.h.b16 %v2625
    %v4810 = vunpack.c.l.b16 %v2626
    %v4811 = vunpack.c.h.b16 %v2626
    %v4812 = vunpack.c.l.b16 %v2627
    %v4813 = vunpack.c.h.b16 %v2627
    %v4814 = vunpack.c.l.b16 %v2628
    %v4815 = vunpack.c.h.b16 %v2628
    %v4816 = vunpack.c.l.b16 %v2629
    %v4817 = vunpack.c.h.b16 %v2629
    %v4818 = vunpack.c.l.b16 %v2630
    %v4819 = vunpack.c.h.b16 %v2630
    %v4820 = vunpack.c.l.b16 %v2631
    %v4821 = vunpack.c.h.b16 %v2631
    %v4822 = vunpack.c.l.b16 %v2632
    %v4823 = vunpack.c.h.b16 %v2632
    %v4824 = vunpack.c.l.b16 %v2633
    %v4825 = vunpack.c.h.b16 %v2633
    %v4826 = vunpack.c.l.b16 %v2634
    %v4827 = vunpack.c.h.b16 %v2634
    %v4828 = vunpack.c.l.b16 %v2635
    %v4829 = vunpack.c.h.b16 %v2635
    %v4830 = vunpack.c.l.b16 %v2636
    %v4831 = vunpack.c.h.b16 %v2636
    %v4832 = vunpack.c.l.b16 %v2637
    %v4833 = vunpack.c.h.b16 %v2637
    %v4834 = vunpack.c.l.b16 %v2638
    %v4835 = vunpack.c.h.b16 %v2638
    %v4836 = vunpack.c.l.b16 %v2639
    %v4837 = vunpack.c.h.b16 %v2639
    %v4838 = vunpack.c.l.b16 %v2640
    %v4839 = vunpack.c.h.b16 %v2640
    %v4840 = vunpack.c.l.b16 %v2641
    %v4841 = vunpack.c.h.b16 %v2641
    %v4842 = vunpack.c.l.b16 %v2642
    %v4843 = vunpack.c.h.b16 %v2642
    %v4844 = vunpack.c.l.b16 %v2643
    %v4845 = vunpack.c.h.b16 %v2643
    %v4846 = vunpack.c.l.b16 %v2644
    %v4847 = vunpack.c.h.b16 %v2644
    %v4848 = vunpack.c.l.b16 %v2645
    %v4849 = vunpack.c.h.b16 %v2645
    %v4850 = vunpack.c.l.b16 %v2646
    %v4851 = vunpack.c.h.b16 %v2646
    %v4852 = vunpack.c.l.b16 %v2647
    %v4853 = vunpack.c.h.b16 %v2647
    %v4854 = vunpack.c.l.b16 %v2648
    %v4855 = vunpack.c.h.b16 %v2648
    %v4856 = vunpack.c.l.b16 %v2649
    %v4857 = vunpack.c.h.b16 %v2649
    %v4858 = vunpack.c.l.b16 %v2650
    %v4859 = vunpack.c.h.b16 %v2650
    %v4860 = vunpack.c.l.b16 %v2651
    %v4861 = vunpack.c.h.b16 %v2651
    %v4862 = vunpack.c.l.b16 %v2652
    %v4863 = vunpack.c.h.b16 %v2652
    %v4864 = vunpack.c.l.b16 %v2653
    %v4865 = vunpack.c.h.b16 %v2653
    %v4866 = vunpack.c.l.b16 %v2654
    %v4867 = vunpack.c.h.b16 %v2654
    %v4868 = vunpack.c.l.b16 %v2655
    %v4869 = vunpack.c.h.b16 %v2655
    %v4870 = vunpack.c.l.b16 %v2656
    %v4871 = vunpack.c.h.b16 %v2656
    %v4872 = vunpack.c.l.b16 %v2657
    %v4873 = vunpack.c.h.b16 %v2657
    %v4874 = vunpack.c.l.b16 %v2658
    %v4875 = vunpack.c.h.b16 %v2658
    %v4876 = vunpack.c.l.b16 %v2659
    %v4877 = vunpack.c.h.b16 %v2659
    %v4878 = vunpack.c.l.b16 %v2660
    %v4879 = vunpack.c.h.b16 %v2660
    %v4880 = vunpack.c.l.b16 %v2661
    %v4881 = vunpack.c.h.b16 %v2661
    %v4882 = vunpack.c.l.b16 %v2662
    %v4883 = vunpack.c.h.b16 %v2662
    %v4884 = vunpack.c.l.b16 %v2663
    %v4885 = vunpack.c.h.b16 %v2663
    %v4886 = vunpack.c.l.b16 %v2664
    %v4887 = vunpack.c.h.b16 %v2664
    %v4888 = vunpack.c.l.b16 %v2665
    %v4889 = vunpack.c.h.b16 %v2665
    %v4890 = vunpack.c.l.b16 %v2666
    %v4891 = vunpack.c.h.b16 %v2666
    %v4892 = vunpack.c.l.b16 %v2667
    %v4893 = vunpack.c.h.b16 %v2667
    %v4894 = vunpack.c.l.b16 %v2668
    %v4895 = vunpack.c.h.b16 %v2668
    %v4896 = vunpack.c.l.b16 %v2669
    %v4897 = vunpack.c.h.b16 %v2669
    %v4898 = vunpack.c.l.b16 %v2670
    %v4899 = vunpack.c.h.b16 %v2670
    %v4900 = vunpack.c.l.b16 %v2671
    %v4901 = vunpack.c.h.b16 %v2671
    %v4902 = vunpack.c.l.b16 %v2672
    %v4903 = vunpack.c.h.b16 %v2672
    %v4904 = vunpack.c.l.b16 %v2673
    %v4905 = vunpack.c.h.b16 %v2673
    %v4906 = vunpack.c.l.b16 %v2674
    %v4907 = vunpack.c.h.b16 %v2674
    %v4908 = vunpack.c.l.b16 %v2675
    %v4909 = vunpack.c.h.b16 %v2675
    %v4910 = vunpack.c.l.b16 %v2676
    %v4911 = vunpack.c.h.b16 %v2676
    %v4912 = vunpack.c.l.b16 %v2677
    %v4913 = vunpack.c.h.b16 %v2677
    %v4914 = vunpack.c.l.b16 %v2678
    %v4915 = vunpack.c.h.b16 %v2678
    %v4916 = vunpack.c.l.b16 %v2679
    %v4917 = vunpack.c.h.b16 %v2679
    %v4918 = vunpack.c.l.b16 %v2680
    %v4919 = vunpack.c.h.b16 %v2680
    %v4920 = vunpack.c.l.b16 %v2681
    %v4921 = vunpack.c.h.b16 %v2681
    %v4922 = vunpack.c.l.b16 %v2682
    %v4923 = vunpack.c.h.b16 %v2682
    %v4924 = vunpack.c.l.b16 %v2683
    %v4925 = vunpack.c.h.b16 %v2683
    %v4926 = vunpack.c.l.b16 %v2684
    %v4927 = vunpack.c.h.b16 %v2684
    %v4928 = vunpack.c.l.b16 %v2685
    %v4929 = vunpack.c.h.b16 %v2685
    %v4930 = vunpack.c.l.b16 %v2686
    %v4931 = vunpack.c.h.b16 %v2686
    %v4932 = vunpack.c.l.b16 %v2687
    %v4933 = vunpack.c.h.b16 %v2687
    %v4934 = vunpack.c.l.b16 %v2688
    %v4935 = vunpack.c.h.b16 %v2688
    %v4936 = vunpack.c.l.b16 %v2689
    %v4937 = vunpack.c.h.b16 %v2689
    %v4938 = vunpack.c.l.b16 %v2690
    %v4939 = vunpack.c.h.b16 %v2690
    %v4940 = vunpack.c.l.b16 %v2691
    %v4941 = vunpack.c.h.b16 %v2691
    %v4942 = vunpack.c.l.b16 %v2692
    %v4943 = vunpack.c.h.b16 %v2692
    %v4944 = vunpack.c.l.b16 %v2693
    %v4945 = vunpack.c.h.b16 %v2693
    %v4946 = vunpack.c.l.b16 %v2694
    %v4947 = vunpack.c.h.b16 %v2694
    %v4948 = vunpack.c.l.b16 %v2695
    %v4949 = vunpack.c.h.b16 %v2695
    %v4950 = vunpack.c.l.b16 %v2696
    %v4951 = vunpack.c.h.b16 %v2696
    %v4952 = vunpack.c.l.b16 %v2697
    %v4953 = vunpack.c.h.b16 %v2697
    %v4954 = vunpack.c.l.b16 %v2698
    %v4955 = vunpack.c.h.b16 %v2698
    %v4956 = vunpack.c.l.b16 %v2699
    %v4957 = vunpack.c.h.b16 %v2699
    %v4958 = vunpack.c.l.b16 %v2700
    %v4959 = vunpack.c.h.b16 %v2700
    %v4960 = vunpack.c.l.b16 %v2701
    %v4961 = vunpack.c.h.b16 %v2701
    %v4962 = vunpack.c.l.b16 %v2702
    %v4963 = vunpack.c.h.b16 %v2702
    %v4964 = vunpack.c.l.b16 %v2703
    %v4965 = vunpack.c.h.b16 %v2703
    %v4966 = vunpack.c.l.b16 %v2704
    %v4967 = vunpack.c.h.b16 %v2704
    %v4968 = vunpack.c.l.b16 %v2705
    %v4969 = vunpack.c.h.b16 %v2705
    %v4970 = vunpack.c.l.b16 %v2706
    %v4971 = vunpack.c.h.b16 %v2706
    %v4972 = vunpack.c.l.b16 %v2707
    %v4973 = vunpack.c.h.b16 %v2707
    %v4974 = vunpack.c.l.b16 %v2708
    %v4975 = vunpack.c.h.b16 %v2708
    %v4976 = vunpack.c.l.b16 %v2709
    %v4977 = vunpack.c.h.b16 %v2709
    %v4978 = vunpack.c.l.b16 %v2710
    %v4979 = vunpack.c.h.b16 %v2710
    %v4980 = vunpack.c.l.b16 %v2711
    %v4981 = vunpack.c.h.b16 %v2711
    %v4982 = vunpack.c.l.b16 %v2712
    %v4983 = vunpack.c.h.b16 %v2712
    %v4984 = vunpack.c.l.b16 %v2713
    %v4985 = vunpack.c.h.b16 %v2713
    %v4986 = vunpack.c.l.b16 %v2714
    %v4987 = vunpack.c.h.b16 %v2714
    %v4988 = vunpack.c.l.b16 %v2715
    %v4989 = vunpack.c.h.b16 %v2715
    %v4990 = vunpack.c.l.b16 %v2716
    %v4991 = vunpack.c.h.b16 %v2716
    %v4992 = vunpack.c.l.b16 %v2717
    %v4993 = vunpack.c.h.b16 %v2717
    %v4994 = vunpack.c.l.b16 %v2718
    %v4995 = vunpack.c.h.b16 %v2718
    %v4996 = vunpack.c.l.b16 %v2719
    %v4997 = vunpack.c.h.b16 %v2719
    %v4998 = vunpack.c.l.b16 %v2720
    %v4999 = vunpack.c.h.b16 %v2720
    %v5000 = vunpack.c.l.b16 %v2721
    %v5001 = vunpack.c.h.b16 %v2721
    %v5002 = vunpack.c.l.b16 %v2722
    %v5003 = vunpack.c.h.b16 %v2722
    %v5004 = vunpack.c.l.b16 %v2723
    %v5005 = vunpack.c.h.b16 %v2723
    %v5006 = vunpack.c.l.b16 %v2724
    %v5007 = vunpack.c.h.b16 %v2724
    %v5008 = vunpack.c.l.b16 %v2725
    %v5009 = vunpack.c.h.b16 %v2725
    %v5010 = vunpack.c.l.b16 %v2726
    %v5011 = vunpack.c.h.b16 %v2726
    %v5012 = vunpack.c.l.b16 %v2727
    %v5013 = vunpack.c.h.b16 %v2727
    %v5014 = vunpack.c.l.b16 %v2728
    %v5015 = vunpack.c.h.b16 %v2728
    %v5016 = vunpack.c.l.b16 %v2729
    %v5017 = vunpack.c.h.b16 %v2729
    %v5018 = vunpack.c.l.b16 %v2730
    %v5019 = vunpack.c.h.b16 %v2730
    %v5020 = vunpack.c.l.b16 %v2731
    %v5021 = vunpack.c.h.b16 %v2731
    %v5022 = vunpack.c.l.b16 %v2732
    %v5023 = vunpack.c.h.b16 %v2732
    %v5024 = vunpack.c.l.b16 %v2733
    %v5025 = vunpack.c.h.b16 %v2733
    %v5026 = vunpack.c.l.b16 %v2734
    %v5027 = vunpack.c.h.b16 %v2734
    %v5028 = vunpack.c.l.b16 %v2735
    %v5029 = vunpack.c.h.b16 %v2735
    %v5030 = vunpack.c.l.b16 %v2736
    %v5031 = vunpack.c.h.b16 %v2736
    %v5032 = vunpack.c.l.b16 %v2737
    %v5033 = vunpack.c.h.b16 %v2737
    %v5034 = vunpack.c.l.b16 %v2738
    %v5035 = vunpack.c.h.b16 %v2738
    %v5036 = vunpack.c.l.b16 %v2739
    %v5037 = vunpack.c.h.b16 %v2739
    %v5038 = vunpack.c.l.b16 %v2740
    %v5039 = vunpack.c.h.b16 %v2740
    %v5040 = vunpack.c.l.b16 %v2741
    %v5041 = vunpack.c.h.b16 %v2741
    %v5042 = vunpack.c.l.b16 %v2742
    %v5043 = vunpack.c.h.b16 %v2742
    %v5044 = vunpack.c.l.b16 %v2743
    %v5045 = vunpack.c.h.b16 %v2743
    %v5046 = vunpack.c.l.b16 %v2744
    %v5047 = vunpack.c.h.b16 %v2744
    %v5048 = vunpack.c.l.b16 %v2745
    %v5049 = vunpack.c.h.b16 %v2745
    %v5050 = vunpack.c.l.b16 %v2746
    %v5051 = vunpack.c.h.b16 %v2746
    %v5052 = vunpack.c.l.b16 %v2747
    %v5053 = vunpack.c.h.b16 %v2747
    %v5054 = vunpack.c.l.b16 %v2748
    %v5055 = vunpack.c.h.b16 %v2748
    %v5056 = vunpack.c.l.b16 %v2749
    %v5057 = vunpack.c.h.b16 %v2749
    %v5058 = vunpack.c.l.b16 %v2750
    %v5059 = vunpack.c.h.b16 %v2750
    %v5060 = vunpack.c.l.b16 %v2751
    %v5061 = vunpack.c.h.b16 %v2751
    %v5062 = vunpack.c.l.b16 %v2752
    %v5063 = vunpack.c.h.b16 %v2752
    %v5064 = vunpack.c.l.b16 %v2753
    %v5065 = vunpack.c.h.b16 %v2753
    %v5066 = vunpack.c.l.b16 %v2754
    %v5067 = vunpack.c.h.b16 %v2754
    %v5068 = vunpack.c.l.b16 %v2755
    %v5069 = vunpack.c.h.b16 %v2755
    %v5070 = vunpack.c.l.b16 %v2756
    %v5071 = vunpack.c.h.b16 %v2756
    %v5072 = vunpack.c.l.b16 %v2757
    %v5073 = vunpack.c.h.b16 %v2757
    %v5074 = vunpack.c.l.b16 %v2758
    %v5075 = vunpack.c.h.b16 %v2758
    %v5076 = vunpack.c.l.b16 %v2759
    %v5077 = vunpack.c.h.b16 %v2759
    %v5078 = vunpack.c.l.b16 %v2760
    %v5079 = vunpack.c.h.b16 %v2760
    %v5080 = vunpack.c.l.b16 %v2761
    %v5081 = vunpack.c.h.b16 %v2761
    %v5082 = vunpack.c.l.b16 %v2762
    %v5083 = vunpack.c.h.b16 %v2762
    %v5084 = vunpack.c.l.b16 %v2763
    %v5085 = vunpack.c.h.b16 %v2763
    %v5086 = vunpack.c.l.b16 %v2764
    %v5087 = vunpack.c.h.b16 %v2764
    %v5088 = vunpack.c.l.b16 %v2765
    %v5089 = vunpack.c.h.b16 %v2765
    %v5090 = vunpack.c.l.b16 %v2766
    %v5091 = vunpack.c.h.b16 %v2766
    %v5092 = vunpack.c.l.b16 %v2767
    %v5093 = vunpack.c.h.b16 %v2767
    %v5094 = vunpack.c.l.b16 %v2768
    %v5095 = vunpack.c.h.b16 %v2768
    %v5096 = vunpack.c.l.b16 %v2769
    %v5097 = vunpack.c.h.b16 %v2769
    %v5098 = vunpack.c.l.b16 %v2770
    %v5099 = vunpack.c.h.b16 %v2770
    %v5100 = vunpack.c.l.b16 %v2771
    %v5101 = vunpack.c.h.b16 %v2771
    %v5102 = vunpack.c.l.b16 %v2772
    %v5103 = vunpack.c.h.b16 %v2772
    %v5104 = vunpack.c.l.b16 %v2773
    %v5105 = vunpack.c.h.b16 %v2773
    %v5106 = vunpack.c.l.b16 %v2774
    %v5107 = vunpack.c.h.b16 %v2774
    %v5108 = vunpack.c.l.b16 %v2775
    %v5109 = vunpack.c.h.b16 %v2775
    %v5110 = vunpack.c.l.b16 %v2776
    %v5111 = vunpack.c.h.b16 %v2776
    %v5112 = vunpack.c.l.b16 %v2777
    %v5113 = vunpack.c.h.b16 %v2777
    %v5114 = vunpack.c.l.b16 %v2778
    %v5115 = vunpack.c.h.b16 %v2778
    %v5116 = vunpack.c.l.b16 %v2779
    %v5117 = vunpack.c.h.b16 %v2779
    %v5118 = vunpack.c.l.b16 %v2780
    %v5119 = vunpack.c.h.b16 %v2780
    %v5120 = vunpack.c.l.b16 %v2781
    %v5121 = vunpack.c.h.b16 %v2781
    %v5122 = vunpack.c.l.b16 %v2782
    %v5123 = vunpack.c.h.b16 %v2782
    %v5124 = vunpack.c.l.b16 %v2783
    %v5125 = vunpack.c.h.b16 %v2783
    %v5126 = vunpack.c.l.b16 %v2784
    %v5127 = vunpack.c.h.b16 %v2784
    %v5128 = vunpack.c.l.b16 %v2785
    %v5129 = vunpack.c.h.b16 %v2785
    %v5130 = vunpack.c.l.b16 %v2786
    %v5131 = vunpack.c.h.b16 %v2786
    %v5132 = vunpack.c.l.b16 %v2787
    %v5133 = vunpack.c.h.b16 %v2787
    %v5134 = vunpack.c.l.b16 %v2788
    %v5135 = vunpack.c.h.b16 %v2788
    %v5136 = vunpack.c.l.b16 %v2789
    %v5137 = vunpack.c.h.b16 %v2789
    %v5138 = vunpack.c.l.b16 %v2790
    %v5139 = vunpack.c.h.b16 %v2790
    %v5140 = vunpack.c.l.b16 %v2791
    %v5141 = vunpack.c.h.b16 %v2791
    %v5142 = vunpack.c.l.b16 %v2792
    %v5143 = vunpack.c.h.b16 %v2792
    %v5144 = vunpack.c.l.b16 %v2793
    %v5145 = vunpack.c.h.b16 %v2793
    %v5146 = vunpack.c.l.b16 %v2794
    %v5147 = vunpack.c.h.b16 %v2794
    %v5148 = vunpack.c.l.b16 %v2795
    %v5149 = vunpack.c.h.b16 %v2795
    %v5150 = vunpack.c.l.b16 %v2796
    %v5151 = vunpack.c.h.b16 %v2796
    %v5152 = vunpack.c.l.b16 %v2797
    %v5153 = vunpack.c.h.b16 %v2797
    %v5154 = vunpack.c.l.b16 %v2798
    %v5155 = vunpack.c.h.b16 %v2798
    %v5156 = vunpack.c.l.b16 %v2799
    %v5157 = vunpack.c.h.b16 %v2799
    %v5158 = vunpack.c.l.b16 %v2800
    %v5159 = vunpack.c.h.b16 %v2800
    %v5160 = vunpack.c.l.b16 %v2801
    %v5161 = vunpack.c.h.b16 %v2801
    %v5162 = vunpack.c.l.b16 %v2802
    %v5163 = vunpack.c.h.b16 %v2802
    %v5164 = vunpack.c.l.b16 %v2803
    %v5165 = vunpack.c.h.b16 %v2803
    %v5166 = vunpack.c.l.b16 %v2804
    %v5167 = vunpack.c.h.b16 %v2804
    %v5168 = vunpack.c.l.b16 %v2805
    %v5169 = vunpack.c.h.b16 %v2805
    %v5170 = vunpack.c.l.b16 %v2806
    %v5171 = vunpack.c.h.b16 %v2806
    %v5172 = vunpack.c.l.b16 %v2807
    %v5173 = vunpack.c.h.b16 %v2807
    %v5174 = vunpack.c.l.b16 %v2808
    %v5175 = vunpack.c.h.b16 %v2808
    %v5176 = vunpack.c.l.b16 %v2809
    %v5177 = vunpack.c.h.b16 %v2809
    %v5178 = vunpack.c.l.b16 %v2810
    %v5179 = vunpack.c.h.b16 %v2810
    %v5180 = vunpack.c.l.b16 %v2811
    %v5181 = vunpack.c.h.b16 %v2811
    %v5182 = vunpack.c.l.b16 %v2812
    %v5183 = vunpack.c.h.b16 %v2812
    %v5184 = vunpack.c.l.b16 %v2813
    %v5185 = vunpack.c.h.b16 %v2813
    %v5186 = vunpack.c.l.b16 %v2814
    %v5187 = vunpack.c.h.b16 %v2814
    %v5188 = vunpack.c.l.b16 %v2815
    %v5189 = vunpack.c.h.b16 %v2815
    %v5190 = vunpack.c.l.b16 %v2816
    %v5191 = vunpack.c.h.b16 %v2816
    %v5192 = vunpack.c.l.b16 %v2817
    %v5193 = vunpack.c.h.b16 %v2817
    %v5194 = vunpack.c.l.b16 %v2818
    %v5195 = vunpack.c.h.b16 %v2818
    %v5196 = vunpack.c.l.b16 %v2819
    %v5197 = vunpack.c.h.b16 %v2819
    %v5198 = vunpack.c.l.b16 %v2820
    %v5199 = vunpack.c.h.b16 %v2820
    %v5200 = vunpack.c.l.b16 %v2821
    %v5201 = vunpack.c.h.b16 %v2821
    %v5202 = vunpack.c.l.b16 %v2822
    %v5203 = vunpack.c.h.b16 %v2822
    %v5204 = vunpack.c.l.b16 %v2823
    %v5205 = vunpack.c.h.b16 %v2823
    %v5206 = vunpack.c.l.b16 %v2824
    %v5207 = vunpack.c.h.b16 %v2824
    %v5208 = vunpack.c.l.b16 %v2825
    %v5209 = vunpack.c.h.b16 %v2825
    %v5210 = vunpack.c.l.b16 %v2826
    %v5211 = vunpack.c.h.b16 %v2826
    %v5212 = vunpack.c.l.b16 %v2827
    %v5213 = vunpack.c.h.b16 %v2827
    %v5214 = vunpack.c.l.b16 %v2828
    %v5215 = vunpack.c.h.b16 %v2828
    %v5216 = vunpack.c.l.b16 %v2829
    %v5217 = vunpack.c.h.b16 %v2829
    %v5218 = vunpack.c.l.b16 %v2830
    %v5219 = vunpack.c.h.b16 %v2830
    %v5220 = vunpack.c.l.b16 %v2831
    %v5221 = vunpack.c.h.b16 %v2831
    %v5222 = vunpack.c.l.b16 %v2832
    %v5223 = vunpack.c.h.b16 %v2832
    %v5224 = vunpack.c.l.b16 %v2833
    %v5225 = vunpack.c.h.b16 %v2833
    %v5226 = vunpack.c.l.b16 %v2834
    %v5227 = vunpack.c.h.b16 %v2834
    %v5228 = vunpack.c.l.b16 %v2835
    %v5229 = vunpack.c.h.b16 %v2835
    %v5230 = vunpack.c.l.b16 %v2836
    %v5231 = vunpack.c.h.b16 %v2836
    %v5232 = vunpack.c.l.b16 %v2837
    %v5233 = vunpack.c.h.b16 %v2837
    %v5234 = vunpack.c.l.b16 %v2838
    %v5235 = vunpack.c.h.b16 %v2838
    %v5236 = vunpack.c.l.b16 %v2839
    %v5237 = vunpack.c.h.b16 %v2839
    %v5238 = vunpack.c.l.b16 %v2840
    %v5239 = vunpack.c.h.b16 %v2840
    %v5240 = vunpack.c.l.b16 %v2841
    %v5241 = vunpack.c.h.b16 %v2841
    %v5242 = vunpack.c.l.b16 %v2842
    %v5243 = vunpack.c.h.b16 %v2842
    %v5244 = vunpack.c.l.b16 %v2843
    %v5245 = vunpack.c.h.b16 %v2843
    %v5246 = vunpack.c.l.b16 %v2844
    %v5247 = vunpack.c.h.b16 %v2844
    %v5248 = vunpack.c.l.b16 %v2845
    %v5249 = vunpack.c.h.b16 %v2845
    %v5250 = vunpack.c.l.b16 %v2846
    %v5251 = vunpack.c.h.b16 %v2846
    %v5252 = vunpack.c.l.b16 %v2847
    %v5253 = vunpack.c.h.b16 %v2847
    %v5254 = vunpack.c.l.b16 %v2848
    %v5255 = vunpack.c.h.b16 %v2848
    %v5256 = vunpack.c.l.b16 %v2849
    %v5257 = vunpack.c.h.b16 %v2849
    %v5258 = vunpack.c.l.b16 %v2850
    %v5259 = vunpack.c.h.b16 %v2850
    %v5260 = vunpack.c.l.b16 %v2851
    %v5261 = vunpack.c.h.b16 %v2851
    %v5262 = vunpack.c.l.b16 %v2852
    %v5263 = vunpack.c.h.b16 %v2852
    %v5264 = vunpack.c.l.b16 %v2853
    %v5265 = vunpack.c.h.b16 %v2853
    %v5266 = vunpack.c.l.b16 %v2854
    %v5267 = vunpack.c.h.b16 %v2854
    %v5268 = vunpack.c.l.b16 %v2855
    %v5269 = vunpack.c.h.b16 %v2855
    %v5270 = vunpack.c.l.b16 %v2856
    %v5271 = vunpack.c.h.b16 %v2856
    %v5272 = vunpack.c.l.b16 %v2857
    %v5273 = vunpack.c.h.b16 %v2857
    %v5274 = vunpack.c.l.b16 %v2858
    %v5275 = vunpack.c.h.b16 %v2858
    %v5276 = vunpack.c.l.b16 %v2859
    %v5277 = vunpack.c.h.b16 %v2859
    %v5278 = vunpack.c.l.b16 %v2860
    %v5279 = vunpack.c.h.b16 %v2860
    %v5280 = vunpack.c.l.b16 %v2861
    %v5281 = vunpack.c.h.b16 %v2861
    %v5282 = vunpack.c.l.b16 %v2862
    %v5283 = vunpack.c.h.b16 %v2862
    %v5284 = vunpack.c.l.b16 %v2863
    %v5285 = vunpack.c.h.b16 %v2863
    %v5286 = vunpack.c.l.b16 %v2864
    %v5287 = vunpack.c.h.b16 %v2864
    %v5288 = vunpack.c.l.b16 %v2865
    %v5289 = vunpack.c.h.b16 %v2865
    %v5290 = vunpack.c.l.b16 %v2866
    %v5291 = vunpack.c.h.b16 %v2866
    %v5292 = vunpack.c.l.b16 %v2867
    %v5293 = vunpack.c.h.b16 %v2867
    %v5294 = vunpack.c.l.b16 %v2868
    %v5295 = vunpack.c.h.b16 %v2868
    %v5296 = vunpack.c.l.b16 %v2869
    %v5297 = vunpack.c.h.b16 %v2869
    %v5298 = vunpack.c.l.b16 %v2870
    %v5299 = vunpack.c.h.b16 %v2870
    %v5300 = vunpack.c.l.b16 %v2871
    %v5301 = vunpack.c.h.b16 %v2871
    %v5302 = vunpack.c.l.b16 %v2872
    %v5303 = vunpack.c.h.b16 %v2872
    %v5304 = vunpack.c.l.b16 %v2873
    %v5305 = vunpack.c.h.b16 %v2873
    %v5306 = vunpack.c.l.b16 %v2874
    %v5307 = vunpack.c.h.b16 %v2874
    %v5308 = vunpack.c.l.b16 %v2875
    %v5309 = vunpack.c.h.b16 %v2875
    %v5310 = vunpack.c.l.b16 %v2876
    %v5311 = vunpack.c.h.b16 %v2876
    %v5312 = vunpack.c.l.b16 %v2877
    %v5313 = vunpack.c.h.b16 %v2877
    %v5314 = vunpack.c.l.b16 %v2878
    %v5315 = vunpack.c.h.b16 %v2878
    %v5316 = vunpack.c.l.b16 %v2879
    %v5317 = vunpack.c.h.b16 %v2879
    %v5318 = vunpack.c.l.b16 %v2880
    %v5319 = vunpack.c.h.b16 %v2880
    %v5320 = vunpack.c.l.b16 %v2881
    %v5321 = vunpack.c.h.b16 %v2881
    %v5322 = vunpack.c.l.b16 %v2882
    %v5323 = vunpack.c.h.b16 %v2882
    %v5324 = vunpack.c.l.b16 %v2883
    %v5325 = vunpack.c.h.b16 %v2883
    %v5326 = vunpack.c.l.b16 %v2884
    %v5327 = vunpack.c.h.b16 %v2884
    %v5328 = vunpack.c.l.b16 %v2885
    %v5329 = vunpack.c.h.b16 %v2885
    %v5330 = vunpack.c.l.b16 %v2886
    %v5331 = vunpack.c.h.b16 %v2886
    %v5332 = vunpack.c.l.b16 %v2887
    %v5333 = vunpack.c.h.b16 %v2887
    %v5334 = vunpack.c.l.b16 %v2888
    %v5335 = vunpack.c.h.b16 %v2888
    %v5336 = vunpack.c.l.b16 %v2889
    %v5337 = vunpack.c.h.b16 %v2889
    %v5338 = vunpack.c.l.b16 %v2890
    %v5339 = vunpack.c.h.b16 %v2890
    %v5340 = vunpack.c.l.b16 %v2891
    %v5341 = vunpack.c.h.b16 %v2891
    %v5342 = vunpack.c.l.b16 %v2892
    %v5343 = vunpack.c.h.b16 %v2892
    %v5344 = vunpack.c.l.b16 %v2893
    %v5345 = vunpack.c.h.b16 %v2893
    %v5346 = vunpack.c.l.b16 %v2894
    %v5347 = vunpack.c.h.b16 %v2894
    %v5348 = vunpack.c.l.b16 %v2895
    %v5349 = vunpack.c.h.b16 %v2895
    %v5350 = vunpack.c.l.b16 %v2896
    %v5351 = vunpack.c.h.b16 %v2896
    %v5352 = vunpack.c.l.b16 %v2897
    %v5353 = vunpack.c.h.b16 %v2897
    %v5354 = vunpack.c.l.b16 %v2898
    %v5355 = vunpack.c.h.b16 %v2898
    %v5356 = vunpack.c.l.b16 %v2899
    %v5357 = vunpack.c.h.b16 %v2899
    %v5358 = vunpack.c.l.b16 %v2900
    %v5359 = vunpack.c.h.b16 %v2900
    %v5360 = vunpack.c.l.b16 %v2901
    %v5361 = vunpack.c.h.b16 %v2901
    %v5362 = vunpack.c.l.b16 %v2902
    %v5363 = vunpack.c.h.b16 %v2902
    %v5364 = vunpack.c.l.b16 %v2903
    %v5365 = vunpack.c.h.b16 %v2903
    %v5366 = vunpack.c.l.b16 %v2904
    %v5367 = vunpack.c.h.b16 %v2904
    %v5368 = vunpack.c.l.b16 %v2905
    %v5369 = vunpack.c.h.b16 %v2905
    %v5370 = vunpack.c.l.b16 %v2906
    %v5371 = vunpack.c.h.b16 %v2906
    %v5372 = vunpack.c.l.b16 %v2907
    %v5373 = vunpack.c.h.b16 %v2907
    %v5374 = vunpack.c.l.b16 %v2908
    %v5375 = vunpack.c.h.b16 %v2908
    %v5376 = vunpack.c.l.b16 %v2909
    %v5377 = vunpack.c.h.b16 %v2909
    %v5378 = vunpack.c.l.b16 %v2910
    %v5379 = vunpack.c.h.b16 %v2910
    %v5380 = vunpack.c.l.b16 %v2911
    %v5381 = vunpack.c.h.b16 %v2911
    %v5382 = vunpack.c.l.b16 %v2912
    %v5383 = vunpack.c.h.b16 %v2912
    %v5384 = vunpack.c.l.b16 %v2913
    %v5385 = vunpack.c.h.b16 %v2913
    %v5386 = vunpack.c.l.b16 %v2914
    %v5387 = vunpack.c.h.b16 %v2914
    %v5388 = vunpack.c.l.b16 %v2915
    %v5389 = vunpack.c.h.b16 %v2915
    %v5390 = vunpack.c.l.b16 %v2916
    %v5391 = vunpack.c.h.b16 %v2916
    %v5392 = vunpack.c.l.b16 %v2917
    %v5393 = vunpack.c.h.b16 %v2917
    %v5394 = vunpack.c.l.b16 %v2918
    %v5395 = vunpack.c.h.b16 %v2918
    %v5396 = vunpack.c.l.b16 %v2919
    %v5397 = vunpack.c.h.b16 %v2919
    %v5398 = vunpack.c.l.b16 %v2920
    %v5399 = vunpack.c.h.b16 %v2920
    %v5400 = vunpack.c.l.b16 %v2921
    %v5401 = vunpack.c.h.b16 %v2921
    %v5402 = vunpack.c.l.b16 %v2922
    %v5403 = vunpack.c.h.b16 %v2922
    %v5404 = vunpack.c.l.b16 %v2923
    %v5405 = vunpack.c.h.b16 %v2923
    %v5406 = vunpack.c.l.b16 %v2924
    %v5407 = vunpack.c.h.b16 %v2924
    %v5408 = vunpack.c.l.b16 %v2925
    %v5409 = vunpack.c.h.b16 %v2925
    %v5410 = vunpack.c.l.b16 %v2926
    %v5411 = vunpack.c.h.b16 %v2926
    %v5412 = vunpack.c.l.b16 %v2927
    %v5413 = vunpack.c.h.b16 %v2927
    %v5414 = vunpack.c.l.b16 %v2928
    %v5415 = vunpack.c.h.b16 %v2928
    %v5416 = vunpack.c.l.b16 %v2929
    %v5417 = vunpack.c.h.b16 %v2929
    %v5418 = vunpack.c.l.b16 %v2930
    %v5419 = vunpack.c.h.b16 %v2930
    %v5420 = vunpack.c.l.b16 %v2931
    %v5421 = vunpack.c.h.b16 %v2931
    %v5422 = vunpack.c.l.b16 %v2932
    %v5423 = vunpack.c.h.b16 %v2932
    %v5424 = vunpack.c.l.b16 %v2933
    %v5425 = vunpack.c.h.b16 %v2933
    %v5426 = vunpack.c.l.b16 %v2934
    %v5427 = vunpack.c.h.b16 %v2934
    %v5428 = vunpack.c.l.b16 %v2935
    %v5429 = vunpack.c.h.b16 %v2935
    %v5430 = vunpack.c.l.b16 %v2936
    %v5431 = vunpack.c.h.b16 %v2936
    %v5432 = vunpack.c.l.b16 %v2937
    %v5433 = vunpack.c.h.b16 %v2937
    %v5434 = vunpack.c.l.b16 %v2938
    %v5435 = vunpack.c.h.b16 %v2938
    %v5436 = vunpack.c.l.b16 %v2939
    %v5437 = vunpack.c.h.b16 %v2939
    %v5438 = vunpack.c.l.b16 %v2940
    %v5439 = vunpack.c.h.b16 %v2940
    %v5440 = vunpack.c.l.b16 %v2941
    %v5441 = vunpack.c.h.b16 %v2941
    %v5442 = vunpack.c.l.b16 %v2942
    %v5443 = vunpack.c.h.b16 %v2942
    %v5444 = vunpack.c.l.b16 %v2943
    %v5445 = vunpack.c.h.b16 %v2943
    %v5446 = vunpack.c.l.b16 %v2944
    %v5447 = vunpack.c.h.b16 %v2944
    %v5448 = vunpack.c.l.b16 %v2945
    %v5449 = vunpack.c.h.b16 %v2945
    %v5450 = vunpack.c.l.b16 %v2946
    %v5451 = vunpack.c.h.b16 %v2946
    %v5452 = vunpack.c.l.b16 %v2947
    %v5453 = vunpack.c.h.b16 %v2947
    %v5454 = vunpack.c.l.b16 %v2948
    %v5455 = vunpack.c.h.b16 %v2948
    %v5456 = vunpack.c.l.b16 %v2949
    %v5457 = vunpack.c.h.b16 %v2949
    %v5458 = vunpack.c.l.b16 %v2950
    %v5459 = vunpack.c.h.b16 %v2950
    %v5460 = vunpack.c.l.b16 %v2951
    %v5461 = vunpack.c.h.b16 %v2951
    %v5462 = vunpack.c.l.b16 %v2952
    %v5463 = vunpack.c.h.b16 %v2952
    %v5464 = vunpack.c.l.b16 %v2953
    %v5465 = vunpack.c.h.b16 %v2953
    %v5466 = vunpack.c.l.b16 %v2954
    %v5467 = vunpack.c.h.b16 %v2954
    %v5468 = vunpack.c.l.b16 %v2955
    %v5469 = vunpack.c.h.b16 %v2955
    %v5470 = vunpack.c.l.b16 %v2956
    %v5471 = vunpack.c.h.b16 %v2956
    %v5472 = vunpack.c.l.b16 %v2957
    %v5473 = vunpack.c.h.b16 %v2957
    %v5474 = vunpack.c.l.b16 %v2958
    %v5475 = vunpack.c.h.b16 %v2958
    %v5476 = vunpack.c.l.b16 %v2959
    %v5477 = vunpack.c.h.b16 %v2959
    %v5478 = vunpack.c.l.b16 %v2960
    %v5479 = vunpack.c.h.b16 %v2960
    %v5480 = vunpack.c.l.b16 %v2961
    %v5481 = vunpack.c.h.b16 %v2961
    %v5482 = vunpack.c.l.b16 %v2962
    %v5483 = vunpack.c.h.b16 %v2962
    %v5484 = vunpack.c.l.b16 %v2963
    %v5485 = vunpack.c.h.b16 %v2963
    %v5486 = vunpack.c.l.b16 %v2964
    %v5487 = vunpack.c.h.b16 %v2964
    %v5488 = vunpack.c.l.b16 %v2965
    %v5489 = vunpack.c.h.b16 %v2965
    %v5490 = vunpack.c.l.b16 %v2966
    %v5491 = vunpack.c.h.b16 %v2966
    %v5492 = vunpack.c.l.b16 %v2967
    %v5493 = vunpack.c.h.b16 %v2967
    %v5494 = vunpack.c.l.b16 %v2968
    %v5495 = vunpack.c.h.b16 %v2968
    %v5496 = vunpack.c.l.b16 %v2969
    %v5497 = vunpack.c.h.b16 %v2969
    %v5498 = vunpack.c.l.b16 %v2970
    %v5499 = vunpack.c.h.b16 %v2970
    %v5500 = vunpack.c.l.b16 %v2971
    %v5501 = vunpack.c.h.b16 %v2971
    %v5502 = vunpack.c.l.b16 %v2972
    %v5503 = vunpack.c.h.b16 %v2972
    %v5504 = vunpack.c.l.b16 %v2973
    %v5505 = vunpack.c.h.b16 %v2973
    %v5506 = vunpack.c.l.b16 %v2974
    %v5507 = vunpack.c.h.b16 %v2974
    %v5508 = vunpack.c.l.b16 %v2975
    %v5509 = vunpack.c.h.b16 %v2975
    %v5510 = vunpack.c.l.b16 %v2976
    %v5511 = vunpack.c.h.b16 %v2976
    %v5512 = vunpack.c.l.b16 %v2977
    %v5513 = vunpack.c.h.b16 %v2977
    %v5514 = vunpack.c.l.b16 %v2978
    %v5515 = vunpack.c.h.b16 %v2978
    %v5516 = vunpack.c.l.b16 %v2979
    %v5517 = vunpack.c.h.b16 %v2979
    %v5518 = vunpack.c.l.b16 %v2980
    %v5519 = vunpack.c.h.b16 %v2980
    %v5520 = vunpack.c.l.b16 %v2981
    %v5521 = vunpack.c.h.b16 %v2981
    %v5522 = vunpack.c.l.b16 %v2982
    %v5523 = vunpack.c.h.b16 %v2982
    %v5524 = vunpack.c.l.b16 %v2983
    %v5525 = vunpack.c.h.b16 %v2983
    %v5526 = vunpack.c.l.b16 %v2984
    %v5527 = vunpack.c.h.b16 %v2984
    %v5528 = vunpack.c.l.b16 %v2985
    %v5529 = vunpack.c.h.b16 %v2985
    %v5530 = vunpack.c.l.b16 %v2986
    %v5531 = vunpack.c.h.b16 %v2986
    %v5532 = vunpack.c.l.b16 %v2987
    %v5533 = vunpack.c.h.b16 %v2987
    %v5534 = vunpack.c.l.b16 %v2988
    %v5535 = vunpack.c.h.b16 %v2988
    %v5536 = vunpack.c.l.b16 %v2989
    %v5537 = vunpack.c.h.b16 %v2989
    %v5538 = vunpack.c.l.b16 %v2990
    %v5539 = vunpack.c.h.b16 %v2990
    %v5540 = vunpack.c.l.b16 %v2991
    %v5541 = vunpack.c.h.b16 %v2991
    %v5542 = vunpack.c.l.b16 %v2992
    %v5543 = vunpack.c.h.b16 %v2992
    %v5544 = vunpack.c.l.b16 %v2993
    %v5545 = vunpack.c.h.b16 %v2993
    %v5546 = vunpack.c.l.b16 %v2994
    %v5547 = vunpack.c.h.b16 %v2994
    %v5548 = vunpack.c.l.b16 %v2995
    %v5549 = vunpack.c.h.b16 %v2995
    %v5550 = vunpack.c.l.b16 %v2996
    %v5551 = vunpack.c.h.b16 %v2996
    %v5552 = vunpack.c.l.b16 %v2997
    %v5553 = vunpack.c.h.b16 %v2997
    %v5554 = vunpack.c.l.b16 %v2998
    %v5555 = vunpack.c.h.b16 %v2998
    %v5556 = vunpack.c.l.b16 %v2999
    %v5557 = vunpack.c.h.b16 %v2999
    %v5558 = vunpack.c.l.b16 %v3000
    %v5559 = vunpack.c.h.b16 %v3000
    %v5560 = vunpack.c.l.b16 %v3001
    %v5561 = vunpack.c.h.b16 %v3001
    %v5562 = vunpack.c.l.b16 %v3002
    %v5563 = vunpack.c.h.b16 %v3002
    %v5564 = vunpack.c.l.b16 %v3003
    %v5565 = vunpack.c.h.b16 %v3003
    %v5566 = vunpack.c.l.b16 %v3004
    %v5567 = vunpack.c.h.b16 %v3004
    %v5568 = vunpack.c.l.b16 %v3005
    %v5569 = vunpack.c.h.b16 %v3005
    %v5570 = vunpack.c.l.b16 %v3006
    %v5571 = vunpack.c.h.b16 %v3006
    %v5572 = vunpack.c.l.b16 %v3007
    %v5573 = vunpack.c.h.b16 %v3007
    %v5574 = vunpack.c.l.b16 %v3008
    %v5575 = vunpack.c.h.b16 %v3008
    %v5576 = vunpack.c.l.b16 %v3009
    %v5577 = vunpack.c.h.b16 %v3009
    %v5578 = vunpack.c.l.b16 %v3010
    %v5579 = vunpack.c.h.b16 %v3010
    %v5580 = vunpack.c.l.b16 %v3011
    %v5581 = vunpack.c.h.b16 %v3011
    %v5582 = vunpack.c.l.b16 %v3012
    %v5583 = vunpack.c.h.b16 %v3012
    %v5584 = vunpack.c.l.b16 %v3013
    %v5585 = vunpack.c.h.b16 %v3013
    %v5586 = vunpack.c.l.b16 %v3014
    %v5587 = vunpack.c.h.b16 %v3014
    %v5588 = vunpack.c.l.b16 %v3015
    %v5589 = vunpack.c.h.b16 %v3015
    %v5590 = vunpack.c.l.b16 %v3016
    %v5591 = vunpack.c.h.b16 %v3016
    %v5592 = vunpack.c.l.b16 %v3017
    %v5593 = vunpack.c.h.b16 %v3017
    %v5594 = vunpack.c.l.b16 %v3018
    %v5595 = vunpack.c.h.b16 %v3018
    %v5596 = vunpack.c.l.b16 %v3019
    %v5597 = vunpack.c.h.b16 %v3019
    %v5598 = vunpack.c.l.b16 %v3020
    %v5599 = vunpack.c.h.b16 %v3020
    %v5600 = vunpack.c.l.b16 %v3021
    %v5601 = vunpack.c.h.b16 %v3021
    %v5602 = vunpack.c.l.b16 %v3022
    %v5603 = vunpack.c.h.b16 %v3022
    %v5604 = vunpack.c.l.b16 %v3023
    %v5605 = vunpack.c.h.b16 %v3023
    %v5606 = vunpack.c.l.b16 %v3024
    %v5607 = vunpack.c.h.b16 %v3024
    %v5608 = vunpack.c.l.b16 %v3025
    %v5609 = vunpack.c.h.b16 %v3025
    %v5610 = vunpack.c.l.b16 %v3026
    %v5611 = vunpack.c.h.b16 %v3026
    %v5612 = vunpack.c.l.b16 %v3027
    %v5613 = vunpack.c.h.b16 %v3027
    %v5614 = vunpack.c.l.b16 %v3028
    %v5615 = vunpack.c.h.b16 %v3028
    %v5616 = vunpack.c.l.b16 %v3029
    %v5617 = vunpack.c.h.b16 %v3029
    %v5618 = vunpack.c.l.b16 %v3030
    %v5619 = vunpack.c.h.b16 %v3030
    %v5620 = vunpack.c.l.b16 %v3031
    %v5621 = vunpack.c.h.b16 %v3031
    %v5622 = vunpack.c.l.b16 %v3032
    %v5623 = vunpack.c.h.b16 %v3032
    %v5624 = vunpack.c.l.b16 %v3033
    %v5625 = vunpack.c.h.b16 %v3033
    %v5626 = vunpack.c.l.b16 %v3034
    %v5627 = vunpack.c.h.b16 %v3034
    %v5628 = vunpack.c.l.b16 %v3035
    %v5629 = vunpack.c.h.b16 %v3035
    %v5630 = vunpack.c.l.b16 %v3036
    %v5631 = vunpack.c.h.b16 %v3036
    %v5632 = vunpack.c.l.b16 %v3037
    %v5633 = vunpack.c.h.b16 %v3037
    %v5634 = vunpack.c.l.b16 %v3038
    %v5635 = vunpack.c.h.b16 %v3038
    %v5636 = vunpack.c.l.b16 %v3039
    %v5637 = vunpack.c.h.b16 %v3039
    %v5638 = vunpack.c.l.b16 %v3040
    %v5639 = vunpack.c.h.b16 %v3040
    %v5640 = vunpack.c.l.b16 %v3041
    %v5641 = vunpack.c.h.b16 %v3041
    %v5642 = vunpack.c.l.b16 %v3042
    %v5643 = vunpack.c.h.b16 %v3042
    %v5644 = vunpack.c.l.b16 %v3043
    %v5645 = vunpack.c.h.b16 %v3043
    %v5646 = vunpack.c.l.b16 %v3044
    %v5647 = vunpack.c.h.b16 %v3044
    %v5648 = vunpack.c.l.b16 %v3045
    %v5649 = vunpack.c.h.b16 %v3045
    %v5650 = vunpack.c.l.b16 %v3046
    %v5651 = vunpack.c.h.b16 %v3046
    %v5652 = vunpack.c.l.b16 %v3047
    %v5653 = vunpack.c.h.b16 %v3047
    %v5654 = vunpack.c.l.b16 %v3048
    %v5655 = vunpack.c.h.b16 %v3048
    %v5656 = vunpack.c.l.b16 %v3049
    %v5657 = vunpack.c.h.b16 %v3049
    %v5658 = vunpack.c.l.b16 %v3050
    %v5659 = vunpack.c.h.b16 %v3050
    %v5660 = vunpack.c.l.b16 %v3051
    %v5661 = vunpack.c.h.b16 %v3051
    %v5662 = vunpack.c.l.b16 %v3052
    %v5663 = vunpack.c.h.b16 %v3052
    %v5664 = vunpack.c.l.b16 %v3053
    %v5665 = vunpack.c.h.b16 %v3053
    %v5666 = vunpack.c.l.b16 %v3054
    %v5667 = vunpack.c.h.b16 %v3054
    %v5668 = vunpack.c.l.b16 %v3055
    %v5669 = vunpack.c.h.b16 %v3055
    %v5670 = vunpack.c.l.b16 %v3056
    %v5671 = vunpack.c.h.b16 %v3056
    %v5672 = vunpack.c.l.b16 %v3057
    %v5673 = vunpack.c.h.b16 %v3057
    %v5674 = vunpack.c.l.b16 %v3058
    %v5675 = vunpack.c.h.b16 %v3058
    %v5676 = vunpack.c.l.b16 %v3059
    %v5677 = vunpack.c.h.b16 %v3059
    %v5678 = vunpack.c.l.b16 %v3060
    %v5679 = vunpack.c.h.b16 %v3060
    %v5680 = vunpack.c.l.b16 %v3061
    %v5681 = vunpack.c.h.b16 %v3061
    %v5682 = vunpack.c.l.b16 %v3062
    %v5683 = vunpack.c.h.b16 %v3062
    %v5684 = vunpack.c.l.b16 %v3063
    %v5685 = vunpack.c.h.b16 %v3063
    %v5686 = vunpack.c.l.b16 %v3064
    %v5687 = vunpack.c.h.b16 %v3064
    %v5688 = vunpack.c.l.b16 %v3065
    %v5689 = vunpack.c.h.b16 %v3065
    %v5690 = vunpack.c.l.b16 %v3066
    %v5691 = vunpack.c.h.b16 %v3066
    %v5692 = vunpack.c.l.b16 %v3067
    %v5693 = vunpack.c.h.b16 %v3067
    %v5694 = vunpack.c.l.b16 %v3068
    %v5695 = vunpack.c.h.b16 %v3068
    %v5696 = vunpack.c.l.b16 %v3069
    %v5697 = vunpack.c.h.b16 %v3069
    %v5698 = vunpack.c.l.b16 %v3070
    %v5699 = vunpack.c.h.b16 %v3070
    %v5700 = vunpack.c.l.b16 %v3071
    %v5701 = vunpack.c.h.b16 %v3071
    %v5702 = vunpack.c.l.b16 %v3072
    %v5703 = vunpack.c.h.b16 %v3072
    %v5704 = vunpack.c.l.b16 %v3073
    %v5705 = vunpack.c.h.b16 %v3073
    %v5706 = vunpack.c.l.b16 %v3074
    %v5707 = vunpack.c.h.b16 %v3074
    %v5708 = vunpack.c.l.b16 %v3075
    %v5709 = vunpack.c.h.b16 %v3075
    %v5710 = vunpack.c.l.b16 %v3076
    %v5711 = vunpack.c.h.b16 %v3076
    %v5712 = vunpack.c.l.b16 %v3077
    %v5713 = vunpack.c.h.b16 %v3077
    %v5714 = vunpack.c.l.b16 %v3078
    %v5715 = vunpack.c.h.b16 %v3078
    %v5716 = vunpack.c.l.b16 %v3079
    %v5717 = vunpack.c.h.b16 %v3079
    %v5718 = vunpack.c.l.b16 %v3080
    %v5719 = vunpack.c.h.b16 %v3080
    %v5720 = vunpack.c.l.b16 %v3081
    %v5721 = vunpack.c.h.b16 %v3081
    %v5722 = vunpack.c.l.b16 %v3082
    %v5723 = vunpack.c.h.b16 %v3082
    %v5724 = vunpack.c.l.b16 %v3083
    %v5725 = vunpack.c.h.b16 %v3083
    %v5726 = vunpack.c.l.b16 %v3084
    %v5727 = vunpack.c.h.b16 %v3084
    %v5728 = vunpack.c.l.b16 %v3085
    %v5729 = vunpack.c.h.b16 %v3085
    %v5730 = vunpack.c.l.b16 %v3086
    %v5731 = vunpack.c.h.b16 %v3086
    %v5732 = vunpack.c.l.b16 %v3087
    %v5733 = vunpack.c.h.b16 %v3087
    %v5734 = vunpack.c.l.b16 %v3088
    %v5735 = vunpack.c.h.b16 %v3088
    %v5736 = vunpack.c.l.b16 %v3089
    %v5737 = vunpack.c.h.b16 %v3089
    %v5738 = vunpack.c.l.b16 %v3090
    %v5739 = vunpack.c.h.b16 %v3090
    %v5740 = vunpack.c.l.b16 %v3091
    %v5741 = vunpack.c.h.b16 %v3091
    %v5742 = vunpack.c.l.b16 %v3092
    %v5743 = vunpack.c.h.b16 %v3092
    %v5744 = vunpack.c.l.b16 %v3093
    %v5745 = vunpack.c.h.b16 %v3093
    %v5746 = vunpack.c.l.b16 %v3094
    %v5747 = vunpack.c.h.b16 %v3094
    %v5748 = vunpack.c.l.b16 %v3095
    %v5749 = vunpack.c.h.b16 %v3095
    %v5750 = vunpack.c.l.b16 %v3096
    %v5751 = vunpack.c.h.b16 %v3096
    %v5752 = vunpack.c.l.b16 %v3097
    %v5753 = vunpack.c.h.b16 %v3097
    %v5754 = vunpack.c.l.b16 %v3098
    %v5755 = vunpack.c.h.b16 %v3098
    %v5756 = vunpack.c.l.b16 %v3099
    %v5757 = vunpack.c.h.b16 %v3099
    %v5758 = vunpack.c.l.b16 %v3100
    %v5759 = vunpack.c.h.b16 %v3100
    %v5760 = vunpack.c.l.b16 %v3101
    %v5761 = vunpack.c.h.b16 %v3101
    %v5762 = vunpack.c.l.b16 %v3102
    %v5763 = vunpack.c.h.b16 %v3102
    %v5764 = vunpack.c.l.b16 %v3103
    %v5765 = vunpack.c.h.b16 %v3103
    %v5766 = vpack.c.b16 %v4010, %v4006
    %v5767 = vpack.c.b16 %v4011, %v4007
    %v5768 = vpack.c.b16 %v4012, %v4008
    %v5769 = vpack.c.b16 %v4013, %v4009
    %v5770 = vpack.c.b16 %v4018, %v4014
    %v5771 = vpack.c.b16 %v4019, %v4015
    %v5772 = vpack.c.b16 %v4020, %v4016
    %v5773 = vpack.c.b16 %v4021, %v4017
    %v5774 = vpack.c.b16 %v4026, %v4022
    %v5775 = vpack.c.b16 %v4027, %v4023
    %v5776 = vpack.c.b16 %v4028, %v4024
    %v5777 = vpack.c.b16 %v4029, %v4025
    %v5778 = vpack.c.b16 %v4034, %v4030
    %v5779 = vpack.c.b16 %v4035, %v4031
    %v5780 = vpack.c.b16 %v4036, %v4032
    %v5781 = vpack.c.b16 %v4037, %v4033
    %v5782 = vpack.c.b16 %v4042, %v4038
    %v5783 = vpack.c.b16 %v4043, %v4039
    %v5784 = vpack.c.b16 %v4044, %v4040
    %v5785 = vpack.c.b16 %v4045, %v4041
    %v5786 = vpack.c.b16 %v4050, %v4046
    %v5787 = vpack.c.b16 %v4051, %v4047
    %v5788 = vpack.c.b16 %v4052, %v4048
    %v5789 = vpack.c.b16 %v4053, %v4049
    %v5790 = vpack.c.b16 %v4058, %v4054
    %v5791 = vpack.c.b16 %v4059, %v4055
    %v5792 = vpack.c.b16 %v4060, %v4056
    %v5793 = vpack.c.b16 %v4061, %v4057
    %v5794 = vpack.c.b16 %v4066, %v4062
    %v5795 = vpack.c.b16 %v4067, %v4063
    %v5796 = vpack.c.b16 %v4068, %v4064
    %v5797 = vpack.c.b16 %v4069, %v4065
    %v5798 = vpack.c.b16 %v4074, %v4070
    %v5799 = vpack.c.b16 %v4075, %v4071
    %v5800 = vpack.c.b16 %v4076, %v4072
    %v5801 = vpack.c.b16 %v4077, %v4073
    %v5802 = vpack.c.b16 %v4082, %v4078
    %v5803 = vpack.c.b16 %v4083, %v4079
    %v5804 = vpack.c.b16 %v4084, %v4080
    %v5805 = vpack.c.b16 %v4085, %v4081
    %v5806 = vpack.c.b16 %v4090, %v4086
    %v5807 = vpack.c.b16 %v4091, %v4087
    %v5808 = vpack.c.b16 %v4092, %v4088
    %v5809 = vpack.c.b16 %v4093, %v4089
    %v5810 = vpack.c.b16 %v4098, %v4094
    %v5811 = vpack.c.b16 %v4099, %v4095
    %v5812 = vpack.c.b16 %v4100, %v4096
    %v5813 = vpack.c.b16 %v4101, %v4097
    %v5814 = vpack.c.b16 %v4106, %v4102
    %v5815 = vpack.c.b16 %v4107, %v4103
    %v5816 = vpack.c.b16 %v4108, %v4104
    %v5817 = vpack.c.b16 %v4109, %v4105
    %v5818 = vpack.c.b16 %v4114, %v4110
    %v5819 = vpack.c.b16 %v4115, %v4111
    %v5820 = vpack.c.b16 %v4116, %v4112
    %v5821 = vpack.c.b16 %v4117, %v4113
    %v5822 = vpack.c.b16 %v4122, %v4118
    %v5823 = vpack.c.b16 %v4123, %v4119
    %v5824 = vpack.c.b16 %v4124, %v4120
    %v5825 = vpack.c.b16 %v4125, %v4121
    %v5826 = vpack.c.b16 %v4130, %v4126
    %v5827 = vpack.c.b16 %v4131, %v4127
    %v5828 = vpack.c.b16 %v4132, %v4128
    %v5829 = vpack.c.b16 %v4133, %v4129
    %v5830 = vpack.c.b16 %v4138, %v4134
    %v5831 = vpack.c.b16 %v4139, %v4135
    %v5832 = vpack.c.b16 %v4140, %v4136
    %v5833 = vpack.c.b16 %v4141, %v4137
    %v5834 = vpack.c.b16 %v4146, %v4142
    %v5835 = vpack.c.b16 %v4147, %v4143
    %v5836 = vpack.c.b16 %v4148, %v4144
    %v5837 = vpack.c.b16 %v4149, %v4145
    %v5838 = vpack.c.b16 %v4154, %v4150
    %v5839 = vpack.c.b16 %v4155, %v4151
    %v5840 = vpack.c.b16 %v4156, %v4152
    %v5841 = vpack.c.b16 %v4157, %v4153
    %v5842 = vpack.c.b16 %v4162, %v4158
    %v5843 = vpack.c.b16 %v4163, %v4159
    %v5844 = vpack.c.b16 %v4164, %v4160
    %v5845 = vpack.c.b16 %v4165, %v4161
    %v5846 = vpack.c.b16 %v4170, %v4166
    %v5847 = vpack.c.b16 %v4171, %v4167
    %v5848 = vpack.c.b16 %v4172, %v4168
    %v5849 = vpack.c.b16 %v4173, %v4169
    %v5850 = vpack.c.b16 %v4178, %v4174
    %v5851 = vpack.c.b16 %v4179, %v4175
    %v5852 = vpack.c.b16 %v4180, %v4176
    %v5853 = vpack.c.b16 %v4181, %v4177
    %v5854 = vpack.c.b16 %v4186, %v4182
    %v5855 = vpack.c.b16 %v4187, %v4183
    %v5856 = vpack.c.b16 %v4188, %v4184
    %v5857 = vpack.c.b16 %v4189, %v4185
    %v5858 = vpack.c.b16 %v4194, %v4190
    %v5859 = vpack.c.b16 %v4195, %v4191
    %v5860 = vpack.c.b16 %v4196, %v4192
    %v5861 = vpack.c.b16 %v4197, %v4193
    %v5862 = vpack.c.b16 %v4202, %v4198
    %v5863 = vpack.c.b16 %v4203, %v4199
    %v5864 = vpack.c.b16 %v4204, %v4200
    %v5865 = vpack.c.b16 %v4205, %v4201
    %v5866 = vpack.c.b16 %v4210, %v4206
    %v5867 = vpack.c.b16 %v4211, %v4207
    %v5868 = vpack.c.b16 %v4212, %v4208
    %v5869 = vpack.c.b16 %v4213, %v4209
    %v5870 = vpack.c.b16 %v4218, %v4214
    %v5871 = vpack.c.b16 %v4219, %v4215
    %v5872 = vpack.c.b16 %v4220, %v4216
    %v5873 = vpack.c.b16 %v4221, %v4217
    %v5874 = vpack.c.b16 %v4226, %v4222
    %v5875 = vpack.c.b16 %v4227, %v4223
    %v5876 = vpack.c.b16 %v4228, %v4224
    %v5877 = vpack.c.b16 %v4229, %v4225
    %v5878 = vpack.c.b16 %v4234, %v4230
    %v5879 = vpack.c.b16 %v4235, %v4231
    %v5880 = vpack.c.b16 %v4236, %v4232
    %v5881 = vpack.c.b16 %v4237, %v4233
    %v5882 = vpack.c.b16 %v4242, %v4238
    %v5883 = vpack.c.b16 %v4243, %v4239
    %v5884 = vpack.c.b16 %v4244, %v4240
    %v5885 = vpack.c.b16 %v4245, %v4241
    %v5886 = vpack.c.b16 %v4250, %v4246
    %v5887 = vpack.c.b16 %v4251, %v4247
    %v5888 = vpack.c.b16 %v4252, %v4248
    %v5889 = vpack.c.b16 %v4253, %v4249
    %v5890 = vpack.c.b16 %v4258, %v4254
    %v5891 = vpack.c.b16 %v4259, %v4255
    %v5892 = vpack.c.b16 %v4260, %v4256
    %v5893 = vpack.c.b16 %v4261, %v4257
    %v5894 = vpack.c.b16 %v4266, %v4262
    %v5895 = vpack.c.b16 %v4267, %v4263
    %v5896 = vpack.c.b16 %v4268, %v4264
    %v5897 = vpack.c.b16 %v4269, %v4265
    %v5898 = vpack.c.b16 %v4274, %v4270
    %v5899 = vpack.c.b16 %v4275, %v4271
    %v5900 = vpack.c.b16 %v4276, %v4272
    %v5901 = vpack.c.b16 %v4277, %v4273
    %v5902 = vpack.c.b16 %v4282, %v4278
    %v5903 = vpack.c.b16 %v4283, %v4279
    %v5904 = vpack.c.b16 %v4284, %v4280
    %v5905 = vpack.c.b16 %v4285, %v4281
    %v5906 = vpack.c.b16 %v4290, %v4286
    %v5907 = vpack.c.b16 %v4291, %v4287
    %v5908 = vpack.c.b16 %v4292, %v4288
    %v5909 = vpack.c.b16 %v4293, %v4289
    %v5910 = vpack.c.b16 %v4298, %v4294
    %v5911 = vpack.c.b16 %v4299, %v4295
    %v5912 = vpack.c.b16 %v4300, %v4296
    %v5913 = vpack.c.b16 %v4301, %v4297
    %v5914 = vpack.c.b16 %v4306, %v4302
    %v5915 = vpack.c.b16 %v4307, %v4303
    %v5916 = vpack.c.b16 %v4308, %v4304
    %v5917 = vpack.c.b16 %v4309, %v4305
    %v5918 = vpack.c.b16 %v4314, %v4310
    %v5919 = vpack.c.b16 %v4315, %v4311
    %v5920 = vpack.c.b16 %v4316, %v4312
    %v5921 = vpack.c.b16 %v4317, %v4313
    %v5922 = vpack.c.b16 %v4322, %v4318
    %v5923 = vpack.c.b16 %v4323, %v4319
    %v5924 = vpack.c.b16 %v4324, %v4320
    %v5925 = vpack.c.b16 %v4325, %v4321
    %v5926 = vpack.c.b16 %v4330, %v4326
    %v5927 = vpack.c.b16 %v4331, %v4327
    %v5928 = vpack.c.b16 %v4332, %v4328
    %v5929 = vpack.c.b16 %v4333, %v4329
    %v5930 = vpack.c.b16 %v4338, %v4334
    %v5931 = vpack.c.b16 %v4339, %v4335
    %v5932 = vpack.c.b16 %v4340, %v4336
    %v5933 = vpack.c.b16 %v4341, %v4337
    %v5934 = vpack.c.b16 %v4346, %v4342
    %v5935 = vpack.c.b16 %v4347, %v4343
    %v5936 = vpack.c.b16 %v4348, %v4344
    %v5937 = vpack.c.b16 %v4349, %v4345
    %v5938 = vpack.c.b16 %v4354, %v4350
    %v5939 = vpack.c.b16 %v4355, %v4351
    %v5940 = vpack.c.b16 %v4356, %v4352
    %v5941 = vpack.c.b16 %v4357, %v4353
    %v5942 = vpack.c.b16 %v4362, %v4358
    %v5943 = vpack.c.b16 %v4363, %v4359
    %v5944 = vpack.c.b16 %v4364, %v4360
    %v5945 = vpack.c.b16 %v4365, %v4361
    %v5946 = vpack.c.b16 %v4370, %v4366
    %v5947 = vpack.c.b16 %v4371, %v4367
    %v5948 = vpack.c.b16 %v4372, %v4368
    %v5949 = vpack.c.b16 %v4373, %v4369
    %v5950 = vpack.c.b16 %v4378, %v4374
    %v5951 = vpack.c.b16 %v4379, %v4375
    %v5952 = vpack.c.b16 %v4380, %v4376
    %v5953 = vpack.c.b16 %v4381, %v4377
    %v5954 = vpack.c.b16 %v4386, %v4382
    %v5955 = vpack.c.b16 %v4387, %v4383
    %v5956 = vpack.c.b16 %v4388, %v4384
    %v5957 = vpack.c.b16 %v4389, %v4385
    %v5958 = vpack.c.b16 %v4394, %v4390
    %v5959 = vpack.c.b16 %v4395, %v4391
    %v5960 = vpack.c.b16 %v4396, %v4392
    %v5961 = vpack.c.b16 %v4397, %v4393
    %v5962 = vpack.c.b16 %v4402, %v4398
    %v5963 = vpack.c.b16 %v4403, %v4399
    %v5964 = vpack.c.b16 %v4404, %v4400
    %v5965 = vpack.c.b16 %v4405, %v4401
    %v5966 = vpack.c.b16 %v4410, %v4406
    %v5967 = vpack.c.b16 %v4411, %v4407
    %v5968 = vpack.c.b16 %v4412, %v4408
    %v5969 = vpack.c.b16 %v4413, %v4409
    %v5970 = vpack.c.b16 %v4418, %v4414
    %v5971 = vpack.c.b16 %v4419, %v4415
    %v5972 = vpack.c.b16 %v4420, %v4416
    %v5973 = vpack.c.b16 %v4421, %v4417
    %v5974 = vpack.c.b16 %v4426, %v4422
    %v5975 = vpack.c.b16 %v4427, %v4423
    %v5976 = vpack.c.b16 %v4428, %v4424
    %v5977 = vpack.c.b16 %v4429, %v4425
    %v5978 = vpack.c.b16 %v4434, %v4430
    %v5979 = vpack.c.b16 %v4435, %v4431
    %v5980 = vpack.c.b16 %v4436, %v4432
    %v5981 = vpack.c.b16 %v4437, %v4433
    %v5982 = vpack.c.b16 %v4442, %v4438
    %v5983 = vpack.c.b16 %v4443, %v4439
    %v5984 = vpack.c.b16 %v4444, %v4440
    %v5985 = vpack.c.b16 %v4445, %v4441
    %v5986 = vpack.c.b16 %v4450, %v4446
    %v5987 = vpack.c.b16 %v4451, %v4447
    %v5988 = vpack.c.b16 %v4452, %v4448
    %v5989 = vpack.c.b16 %v4453, %v4449
    %v5990 = vpack.c.b16 %v4458, %v4454
    %v5991 = vpack.c.b16 %v4459, %v4455
    %v5992 = vpack.c.b16 %v4460, %v4456
    %v5993 = vpack.c.b16 %v4461, %v4457
    %v5994 = vpack.c.b16 %v4466, %v4462
    %v5995 = vpack.c.b16 %v4467, %v4463
    %v5996 = vpack.c.b16 %v4468, %v4464
    %v5997 = vpack.c.b16 %v4469, %v4465
    %v5998 = vpack.c.b16 %v4474, %v4470
    %v5999 = vpack.c.b16 %v4475, %v4471
    %v6000 = vpack.c.b16 %v4476, %v4472
    %v6001 = vpack.c.b16 %v4477, %v4473
    %v6002 = vpack.c.b16 %v4482, %v4478
    %v6003 = vpack.c.b16 %v4483, %v4479
    %v6004 = vpack.c.b16 %v4484, %v4480
    %v6005 = vpack.c.b16 %v4485, %v4481
    %v6006 = vpack.c.b16 %v4490, %v4486
    %v6007 = vpack.c.b16 %v4491, %v4487
    %v6008 = vpack.c.b16 %v4492, %v4488
    %v6009 = vpack.c.b16 %v4493, %v4489
    %v6010 = vpack.c.b16 %v4498, %v4494
    %v6011 = vpack.c.b16 %v4499, %v4495
    %v6012 = vpack.c.b16 %v4500, %v4496
    %v6013 = vpack.c.b16 %v4501, %v4497
    %v6014 = vpack.c.b16 %v4506, %v4502
    %v6015 = vpack.c.b16 %v4507, %v4503
    %v6016 = vpack.c.b16 %v4508, %v4504
    %v6017 = vpack.c.b16 %v4509, %v4505
    %v6018 = vpack.c.b16 %v4514, %v4510
    %v6019 = vpack.c.b16 %v4515, %v4511
    %v6020 = vpack.c.b16 %v4516, %v4512
    %v6021 = vpack.c.b16 %v4517, %v4513
    %v6022 = vpack.c.b16 %v4522, %v4518
    %v6023 = vpack.c.b16 %v4523, %v4519
    %v6024 = vpack.c.b16 %v4524, %v4520
    %v6025 = vpack.c.b16 %v4525, %v4521
    %v6026 = vpack.c.b16 %v4530, %v4526
    %v6027 = vpack.c.b16 %v4531, %v4527
    %v6028 = vpack.c.b16 %v4532, %v4528
    %v6029 = vpack.c.b16 %v4533, %v4529
    %v6030 = vpack.c.b16 %v4538, %v4534
    %v6031 = vpack.c.b16 %v4539, %v4535
    %v6032 = vpack.c.b16 %v4540, %v4536
    %v6033 = vpack.c.b16 %v4541, %v4537
    %v6034 = vpack.c.b16 %v4546, %v4542
    %v6035 = vpack.c.b16 %v4547, %v4543
    %v6036 = vpack.c.b16 %v4548, %v4544
    %v6037 = vpack.c.b16 %v4549, %v4545
    %v6038 = vpack.c.b16 %v4554, %v4550
    %v6039 = vpack.c.b16 %v4555, %v4551
    %v6040 = vpack.c.b16 %v4556, %v4552
    %v6041 = vpack.c.b16 %v4557, %v4553
    %v6042 = vpack.c.b16 %v4562, %v4558
    %v6043 = vpack.c.b16 %v4563, %v4559
    %v6044 = vpack.c.b16 %v4564, %v4560
    %v6045 = vpack.c.b16 %v4565, %v4561
    %v6046 = vpack.c.b16 %v4570, %v4566
    %v6047 = vpack.c.b16 %v4571, %v4567
    %v6048 = vpack.c.b16 %v4572, %v4568
    %v6049 = vpack.c.b16 %v4573, %v4569
    %v6050 = vpack.c.b16 %v4578, %v4574
    %v6051 = vpack.c.b16 %v4579, %v4575
    %v6052 = vpack.c.b16 %v4580, %v4576
    %v6053 = vpack.c.b16 %v4581, %v4577
    %v6054 = vpack.c.b16 %v4586, %v4582
    %v6055 = vpack.c.b16 %v4587, %v4583
    %v6056 = vpack.c.b16 %v4588, %v4584
    %v6057 = vpack.c.b16 %v4589, %v4585
    %v6058 = vpack.c.b16 %v4594, %v4590
    %v6059 = vpack.c.b16 %v4595, %v4591
    %v6060 = vpack.c.b16 %v4596, %v4592
    %v6061 = vpack.c.b16 %v4597, %v4593
    %v6062 = vpack.c.b16 %v4602, %v4598
    %v6063 = vpack.c.b16 %v4603, %v4599
    %v6064 = vpack.c.b16 %v4604, %v4600
    %v6065 = vpack.c.b16 %v4605, %v4601
    %v6066 = vpack.c.b16 %v4610, %v4606
    %v6067 = vpack.c.b16 %v4611, %v4607
    %v6068 = vpack.c.b16 %v4612, %v4608
    %v6069 = vpack.c.b16 %v4613, %v4609
    %v6070 = vpack.c.b16 %v4618, %v4614
    %v6071 = vpack.c.b16 %v4619, %v4615
    %v6072 = vpack.c.b16 %v4620, %v4616
    %v6073 = vpack.c.b16 %v4621, %v4617
    %v6074 = vpack.c.b16 %v4626, %v4622
    %v6075 = vpack.c.b16 %v4627, %v4623
    %v6076 = vpack.c.b16 %v4628, %v4624
    %v6077 = vpack.c.b16 %v4629, %v4625
    %v6078 = vpack.c.b16 %v4634, %v4630
    %v6079 = vpack.c.b16 %v4635, %v4631
    %v6080 = vpack.c.b16 %v4636, %v4632
    %v6081 = vpack.c.b16 %v4637, %v4633
    %v6082 = vpack.c.b16 %v4642, %v4638
    %v6083 = vpack.c.b16 %v4643, %v4639
    %v6084 = vpack.c.b16 %v4644, %v4640
    %v6085 = vpack.c.b16 %v4645, %v4641
    %v6086 = vpack.c.b16 %v4650, %v4646
    %v6087 = vpack.c.b16 %v4651, %v4647
    %v6088 = vpack.c.b16 %v4652, %v4648
    %v6089 = vpack.c.b16 %v4653, %v4649
    %v6090 = vpack.c.b16 %v4658, %v4654
    %v6091 = vpack.c.b16 %v4659, %v4655
    %v6092 = vpack.c.b16 %v4660, %v4656
    %v6093 = vpack.c.b16 %v4661, %v4657
    %v6094 = vpack.c.b16 %v4666, %v4662
    %v6095 = vpack.c.b16 %v4667, %v4663
    %v6096 = vpack.c.b16 %v4668, %v4664
    %v6097 = vpack.c.b16 %v4669, %v4665
    %v6098 = vpack.c.b16 %v4674, %v4670
    %v6099 = vpack.c.b16 %v4675, %v4671
    %v6100 = vpack.c.b16 %v4676, %v4672
    %v6101 = vpack.c.b16 %v4677, %v4673
    %v6102 = vpack.c.b16 %v4682, %v4678
    %v6103 = vpack.c.b16 %v4683, %v4679
    %v6104 = vpack.c.b16 %v4684, %v4680
    %v6105 = vpack.c.b16 %v4685, %v4681
    %v6106 = vpack.c.b16 %v4690, %v4686
    %v6107 = vpack.c.b16 %v4691, %v4687
    %v6108 = vpack.c.b16 %v4692, %v4688
    %v6109 = vpack.c.b16 %v4693, %v4689
    %v6110 = vpack.c.b16 %v4698, %v4694
    %v6111 = vpack.c.b16 %v4699, %v4695
    %v6112 = vpack.c.b16 %v4700, %v4696
    %v6113 = vpack.c.b16 %v4701, %v4697
    %v6114 = vpack.c.b16 %v4706, %v4702
    %v6115 = vpack.c.b16 %v4707, %v4703
    %v6116 = vpack.c.b16 %v4708, %v4704
    %v6117 = vpack.c.b16 %v4709, %v4705
    %v6118 = vpack.c.b16 %v4714, %v4710
    %v6119 = vpack.c.b16 %v4715, %v4711
    %v6120 = vpack.c.b16 %v4716, %v4712
    %v6121 = vpack.c.b16 %v4717, %v4713
    %v6122 = vpack.c.b16 %v4722, %v4718
    %v6123 = vpack.c.b16 %v4723, %v4719
    %v6124 = vpack.c.b16 %v4724, %v4720
    %v6125 = vpack.c.b16 %v4725, %v4721
    %v6126 = vpack.c.b16 %v4730, %v4726
    %v6127 = vpack.c.b16 %v4731, %v4727
    %v6128 = vpack.c.b16 %v4732, %v4728
    %v6129 = vpack.c.b16 %v4733, %v4729
    %v6130 = vpack.c.b16 %v4738, %v4734
    %v6131 = vpack.c.b16 %v4739, %v4735
    %v6132 = vpack.c.b16 %v4740, %v4736
    %v6133 = vpack.c.b16 %v4741, %v4737
    %v6134 = vpack.c.b16 %v4746, %v4742
    %v6135 = vpack.c.b16 %v4747, %v4743
    %v6136 = vpack.c.b16 %v4748, %v4744
    %v6137 = vpack.c.b16 %v4749, %v4745
    %v6138 = vpack.c.b16 %v4754, %v4750
    %v6139 = vpack.c.b16 %v4755, %v4751
    %v6140 = vpack.c.b16 %v4756, %v4752
    %v6141 = vpack.c.b16 %v4757, %v4753
    %v6142 = vpack.c.b16 %v4762, %v4758
    %v6143 = vpack.c.b16 %v4763, %v4759
    %v6144 = vpack.c.b16 %v4764, %v4760
    %v6145 = vpack.c.b16 %v4765, %v4761
    %v6146 = vpack.c.b16 %v4770, %v4766
    %v6147 = vpack.c.b16 %v4771, %v4767
    %v6148 = vpack.c.b16 %v4772, %v4768
    %v6149 = vpack.c.b16 %v4773, %v4769
    %v6150 = vpack.c.b16 %v4778, %v4774
    %v6151 = vpack.c.b16 %v4779, %v4775
    %v6152 = vpack.c.b16 %v4780, %v4776
    %v6153 = vpack.c.b16 %v4781, %v4777
    %v6154 = vpack.c.b16 %v4786, %v4782
    %v6155 = vpack.c.b16 %v4787, %v4783
    %v6156 = vpack.c.b16 %v4788, %v4784
    %v6157 = vpack.c.b16 %v4789, %v4785
    %v6158 = vpack.c.b16 %v4794, %v4790
    %v6159 = vpack.c.b16 %v4795, %v4791
    %v6160 = vpack.c.b16 %v4796, %v4792
    %v6161 = vpack.c.b16 %v4797, %v4793
    %v6162 = vpack.c.b16 %v4802, %v4798
    %v6163 = vpack.c.b16 %v4803, %v4799
    %v6164 = vpack.c.b16 %v4804, %v4800
    %v6165 = vpack.c.b16 %v4805, %v4801
    %v6166 = vpack.c.b16 %v4810, %v4806
    %v6167 = vpack.c.b16 %v4811, %v4807
    %v6168 = vpack.c.b16 %v4812, %v4808
    %v6169 = vpack.c.b16 %v4813, %v4809
    %v6170 = vpack.c.b16 %v4818, %v4814
    %v6171 = vpack.c.b16 %v4819, %v4815
    %v6172 = vpack.c.b16 %v4820, %v4816
    %v6173 = vpack.c.b16 %v4821, %v4817
    %v6174 = vpack.c.b16 %v4826, %v4822
    %v6175 = vpack.c.b16 %v4827, %v4823
    %v6176 = vpack.c.b16 %v4828, %v4824
    %v6177 = vpack.c.b16 %v4829, %v4825
    %v6178 = vpack.c.b16 %v4834, %v4830
    %v6179 = vpack.c.b16 %v4835, %v4831
    %v6180 = vpack.c.b16 %v4836, %v4832
    %v6181 = vpack.c.b16 %v4837, %v4833
    %v6182 = vpack.c.b16 %v4842, %v4838
    %v6183 = vpack.c.b16 %v4843, %v4839
    %v6184 = vpack.c.b16 %v4844, %v4840
    %v6185 = vpack.c.b16 %v4845, %v4841
    %v6186 = vpack.c.b16 %v4850, %v4846
    %v6187 = vpack.c.b16 %v4851, %v4847
    %v6188 = vpack.c.b16 %v4852, %v4848
    %v6189 = vpack.c.b16 %v4853, %v4849
    %v6190 = vpack.c.b16 %v4858, %v4854
    %v6191 = vpack.c.b16 %v4859, %v4855
    %v6192 = vpack.c.b16 %v4860, %v4856
    %v6193 = vpack.c.b16 %v4861, %v4857
    %v6194 = vpack.c.b16 %v4866, %v4862
    %v6195 = vpack.c.b16 %v4867, %v4863
    %v6196 = vpack.c.b16 %v4868, %v4864
    %v6197 = vpack.c.b16 %v4869, %v4865
    %v6198 = vpack.c.b16 %v4874, %v4870
    %v6199 = vpack.c.b16 %v4875, %v4871
    %v6200 = vpack.c.b16 %v4876, %v4872
    %v6201 = vpack.c.b16 %v4877, %v4873
    %v6202 = vpack.c.b16 %v4882, %v4878
    %v6203 = vpack.c.b16 %v4883, %v4879
    %v6204 = vpack.c.b16 %v4884, %v4880
    %v6205 = vpack.c.b16 %v4885, %v4881
    %v6206 = vpack.c.b16 %v4890, %v4886
    %v6207 = vpack.c.b16 %v4891, %v4887
    %v6208 = vpack.c.b16 %v4892, %v4888
    %v6209 = vpack.c.b16 %v4893, %v4889
    %v6210 = vpack.c.b16 %v4898, %v4894
    %v6211 = vpack.c.b16 %v4899, %v4895
    %v6212 = vpack.c.b16 %v4900, %v4896
    %v6213 = vpack.c.b16 %v4901, %v4897
    %v6214 = vpack.c.b16 %v4906, %v4902
    %v6215 = vpack.c.b16 %v4907, %v4903
    %v6216 = vpack.c.b16 %v4908, %v4904
    %v6217 = vpack.c.b16 %v4909, %v4905
    %v6218 = vpack.c.b16 %v4914, %v4910
    %v6219 = vpack.c.b16 %v4915, %v4911
    %v6220 = vpack.c.b16 %v4916, %v4912
    %v6221 = vpack.c.b16 %v4917, %v4913
    %v6222 = vpack.c.b16 %v4922, %v4918
    %v6223 = vpack.c.b16 %v4923, %v4919
    %v6224 = vpack.c.b16 %v4924, %v4920
    %v6225 = vpack.c.b16 %v4925, %v4921
    %v6226 = vpack.c.b16 %v4930, %v4926
    %v6227 = vpack.c.b16 %v4931, %v4927
    %v6228 = vpack.c.b16 %v4932, %v4928
    %v6229 = vpack.c.b16 %v4933, %v4929
    %v6230 = vpack.c.b16 %v4938, %v4934
    %v6231 = vpack.c.b16 %v4939, %v4935
    %v6232 = vpack.c.b16 %v4940, %v4936
    %v6233 = vpack.c.b16 %v4941, %v4937
    %v6234 = vpack.c.b16 %v4946, %v4942
    %v6235 = vpack.c.b16 %v4947, %v4943
    %v6236 = vpack.c.b16 %v4948, %v4944
    %v6237 = vpack.c.b16 %v4949, %v4945
    %v6238 = vpack.c.b16 %v4954, %v4950
    %v6239 = vpack.c.b16 %v4955, %v4951
    %v6240 = vpack.c.b16 %v4956, %v4952
    %v6241 = vpack.c.b16 %v4957, %v4953
    %v6242 = vpack.c.b16 %v4962, %v4958
    %v6243 = vpack.c.b16 %v4963, %v4959
    %v6244 = vpack.c.b16 %v4964, %v4960
    %v6245 = vpack.c.b16 %v4965, %v4961
    %v6246 = vpack.c.b16 %v4970, %v4966
    %v6247 = vpack.c.b16 %v4971, %v4967
    %v6248 = vpack.c.b16 %v4972, %v4968
    %v6249 = vpack.c.b16 %v4973, %v4969
    %v6250 = vpack.c.b16 %v4978, %v4974
    %v6251 = vpack.c.b16 %v4979, %v4975
    %v6252 = vpack.c.b16 %v4980, %v4976
    %v6253 = vpack.c.b16 %v4981, %v4977
    %v6254 = vpack.c.b16 %v4986, %v4982
    %v6255 = vpack.c.b16 %v4987, %v4983
    %v6256 = vpack.c.b16 %v4988, %v4984
    %v6257 = vpack.c.b16 %v4989, %v4985
    %v6258 = vpack.c.b16 %v4994, %v4990
    %v6259 = vpack.c.b16 %v4995, %v4991
    %v6260 = vpack.c.b16 %v4996, %v4992
    %v6261 = vpack.c.b16 %v4997, %v4993
    %v6262 = vpack.c.b16 %v5002, %v4998
    %v6263 = vpack.c.b16 %v5003, %v4999
    %v6264 = vpack.c.b16 %v5004, %v5000
    %v6265 = vpack.c.b16 %v5005, %v5001
    %v6266 = vpack.c.b16 %v5010, %v5006
    %v6267 = vpack.c.b16 %v5011, %v5007
    %v6268 = vpack.c.b16 %v5012, %v5008
    %v6269 = vpack.c.b16 %v5013, %v5009
    %v6270 = vpack.c.b16 %v5018, %v5014
    %v6271 = vpack.c.b16 %v5019, %v5015
    %v6272 = vpack.c.b16 %v5020, %v5016
    %v6273 = vpack.c.b16 %v5021, %v5017
    %v6274 = vpack.c.b16 %v5026, %v5022
    %v6275 = vpack.c.b16 %v5027, %v5023
    %v6276 = vpack.c.b16 %v5028, %v5024
    %v6277 = vpack.c.b16 %v5029, %v5025
    %v6278 = vpack.c.b16 %v5034, %v5030
    %v6279 = vpack.c.b16 %v5035, %v5031
    %v6280 = vpack.c.b16 %v5036, %v5032
    %v6281 = vpack.c.b16 %v5037, %v5033
    %v6282 = vpack.c.b16 %v5042, %v5038
    %v6283 = vpack.c.b16 %v5043, %v5039
    %v6284 = vpack.c.b16 %v5044, %v5040
    %v6285 = vpack.c.b16 %v5045, %v5041
    %v6286 = vpack.c.b16 %v5050, %v5046
    %v6287 = vpack.c.b16 %v5051, %v5047
    %v6288 = vpack.c.b16 %v5052, %v5048
    %v6289 = vpack.c.b16 %v5053, %v5049
    %v6290 = vpack.c.b16 %v5058, %v5054
    %v6291 = vpack.c.b16 %v5059, %v5055
    %v6292 = vpack.c.b16 %v5060, %v5056
    %v6293 = vpack.c.b16 %v5061, %v5057
    %v6294 = vpack.c.b16 %v5066, %v5062
    %v6295 = vpack.c.b16 %v5067, %v5063
    %v6296 = vpack.c.b16 %v5068, %v5064
    %v6297 = vpack.c.b16 %v5069, %v5065
    %v6298 = vpack.c.b16 %v5074, %v5070
    %v6299 = vpack.c.b16 %v5075, %v5071
    %v6300 = vpack.c.b16 %v5076, %v5072
    %v6301 = vpack.c.b16 %v5077, %v5073
    %v6302 = vpack.c.b16 %v5082, %v5078
    %v6303 = vpack.c.b16 %v5083, %v5079
    %v6304 = vpack.c.b16 %v5084, %v5080
    %v6305 = vpack.c.b16 %v5085, %v5081
    %v6306 = vpack.c.b16 %v5090, %v5086
    %v6307 = vpack.c.b16 %v5091, %v5087
    %v6308 = vpack.c.b16 %v5092, %v5088
    %v6309 = vpack.c.b16 %v5093, %v5089
    %v6310 = vpack.c.b16 %v5098, %v5094
    %v6311 = vpack.c.b16 %v5099, %v5095
    %v6312 = vpack.c.b16 %v5100, %v5096
    %v6313 = vpack.c.b16 %v5101, %v5097
    %v6314 = vpack.c.b16 %v5106, %v5102
    %v6315 = vpack.c.b16 %v5107, %v5103
    %v6316 = vpack.c.b16 %v5108, %v5104
    %v6317 = vpack.c.b16 %v5109, %v5105
    %v6318 = vpack.c.b16 %v5114, %v5110
    %v6319 = vpack.c.b16 %v5115, %v5111
    %v6320 = vpack.c.b16 %v5116, %v5112
    %v6321 = vpack.c.b16 %v5117, %v5113
    %v6322 = vpack.c.b16 %v5122, %v5118
    %v6323 = vpack.c.b16 %v5123, %v5119
    %v6324 = vpack.c.b16 %v5124, %v5120
    %v6325 = vpack.c.b16 %v5125, %v5121
    %v6326 = vpack.c.b16 %v5130, %v5126
    %v6327 = vpack.c.b16 %v5131, %v5127
    %v6328 = vpack.c.b16 %v5132, %v5128
    %v6329 = vpack.c.b16 %v5133, %v5129
    %v6330 = vpack.c.b16 %v5138, %v5134
    %v6331 = vpack.c.b16 %v5139, %v5135
    %v6332 = vpack.c.b16 %v5140, %v5136
    %v6333 = vpack.c.b16 %v5141, %v5137
    %v6334 = vpack.c.b16 %v5146, %v5142
    %v6335 = vpack.c.b16 %v5147, %v5143
    %v6336 = vpack.c.b16 %v5148, %v5144
    %v6337 = vpack.c.b16 %v5149, %v5145
    %v6338 = vpack.c.b16 %v5154, %v5150
    %v6339 = vpack.c.b16 %v5155, %v5151
    %v6340 = vpack.c.b16 %v5156, %v5152
    %v6341 = vpack.c.b16 %v5157, %v5153
    %v6342 = vpack.c.b16 %v5162, %v5158
    %v6343 = vpack.c.b16 %v5163, %v5159
    %v6344 = vpack.c.b16 %v5164, %v5160
    %v6345 = vpack.c.b16 %v5165, %v5161
    %v6346 = vpack.c.b16 %v5170, %v5166
    %v6347 = vpack.c.b16 %v5171, %v5167
    %v6348 = vpack.c.b16 %v5172, %v5168
    %v6349 = vpack.c.b16 %v5173, %v5169
    %v6350 = vpack.c.b16 %v5178, %v5174
    %v6351 = vpack.c.b16 %v5179, %v5175
    %v6352 = vpack.c.b16 %v5180, %v5176
    %v6353 = vpack.c.b16 %v5181, %v5177
    %v6354 = vpack.c.b16 %v5186, %v5182
    %v6355 = vpack.c.b16 %v5187, %v5183
    %v6356 = vpack.c.b16 %v5188, %v5184
    %v6357 = vpack.c.b16 %v5189, %v5185
    %v6358 = vpack.c.b16 %v5194, %v5190
    %v6359 = vpack.c.b16 %v5195, %v5191
    %v6360 = vpack.c.b16 %v5196, %v5192
    %v6361 = vpack.c.b16 %v5197, %v5193
    %v6362 = vpack.c.b16 %v5202, %v5198
    %v6363 = vpack.c.b16 %v5203, %v5199
    %v6364 = vpack.c.b16 %v5204, %v5200
    %v6365 = vpack.c.b16 %v5205, %v5201
    %v6366 = vpack.c.b16 %v5210, %v5206
    %v6367 = vpack.c.b16 %v5211, %v5207
    %v6368 = vpack.c.b16 %v5212, %v5208
    %v6369 = vpack.c.b16 %v5213, %v5209
    %v6370 = vpack.c.b16 %v5218, %v5214
    %v6371 = vpack.c.b16 %v5219, %v5215
    %v6372 = vpack.c.b16 %v5220, %v5216
    %v6373 = vpack.c.b16 %v5221, %v5217
    %v6374 = vpack.c.b16 %v5226, %v5222
    %v6375 = vpack.c.b16 %v5227, %v5223
    %v6376 = vpack.c.b16 %v5228, %v5224
    %v6377 = vpack.c.b16 %v5229, %v5225
    %v6378 = vpack.c.b16 %v5234, %v5230
    %v6379 = vpack.c.b16 %v5235, %v5231
    %v6380 = vpack.c.b16 %v5236, %v5232
    %v6381 = vpack.c.b16 %v5237, %v5233
    %v6382 = vpack.c.b16 %v5242, %v5238
    %v6383 = vpack.c.b16 %v5243, %v5239
    %v6384 = vpack.c.b16 %v5244, %v5240
    %v6385 = vpack.c.b16 %v5245, %v5241
    %v6386 = vpack.c.b16 %v5250, %v5246
    %v6387 = vpack.c.b16 %v5251, %v5247
    %v6388 = vpack.c.b16 %v5252, %v5248
    %v6389 = vpack.c.b16 %v5253, %v5249
    %v6390 = vpack.c.b16 %v5258, %v5254
    %v6391 = vpack.c.b16 %v5259, %v5255
    %v6392 = vpack.c.b16 %v5260, %v5256
    %v6393 = vpack.c.b16 %v5261, %v5257
    %v6394 = vpack.c.b16 %v5266, %v5262
    %v6395 = vpack.c.b16 %v5267, %v5263
    %v6396 = vpack.c.b16 %v5268, %v5264
    %v6397 = vpack.c.b16 %v5269, %v5265
    %v6398 = vpack.c.b16 %v5274, %v5270
    %v6399 = vpack.c.b16 %v5275, %v5271
    %v6400 = vpack.c.b16 %v5276, %v5272
    %v6401 = vpack.c.b16 %v5277, %v5273
    %v6402 = vpack.c.b16 %v5282, %v5278
    %v6403 = vpack.c.b16 %v5283, %v5279
    %v6404 = vpack.c.b16 %v5284, %v5280
    %v6405 = vpack.c.b16 %v5285, %v5281
    %v6406 = vpack.c.b16 %v5290, %v5286
    %v6407 = vpack.c.b16 %v5291, %v5287
    %v6408 = vpack.c.b16 %v5292, %v5288
    %v6409 = vpack.c.b16 %v5293, %v5289
    %v6410 = vpack.c.b16 %v5298, %v5294
    %v6411 = vpack.c.b16 %v5299, %v5295
    %v6412 = vpack.c.b16 %v5300, %v5296
    %v6413 = vpack.c.b16 %v5301, %v5297
    %v6414 = vpack.c.b16 %v5306, %v5302
    %v6415 = vpack.c.b16 %v5307, %v5303
    %v6416 = vpack.c.b16 %v5308, %v5304
    %v6417 = vpack.c.b16 %v5309, %v5305
    %v6418 = vpack.c.b16 %v5314, %v5310
    %v6419 = vpack.c.b16 %v5315, %v5311
    %v6420 = vpack.c.b16 %v5316, %v5312
    %v6421 = vpack.c.b16 %v5317, %v5313
    %v6422 = vpack.c.b16 %v5322, %v5318
    %v6423 = vpack.c.b16 %v5323, %v5319
    %v6424 = vpack.c.b16 %v5324, %v5320
    %v6425 = vpack.c.b16 %v5325, %v5321
    %v6426 = vpack.c.b16 %v5330, %v5326
    %v6427 = vpack.c.b16 %v5331, %v5327
    %v6428 = vpack.c.b16 %v5332, %v5328
    %v6429 = vpack.c.b16 %v5333, %v5329
    %v6430 = vpack.c.b16 %v5338, %v5334
    %v6431 = vpack.c.b16 %v5339, %v5335
    %v6432 = vpack.c.b16 %v5340, %v5336
    %v6433 = vpack.c.b16 %v5341, %v5337
    %v6434 = vpack.c.b16 %v5346, %v5342
    %v6435 = vpack.c.b16 %v5347, %v5343
    %v6436 = vpack.c.b16 %v5348, %v5344
    %v6437 = vpack.c.b16 %v5349, %v5345
    %v6438 = vpack.c.b16 %v5354, %v5350
    %v6439 = vpack.c.b16 %v5355, %v5351
    %v6440 = vpack.c.b16 %v5356, %v5352
    %v6441 = vpack.c.b16 %v5357, %v5353
    %v6442 = vpack.c.b16 %v5362, %v5358
    %v6443 = vpack.c.b16 %v5363, %v5359
    %v6444 = vpack.c.b16 %v5364, %v5360
    %v6445 = vpack.c.b16 %v5365, %v5361
    %v6446 = vpack.c.b16 %v5370, %v5366
    %v6447 = vpack.c.b16 %v5371, %v5367
    %v6448 = vpack.c.b16 %v5372, %v5368
    %v6449 = vpack.c.b16 %v5373, %v5369
    %v6450 = vpack.c.b16 %v5378, %v5374
    %v6451 = vpack.c.b16 %v5379, %v5375
    %v6452 = vpack.c.b16 %v5380, %v5376
    %v6453 = vpack.c.b16 %v5381, %v5377
    %v6454 = vpack.c.b16 %v5386, %v5382
    %v6455 = vpack.c.b16 %v5387, %v5383
    %v6456 = vpack.c.b16 %v5388, %v5384
    %v6457 = vpack.c.b16 %v5389, %v5385
    %v6458 = vpack.c.b16 %v5394, %v5390
    %v6459 = vpack.c.b16 %v5395, %v5391
    %v6460 = vpack.c.b16 %v5396, %v5392
    %v6461 = vpack.c.b16 %v5397, %v5393
    %v6462 = vpack.c.b16 %v5402, %v5398
    %v6463 = vpack.c.b16 %v5403, %v5399
    %v6464 = vpack.c.b16 %v5404, %v5400
    %v6465 = vpack.c.b16 %v5405, %v5401
    %v6466 = vpack.c.b16 %v5410, %v5406
    %v6467 = vpack.c.b16 %v5411, %v5407
    %v6468 = vpack.c.b16 %v5412, %v5408
    %v6469 = vpack.c.b16 %v5413, %v5409
    %v6470 = vpack.c.b16 %v5418, %v5414
    %v6471 = vpack.c.b16 %v5419, %v5415
    %v6472 = vpack.c.b16 %v5420, %v5416
    %v6473 = vpack.c.b16 %v5421, %v5417
    %v6474 = vpack.c.b16 %v5426, %v5422
    %v6475 = vpack.c.b16 %v5427, %v5423
    %v6476 = vpack.c.b16 %v5428, %v5424
    %v6477 = vpack.c.b16 %v5429, %v5425
    %v6478 = vpack.c.b16 %v5434, %v5430
    %v6479 = vpack.c.b16 %v5435, %v5431
    %v6480 = vpack.c.b16 %v5436, %v5432
    %v6481 = vpack.c.b16 %v5437, %v5433
    %v6482 = vpack.c.b16 %v5442, %v5438
    %v6483 = vpack.c.b16 %v5443, %v5439
    %v6484 = vpack.c.b16 %v5444, %v5440
    %v6485 = vpack.c.b16 %v5445, %v5441
    %v6486 = vpack.c.b16 %v5450, %v5446
    %v6487 = vpack.c.b16 %v5451, %v5447
    %v6488 = vpack.c.b16 %v5452, %v5448
    %v6489 = vpack.c.b16 %v5453, %v5449
    %v6490 = vpack.c.b16 %v5458, %v5454
    %v6491 = vpack.c.b16 %v5459, %v5455
    %v6492 = vpack.c.b16 %v5460, %v5456
    %v6493 = vpack.c.b16 %v5461, %v5457
    %v6494 = vpack.c.b16 %v5466, %v5462
    %v6495 = vpack.c.b16 %v5467, %v5463
    %v6496 = vpack.c.b16 %v5468, %v5464
    %v6497 = vpack.c.b16 %v5469, %v5465
    %v6498 = vpack.c.b16 %v5474, %v5470
    %v6499 = vpack.c.b16 %v5475, %v5471
    %v6500 = vpack.c.b16 %v5476, %v5472
    %v6501 = vpack.c.b16 %v5477, %v5473
    %v6502 = vpack.c.b16 %v5482, %v5478
    %v6503 = vpack.c.b16 %v5483, %v5479
    %v6504 = vpack.c.b16 %v5484, %v5480
    %v6505 = vpack.c.b16 %v5485, %v5481
    %v6506 = vpack.c.b16 %v5490, %v5486
    %v6507 = vpack.c.b16 %v5491, %v5487
    %v6508 = vpack.c.b16 %v5492, %v5488
    %v6509 = vpack.c.b16 %v5493, %v5489
    %v6510 = vpack.c.b16 %v5498, %v5494
    %v6511 = vpack.c.b16 %v5499, %v5495
    %v6512 = vpack.c.b16 %v5500, %v5496
    %v6513 = vpack.c.b16 %v5501, %v5497
    %v6514 = vpack.c.b16 %v5506, %v5502
    %v6515 = vpack.c.b16 %v5507, %v5503
    %v6516 = vpack.c.b16 %v5508, %v5504
    %v6517 = vpack.c.b16 %v5509, %v5505
    %v6518 = vpack.c.b16 %v5514, %v5510
    %v6519 = vpack.c.b16 %v5515, %v5511
    %v6520 = vpack.c.b16 %v5516, %v5512
    %v6521 = vpack.c.b16 %v5517, %v5513
    %v6522 = vpack.c.b16 %v5522, %v5518
    %v6523 = vpack.c.b16 %v5523, %v5519
    %v6524 = vpack.c.b16 %v5524, %v5520
    %v6525 = vpack.c.b16 %v5525, %v5521
    %v6526 = vpack.c.b16 %v5530, %v5526
    %v6527 = vpack.c.b16 %v5531, %v5527
    %v6528 = vpack.c.b16 %v5532, %v5528
    %v6529 = vpack.c.b16 %v5533, %v5529
    %v6530 = vpack.c.b16 %v5538, %v5534
    %v6531 = vpack.c.b16 %v5539, %v5535
    %v6532 = vpack.c.b16 %v5540, %v5536
    %v6533 = vpack.c.b16 %v5541, %v5537
    %v6534 = vpack.c.b16 %v5546, %v5542
    %v6535 = vpack.c.b16 %v5547, %v5543
    %v6536 = vpack.c.b16 %v5548, %v5544
    %v6537 = vpack.c.b16 %v5549, %v5545
    %v6538 = vpack.c.b16 %v5554, %v5550
    %v6539 = vpack.c.b16 %v5555, %v5551
    %v6540 = vpack.c.b16 %v5556, %v5552
    %v6541 = vpack.c.b16 %v5557, %v5553
    %v6542 = vpack.c.b16 %v5562, %v5558
    %v6543 = vpack.c.b16 %v5563, %v5559
    %v6544 = vpack.c.b16 %v5564, %v5560
    %v6545 = vpack.c.b16 %v5565, %v5561
    %v6546 = vpack.c.b16 %v5570, %v5566
    %v6547 = vpack.c.b16 %v5571, %v5567
    %v6548 = vpack.c.b16 %v5572, %v5568
    %v6549 = vpack.c.b16 %v5573, %v5569
    %v6550 = vpack.c.b16 %v5578, %v5574
    %v6551 = vpack.c.b16 %v5579, %v5575
    %v6552 = vpack.c.b16 %v5580, %v5576
    %v6553 = vpack.c.b16 %v5581, %v5577
    %v6554 = vpack.c.b16 %v5586, %v5582
    %v6555 = vpack.c.b16 %v5587, %v5583
    %v6556 = vpack.c.b16 %v5588, %v5584
    %v6557 = vpack.c.b16 %v5589, %v5585
    %v6558 = vpack.c.b16 %v5594, %v5590
    %v6559 = vpack.c.b16 %v5595, %v5591
    %v6560 = vpack.c.b16 %v5596, %v5592
    %v6561 = vpack.c.b16 %v5597, %v5593
    %v6562 = vpack.c.b16 %v5602, %v5598
    %v6563 = vpack.c.b16 %v5603, %v5599
    %v6564 = vpack.c.b16 %v5604, %v5600
    %v6565 = vpack.c.b16 %v5605, %v5601
    %v6566 = vpack.c.b16 %v5610, %v5606
    %v6567 = vpack.c.b16 %v5611, %v5607
    %v6568 = vpack.c.b16 %v5612, %v5608
    %v6569 = vpack.c.b16 %v5613, %v5609
    %v6570 = vpack.c.b16 %v5618, %v5614
    %v6571 = vpack.c.b16 %v5619, %v5615
    %v6572 = vpack.c.b16 %v5620, %v5616
    %v6573 = vpack.c.b16 %v5621, %v5617
    %v6574 = vpack.c.b16 %v5626, %v5622
    %v6575 = vpack.c.b16 %v5627, %v5623
    %v6576 = vpack.c.b16 %v5628, %v5624
    %v6577 = vpack.c.b16 %v5629, %v5625
    %v6578 = vpack.c.b16 %v5634, %v5630
    %v6579 = vpack.c.b16 %v5635, %v5631
    %v6580 = vpack.c.b16 %v5636, %v5632
    %v6581 = vpack.c.b16 %v5637, %v5633
    %v6582 = vpack.c.b16 %v5642, %v5638
    %v6583 = vpack.c.b16 %v5643, %v5639
    %v6584 = vpack.c.b16 %v5644, %v5640
    %v6585 = vpack.c.b16 %v5645, %v5641
    %v6586 = vpack.c.b16 %v5650, %v5646
    %v6587 = vpack.c.b16 %v5651, %v5647
    %v6588 = vpack.c.b16 %v5652, %v5648
    %v6589 = vpack.c.b16 %v5653, %v5649
    %v6590 = vpack.c.b16 %v5658, %v5654
    %v6591 = vpack.c.b16 %v5659, %v5655
    %v6592 = vpack.c.b16 %v5660, %v5656
    %v6593 = vpack.c.b16 %v5661, %v5657
    %v6594 = vpack.c.b16 %v5666, %v5662
    %v6595 = vpack.c.b16 %v5667, %v5663
    %v6596 = vpack.c.b16 %v5668, %v5664
    %v6597 = vpack.c.b16 %v5669, %v5665
    %v6598 = vpack.c.b16 %v5674, %v5670
    %v6599 = vpack.c.b16 %v5675, %v5671
    %v6600 = vpack.c.b16 %v5676, %v5672
    %v6601 = vpack.c.b16 %v5677, %v5673
    %v6602 = vpack.c.b16 %v5682, %v5678
    %v6603 = vpack.c.b16 %v5683, %v5679
    %v6604 = vpack.c.b16 %v5684, %v5680
    %v6605 = vpack.c.b16 %v5685, %v5681
    %v6606 = vpack.c.b16 %v5690, %v5686
    %v6607 = vpack.c.b16 %v5691, %v5687
    %v6608 = vpack.c.b16 %v5692, %v5688
    %v6609 = vpack.c.b16 %v5693, %v5689
    %v6610 = vpack.c.b16 %v5698, %v5694
    %v6611 = vpack.c.b16 %v5699, %v5695
    %v6612 = vpack.c.b16 %v5700, %v5696
    %v6613 = vpack.c.b16 %v5701, %v5697
    %v6614 = vpack.c.b16 %v5706, %v5702
    %v6615 = vpack.c.b16 %v5707, %v5703
    %v6616 = vpack.c.b16 %v5708, %v5704
    %v6617 = vpack.c.b16 %v5709, %v5705
    %v6618 = vpack.c.b16 %v5714, %v5710
    %v6619 = vpack.c.b16 %v5715, %v5711
    %v6620 = vpack.c.b16 %v5716, %v5712
    %v6621 = vpack.c.b16 %v5717, %v5713
    %v6622 = vpack.c.b16 %v5722, %v5718
    %v6623 = vpack.c.b16 %v5723, %v5719
    %v6624 = vpack.c.b16 %v5724, %v5720
    %v6625 = vpack.c.b16 %v5725, %v5721
    %v6626 = vpack.c.b16 %v5730, %v5726
    %v6627 = vpack.c.b16 %v5731, %v5727
    %v6628 = vpack.c.b16 %v5732, %v5728
    %v6629 = vpack.c.b16 %v5733, %v5729
    %v6630 = vpack.c.b16 %v5738, %v5734
    %v6631 = vpack.c.b16 %v5739, %v5735
    %v6632 = vpack.c.b16 %v5740, %v5736
    %v6633 = vpack.c.b16 %v5741, %v5737
    %v6634 = vpack.c.b16 %v5746, %v5742
    %v6635 = vpack.c.b16 %v5747, %v5743
    %v6636 = vpack.c.b16 %v5748, %v5744
    %v6637 = vpack.c.b16 %v5749, %v5745
    %v6638 = vpack.c.b16 %v5754, %v5750
    %v6639 = vpack.c.b16 %v5755, %v5751
    %v6640 = vpack.c.b16 %v5756, %v5752
    %v6641 = vpack.c.b16 %v5757, %v5753
    %v6642 = vpack.c.b16 %v5762, %v5758
    %v6643 = vpack.c.b16 %v5763, %v5759
    %v6644 = vpack.c.b16 %v5764, %v5760
    %v6645 = vpack.c.b16 %v5765, %v5761
    %vm7526 = vcmask 523264
    %v7528 = vsel %vm7526, %v2223, 0
    %7530 = vmatprep.subr.bf16.mxu0 %v5767
    %7531 = vmatpush1.bf16.msra.mxu0 %v5766
    %7532 = vmatprep.subr.bf16.mxu0 %v5771
    %7533 = vmatpush1.bf16.msra.mxu0 %v5770
    %7534 = vmatprep.subr.bf16.mxu0 %v5775
    %7535 = vmatpush1.bf16.msra.mxu0 %v5774
    %7536 = vmatprep.subr.bf16.mxu0 %v5779
    %7537 = vmatpush1.bf16.msra.mxu0 %v5778
    %7538 = vmatprep.subr.bf16.mxu0 %v5783
    %7539 = vmatpush1.bf16.msra.mxu0 %v5782
    %7540 = vmatprep.subr.bf16.mxu0 %v5787
    %7541 = vmatpush1.bf16.msra.mxu0 %v5786
    %7542 = vmatprep.subr.bf16.mxu0 %v5791
    %7543 = vmatpush1.bf16.msra.mxu0 %v5790
    %7544 = vmatprep.subr.bf16.mxu0 %v5795
    %7545 = vmatpush1.bf16.msra.mxu0 %v5794
    %7546 = vmatprep.subr.bf16.mxu0 %v5799
    %7547 = vmatpush1.bf16.msra.mxu0 %v5798
    %7548 = vmatprep.subr.bf16.mxu0 %v5803
    %7549 = vmatpush1.bf16.msra.mxu0 %v5802
    %7550 = vmatprep.subr.bf16.mxu0 %v5807
    %7551 = vmatpush1.bf16.msra.mxu0 %v5806
    %7552 = vmatprep.subr.bf16.mxu0 %v5811
    %7553 = vmatpush1.bf16.msra.mxu0 %v5810
    %7554 = vmatprep.subr.bf16.mxu0 %v5815
    %7555 = vmatpush1.bf16.msra.mxu0 %v5814
    %7556 = vmatprep.subr.bf16.mxu0 %v5819
    %7557 = vmatpush1.bf16.msra.mxu0 %v5818
    %7558 = vmatprep.subr.bf16.mxu0 %v5823
    %7559 = vmatpush1.bf16.msra.mxu0 %v5822
    %7560 = vmatprep.subr.bf16.mxu0 %v5827
    %7561 = vmatpush1.bf16.msra.mxu0 %v5826
    %7562 = vmatprep.mubr.bf16.mxu0 %v2197
    %7563 = vmatmul.mubr.bf16.gmra.mrb[0].mxu0 %v2196
    %v7564 = vpop.f32.mrb[0].mxu0
    %v7565 = vadd.f32 %v3109, %v7564
    %v7566 = vpop.f32.mrb[0].mxu0
    %v7567 = vadd.f32 %v3113, %v7566
    %v7568 = vpop.f32.mrb[0].mxu0
    %v7569 = vpop.f32.mrb[0].mxu0
    %7570 = vdwg.mxu0
    %7571 = vmatprep.subr.bf16.mxu0 %v5831
    %7572 = vmatpush1.bf16.msra.mxu0 %v5830
    %7573 = vmatprep.subr.bf16.mxu0 %v5835
    %7574 = vmatpush1.bf16.msra.mxu0 %v5834
    %7575 = vmatprep.subr.bf16.mxu0 %v5839
    %7576 = vmatpush1.bf16.msra.mxu0 %v5838
    %7577 = vmatprep.subr.bf16.mxu0 %v5843
    %7578 = vmatpush1.bf16.msra.mxu0 %v5842
    %7579 = vmatprep.subr.bf16.mxu0 %v5847
    %7580 = vmatpush1.bf16.msra.mxu0 %v5846
    %7581 = vmatprep.subr.bf16.mxu0 %v5851
    %7582 = vmatpush1.bf16.msra.mxu0 %v5850
    %7583 = vmatprep.subr.bf16.mxu0 %v5855
    %7584 = vmatpush1.bf16.msra.mxu0 %v5854
    %7585 = vmatprep.subr.bf16.mxu0 %v5859
    %7586 = vmatpush1.bf16.msra.mxu0 %v5858
    %7587 = vmatprep.subr.bf16.mxu0 %v5863
    %7588 = vmatpush1.bf16.msra.mxu0 %v5862
    %7589 = vmatprep.subr.bf16.mxu0 %v5867
    %7590 = vmatpush1.bf16.msra.mxu0 %v5866
    %7591 = vmatprep.subr.bf16.mxu0 %v5871
    %7592 = vmatpush1.bf16.msra.mxu0 %v5870
    %7593 = vmatprep.subr.bf16.mxu0 %v5875
    %7594 = vmatpush1.bf16.msra.mxu0 %v5874
    %7595 = vmatprep.subr.bf16.mxu0 %v5879
    %7596 = vmatpush1.bf16.msra.mxu0 %v5878
    %7597 = vmatprep.subr.bf16.mxu0 %v5883
    %7598 = vmatpush1.bf16.msra.mxu0 %v5882
    %7599 = vmatprep.subr.bf16.mxu0 %v5887
    %7600 = vmatpush1.bf16.msra.mxu0 %v5886
    %7601 = vmatprep.subr.bf16.mxu0 %v5891
    %7602 = vmatpush1.bf16.msra.mxu0 %v5890
    %7603 = vmatprep.mubr.bf16.mxu0 %v2199
    %7604 = vmatmul.mubr.bf16.gmra.mrb[0].mxu0 %v2198
    %v7605 = vpop.f32.mrb[0].mxu0
    %v7606 = vadd.f32 %v7565, %v7605
    %v7607 = vpop.f32.mrb[0].mxu0
    %v7608 = vadd.f32 %v7567, %v7607
    %v7609 = vpop.f32.mrb[0].mxu0
    %v7610 = vpop.f32.mrb[0].mxu0
    %7611 = vdwg.mxu0
    %7612 = vmatprep.subr.bf16.mxu0 %v5895
    %7613 = vmatpush1.bf16.msra.mxu0 %v5894
    %7614 = vmatprep.subr.bf16.mxu0 %v5899
    %7615 = vmatpush1.bf16.msra.mxu0 %v5898
    %7616 = vmatprep.subr.bf16.mxu0 %v5903
    %7617 = vmatpush1.bf16.msra.mxu0 %v5902
    %7618 = vmatprep.subr.bf16.mxu0 %v5907
    %7619 = vmatpush1.bf16.msra.mxu0 %v5906
    %7620 = vmatprep.subr.bf16.mxu0 %v5911
    %7621 = vmatpush1.bf16.msra.mxu0 %v5910
    %7622 = vmatprep.subr.bf16.mxu0 %v5915
    %7623 = vmatpush1.bf16.msra.mxu0 %v5914
    %7624 = vmatprep.subr.bf16.mxu0 %v5919
    %7625 = vmatpush1.bf16.msra.mxu0 %v5918
    %7626 = vmatprep.subr.bf16.mxu0 %v5923
    %7627 = vmatpush1.bf16.msra.mxu0 %v5922
    %7628 = vmatprep.subr.bf16.mxu0 %v5927
    %7629 = vmatpush1.bf16.msra.mxu0 %v5926
    %7630 = vmatprep.subr.bf16.mxu0 %v5931
    %7631 = vmatpush1.bf16.msra.mxu0 %v5930
    %7632 = vmatprep.subr.bf16.mxu0 %v5935
    %7633 = vmatpush1.bf16.msra.mxu0 %v5934
    %7634 = vmatprep.subr.bf16.mxu0 %v5939
    %7635 = vmatpush1.bf16.msra.mxu0 %v5938
    %7636 = vmatprep.subr.bf16.mxu0 %v5943
    %7637 = vmatpush1.bf16.msra.mxu0 %v5942
    %7638 = vmatprep.subr.bf16.mxu0 %v5947
    %7639 = vmatpush1.bf16.msra.mxu0 %v5946
    %7640 = vmatprep.subr.bf16.mxu0 %v5951
    %7641 = vmatpush1.bf16.msra.mxu0 %v5950
    %7642 = vmatprep.subr.bf16.mxu0 %v5955
    %7643 = vmatpush1.bf16.msra.mxu0 %v5954
    %7644 = vmatprep.mubr.bf16.mxu0 %v2201
    %7645 = vmatmul.mubr.bf16.gmra.mrb[0].mxu0 %v2200
    %v7646 = vpop.f32.mrb[0].mxu0
    %v7647 = vadd.f32 %v7606, %v7646
    %v7648 = vpop.f32.mrb[0].mxu0
    %v7649 = vadd.f32 %v7608, %v7648
    %v7650 = vpop.f32.mrb[0].mxu0
    %v7651 = vpop.f32.mrb[0].mxu0
    %7652 = vdwg.mxu0
    %7653 = vmatprep.subr.bf16.mxu0 %v5959
    %7654 = vmatpush1.bf16.msra.mxu0 %v5958
    %7655 = vmatprep.subr.bf16.mxu0 %v5963
    %7656 = vmatpush1.bf16.msra.mxu0 %v5962
    %7657 = vmatprep.subr.bf16.mxu0 %v5967
    %7658 = vmatpush1.bf16.msra.mxu0 %v5966
    %7659 = vmatprep.subr.bf16.mxu0 %v5971
    %7660 = vmatpush1.bf16.msra.mxu0 %v5970
    %7661 = vmatprep.subr.bf16.mxu0 %v5975
    %7662 = vmatpush1.bf16.msra.mxu0 %v5974
    %7663 = vmatprep.subr.bf16.mxu0 %v5979
    %7664 = vmatpush1.bf16.msra.mxu0 %v5978
    %7665 = vmatprep.subr.bf16.mxu0 %v5983
    %7666 = vmatpush1.bf16.msra.mxu0 %v5982
    %7667 = vmatprep.subr.bf16.mxu0 %v5987
    %7668 = vmatpush1.bf16.msra.mxu0 %v5986
    %7669 = vmatprep.subr.bf16.mxu0 %v5991
    %7670 = vmatpush1.bf16.msra.mxu0 %v5990
    %7671 = vmatprep.subr.bf16.mxu0 %v5995
    %7672 = vmatpush1.bf16.msra.mxu0 %v5994
    %7673 = vmatprep.subr.bf16.mxu0 %v5999
    %7674 = vmatpush1.bf16.msra.mxu0 %v5998
    %7675 = vmatprep.subr.bf16.mxu0 %v6003
    %7676 = vmatpush1.bf16.msra.mxu0 %v6002
    %7677 = vmatprep.subr.bf16.mxu0 %v6007
    %7678 = vmatpush1.bf16.msra.mxu0 %v6006
    %7679 = vmatprep.subr.bf16.mxu0 %v6011
    %7680 = vmatpush1.bf16.msra.mxu0 %v6010
    %7681 = vmatprep.subr.bf16.mxu0 %v6015
    %7682 = vmatpush1.bf16.msra.mxu0 %v6014
    %7683 = vmatprep.subr.bf16.mxu0 %v6019
    %7684 = vmatpush1.bf16.msra.mxu0 %v6018
    %7685 = vmatprep.mubr.bf16.mxu0 %v2203
    %7686 = vmatmul.mubr.bf16.gmra.mrb[0].mxu0 %v2202
    %v7687 = vpop.f32.mrb[0].mxu0
    %v7688 = vadd.f32 %v7647, %v7687
    %v7689 = vpop.f32.mrb[0].mxu0
    %v7690 = vadd.f32 %v7649, %v7689
    %v7691 = vpop.f32.mrb[0].mxu0
    %v7692 = vpop.f32.mrb[0].mxu0
    %7693 = vdwg.mxu0
    %7694 = vmatprep.subr.bf16.mxu0 %v6023
    %7695 = vmatpush1.bf16.msra.mxu0 %v6022
    %7696 = vmatprep.subr.bf16.mxu0 %v6027
    %7697 = vmatpush1.bf16.msra.mxu0 %v6026
    %7698 = vmatprep.subr.bf16.mxu0 %v6031
    %7699 = vmatpush1.bf16.msra.mxu0 %v6030
    %7700 = vmatprep.subr.bf16.mxu0 %v6035
    %7701 = vmatpush1.bf16.msra.mxu0 %v6034
    %7702 = vmatprep.subr.bf16.mxu0 %v6039
    %7703 = vmatpush1.bf16.msra.mxu0 %v6038
    %7704 = vmatprep.subr.bf16.mxu0 %v6043
    %7705 = vmatpush1.bf16.msra.mxu0 %v6042
    %7706 = vmatprep.subr.bf16.mxu0 %v6047
    %7707 = vmatpush1.bf16.msra.mxu0 %v6046
    %7708 = vmatprep.subr.bf16.mxu0 %v6051
    %7709 = vmatpush1.bf16.msra.mxu0 %v6050
    %7710 = vmatprep.subr.bf16.mxu0 %v6055
    %7711 = vmatpush1.bf16.msra.mxu0 %v6054
    %7712 = vmatprep.subr.bf16.mxu0 %v6059
    %7713 = vmatpush1.bf16.msra.mxu0 %v6058
    %7714 = vmatprep.subr.bf16.mxu0 %v6063
    %7715 = vmatpush1.bf16.msra.mxu0 %v6062
    %7716 = vmatprep.subr.bf16.mxu0 %v6067
    %7717 = vmatpush1.bf16.msra.mxu0 %v6066
    %7718 = vmatprep.subr.bf16.mxu0 %v6071
    %7719 = vmatpush1.bf16.msra.mxu0 %v6070
    %7720 = vmatprep.subr.bf16.mxu0 %v6075
    %7721 = vmatpush1.bf16.msra.mxu0 %v6074
    %7722 = vmatprep.subr.bf16.mxu0 %v6079
    %7723 = vmatpush1.bf16.msra.mxu0 %v6078
    %7724 = vmatprep.subr.bf16.mxu0 %v6083
    %7725 = vmatpush1.bf16.msra.mxu0 %v6082
    %7726 = vmatprep.mubr.bf16.mxu0 %v2205
    %7727 = vmatmul.mubr.bf16.gmra.mrb[0].mxu0 %v2204
    %v7728 = vpop.f32.mrb[0].mxu0
    %v7729 = vadd.f32 %v7688, %v7728
    %v7730 = vpop.f32.mrb[0].mxu0
    %v7731 = vadd.f32 %v7690, %v7730
    %v7732 = vpop.f32.mrb[0].mxu0
    %v7733 = vpop.f32.mrb[0].mxu0
    %7734 = vdwg.mxu0
    %7735 = vmatprep.subr.bf16.mxu0 %v6087
    %7736 = vmatpush1.bf16.msra.mxu0 %v6086
    %7737 = vmatprep.subr.bf16.mxu0 %v6091
    %7738 = vmatpush1.bf16.msra.mxu0 %v6090
    %7739 = vmatprep.subr.bf16.mxu0 %v6095
    %7740 = vmatpush1.bf16.msra.mxu0 %v6094
    %7741 = vmatprep.subr.bf16.mxu0 %v6099
    %7742 = vmatpush1.bf16.msra.mxu0 %v6098
    %7743 = vmatprep.subr.bf16.mxu0 %v6103
    %7744 = vmatpush1.bf16.msra.mxu0 %v6102
    %7745 = vmatprep.subr.bf16.mxu0 %v6107
    %7746 = vmatpush1.bf16.msra.mxu0 %v6106
    %7747 = vmatprep.subr.bf16.mxu0 %v6111
    %7748 = vmatpush1.bf16.msra.mxu0 %v6110
    %7749 = vmatprep.subr.bf16.mxu0 %v6115
    %7750 = vmatpush1.bf16.msra.mxu0 %v6114
    %7751 = vmatprep.subr.bf16.mxu0 %v6119
    %7752 = vmatpush1.bf16.msra.mxu0 %v6118
    %7753 = vmatprep.subr.bf16.mxu0 %v6123
    %7754 = vmatpush1.bf16.msra.mxu0 %v6122
    %7755 = vmatprep.subr.bf16.mxu0 %v6127
    %7756 = vmatpush1.bf16.msra.mxu0 %v6126
    %7757 = vmatprep.subr.bf16.mxu0 %v6131
    %7758 = vmatpush1.bf16.msra.mxu0 %v6130
    %7759 = vmatprep.subr.bf16.mxu0 %v6135
    %7760 = vmatpush1.bf16.msra.mxu0 %v6134
    %7761 = vmatprep.subr.bf16.mxu0 %v6139
    %7762 = vmatpush1.bf16.msra.mxu0 %v6138
    %7763 = vmatprep.subr.bf16.mxu0 %v6143
    %7764 = vmatpush1.bf16.msra.mxu0 %v6142
    %7765 = vmatprep.subr.bf16.mxu0 %v6147
    %7766 = vmatpush1.bf16.msra.mxu0 %v6146
    %7767 = vmatprep.mubr.bf16.mxu0 %v2207
    %7768 = vmatmul.mubr.bf16.gmra.mrb[0].mxu0 %v2206
    %v7769 = vpop.f32.mrb[0].mxu0
    %v7770 = vadd.f32 %v7729, %v7769
    %v7771 = vpop.f32.mrb[0].mxu0
    %v7772 = vadd.f32 %v7731, %v7771
    %v7773 = vpop.f32.mrb[0].mxu0
    %v7774 = vpop.f32.mrb[0].mxu0
    %7775 = vdwg.mxu0
    %7776 = vmatprep.subr.bf16.mxu0 %v6151
    %7777 = vmatpush1.bf16.msra.mxu0 %v6150
    %7778 = vmatprep.subr.bf16.mxu0 %v6155
    %7779 = vmatpush1.bf16.msra.mxu0 %v6154
    %7780 = vmatprep.subr.bf16.mxu0 %v6159
    %7781 = vmatpush1.bf16.msra.mxu0 %v6158
    %7782 = vmatprep.subr.bf16.mxu0 %v6163
    %7783 = vmatpush1.bf16.msra.mxu0 %v6162
    %7784 = vmatprep.subr.bf16.mxu0 %v6167
    %7785 = vmatpush1.bf16.msra.mxu0 %v6166
    %7786 = vmatprep.subr.bf16.mxu0 %v6171
    %7787 = vmatpush1.bf16.msra.mxu0 %v6170
    %7788 = vmatprep.subr.bf16.mxu0 %v6175
    %7789 = vmatpush1.bf16.msra.mxu0 %v6174
    %7790 = vmatprep.subr.bf16.mxu0 %v6179
    %7791 = vmatpush1.bf16.msra.mxu0 %v6178
    %7792 = vmatprep.subr.bf16.mxu0 %v6183
    %7793 = vmatpush1.bf16.msra.mxu0 %v6182
    %7794 = vmatprep.subr.bf16.mxu0 %v6187
    %7795 = vmatpush1.bf16.msra.mxu0 %v6186
    %7796 = vmatprep.subr.bf16.mxu0 %v6191
    %7797 = vmatpush1.bf16.msra.mxu0 %v6190
    %7798 = vmatprep.subr.bf16.mxu0 %v6195
    %7799 = vmatpush1.bf16.msra.mxu0 %v6194
    %7800 = vmatprep.subr.bf16.mxu0 %v6199
    %7801 = vmatpush1.bf16.msra.mxu0 %v6198
    %7802 = vmatprep.subr.bf16.mxu0 %v6203
    %7803 = vmatpush1.bf16.msra.mxu0 %v6202
    %7804 = vmatprep.subr.bf16.mxu0 %v6207
    %7805 = vmatpush1.bf16.msra.mxu0 %v6206
    %7806 = vmatprep.subr.bf16.mxu0 %v6211
    %7807 = vmatpush1.bf16.msra.mxu0 %v6210
    %7808 = vmatprep.mubr.bf16.mxu0 %v2209
    %7809 = vmatmul.mubr.bf16.gmra.mrb[0].mxu0 %v2208
    %v7810 = vpop.f32.mrb[0].mxu0
    %v7811 = vadd.f32 %v7770, %v7810
    %v7812 = vpop.f32.mrb[0].mxu0
    %v7813 = vadd.f32 %v7772, %v7812
    %v7814 = vpop.f32.mrb[0].mxu0
    %v7815 = vpop.f32.mrb[0].mxu0
    %7816 = vdwg.mxu0
    %7817 = vmatprep.subr.bf16.mxu0 %v6215
    %7818 = vmatpush1.bf16.msra.mxu0 %v6214
    %7819 = vmatprep.subr.bf16.mxu0 %v6219
    %7820 = vmatpush1.bf16.msra.mxu0 %v6218
    %7821 = vmatprep.subr.bf16.mxu0 %v6223
    %7822 = vmatpush1.bf16.msra.mxu0 %v6222
    %7823 = vmatprep.subr.bf16.mxu0 %v6227
    %7824 = vmatpush1.bf16.msra.mxu0 %v6226
    %7825 = vmatprep.subr.bf16.mxu0 %v6231
    %7826 = vmatpush1.bf16.msra.mxu0 %v6230
    %7827 = vmatprep.subr.bf16.mxu0 %v6235
    %7828 = vmatpush1.bf16.msra.mxu0 %v6234
    %7829 = vmatprep.subr.bf16.mxu0 %v6239
    %7830 = vmatpush1.bf16.msra.mxu0 %v6238
    %7831 = vmatprep.subr.bf16.mxu0 %v6243
    %7832 = vmatpush1.bf16.msra.mxu0 %v6242
    %7833 = vmatprep.subr.bf16.mxu0 %v6247
    %7834 = vmatpush1.bf16.msra.mxu0 %v6246
    %7835 = vmatprep.subr.bf16.mxu0 %v6251
    %7836 = vmatpush1.bf16.msra.mxu0 %v6250
    %7837 = vmatprep.subr.bf16.mxu0 %v6255
    %7838 = vmatpush1.bf16.msra.mxu0 %v6254
    %7839 = vmatprep.subr.bf16.mxu0 %v6259
    %7840 = vmatpush1.bf16.msra.mxu0 %v6258
    %7841 = vmatprep.subr.bf16.mxu0 %v6263
    %7842 = vmatpush1.bf16.msra.mxu0 %v6262
    %7843 = vmatprep.subr.bf16.mxu0 %v6267
    %7844 = vmatpush1.bf16.msra.mxu0 %v6266
    %7845 = vmatprep.subr.bf16.mxu0 %v6271
    %7846 = vmatpush1.bf16.msra.mxu0 %v6270
    %7847 = vmatprep.subr.bf16.mxu0 %v6275
    %7848 = vmatpush1.bf16.msra.mxu0 %v6274
    %7849 = vmatprep.mubr.bf16.mxu0 %v2211
    %7850 = vmatmul.mubr.bf16.gmra.mrb[0].mxu0 %v2210
    %v7851 = vpop.f32.mrb[0].mxu0
    %v7852 = vadd.f32 %v7811, %v7851
    %v7853 = vpop.f32.mrb[0].mxu0
    %v7854 = vadd.f32 %v7813, %v7853
    %v7855 = vpop.f32.mrb[0].mxu0
    %v7856 = vpop.f32.mrb[0].mxu0
    %7857 = vdwg.mxu0
    %7858 = vmatprep.subr.bf16.mxu0 %v6279
    %7859 = vmatpush1.bf16.msra.mxu0 %v6278
    %7860 = vmatprep.subr.bf16.mxu0 %v6283
    %7861 = vmatpush1.bf16.msra.mxu0 %v6282
    %7862 = vmatprep.subr.bf16.mxu0 %v6287
    %7863 = vmatpush1.bf16.msra.mxu0 %v6286
    %7864 = vmatprep.subr.bf16.mxu0 %v6291
    %7865 = vmatpush1.bf16.msra.mxu0 %v6290
    %7866 = vmatprep.subr.bf16.mxu0 %v6295
    %7867 = vmatpush1.bf16.msra.mxu0 %v6294
    %7868 = vmatprep.subr.bf16.mxu0 %v6299
    %7869 = vmatpush1.bf16.msra.mxu0 %v6298
    %7870 = vmatprep.subr.bf16.mxu0 %v6303
    %7871 = vmatpush1.bf16.msra.mxu0 %v6302
    %7872 = vmatprep.subr.bf16.mxu0 %v6307
    %7873 = vmatpush1.bf16.msra.mxu0 %v6306
    %7874 = vmatprep.subr.bf16.mxu0 %v6311
    %7875 = vmatpush1.bf16.msra.mxu0 %v6310
    %7876 = vmatprep.subr.bf16.mxu0 %v6315
    %7877 = vmatpush1.bf16.msra.mxu0 %v6314
    %7878 = vmatprep.subr.bf16.mxu0 %v6319
    %7879 = vmatpush1.bf16.msra.mxu0 %v6318
    %7880 = vmatprep.subr.bf16.mxu0 %v6323
    %7881 = vmatpush1.bf16.msra.mxu0 %v6322
    %7882 = vmatprep.subr.bf16.mxu0 %v6327
    %7883 = vmatpush1.bf16.msra.mxu0 %v6326
    %7884 = vmatprep.subr.bf16.mxu0 %v6331
    %7885 = vmatpush1.bf16.msra.mxu0 %v6330
    %7886 = vmatprep.subr.bf16.mxu0 %v6335
    %7887 = vmatpush1.bf16.msra.mxu0 %v6334
    %7888 = vmatprep.subr.bf16.mxu0 %v6339
    %7889 = vmatpush1.bf16.msra.mxu0 %v6338
    %7890 = vmatprep.mubr.bf16.mxu0 %v2213
    %7891 = vmatmul.mubr.bf16.gmra.mrb[0].mxu0 %v2212
    %v7892 = vpop.f32.mrb[0].mxu0
    %v7893 = vadd.f32 %v7852, %v7892
    %v7894 = vpop.f32.mrb[0].mxu0
    %v7895 = vadd.f32 %v7854, %v7894
    %v7896 = vpop.f32.mrb[0].mxu0
    %v7897 = vpop.f32.mrb[0].mxu0
    %7898 = vdwg.mxu0
    %7899 = vmatprep.subr.bf16.mxu0 %v6343
    %7900 = vmatpush1.bf16.msra.mxu0 %v6342
    %7901 = vmatprep.subr.bf16.mxu0 %v6347
    %7902 = vmatpush1.bf16.msra.mxu0 %v6346
    %7903 = vmatprep.subr.bf16.mxu0 %v6351
    %7904 = vmatpush1.bf16.msra.mxu0 %v6350
    %7905 = vmatprep.subr.bf16.mxu0 %v6355
    %7906 = vmatpush1.bf16.msra.mxu0 %v6354
    %7907 = vmatprep.subr.bf16.mxu0 %v6359
    %7908 = vmatpush1.bf16.msra.mxu0 %v6358
    %7909 = vmatprep.subr.bf16.mxu0 %v6363
    %7910 = vmatpush1.bf16.msra.mxu0 %v6362
    %7911 = vmatprep.subr.bf16.mxu0 %v6367
    %7912 = vmatpush1.bf16.msra.mxu0 %v6366
    %7913 = vmatprep.subr.bf16.mxu0 %v6371
    %7914 = vmatpush1.bf16.msra.mxu0 %v6370
    %7915 = vmatprep.subr.bf16.mxu0 %v6375
    %7916 = vmatpush1.bf16.msra.mxu0 %v6374
    %7917 = vmatprep.subr.bf16.mxu0 %v6379
    %7918 = vmatpush1.bf16.msra.mxu0 %v6378
    %7919 = vmatprep.subr.bf16.mxu0 %v6383
    %7920 = vmatpush1.bf16.msra.mxu0 %v6382
    %7921 = vmatprep.subr.bf16.mxu0 %v6387
    %7922 = vmatpush1.bf16.msra.mxu0 %v6386
    %7923 = vmatprep.subr.bf16.mxu0 %v6391
    %7924 = vmatpush1.bf16.msra.mxu0 %v6390
    %7925 = vmatprep.subr.bf16.mxu0 %v6395
    %7926 = vmatpush1.bf16.msra.mxu0 %v6394
    %7927 = vmatprep.subr.bf16.mxu0 %v6399
    %7928 = vmatpush1.bf16.msra.mxu0 %v6398
    %7929 = vmatprep.subr.bf16.mxu0 %v6403
    %7930 = vmatpush1.bf16.msra.mxu0 %v6402
    %7931 = vmatprep.mubr.bf16.mxu0 %v2215
    %7932 = vmatmul.mubr.bf16.gmra.mrb[0].mxu0 %v2214
    %v7933 = vpop.f32.mrb[0].mxu0
    %v7934 = vadd.f32 %v7893, %v7933
    %v7935 = vpop.f32.mrb[0].mxu0
    %v7936 = vadd.f32 %v7895, %v7935
    %v7937 = vpop.f32.mrb[0].mxu0
    %v7938 = vpop.f32.mrb[0].mxu0
    %7939 = vdwg.mxu0
    %7940 = vmatprep.subr.bf16.mxu0 %v6407
    %7941 = vmatpush1.bf16.msra.mxu0 %v6406
    %7942 = vmatprep.subr.bf16.mxu0 %v6411
    %7943 = vmatpush1.bf16.msra.mxu0 %v6410
    %7944 = vmatprep.subr.bf16.mxu0 %v6415
    %7945 = vmatpush1.bf16.msra.mxu0 %v6414
    %7946 = vmatprep.subr.bf16.mxu0 %v6419
    %7947 = vmatpush1.bf16.msra.mxu0 %v6418
    %7948 = vmatprep.subr.bf16.mxu0 %v6423
    %7949 = vmatpush1.bf16.msra.mxu0 %v6422
    %7950 = vmatprep.subr.bf16.mxu0 %v6427
    %7951 = vmatpush1.bf16.msra.mxu0 %v6426
    %7952 = vmatprep.subr.bf16.mxu0 %v6431
    %7953 = vmatpush1.bf16.msra.mxu0 %v6430
    %7954 = vmatprep.subr.bf16.mxu0 %v6435
    %7955 = vmatpush1.bf16.msra.mxu0 %v6434
    %7956 = vmatprep.subr.bf16.mxu0 %v6439
    %7957 = vmatpush1.bf16.msra.mxu0 %v6438
    %7958 = vmatprep.subr.bf16.mxu0 %v6443
    %7959 = vmatpush1.bf16.msra.mxu0 %v6442
    %7960 = vmatprep.subr.bf16.mxu0 %v6447
    %7961 = vmatpush1.bf16.msra.mxu0 %v6446
    %7962 = vmatprep.subr.bf16.mxu0 %v6451
    %7963 = vmatpush1.bf16.msra.mxu0 %v6450
    %7964 = vmatprep.subr.bf16.mxu0 %v6455
    %7965 = vmatpush1.bf16.msra.mxu0 %v6454
    %7966 = vmatprep.subr.bf16.mxu0 %v6459
    %7967 = vmatpush1.bf16.msra.mxu0 %v6458
    %7968 = vmatprep.subr.bf16.mxu0 %v6463
    %7969 = vmatpush1.bf16.msra.mxu0 %v6462
    %7970 = vmatprep.subr.bf16.mxu0 %v6467
    %7971 = vmatpush1.bf16.msra.mxu0 %v6466
    %7972 = vmatprep.mubr.bf16.mxu0 %v2217
    %7973 = vmatmul.mubr.bf16.gmra.mrb[0].mxu0 %v2216
    %v7974 = vpop.f32.mrb[0].mxu0
    %v7975 = vadd.f32 %v7934, %v7974
    %v7976 = vpop.f32.mrb[0].mxu0
    %v7977 = vadd.f32 %v7936, %v7976
    %v7978 = vpop.f32.mrb[0].mxu0
    %v7979 = vpop.f32.mrb[0].mxu0
    %7980 = vdwg.mxu0
    %7981 = vmatprep.subr.bf16.mxu0 %v6471
    %7982 = vmatpush1.bf16.msra.mxu0 %v6470
    %7983 = vmatprep.subr.bf16.mxu0 %v6475
    %7984 = vmatpush1.bf16.msra.mxu0 %v6474
    %7985 = vmatprep.subr.bf16.mxu0 %v6479
    %7986 = vmatpush1.bf16.msra.mxu0 %v6478
    %7987 = vmatprep.subr.bf16.mxu0 %v6483
    %7988 = vmatpush1.bf16.msra.mxu0 %v6482
    %7989 = vmatprep.subr.bf16.mxu0 %v6487
    %7990 = vmatpush1.bf16.msra.mxu0 %v6486
    %7991 = vmatprep.subr.bf16.mxu0 %v6491
    %7992 = vmatpush1.bf16.msra.mxu0 %v6490
    %7993 = vmatprep.subr.bf16.mxu0 %v6495
    %7994 = vmatpush1.bf16.msra.mxu0 %v6494
    %7995 = vmatprep.subr.bf16.mxu0 %v6499
    %7996 = vmatpush1.bf16.msra.mxu0 %v6498
    %7997 = vmatprep.subr.bf16.mxu0 %v6503
    %7998 = vmatpush1.bf16.msra.mxu0 %v6502
    %7999 = vmatprep.subr.bf16.mxu0 %v6507
    %8000 = vmatpush1.bf16.msra.mxu0 %v6506
    %8001 = vmatprep.subr.bf16.mxu0 %v6511
    %8002 = vmatpush1.bf16.msra.mxu0 %v6510
    %8003 = vmatprep.subr.bf16.mxu0 %v6515
    %8004 = vmatpush1.bf16.msra.mxu0 %v6514
    %8005 = vmatprep.subr.bf16.mxu0 %v6519
    %8006 = vmatpush1.bf16.msra.mxu0 %v6518
    %8007 = vmatprep.subr.bf16.mxu0 %v6523
    %8008 = vmatpush1.bf16.msra.mxu0 %v6522
    %8009 = vmatprep.subr.bf16.mxu0 %v6527
    %8010 = vmatpush1.bf16.msra.mxu0 %v6526
    %8011 = vmatprep.subr.bf16.mxu0 %v6531
    %8012 = vmatpush1.bf16.msra.mxu0 %v6530
    %8013 = vmatprep.mubr.bf16.mxu0 %v2219
    %8014 = vmatmul.mubr.bf16.gmra.mrb[0].mxu0 %v2218
    %v8015 = vpop.f32.mrb[0].mxu0
    %v8016 = vadd.f32 %v7975, %v8015
    %v8017 = vpop.f32.mrb[0].mxu0
    %v8018 = vadd.f32 %v7977, %v8017
    %v8019 = vpop.f32.mrb[0].mxu0
    %v8020 = vpop.f32.mrb[0].mxu0
    %8021 = vdwg.mxu0
    %8022 = vmatprep.subr.bf16.mxu0 %v6535
    %8023 = vmatpush1.bf16.msra.mxu0 %v6534
    %8024 = vmatprep.subr.bf16.mxu0 %v6539
    %8025 = vmatpush1.bf16.msra.mxu0 %v6538
    %8026 = vmatprep.subr.bf16.mxu0 %v6543
    %8027 = vmatpush1.bf16.msra.mxu0 %v6542
    %8028 = vmatprep.subr.bf16.mxu0 %v6547
    %8029 = vmatpush1.bf16.msra.mxu0 %v6546
    %8030 = vmatprep.subr.bf16.mxu0 %v6551
    %8031 = vmatpush1.bf16.msra.mxu0 %v6550
    %8032 = vmatprep.subr.bf16.mxu0 %v6555
    %8033 = vmatpush1.bf16.msra.mxu0 %v6554
    %8034 = vmatprep.subr.bf16.mxu0 %v6559
    %8035 = vmatpush1.bf16.msra.mxu0 %v6558
    %8036 = vmatprep.subr.bf16.mxu0 %v6563
    %8037 = vmatpush1.bf16.msra.mxu0 %v6562
    %8038 = vmatprep.subr.bf16.mxu0 %v6567
    %8039 = vmatpush1.bf16.msra.mxu0 %v6566
    %8040 = vmatprep.subr.bf16.mxu0 %v6571
    %8041 = vmatpush1.bf16.msra.mxu0 %v6570
    %8042 = vmatprep.subr.bf16.mxu0 %v6575
    %8043 = vmatpush1.bf16.msra.mxu0 %v6574
    %8044 = vmatprep.subr.bf16.mxu0 %v6579
    %8045 = vmatpush1.bf16.msra.mxu0 %v6578
    %8046 = vmatprep.subr.bf16.mxu0 %v6583
    %8047 = vmatpush1.bf16.msra.mxu0 %v6582
    %8048 = vmatprep.subr.bf16.mxu0 %v6587
    %8049 = vmatpush1.bf16.msra.mxu0 %v6586
    %8050 = vmatprep.subr.bf16.mxu0 %v6591
    %8051 = vmatpush1.bf16.msra.mxu0 %v6590
    %8052 = vmatprep.subr.bf16.mxu0 %v6595
    %8053 = vmatpush1.bf16.msra.mxu0 %v6594
    %8054 = vmatprep.mubr.bf16.mxu0 %v2221
    %8055 = vmatmul.mubr.bf16.gmra.mrb[0].mxu0 %v2220
    %v8056 = vpop.f32.mrb[0].mxu0
    %v8057 = vadd.f32 %v8016, %v8056
    %v8058 = vpop.f32.mrb[0].mxu0
    %v8059 = vadd.f32 %v8018, %v8058
    %v8060 = vpop.f32.mrb[0].mxu0
    %v8061 = vpop.f32.mrb[0].mxu0
    %8062 = vdwg.mxu0
    %8063 = vmatprep.subr.bf16.mxu0 %v6599
    %8064 = vmatpush1.bf16.msra.mxu0 %v6598
    %8065 = vmatprep.subr.bf16.mxu0 %v6603
    %8066 = vmatpush1.bf16.msra.mxu0 %v6602
    %8067 = vmatprep.subr.bf16.mxu0 %v6607
    %8068 = vmatpush1.bf16.msra.mxu0 %v6606
    %8069 = vmatprep.subr.bf16.mxu0 %v6611
    %8070 = vmatpush1.bf16.msra.mxu0 %v6610
    %8071 = vmatprep.subr.bf16.mxu0 %v6615
    %8072 = vmatpush1.bf16.msra.mxu0 %v6614
    %8073 = vmatprep.subr.bf16.mxu0 %v6619
    %8074 = vmatpush1.bf16.msra.mxu0 %v6618
    %8075 = vmatprep.subr.bf16.mxu0 %v6623
    %8076 = vmatpush1.bf16.msra.mxu0 %v6622
    %8077 = vmatprep.subr.bf16.mxu0 %v6627
    %8078 = vmatpush1.bf16.msra.mxu0 %v6626
    %8079 = vmatprep.subr.bf16.mxu0 %v6631
    %8080 = vmatpush1.bf16.msra.mxu0 %v6630
    %8081 = vmatprep.subr.bf16.mxu0 %v6635
    %8082 = vmatpush1.bf16.msra.mxu0 %v6634
    %8083 = vmatprep.subr.bf16.mxu0 %v6639
    %8084 = vmatpush1.bf16.msra.mxu0 %v6638
    %8085 = vmatprep.subr.bf16.mxu0 %v6643
    %8086 = vmatpush1.bf16.msra.mxu0 %v6642
    %8087 = vmatprep.subr.bf16.mxu0 0
    %8088 = vmatpush1.bf16.msra.mxu0 0
    %8089 = vmatprep.subr.bf16.mxu0 0
    %8090 = vmatpush1.bf16.msra.mxu0 0
    %8091 = vmatprep.subr.bf16.mxu0 0
    %8092 = vmatpush1.bf16.msra.mxu0 0
    %8093 = vmatprep.subr.bf16.mxu0 0
    %8094 = vmatpush1.bf16.msra.mxu0 0
    %8095 = vmatprep.mubr.bf16.mxu0 %v7528
    %8096 = vmatmul.mubr.bf16.gmra.mrb[0].mxu0 %v2222
    %v8097 = vpop.f32.mrb[0].mxu0
    %v8098 = vadd.f32 %v8057, %v8097
    %v8099 = vpop.f32.mrb[0].mxu0
    %v8100 = vadd.f32 %v8059, %v8099
    %v8101 = vpop.f32.mrb[0].mxu0
    %v8102 = vpop.f32.mrb[0].mxu0
    %8103 = vdwg.mxu0
    %8104 = vmatprep.subr.bf16.mxu0 %v5769
    %8105 = vmatpush1.bf16.msra.mxu0 %v5768
    %8106 = vmatprep.subr.bf16.mxu0 %v5773
    %8107 = vmatpush1.bf16.msra.mxu0 %v5772
    %8108 = vmatprep.subr.bf16.mxu0 %v5777
    %8109 = vmatpush1.bf16.msra.mxu0 %v5776
    %8110 = vmatprep.subr.bf16.mxu0 %v5781
    %8111 = vmatpush1.bf16.msra.mxu0 %v5780
    %8112 = vmatprep.subr.bf16.mxu0 %v5785
    %8113 = vmatpush1.bf16.msra.mxu0 %v5784
    %8114 = vmatprep.subr.bf16.mxu0 %v5789
    %8115 = vmatpush1.bf16.msra.mxu0 %v5788
    %8116 = vmatprep.subr.bf16.mxu0 %v5793
    %8117 = vmatpush1.bf16.msra.mxu0 %v5792
    %8118 = vmatprep.subr.bf16.mxu0 %v5797
    %8119 = vmatpush1.bf16.msra.mxu0 %v5796
    %8120 = vmatprep.subr.bf16.mxu0 %v5801
    %8121 = vmatpush1.bf16.msra.mxu0 %v5800
    %8122 = vmatprep.subr.bf16.mxu0 %v5805
    %8123 = vmatpush1.bf16.msra.mxu0 %v5804
    %8124 = vmatprep.subr.bf16.mxu0 %v5809
    %8125 = vmatpush1.bf16.msra.mxu0 %v5808
    %8126 = vmatprep.subr.bf16.mxu0 %v5813
    %8127 = vmatpush1.bf16.msra.mxu0 %v5812
    %8128 = vmatprep.subr.bf16.mxu0 %v5817
    %8129 = vmatpush1.bf16.msra.mxu0 %v5816
    %8130 = vmatprep.subr.bf16.mxu0 %v5821
    %8131 = vmatpush1.bf16.msra.mxu0 %v5820
    %8132 = vmatprep.subr.bf16.mxu0 %v5825
    %8133 = vmatpush1.bf16.msra.mxu0 %v5824
    %8134 = vmatprep.subr.bf16.mxu0 %v5829
    %8135 = vmatpush1.bf16.msra.mxu0 %v5828
    %8136 = vmatprep.mubr.bf16.mxu0 %v2197
    %8137 = vmatmul.mubr.bf16.gmra.mrb[0].mxu0 %v2196
    %v8138 = vpop.f32.mrb[0].mxu0
    %v8139 = vadd.f32 %v3117, %v8138
    %v8140 = vpop.f32.mrb[0].mxu0
    %v8141 = vadd.f32 %v3121, %v8140
    %v8142 = vpop.f32.mrb[0].mxu0
    %v8143 = vpop.f32.mrb[0].mxu0
    %8144 = vdwg.mxu0
    %8145 = vmatprep.subr.bf16.mxu0 %v5833
    %8146 = vmatpush1.bf16.msra.mxu0 %v5832
    %8147 = vmatprep.subr.bf16.mxu0 %v5837
    %8148 = vmatpush1.bf16.msra.mxu0 %v5836
    %8149 = vmatprep.subr.bf16.mxu0 %v5841
    %8150 = vmatpush1.bf16.msra.mxu0 %v5840
    %8151 = vmatprep.subr.bf16.mxu0 %v5845
    %8152 = vmatpush1.bf16.msra.mxu0 %v5844
    %8153 = vmatprep.subr.bf16.mxu0 %v5849
    %8154 = vmatpush1.bf16.msra.mxu0 %v5848
    %8155 = vmatprep.subr.bf16.mxu0 %v5853
    %8156 = vmatpush1.bf16.msra.mxu0 %v5852
    %8157 = vmatprep.subr.bf16.mxu0 %v5857
    %8158 = vmatpush1.bf16.msra.mxu0 %v5856
    %8159 = vmatprep.subr.bf16.mxu0 %v5861
    %8160 = vmatpush1.bf16.msra.mxu0 %v5860
    %8161 = vmatprep.subr.bf16.mxu0 %v5865
    %8162 = vmatpush1.bf16.msra.mxu0 %v5864
    %8163 = vmatprep.subr.bf16.mxu0 %v5869
    %8164 = vmatpush1.bf16.msra.mxu0 %v5868
    %8165 = vmatprep.subr.bf16.mxu0 %v5873
    %8166 = vmatpush1.bf16.msra.mxu0 %v5872
    %8167 = vmatprep.subr.bf16.mxu0 %v5877
    %8168 = vmatpush1.bf16.msra.mxu0 %v5876
    %8169 = vmatprep.subr.bf16.mxu0 %v5881
    %8170 = vmatpush1.bf16.msra.mxu0 %v5880
    %8171 = vmatprep.subr.bf16.mxu0 %v5885
    %8172 = vmatpush1.bf16.msra.mxu0 %v5884
    %8173 = vmatprep.subr.bf16.mxu0 %v5889
    %8174 = vmatpush1.bf16.msra.mxu0 %v5888
    %8175 = vmatprep.subr.bf16.mxu0 %v5893
    %8176 = vmatpush1.bf16.msra.mxu0 %v5892
    %8177 = vmatprep.mubr.bf16.mxu0 %v2199
    %8178 = vmatmul.mubr.bf16.gmra.mrb[0].mxu0 %v2198
    %v8179 = vpop.f32.mrb[0].mxu0
    %v8180 = vadd.f32 %v8139, %v8179
    %v8181 = vpop.f32.mrb[0].mxu0
    %v8182 = vadd.f32 %v8141, %v8181
    %v8183 = vpop.f32.mrb[0].mxu0
    %v8184 = vpop.f32.mrb[0].mxu0
    %8185 = vdwg.mxu0
    %8186 = vmatprep.subr.bf16.mxu0 %v5897
    %8187 = vmatpush1.bf16.msra.mxu0 %v5896
    %8188 = vmatprep.subr.bf16.mxu0 %v5901
    %8189 = vmatpush1.bf16.msra.mxu0 %v5900
    %8190 = vmatprep.subr.bf16.mxu0 %v5905
    %8191 = vmatpush1.bf16.msra.mxu0 %v5904
    %8192 = vmatprep.subr.bf16.mxu0 %v5909
    %8193 = vmatpush1.bf16.msra.mxu0 %v5908
    %8194 = vmatprep.subr.bf16.mxu0 %v5913
    %8195 = vmatpush1.bf16.msra.mxu0 %v5912
    %8196 = vmatprep.subr.bf16.mxu0 %v5917
    %8197 = vmatpush1.bf16.msra.mxu0 %v5916
    %8198 = vmatprep.subr.bf16.mxu0 %v5921
    %8199 = vmatpush1.bf16.msra.mxu0 %v5920
    %8200 = vmatprep.subr.bf16.mxu0 %v5925
    %8201 = vmatpush1.bf16.msra.mxu0 %v5924
    %8202 = vmatprep.subr.bf16.mxu0 %v5929
    %8203 = vmatpush1.bf16.msra.mxu0 %v5928
    %8204 = vmatprep.subr.bf16.mxu0 %v5933
    %8205 = vmatpush1.bf16.msra.mxu0 %v5932
    %8206 = vmatprep.subr.bf16.mxu0 %v5937
    %8207 = vmatpush1.bf16.msra.mxu0 %v5936
    %8208 = vmatprep.subr.bf16.mxu0 %v5941
    %8209 = vmatpush1.bf16.msra.mxu0 %v5940
    %8210 = vmatprep.subr.bf16.mxu0 %v5945
    %8211 = vmatpush1.bf16.msra.mxu0 %v5944
    %8212 = vmatprep.subr.bf16.mxu0 %v5949
    %8213 = vmatpush1.bf16.msra.mxu0 %v5948
    %8214 = vmatprep.subr.bf16.mxu0 %v5953
    %8215 = vmatpush1.bf16.msra.mxu0 %v5952
    %8216 = vmatprep.subr.bf16.mxu0 %v5957
    %8217 = vmatpush1.bf16.msra.mxu0 %v5956
    %8218 = vmatprep.mubr.bf16.mxu0 %v2201
    %8219 = vmatmul.mubr.bf16.gmra.mrb[0].mxu0 %v2200
    %v8220 = vpop.f32.mrb[0].mxu0
    %v8221 = vadd.f32 %v8180, %v8220
    %v8222 = vpop.f32.mrb[0].mxu0
    %v8223 = vadd.f32 %v8182, %v8222
    %v8224 = vpop.f32.mrb[0].mxu0
    %v8225 = vpop.f32.mrb[0].mxu0
    %8226 = vdwg.mxu0
    %8227 = vmatprep.subr.bf16.mxu0 %v5961
    %8228 = vmatpush1.bf16.msra.mxu0 %v5960
    %8229 = vmatprep.subr.bf16.mxu0 %v5965
    %8230 = vmatpush1.bf16.msra.mxu0 %v5964
    %8231 = vmatprep.subr.bf16.mxu0 %v5969
    %8232 = vmatpush1.bf16.msra.mxu0 %v5968
    %8233 = vmatprep.subr.bf16.mxu0 %v5973
    %8234 = vmatpush1.bf16.msra.mxu0 %v5972
    %8235 = vmatprep.subr.bf16.mxu0 %v5977
    %8236 = vmatpush1.bf16.msra.mxu0 %v5976
    %8237 = vmatprep.subr.bf16.mxu0 %v5981
    %8238 = vmatpush1.bf16.msra.mxu0 %v5980
    %8239 = vmatprep.subr.bf16.mxu0 %v5985
    %8240 = vmatpush1.bf16.msra.mxu0 %v5984
    %8241 = vmatprep.subr.bf16.mxu0 %v5989
    %8242 = vmatpush1.bf16.msra.mxu0 %v5988
    %8243 = vmatprep.subr.bf16.mxu0 %v5993
    %8244 = vmatpush1.bf16.msra.mxu0 %v5992
    %8245 = vmatprep.subr.bf16.mxu0 %v5997
    %8246 = vmatpush1.bf16.msra.mxu0 %v5996
    %8247 = vmatprep.subr.bf16.mxu0 %v6001
    %8248 = vmatpush1.bf16.msra.mxu0 %v6000
    %8249 = vmatprep.subr.bf16.mxu0 %v6005
    %8250 = vmatpush1.bf16.msra.mxu0 %v6004
    %8251 = vmatprep.subr.bf16.mxu0 %v6009
    %8252 = vmatpush1.bf16.msra.mxu0 %v6008
    %8253 = vmatprep.subr.bf16.mxu0 %v6013
    %8254 = vmatpush1.bf16.msra.mxu0 %v6012
    %8255 = vmatprep.subr.bf16.mxu0 %v6017
    %8256 = vmatpush1.bf16.msra.mxu0 %v6016
    %8257 = vmatprep.subr.bf16.mxu0 %v6021
    %8258 = vmatpush1.bf16.msra.mxu0 %v6020
    %8259 = vmatprep.mubr.bf16.mxu0 %v2203
    %8260 = vmatmul.mubr.bf16.gmra.mrb[0].mxu0 %v2202
    %v8261 = vpop.f32.mrb[0].mxu0
    %v8262 = vadd.f32 %v8221, %v8261
    %v8263 = vpop.f32.mrb[0].mxu0
    %v8264 = vadd.f32 %v8223, %v8263
    %v8265 = vpop.f32.mrb[0].mxu0
    %v8266 = vpop.f32.mrb[0].mxu0
    %8267 = vdwg.mxu0
    %8268 = vmatprep.subr.bf16.mxu0 %v6025
    %8269 = vmatpush1.bf16.msra.mxu0 %v6024
    %8270 = vmatprep.subr.bf16.mxu0 %v6029
    %8271 = vmatpush1.bf16.msra.mxu0 %v6028
    %8272 = vmatprep.subr.bf16.mxu0 %v6033
    %8273 = vmatpush1.bf16.msra.mxu0 %v6032
    %8274 = vmatprep.subr.bf16.mxu0 %v6037
    %8275 = vmatpush1.bf16.msra.mxu0 %v6036
    %8276 = vmatprep.subr.bf16.mxu0 %v6041
    %8277 = vmatpush1.bf16.msra.mxu0 %v6040
    %8278 = vmatprep.subr.bf16.mxu0 %v6045
    %8279 = vmatpush1.bf16.msra.mxu0 %v6044
    %8280 = vmatprep.subr.bf16.mxu0 %v6049
    %8281 = vmatpush1.bf16.msra.mxu0 %v6048
    %8282 = vmatprep.subr.bf16.mxu0 %v6053
    %8283 = vmatpush1.bf16.msra.mxu0 %v6052
    %8284 = vmatprep.subr.bf16.mxu0 %v6057
    %8285 = vmatpush1.bf16.msra.mxu0 %v6056
    %8286 = vmatprep.subr.bf16.mxu0 %v6061
    %8287 = vmatpush1.bf16.msra.mxu0 %v6060
    %8288 = vmatprep.subr.bf16.mxu0 %v6065
    %8289 = vmatpush1.bf16.msra.mxu0 %v6064
    %8290 = vmatprep.subr.bf16.mxu0 %v6069
    %8291 = vmatpush1.bf16.msra.mxu0 %v6068
    %8292 = vmatprep.subr.bf16.mxu0 %v6073
    %8293 = vmatpush1.bf16.msra.mxu0 %v6072
    %8294 = vmatprep.subr.bf16.mxu0 %v6077
    %8295 = vmatpush1.bf16.msra.mxu0 %v6076
    %8296 = vmatprep.subr.bf16.mxu0 %v6081
    %8297 = vmatpush1.bf16.msra.mxu0 %v6080
    %8298 = vmatprep.subr.bf16.mxu0 %v6085
    %8299 = vmatpush1.bf16.msra.mxu0 %v6084
    %8300 = vmatprep.mubr.bf16.mxu0 %v2205
    %8301 = vmatmul.mubr.bf16.gmra.mrb[0].mxu0 %v2204
    %v8302 = vpop.f32.mrb[0].mxu0
    %v8303 = vadd.f32 %v8262, %v8302
    %v8304 = vpop.f32.mrb[0].mxu0
    %v8305 = vadd.f32 %v8264, %v8304
    %v8306 = vpop.f32.mrb[0].mxu0
    %v8307 = vpop.f32.mrb[0].mxu0
    %8308 = vdwg.mxu0
    %8309 = vmatprep.subr.bf16.mxu0 %v6089
    %8310 = vmatpush1.bf16.msra.mxu0 %v6088
    %8311 = vmatprep.subr.bf16.mxu0 %v6093
    %8312 = vmatpush1.bf16.msra.mxu0 %v6092
    %8313 = vmatprep.subr.bf16.mxu0 %v6097
    %8314 = vmatpush1.bf16.msra.mxu0 %v6096
    %8315 = vmatprep.subr.bf16.mxu0 %v6101
    %8316 = vmatpush1.bf16.msra.mxu0 %v6100
    %8317 = vmatprep.subr.bf16.mxu0 %v6105
    %8318 = vmatpush1.bf16.msra.mxu0 %v6104
    %8319 = vmatprep.subr.bf16.mxu0 %v6109
    %8320 = vmatpush1.bf16.msra.mxu0 %v6108
    %8321 = vmatprep.subr.bf16.mxu0 %v6113
    %8322 = vmatpush1.bf16.msra.mxu0 %v6112
    %8323 = vmatprep.subr.bf16.mxu0 %v6117
    %8324 = vmatpush1.bf16.msra.mxu0 %v6116
    %8325 = vmatprep.subr.bf16.mxu0 %v6121
    %8326 = vmatpush1.bf16.msra.mxu0 %v6120
    %8327 = vmatprep.subr.bf16.mxu0 %v6125
    %8328 = vmatpush1.bf16.msra.mxu0 %v6124
    %8329 = vmatprep.subr.bf16.mxu0 %v6129
    %8330 = vmatpush1.bf16.msra.mxu0 %v6128
    %8331 = vmatprep.subr.bf16.mxu0 %v6133
    %8332 = vmatpush1.bf16.msra.mxu0 %v6132
    %8333 = vmatprep.subr.bf16.mxu0 %v6137
    %8334 = vmatpush1.bf16.msra.mxu0 %v6136
    %8335 = vmatprep.subr.bf16.mxu0 %v6141
    %8336 = vmatpush1.bf16.msra.mxu0 %v6140
    %8337 = vmatprep.subr.bf16.mxu0 %v6145
    %8338 = vmatpush1.bf16.msra.mxu0 %v6144
    %8339 = vmatprep.subr.bf16.mxu0 %v6149
    %8340 = vmatpush1.bf16.msra.mxu0 %v6148
    %8341 = vmatprep.mubr.bf16.mxu0 %v2207
    %8342 = vmatmul.mubr.bf16.gmra.mrb[0].mxu0 %v2206
    %v8343 = vpop.f32.mrb[0].mxu0
    %v8344 = vadd.f32 %v8303, %v8343
    %v8345 = vpop.f32.mrb[0].mxu0
    %v8346 = vadd.f32 %v8305, %v8345
    %v8347 = vpop.f32.mrb[0].mxu0
    %v8348 = vpop.f32.mrb[0].mxu0
    %8349 = vdwg.mxu0
    %8350 = vmatprep.subr.bf16.mxu0 %v6153
    %8351 = vmatpush1.bf16.msra.mxu0 %v6152
    %8352 = vmatprep.subr.bf16.mxu0 %v6157
    %8353 = vmatpush1.bf16.msra.mxu0 %v6156
    %8354 = vmatprep.subr.bf16.mxu0 %v6161
    %8355 = vmatpush1.bf16.msra.mxu0 %v6160
    %8356 = vmatprep.subr.bf16.mxu0 %v6165
    %8357 = vmatpush1.bf16.msra.mxu0 %v6164
    %8358 = vmatprep.subr.bf16.mxu0 %v6169
    %8359 = vmatpush1.bf16.msra.mxu0 %v6168
    %8360 = vmatprep.subr.bf16.mxu0 %v6173
    %8361 = vmatpush1.bf16.msra.mxu0 %v6172
    %8362 = vmatprep.subr.bf16.mxu0 %v6177
    %8363 = vmatpush1.bf16.msra.mxu0 %v6176
    %8364 = vmatprep.subr.bf16.mxu0 %v6181
    %8365 = vmatpush1.bf16.msra.mxu0 %v6180
    %8366 = vmatprep.subr.bf16.mxu0 %v6185
    %8367 = vmatpush1.bf16.msra.mxu0 %v6184
    %8368 = vmatprep.subr.bf16.mxu0 %v6189
    %8369 = vmatpush1.bf16.msra.mxu0 %v6188
    %8370 = vmatprep.subr.bf16.mxu0 %v6193
    %8371 = vmatpush1.bf16.msra.mxu0 %v6192
    %8372 = vmatprep.subr.bf16.mxu0 %v6197
    %8373 = vmatpush1.bf16.msra.mxu0 %v6196
    %8374 = vmatprep.subr.bf16.mxu0 %v6201
    %8375 = vmatpush1.bf16.msra.mxu0 %v6200
    %8376 = vmatprep.subr.bf16.mxu0 %v6205
    %8377 = vmatpush1.bf16.msra.mxu0 %v6204
    %8378 = vmatprep.subr.bf16.mxu0 %v6209
    %8379 = vmatpush1.bf16.msra.mxu0 %v6208
    %8380 = vmatprep.subr.bf16.mxu0 %v6213
    %8381 = vmatpush1.bf16.msra.mxu0 %v6212
    %8382 = vmatprep.mubr.bf16.mxu0 %v2209
    %8383 = vmatmul.mubr.bf16.gmra.mrb[0].mxu0 %v2208
    %v8384 = vpop.f32.mrb[0].mxu0
    %v8385 = vadd.f32 %v8344, %v8384
    %v8386 = vpop.f32.mrb[0].mxu0
    %v8387 = vadd.f32 %v8346, %v8386
    %v8388 = vpop.f32.mrb[0].mxu0
    %v8389 = vpop.f32.mrb[0].mxu0
    %8390 = vdwg.mxu0
    %8391 = vmatprep.subr.bf16.mxu0 %v6217
    %8392 = vmatpush1.bf16.msra.mxu0 %v6216
    %8393 = vmatprep.subr.bf16.mxu0 %v6221
    %8394 = vmatpush1.bf16.msra.mxu0 %v6220
    %8395 = vmatprep.subr.bf16.mxu0 %v6225
    %8396 = vmatpush1.bf16.msra.mxu0 %v6224
    %8397 = vmatprep.subr.bf16.mxu0 %v6229
    %8398 = vmatpush1.bf16.msra.mxu0 %v6228
    %8399 = vmatprep.subr.bf16.mxu0 %v6233
    %8400 = vmatpush1.bf16.msra.mxu0 %v6232
    %8401 = vmatprep.subr.bf16.mxu0 %v6237
    %8402 = vmatpush1.bf16.msra.mxu0 %v6236
    %8403 = vmatprep.subr.bf16.mxu0 %v6241
    %8404 = vmatpush1.bf16.msra.mxu0 %v6240
    %8405 = vmatprep.subr.bf16.mxu0 %v6245
    %8406 = vmatpush1.bf16.msra.mxu0 %v6244
    %8407 = vmatprep.subr.bf16.mxu0 %v6249
    %8408 = vmatpush1.bf16.msra.mxu0 %v6248
    %8409 = vmatprep.subr.bf16.mxu0 %v6253
    %8410 = vmatpush1.bf16.msra.mxu0 %v6252
    %8411 = vmatprep.subr.bf16.mxu0 %v6257
    %8412 = vmatpush1.bf16.msra.mxu0 %v6256
    %8413 = vmatprep.subr.bf16.mxu0 %v6261
    %8414 = vmatpush1.bf16.msra.mxu0 %v6260
    %8415 = vmatprep.subr.bf16.mxu0 %v6265
    %8416 = vmatpush1.bf16.msra.mxu0 %v6264
    %8417 = vmatprep.subr.bf16.mxu0 %v6269
    %8418 = vmatpush1.bf16.msra.mxu0 %v6268
    %8419 = vmatprep.subr.bf16.mxu0 %v6273
    %8420 = vmatpush1.bf16.msra.mxu0 %v6272
    %8421 = vmatprep.subr.bf16.mxu0 %v6277
    %8422 = vmatpush1.bf16.msra.mxu0 %v6276
    %8423 = vmatprep.mubr.bf16.mxu0 %v2211
    %8424 = vmatmul.mubr.bf16.gmra.mrb[0].mxu0 %v2210
    %v8425 = vpop.f32.mrb[0].mxu0
    %v8426 = vadd.f32 %v8385, %v8425
    %v8427 = vpop.f32.mrb[0].mxu0
    %v8428 = vadd.f32 %v8387, %v8427
    %v8429 = vpop.f32.mrb[0].mxu0
    %v8430 = vpop.f32.mrb[0].mxu0
    %8431 = vdwg.mxu0
    %8432 = vmatprep.subr.bf16.mxu0 %v6281
    %8433 = vmatpush1.bf16.msra.mxu0 %v6280
    %8434 = vmatprep.subr.bf16.mxu0 %v6285
    %8435 = vmatpush1.bf16.msra.mxu0 %v6284
    %8436 = vmatprep.subr.bf16.mxu0 %v6289
    %8437 = vmatpush1.bf16.msra.mxu0 %v6288
    %8438 = vmatprep.subr.bf16.mxu0 %v6293
    %8439 = vmatpush1.bf16.msra.mxu0 %v6292
    %8440 = vmatprep.subr.bf16.mxu0 %v6297
    %8441 = vmatpush1.bf16.msra.mxu0 %v6296
    %8442 = vmatprep.subr.bf16.mxu0 %v6301
    %8443 = vmatpush1.bf16.msra.mxu0 %v6300
    %8444 = vmatprep.subr.bf16.mxu0 %v6305
    %8445 = vmatpush1.bf16.msra.mxu0 %v6304
    %8446 = vmatprep.subr.bf16.mxu0 %v6309
    %8447 = vmatpush1.bf16.msra.mxu0 %v6308
    %8448 = vmatprep.subr.bf16.mxu0 %v6313
    %8449 = vmatpush1.bf16.msra.mxu0 %v6312
    %8450 = vmatprep.subr.bf16.mxu0 %v6317
    %8451 = vmatpush1.bf16.msra.mxu0 %v6316
    %8452 = vmatprep.subr.bf16.mxu0 %v6321
    %8453 = vmatpush1.bf16.msra.mxu0 %v6320
    %8454 = vmatprep.subr.bf16.mxu0 %v6325
    %8455 = vmatpush1.bf16.msra.mxu0 %v6324
    %8456 = vmatprep.subr.bf16.mxu0 %v6329
    %8457 = vmatpush1.bf16.msra.mxu0 %v6328
    %8458 = vmatprep.subr.bf16.mxu0 %v6333
    %8459 = vmatpush1.bf16.msra.mxu0 %v6332
    %8460 = vmatprep.subr.bf16.mxu0 %v6337
    %8461 = vmatpush1.bf16.msra.mxu0 %v6336
    %8462 = vmatprep.subr.bf16.mxu0 %v6341
    %8463 = vmatpush1.bf16.msra.mxu0 %v6340
    %8464 = vmatprep.mubr.bf16.mxu0 %v2213
    %8465 = vmatmul.mubr.bf16.gmra.mrb[0].mxu0 %v2212
    %v8466 = vpop.f32.mrb[0].mxu0
    %v8467 = vadd.f32 %v8426, %v8466
    %v8468 = vpop.f32.mrb[0].mxu0
    %v8469 = vadd.f32 %v8428, %v8468
    %v8470 = vpop.f32.mrb[0].mxu0
    %v8471 = vpop.f32.mrb[0].mxu0
    %8472 = vdwg.mxu0
    %8473 = vmatprep.subr.bf16.mxu0 %v6345
    %8474 = vmatpush1.bf16.msra.mxu0 %v6344
    %8475 = vmatprep.subr.bf16.mxu0 %v6349
    %8476 = vmatpush1.bf16.msra.mxu0 %v6348
    %8477 = vmatprep.subr.bf16.mxu0 %v6353
    %8478 = vmatpush1.bf16.msra.mxu0 %v6352
    %8479 = vmatprep.subr.bf16.mxu0 %v6357
    %8480 = vmatpush1.bf16.msra.mxu0 %v6356
    %8481 = vmatprep.subr.bf16.mxu0 %v6361
    %8482 = vmatpush1.bf16.msra.mxu0 %v6360
    %8483 = vmatprep.subr.bf16.mxu0 %v6365
    %8484 = vmatpush1.bf16.msra.mxu0 %v6364
    %8485 = vmatprep.subr.bf16.mxu0 %v6369
    %8486 = vmatpush1.bf16.msra.mxu0 %v6368
    %8487 = vmatprep.subr.bf16.mxu0 %v6373
    %8488 = vmatpush1.bf16.msra.mxu0 %v6372
    %8489 = vmatprep.subr.bf16.mxu0 %v6377
    %8490 = vmatpush1.bf16.msra.mxu0 %v6376
    %8491 = vmatprep.subr.bf16.mxu0 %v6381
    %8492 = vmatpush1.bf16.msra.mxu0 %v6380
    %8493 = vmatprep.subr.bf16.mxu0 %v6385
    %8494 = vmatpush1.bf16.msra.mxu0 %v6384
    %8495 = vmatprep.subr.bf16.mxu0 %v6389
    %8496 = vmatpush1.bf16.msra.mxu0 %v6388
    %8497 = vmatprep.subr.bf16.mxu0 %v6393
    %8498 = vmatpush1.bf16.msra.mxu0 %v6392
    %8499 = vmatprep.subr.bf16.mxu0 %v6397
    %8500 = vmatpush1.bf16.msra.mxu0 %v6396
    %8501 = vmatprep.subr.bf16.mxu0 %v6401
    %8502 = vmatpush1.bf16.msra.mxu0 %v6400
    %8503 = vmatprep.subr.bf16.mxu0 %v6405
    %8504 = vmatpush1.bf16.msra.mxu0 %v6404
    %8505 = vmatprep.mubr.bf16.mxu0 %v2215
    %8506 = vmatmul.mubr.bf16.gmra.mrb[0].mxu0 %v2214
    %v8507 = vpop.f32.mrb[0].mxu0
    %v8508 = vadd.f32 %v8467, %v8507
    %v8509 = vpop.f32.mrb[0].mxu0
    %v8510 = vadd.f32 %v8469, %v8509
    %v8511 = vpop.f32.mrb[0].mxu0
    %v8512 = vpop.f32.mrb[0].mxu0
    %8513 = vdwg.mxu0
    %8514 = vmatprep.subr.bf16.mxu0 %v6409
    %8515 = vmatpush1.bf16.msra.mxu0 %v6408
    %8516 = vmatprep.subr.bf16.mxu0 %v6413
    %8517 = vmatpush1.bf16.msra.mxu0 %v6412
    %8518 = vmatprep.subr.bf16.mxu0 %v6417
    %8519 = vmatpush1.bf16.msra.mxu0 %v6416
    %8520 = vmatprep.subr.bf16.mxu0 %v6421
    %8521 = vmatpush1.bf16.msra.mxu0 %v6420
    %8522 = vmatprep.subr.bf16.mxu0 %v6425
    %8523 = vmatpush1.bf16.msra.mxu0 %v6424
    %8524 = vmatprep.subr.bf16.mxu0 %v6429
    %8525 = vmatpush1.bf16.msra.mxu0 %v6428
    %8526 = vmatprep.subr.bf16.mxu0 %v6433
    %8527 = vmatpush1.bf16.msra.mxu0 %v6432
    %8528 = vmatprep.subr.bf16.mxu0 %v6437
    %8529 = vmatpush1.bf16.msra.mxu0 %v6436
    %8530 = vmatprep.subr.bf16.mxu0 %v6441
    %8531 = vmatpush1.bf16.msra.mxu0 %v6440
    %8532 = vmatprep.subr.bf16.mxu0 %v6445
    %8533 = vmatpush1.bf16.msra.mxu0 %v6444
    %8534 = vmatprep.subr.bf16.mxu0 %v6449
    %8535 = vmatpush1.bf16.msra.mxu0 %v6448
    %8536 = vmatprep.subr.bf16.mxu0 %v6453
    %8537 = vmatpush1.bf16.msra.mxu0 %v6452
    %8538 = vmatprep.subr.bf16.mxu0 %v6457
    %8539 = vmatpush1.bf16.msra.mxu0 %v6456
    %8540 = vmatprep.subr.bf16.mxu0 %v6461
    %8541 = vmatpush1.bf16.msra.mxu0 %v6460
    %8542 = vmatprep.subr.bf16.mxu0 %v6465
    %8543 = vmatpush1.bf16.msra.mxu0 %v6464
    %8544 = vmatprep.subr.bf16.mxu0 %v6469
    %8545 = vmatpush1.bf16.msra.mxu0 %v6468
    %8546 = vmatprep.mubr.bf16.mxu0 %v2217
    %8547 = vmatmul.mubr.bf16.gmra.mrb[0].mxu0 %v2216
    %v8548 = vpop.f32.mrb[0].mxu0
    %v8549 = vadd.f32 %v8508, %v8548
    %v8550 = vpop.f32.mrb[0].mxu0
    %v8551 = vadd.f32 %v8510, %v8550
    %v8552 = vpop.f32.mrb[0].mxu0
    %v8553 = vpop.f32.mrb[0].mxu0
    %8554 = vdwg.mxu0
    %8555 = vmatprep.subr.bf16.mxu0 %v6473
    %8556 = vmatpush1.bf16.msra.mxu0 %v6472
    %8557 = vmatprep.subr.bf16.mxu0 %v6477
    %8558 = vmatpush1.bf16.msra.mxu0 %v6476
    %8559 = vmatprep.subr.bf16.mxu0 %v6481
    %8560 = vmatpush1.bf16.msra.mxu0 %v6480
    %8561 = vmatprep.subr.bf16.mxu0 %v6485
    %8562 = vmatpush1.bf16.msra.mxu0 %v6484
    %8563 = vmatprep.subr.bf16.mxu0 %v6489
    %8564 = vmatpush1.bf16.msra.mxu0 %v6488
    %8565 = vmatprep.subr.bf16.mxu0 %v6493
    %8566 = vmatpush1.bf16.msra.mxu0 %v6492
    %8567 = vmatprep.subr.bf16.mxu0 %v6497
    %8568 = vmatpush1.bf16.msra.mxu0 %v6496
    %8569 = vmatprep.subr.bf16.mxu0 %v6501
    %8570 = vmatpush1.bf16.msra.mxu0 %v6500
    %8571 = vmatprep.subr.bf16.mxu0 %v6505
    %8572 = vmatpush1.bf16.msra.mxu0 %v6504
    %8573 = vmatprep.subr.bf16.mxu0 %v6509
    %8574 = vmatpush1.bf16.msra.mxu0 %v6508
    %8575 = vmatprep.subr.bf16.mxu0 %v6513
    %8576 = vmatpush1.bf16.msra.mxu0 %v6512
    %8577 = vmatprep.subr.bf16.mxu0 %v6517
    %8578 = vmatpush1.bf16.msra.mxu0 %v6516
    %8579 = vmatprep.subr.bf16.mxu0 %v6521
    %8580 = vmatpush1.bf16.msra.mxu0 %v6520
    %8581 = vmatprep.subr.bf16.mxu0 %v6525
    %8582 = vmatpush1.bf16.msra.mxu0 %v6524
    %8583 = vmatprep.subr.bf16.mxu0 %v6529
    %8584 = vmatpush1.bf16.msra.mxu0 %v6528
    %8585 = vmatprep.subr.bf16.mxu0 %v6533
    %8586 = vmatpush1.bf16.msra.mxu0 %v6532
    %8587 = vmatprep.mubr.bf16.mxu0 %v2219
    %8588 = vmatmul.mubr.bf16.gmra.mrb[0].mxu0 %v2218
    %v8589 = vpop.f32.mrb[0].mxu0
    %v8590 = vadd.f32 %v8549, %v8589
    %v8591 = vpop.f32.mrb[0].mxu0
    %v8592 = vadd.f32 %v8551, %v8591
    %v8593 = vpop.f32.mrb[0].mxu0
    %v8594 = vpop.f32.mrb[0].mxu0
    %8595 = vdwg.mxu0
    %8596 = vmatprep.subr.bf16.mxu0 %v6537
    %8597 = vmatpush1.bf16.msra.mxu0 %v6536
    %8598 = vmatprep.subr.bf16.mxu0 %v6541
    %8599 = vmatpush1.bf16.msra.mxu0 %v6540
    %8600 = vmatprep.subr.bf16.mxu0 %v6545
    %8601 = vmatpush1.bf16.msra.mxu0 %v6544
    %8602 = vmatprep.subr.bf16.mxu0 %v6549
    %8603 = vmatpush1.bf16.msra.mxu0 %v6548
    %8604 = vmatprep.subr.bf16.mxu0 %v6553
    %8605 = vmatpush1.bf16.msra.mxu0 %v6552
    %8606 = vmatprep.subr.bf16.mxu0 %v6557
    %8607 = vmatpush1.bf16.msra.mxu0 %v6556
    %8608 = vmatprep.subr.bf16.mxu0 %v6561
    %8609 = vmatpush1.bf16.msra.mxu0 %v6560
    %8610 = vmatprep.subr.bf16.mxu0 %v6565
    %8611 = vmatpush1.bf16.msra.mxu0 %v6564
    %8612 = vmatprep.subr.bf16.mxu0 %v6569
    %8613 = vmatpush1.bf16.msra.mxu0 %v6568
    %8614 = vmatprep.subr.bf16.mxu0 %v6573
    %8615 = vmatpush1.bf16.msra.mxu0 %v6572
    %8616 = vmatprep.subr.bf16.mxu0 %v6577
    %8617 = vmatpush1.bf16.msra.mxu0 %v6576
    %8618 = vmatprep.subr.bf16.mxu0 %v6581
    %8619 = vmatpush1.bf16.msra.mxu0 %v6580
    %8620 = vmatprep.subr.bf16.mxu0 %v6585
    %8621 = vmatpush1.bf16.msra.mxu0 %v6584
    %8622 = vmatprep.subr.bf16.mxu0 %v6589
    %8623 = vmatpush1.bf16.msra.mxu0 %v6588
    %8624 = vmatprep.subr.bf16.mxu0 %v6593
    %8625 = vmatpush1.bf16.msra.mxu0 %v6592
    %8626 = vmatprep.subr.bf16.mxu0 %v6597
    %8627 = vmatpush1.bf16.msra.mxu0 %v6596
    %8628 = vmatprep.mubr.bf16.mxu0 %v2221
    %8629 = vmatmul.mubr.bf16.gmra.mrb[0].mxu0 %v2220
    %v8630 = vpop.f32.mrb[0].mxu0
    %v8631 = vadd.f32 %v8590, %v8630
    %v8632 = vpop.f32.mrb[0].mxu0
    %v8633 = vadd.f32 %v8592, %v8632
    %v8634 = vpop.f32.mrb[0].mxu0
    %v8635 = vpop.f32.mrb[0].mxu0
    %8636 = vdwg.mxu0
    %8637 = vmatprep.subr.bf16.mxu0 %v6601
    %8638 = vmatpush1.bf16.msra.mxu0 %v6600
    %8639 = vmatprep.subr.bf16.mxu0 %v6605
    %8640 = vmatpush1.bf16.msra.mxu0 %v6604
    %8641 = vmatprep.subr.bf16.mxu0 %v6609
    %8642 = vmatpush1.bf16.msra.mxu0 %v6608
    %8643 = vmatprep.subr.bf16.mxu0 %v6613
    %8644 = vmatpush1.bf16.msra.mxu0 %v6612
    %8645 = vmatprep.subr.bf16.mxu0 %v6617
    %8646 = vmatpush1.bf16.msra.mxu0 %v6616
    %8647 = vmatprep.subr.bf16.mxu0 %v6621
    %8648 = vmatpush1.bf16.msra.mxu0 %v6620
    %8649 = vmatprep.subr.bf16.mxu0 %v6625
    %8650 = vmatpush1.bf16.msra.mxu0 %v6624
    %8651 = vmatprep.subr.bf16.mxu0 %v6629
    %8652 = vmatpush1.bf16.msra.mxu0 %v6628
    %8653 = vmatprep.subr.bf16.mxu0 %v6633
    %8654 = vmatpush1.bf16.msra.mxu0 %v6632
    %8655 = vmatprep.subr.bf16.mxu0 %v6637
    %8656 = vmatpush1.bf16.msra.mxu0 %v6636
    %8657 = vmatprep.subr.bf16.mxu0 %v6641
    %8658 = vmatpush1.bf16.msra.mxu0 %v6640
    %8659 = vmatprep.subr.bf16.mxu0 %v6645
    %8660 = vmatpush1.bf16.msra.mxu0 %v6644
    %8661 = vmatprep.subr.bf16.mxu0 0
    %8662 = vmatpush1.bf16.msra.mxu0 0
    %8663 = vmatprep.subr.bf16.mxu0 0
    %8664 = vmatpush1.bf16.msra.mxu0 0
    %8665 = vmatprep.subr.bf16.mxu0 0
    %8666 = vmatpush1.bf16.msra.mxu0 0
    %8667 = vmatprep.subr.bf16.mxu0 0
    %8668 = vmatpush1.bf16.msra.mxu0 0
    %8669 = vmatprep.mubr.bf16.mxu0 %v7528
    %8670 = vmatmul.mubr.bf16.gmra.mrb[0].mxu0 %v2222
    %v8671 = vpop.f32.mrb[0].mxu0
    %v8672 = vadd.f32 %v8631, %v8671
    %v8673 = vpop.f32.mrb[0].mxu0
    %v8674 = vadd.f32 %v8633, %v8673
    %v8675 = vpop.f32.mrb[0].mxu0
    %v8676 = vpop.f32.mrb[0].mxu0
    %8677 = vdwg.mxu0
    %v8678 = vmax.f32 %v8098, 0.0
    %v8679 = vmax.f32 %v8100, 0.0
    %v8680 = vmax.f32 %v8672, 0.0
    %v8681 = vmax.f32 %v8674, 0.0
    %v8682 = vpack.c.bf16 %v8678, %v8678
    %v8683 = vpack.c.bf16 %v8679, %v8679
    %v8684 = vpack.c.bf16 %v8680, %v8680
    %v8685 = vpack.c.bf16 %v8681, %v8681
    %v8686 = vld [vmem:[%s9] sm:$0xf]
    %v8687 = vld [vmem:[%s9 + $0x4] sm:$0xf]
    %v8688 = vld [vmem:[%s9 + $0x8] sm:$0xf]
    %v8689 = vld [vmem:[%s9 + $0xc] sm:$0xf]
    %v8690 = vld [vmem:[%s9 + $0x10] sm:$0xf]
    %v8691 = vld [vmem:[%s9 + $0x14] sm:$0xf]
    %v8692 = vld [vmem:[%s9 + $0x18] sm:$0xf]
    %v8693 = vld [vmem:[%s9 + $0x1c] sm:$0xf]
    %v8694 = vld [vmem:[%s9 + $0x20] sm:$0xf]
    %v8695 = vld [vmem:[%s9 + $0x24] sm:$0xf]
    %v8696 = vld [vmem:[%s9 + $0x28] sm:$0xf]
    %v8697 = vld [vmem:[%s9 + $0x2c] sm:$0xf]
    %v8698 = vld [vmem:[%s9 + $0x30] sm:$0xf]
    %v8699 = vld [vmem:[%s9 + $0x34] sm:$0xf]
    %v8700 = vld [vmem:[%s9 + $0x38] sm:$0xf]
    %v8701 = vld [vmem:[%s9 + $0x3c] sm:$0xf]
    %v8702 = vld [vmem:[%s9 + $0x40] sm:$0xf]
    %v8703 = vld [vmem:[%s9 + $0x44] sm:$0xf]
    %v8704 = vld [vmem:[%s9 + $0x48] sm:$0xf]
    %v8705 = vld [vmem:[%s9 + $0x4c] sm:$0xf]
    %v8706 = vld [vmem:[%s9 + $0x50] sm:$0xf]
    %v8707 = vld [vmem:[%s9 + $0x54] sm:$0xf]
    %v8708 = vld [vmem:[%s9 + $0x58] sm:$0xf]
    %v8709 = vld [vmem:[%s9 + $0x5c] sm:$0xf]
    %v8710 = vld [vmem:[%s9 + $0x60] sm:$0xf]
    %v8711 = vld [vmem:[%s9 + $0x64] sm:$0xf]
    %v8712 = vld [vmem:[%s9 + $0x68] sm:$0xf]
    %v8713 = vld [vmem:[%s9 + $0x6c] sm:$0xf]
    %v8714 = vld [vmem:[%s9 + $0x70] sm:$0xf]
    %v8715 = vld [vmem:[%s9 + $0x74] sm:$0xf]
    %v8716 = vld [vmem:[%s9 + $0x78] sm:$0xf]
    %v8717 = vld [vmem:[%s9 + $0x7c] sm:$0xf]
    %v8718 = vld [vmem:[%s9 + $0x80] sm:$0xf]
    %v8719 = vld [vmem:[%s9 + $0x84] sm:$0xf]
    %v8720 = vld [vmem:[%s9 + $0x88] sm:$0xf]
    %v8721 = vld [vmem:[%s9 + $0x8c] sm:$0xf]
    %v8722 = vld [vmem:[%s9 + $0x90] sm:$0xf]
    %v8723 = vld [vmem:[%s9 + $0x94] sm:$0xf]
    %v8724 = vld [vmem:[%s9 + $0x98] sm:$0xf]
    %v8725 = vld [vmem:[%s9 + $0x9c] sm:$0xf]
    %v8726 = vld [vmem:[%s9 + $0xa0] sm:$0xf]
    %v8727 = vld [vmem:[%s9 + $0xa4] sm:$0xf]
    %v8728 = vld [vmem:[%s9 + $0xa8] sm:$0xf]
    %v8729 = vld [vmem:[%s9 + $0xac] sm:$0xf]
    %v8730 = vld [vmem:[%s9 + $0xb0] sm:$0xf]
    %v8731 = vld [vmem:[%s9 + $0xb4] sm:$0xf]
    %v8732 = vld [vmem:[%s9 + $0xb8] sm:$0xf]
    %v8733 = vld [vmem:[%s9 + $0xbc] sm:$0xf]
    %v8734 = vld [vmem:[%s9 + $0xc0] sm:$0xf]
    %v8735 = vld [vmem:[%s9 + $0xc4] sm:$0xf]
    %v8736 = vld [vmem:[%s9 + $0xc8] sm:$0xf]
    %v8737 = vld [vmem:[%s9 + $0xcc] sm:$0xf]
    %v8738 = vld [vmem:[%s9 + $0xd0] sm:$0xf]
    %v8739 = vld [vmem:[%s9 + $0xd4] sm:$0xf]
    %v8740 = vld [vmem:[%s9 + $0xd8] sm:$0xf]
    %v8741 = vld [vmem:[%s9 + $0xdc] sm:$0xf]
    %v8742 = vld [vmem:[%s9 + $0xe0] sm:$0xf]
    %v8743 = vld [vmem:[%s9 + $0xe4] sm:$0xf]
    %v8744 = vld [vmem:[%s9 + $0xe8] sm:$0xf]
    %v8745 = vld [vmem:[%s9 + $0xec] sm:$0xf]
    %v8746 = vld [vmem:[%s9 + $0xf0] sm:$0xf]
    %v8747 = vld [vmem:[%s9 + $0xf4] sm:$0xf]
    %v8748 = vld [vmem:[%s9 + $0xf8] sm:$0xf]
    %v8749 = vld [vmem:[%s9 + $0xfc] sm:$0xf]
    %v8750 = vld [vmem:[%s10] sm:$0x1]
    %v8752 = vlaneseq
    %v8753 = vshrl.u32 %v8752, 7
    %v8754 = vsub.s32 0, %v8753
    %v8755 = vrot.slane %v8750, %v8754
    %v8821 = vunpack.c.l.b16 %v8686
    %v8822 = vunpack.c.l.b16 %v8687
    %v8823 = vunpack.c.l.b16 %v8688
    %v8824 = vunpack.c.l.b16 %v8689
    %v8825 = vunpack.c.l.b16 %v8690
    %v8826 = vunpack.c.l.b16 %v8691
    %v8827 = vunpack.c.l.b16 %v8692
    %v8828 = vunpack.c.l.b16 %v8693
    %v8829 = vunpack.c.l.b16 %v8694
    %v8830 = vunpack.c.l.b16 %v8695
    %v8831 = vunpack.c.l.b16 %v8696
    %v8832 = vunpack.c.l.b16 %v8697
    %v8833 = vunpack.c.l.b16 %v8698
    %v8834 = vunpack.c.l.b16 %v8699
    %v8835 = vunpack.c.l.b16 %v8700
    %v8836 = vunpack.c.l.b16 %v8701
    %v8837 = vunpack.c.l.b16 %v8702
    %v8838 = vunpack.c.l.b16 %v8703
    %v8839 = vunpack.c.l.b16 %v8704
    %v8840 = vunpack.c.l.b16 %v8705
    %v8841 = vunpack.c.l.b16 %v8706
    %v8842 = vunpack.c.l.b16 %v8707
    %v8843 = vunpack.c.l.b16 %v8708
    %v8844 = vunpack.c.l.b16 %v8709
    %v8845 = vunpack.c.l.b16 %v8710
    %v8846 = vunpack.c.l.b16 %v8711
    %v8847 = vunpack.c.l.b16 %v8712
    %v8848 = vunpack.c.l.b16 %v8713
    %v8849 = vunpack.c.l.b16 %v8714
    %v8850 = vunpack.c.l.b16 %v8715
    %v8851 = vunpack.c.l.b16 %v8716
    %v8852 = vunpack.c.l.b16 %v8717
    %v8853 = vunpack.c.l.b16 %v8718
    %v8854 = vunpack.c.l.b16 %v8719
    %v8855 = vunpack.c.l.b16 %v8720
    %v8856 = vunpack.c.l.b16 %v8721
    %v8857 = vunpack.c.l.b16 %v8722
    %v8858 = vunpack.c.l.b16 %v8723
    %v8859 = vunpack.c.l.b16 %v8724
    %v8860 = vunpack.c.l.b16 %v8725
    %v8861 = vunpack.c.l.b16 %v8726
    %v8862 = vunpack.c.l.b16 %v8727
    %v8863 = vunpack.c.l.b16 %v8728
    %v8864 = vunpack.c.l.b16 %v8729
    %v8865 = vunpack.c.l.b16 %v8730
    %v8866 = vunpack.c.l.b16 %v8731
    %v8867 = vunpack.c.l.b16 %v8732
    %v8868 = vunpack.c.l.b16 %v8733
    %v8869 = vunpack.c.l.b16 %v8734
    %v8870 = vunpack.c.l.b16 %v8735
    %v8871 = vunpack.c.l.b16 %v8736
    %v8872 = vunpack.c.l.b16 %v8737
    %v8873 = vunpack.c.l.b16 %v8738
    %v8874 = vunpack.c.l.b16 %v8739
    %v8875 = vunpack.c.l.b16 %v8740
    %v8876 = vunpack.c.l.b16 %v8741
    %v8877 = vunpack.c.l.b16 %v8742
    %v8878 = vunpack.c.l.b16 %v8743
    %v8879 = vunpack.c.l.b16 %v8744
    %v8880 = vunpack.c.l.b16 %v8745
    %v8881 = vunpack.c.l.b16 %v8746
    %v8882 = vunpack.c.l.b16 %v8747
    %v8883 = vunpack.c.l.b16 %v8748
    %v8884 = vunpack.c.l.b16 %v8749
    %v8885 = vpack.c.b16 %v8822, %v8821
    %v8886 = vpack.c.b16 %v8824, %v8823
    %v8887 = vpack.c.b16 %v8826, %v8825
    %v8888 = vpack.c.b16 %v8828, %v8827
    %v8889 = vpack.c.b16 %v8830, %v8829
    %v8890 = vpack.c.b16 %v8832, %v8831
    %v8891 = vpack.c.b16 %v8834, %v8833
    %v8892 = vpack.c.b16 %v8836, %v8835
    %v8893 = vpack.c.b16 %v8838, %v8837
    %v8894 = vpack.c.b16 %v8840, %v8839
    %v8895 = vpack.c.b16 %v8842, %v8841
    %v8896 = vpack.c.b16 %v8844, %v8843
    %v8897 = vpack.c.b16 %v8846, %v8845
    %v8898 = vpack.c.b16 %v8848, %v8847
    %v8899 = vpack.c.b16 %v8850, %v8849
    %v8900 = vpack.c.b16 %v8852, %v8851
    %v8901 = vpack.c.b16 %v8854, %v8853
    %v8902 = vpack.c.b16 %v8856, %v8855
    %v8903 = vpack.c.b16 %v8858, %v8857
    %v8904 = vpack.c.b16 %v8860, %v8859
    %v8905 = vpack.c.b16 %v8862, %v8861
    %v8906 = vpack.c.b16 %v8864, %v8863
    %v8907 = vpack.c.b16 %v8866, %v8865
    %v8908 = vpack.c.b16 %v8868, %v8867
    %v8909 = vpack.c.b16 %v8870, %v8869
    %v8910 = vpack.c.b16 %v8872, %v8871
    %v8911 = vpack.c.b16 %v8874, %v8873
    %v8912 = vpack.c.b16 %v8876, %v8875
    %v8913 = vpack.c.b16 %v8878, %v8877
    %v8914 = vpack.c.b16 %v8880, %v8879
    %v8915 = vpack.c.b16 %v8882, %v8881
    %v8916 = vpack.c.b16 %v8884, %v8883
    %8949 = vmatprep.subr.bf16.mxu0 0
    %8950 = vmatpush1.bf16.msra.mxu0 %v8885
    %8951 = vmatprep.subr.bf16.mxu0 0
    %8952 = vmatpush1.bf16.msra.mxu0 %v8886
    %8953 = vmatprep.subr.bf16.mxu0 0
    %8954 = vmatpush1.bf16.msra.mxu0 %v8887
    %8955 = vmatprep.subr.bf16.mxu0 0
    %8956 = vmatpush1.bf16.msra.mxu0 %v8888
    %8957 = vmatprep.subr.bf16.mxu0 0
    %8958 = vmatpush1.bf16.msra.mxu0 %v8889
    %8959 = vmatprep.subr.bf16.mxu0 0
    %8960 = vmatpush1.bf16.msra.mxu0 %v8890
    %8961 = vmatprep.subr.bf16.mxu0 0
    %8962 = vmatpush1.bf16.msra.mxu0 %v8891
    %8963 = vmatprep.subr.bf16.mxu0 0
    %8964 = vmatpush1.bf16.msra.mxu0 %v8892
    %8965 = vmatprep.subr.bf16.mxu0 0
    %8966 = vmatpush1.bf16.msra.mxu0 %v8893
    %8967 = vmatprep.subr.bf16.mxu0 0
    %8968 = vmatpush1.bf16.msra.mxu0 %v8894
    %8969 = vmatprep.subr.bf16.mxu0 0
    %8970 = vmatpush1.bf16.msra.mxu0 %v8895
    %8971 = vmatprep.subr.bf16.mxu0 0
    %8972 = vmatpush1.bf16.msra.mxu0 %v8896
    %8973 = vmatprep.subr.bf16.mxu0 0
    %8974 = vmatpush1.bf16.msra.mxu0 %v8897
    %8975 = vmatprep.subr.bf16.mxu0 0
    %8976 = vmatpush1.bf16.msra.mxu0 %v8898
    %8977 = vmatprep.subr.bf16.mxu0 0
    %8978 = vmatpush1.bf16.msra.mxu0 %v8899
    %8979 = vmatprep.subr.bf16.mxu0 0
    %8980 = vmatpush1.bf16.msra.mxu0 %v8900
    %8981 = vmatprep.mubr.bf16.mxu0 %v8683
    %8982 = vmatmul.mubr.bf16.gmra.mrb[0].mxu0 %v8682
    %v8983 = vpop.f32.mrb[0].mxu0
    %v8984 = vadd.f32 %v8755, %v8983
    %v8985 = vpop.f32.mrb[0].mxu0
    %v8986 = vpop.f32.mrb[0].mxu0
    %v8987 = vpop.f32.mrb[0].mxu0
    %8988 = vdwg.mxu0
    %8989 = vmatprep.subr.bf16.mxu0 0
    %8990 = vmatpush1.bf16.msra.mxu0 %v8901
    %8991 = vmatprep.subr.bf16.mxu0 0
    %8992 = vmatpush1.bf16.msra.mxu0 %v8902
    %8993 = vmatprep.subr.bf16.mxu0 0
    %8994 = vmatpush1.bf16.msra.mxu0 %v8903
    %8995 = vmatprep.subr.bf16.mxu0 0
    %8996 = vmatpush1.bf16.msra.mxu0 %v8904
    %8997 = vmatprep.subr.bf16.mxu0 0
    %8998 = vmatpush1.bf16.msra.mxu0 %v8905
    %8999 = vmatprep.subr.bf16.mxu0 0
    %9000 = vmatpush1.bf16.msra.mxu0 %v8906
    %9001 = vmatprep.subr.bf16.mxu0 0
    %9002 = vmatpush1.bf16.msra.mxu0 %v8907
    %9003 = vmatprep.subr.bf16.mxu0 0
    %9004 = vmatpush1.bf16.msra.mxu0 %v8908
    %9005 = vmatprep.subr.bf16.mxu0 0
    %9006 = vmatpush1.bf16.msra.mxu0 %v8909
    %9007 = vmatprep.subr.bf16.mxu0 0
    %9008 = vmatpush1.bf16.msra.mxu0 %v8910
    %9009 = vmatprep.subr.bf16.mxu0 0
    %9010 = vmatpush1.bf16.msra.mxu0 %v8911
    %9011 = vmatprep.subr.bf16.mxu0 0
    %9012 = vmatpush1.bf16.msra.mxu0 %v8912
    %9013 = vmatprep.subr.bf16.mxu0 0
    %9014 = vmatpush1.bf16.msra.mxu0 %v8913
    %9015 = vmatprep.subr.bf16.mxu0 0
    %9016 = vmatpush1.bf16.msra.mxu0 %v8914
    %9017 = vmatprep.subr.bf16.mxu0 0
    %9018 = vmatpush1.bf16.msra.mxu0 %v8915
    %9019 = vmatprep.subr.bf16.mxu0 0
    %9020 = vmatpush1.bf16.msra.mxu0 %v8916
    %9021 = vmatprep.mubr.bf16.mxu0 %v8685
    %9022 = vmatmul.mubr.bf16.gmra.mrb[0].mxu0 %v8684
    %v9023 = vpop.f32.mrb[0].mxu0
    %v9024 = vadd.f32 %v8984, %v9023
    %v9025 = vpop.f32.mrb[0].mxu0
    %v9026 = vpop.f32.mrb[0].mxu0
    %v9027 = vpop.f32.mrb[0].mxu0
    %9028 = vdwg.mxu0
    %v9029 = vmax.f32 %v9024, 0.0
    %v9030 = vpack.c.bf16 %v9029, %v9029
    %v9031 = vld [vmem:[%s11] sm:$0xf]
    %v9032 = vld [vmem:[%s11 + $0x4] sm:$0xf]
    %v9033 = vld [vmem:[%s11 + $0x8] sm:$0xf]
    %v9034 = vld [vmem:[%s11 + $0xc] sm:$0xf]
    %v9035 = vld [vmem:[%s11 + $0x10] sm:$0xf]
    %v9036 = vld [vmem:[%s11 + $0x14] sm:$0xf]
    %v9037 = vld [vmem:[%s11 + $0x18] sm:$0xf]
    %v9038 = vld [vmem:[%s11 + $0x1c] sm:$0xf]
    %v9039 = vld [vmem:[%s11 + $0x20] sm:$0xf]
    %v9040 = vld [vmem:[%s11 + $0x24] sm:$0xf]
    %v9041 = vld [vmem:[%s11 + $0x28] sm:$0xf]
    %v9042 = vld [vmem:[%s11 + $0x2c] sm:$0xf]
    %v9043 = vld [vmem:[%s11 + $0x30] sm:$0xf]
    %v9044 = vld [vmem:[%s11 + $0x34] sm:$0xf]
    %v9045 = vld [vmem:[%s11 + $0x38] sm:$0xf]
    %v9046 = vld [vmem:[%s11 + $0x3c] sm:$0xf]
    %v9047 = vld [vmem:[%s12] sm:$0x1]
    %v9049 = vlaneseq
    %v9050 = vshrl.u32 %v9049, 7
    %v9051 = vsub.s32 0, %v9050
    %v9052 = vrot.slane %v9047, %v9051
    %v9070 = vunpack.c.l.b16 %v9031
    %v9071 = vunpack.c.l.b16 %v9032
    %v9072 = vunpack.c.l.b16 %v9033
    %v9073 = vunpack.c.l.b16 %v9034
    %v9074 = vunpack.c.l.b16 %v9035
    %v9075 = vunpack.c.l.b16 %v9036
    %v9076 = vunpack.c.l.b16 %v9037
    %v9077 = vunpack.c.l.b16 %v9038
    %v9078 = vunpack.c.l.b16 %v9039
    %v9079 = vunpack.c.l.b16 %v9040
    %v9080 = vunpack.c.l.b16 %v9041
    %v9081 = vunpack.c.l.b16 %v9042
    %v9082 = vunpack.c.l.b16 %v9043
    %v9083 = vunpack.c.l.b16 %v9044
    %v9084 = vunpack.c.l.b16 %v9045
    %v9085 = vunpack.c.l.b16 %v9046
    %v9086 = vpack.c.b16 %v9071, %v9070
    %v9087 = vpack.c.b16 %v9073, %v9072
    %v9088 = vpack.c.b16 %v9075, %v9074
    %v9089 = vpack.c.b16 %v9077, %v9076
    %v9090 = vpack.c.b16 %v9079, %v9078
    %v9091 = vpack.c.b16 %v9081, %v9080
    %v9092 = vpack.c.b16 %v9083, %v9082
    %v9093 = vpack.c.b16 %v9085, %v9084
    %9102 = vmatprep.subr.bf16.mxu0 0
    %9103 = vmatpush1.bf16.msra.mxu0 %v9086
    %9104 = vmatprep.subr.bf16.mxu0 0
    %9105 = vmatpush1.bf16.msra.mxu0 %v9087
    %9106 = vmatprep.subr.bf16.mxu0 0
    %9107 = vmatpush1.bf16.msra.mxu0 %v9088
    %9108 = vmatprep.subr.bf16.mxu0 0
    %9109 = vmatpush1.bf16.msra.mxu0 %v9089
    %9110 = vmatprep.subr.bf16.mxu0 0
    %9111 = vmatpush1.bf16.msra.mxu0 %v9090
    %9112 = vmatprep.subr.bf16.mxu0 0
    %9113 = vmatpush1.bf16.msra.mxu0 %v9091
    %9114 = vmatprep.subr.bf16.mxu0 0
    %9115 = vmatpush1.bf16.msra.mxu0 %v9092
    %9116 = vmatprep.subr.bf16.mxu0 0
    %9117 = vmatpush1.bf16.msra.mxu0 %v9093
    %9118 = vmatprep.subr.bf16.mxu0 0
    %9119 = vmatpush1.bf16.msra.mxu0 0
    %9120 = vmatprep.subr.bf16.mxu0 0
    %9121 = vmatpush1.bf16.msra.mxu0 0
    %9122 = vmatprep.subr.bf16.mxu0 0
    %9123 = vmatpush1.bf16.msra.mxu0 0
    %9124 = vmatprep.subr.bf16.mxu0 0
    %9125 = vmatpush1.bf16.msra.mxu0 0
    %9126 = vmatprep.subr.bf16.mxu0 0
    %9127 = vmatpush1.bf16.msra.mxu0 0
    %9128 = vmatprep.subr.bf16.mxu0 0
    %9129 = vmatpush1.bf16.msra.mxu0 0
    %9130 = vmatprep.subr.bf16.mxu0 0
    %9131 = vmatpush1.bf16.msra.mxu0 0
    %9132 = vmatprep.subr.bf16.mxu0 0
    %9133 = vmatpush1.bf16.msra.mxu0 0
    %9134 = vmatprep.mubr.bf16.mxu0 0
    %9135 = vmatmul.mubr.bf16.gmra.mrb[0].mxu0 %v9030
    %v9136 = vpop.f32.mrb[0].mxu0
    %v9137 = vadd.f32 %v9052, %v9136
    %v9138 = vpop.f32.mrb[0].mxu0
    %v9139 = vpop.f32.mrb[0].mxu0
    %v9140 = vpop.f32.mrb[0].mxu0
    %9141 = vdwg.mxu0
    %vm9142 = vcmask 41984
    %9143 = vst.msk [vmem:[#allocation4] sm:$0x3] %vm9142, %v9137
    // Predicated region
    $region54: #{_lambda_.1} parent=1 // pred_check
      _
    $region55: #{_lambda_.1} parent=1 // pred_check_branch
      %9145 = sbr.rel (0) target = $region57
    $region56: #{_lambda_.1} parent=1 // pred_region
      %s9147 = ssub.s32 32, 32
      %9148 = vsyncadd [#allocation5], %s9147
      %s9150 = sshll.u32 [#allocation4], 4
      %s9151 = int_to_ptr.vmem [resolvable:$true] %s9150
      %9153 = dma.vmem_to_hbm [thread:$0]  %s9151, 32, %s13, [#allocation5]
    $region57: #{_lambda_.1} parent=1 // pred_fallthru
      _
    // Predicated region
    $region58: #{_lambda_.1} parent=1 // pred_check
      _
    $region59: #{_lambda_.1} parent=1 // pred_check_branch
      %9155 = sbr.rel (0) target = $region61
    $region60: #{_lambda_.1} parent=1 // pred_region
      %9156 = dma.done [#allocation5], 32
    $region61: #{_lambda_.1} parent=1 // pred_fallthru
      _
    %9157 = vsyncpa [#allocation5], 1

</llo_original>
